<compile_context>
chip_gen: v5e
topology: v5e:2x2
jax: 0.10.0
libtpu: 0.0.40
codegen_flags: <defaults>
</compile_context>

<pallas_src>
import functools

import jax
import jax.numpy as jnp
from jax.experimental import pallas as pl
from jax.experimental.pallas import tpu as pltpu


# ----------------------------------------------------------------------------
# In-kernel helpers
# ----------------------------------------------------------------------------
def _gelu(x):
    """Exact (erf-based) GELU; erf via A&S 7.1.26 (|err| <= 1.5e-7).

    The 1/(1+p|z|) term uses pl.reciprocal so it leaves the VALU issue slots.
    """
    a1, a2, a3, a4, a5 = (0.254829592, -0.284496736, 1.421413741,
                          -1.453152027, 1.061405429)
    p = 0.3275911
    z = x * 0.7071067811865476
    az = jnp.abs(z)
    t = pl.reciprocal(1.0 + p * az, approx=False)
    poly = ((((a5 * t + a4) * t + a3) * t + a2) * t + a1) * t
    e = 1.0 - poly * jnp.exp(-az * az)
    erf = jnp.where(z >= 0, e, -e)
    return 0.5 * x * (1.0 + erf)


# ----------------------------------------------------------------------------
# Fused decoder kernel (one grid step per prompt-batch element)
# ----------------------------------------------------------------------------
def _decoder_kernel(tokens_ref, img_ref, dense_ref, pos_ref, w_ref,
                    masks_ref, iou_ref, *, layout, dim, nt, eps_bn, eps_ln):
    f32 = jnp.float32

    def w(name):                                   # static slice into the slab
        off, r, c = layout[name]
        return w_ref[off:off + r, 0:c]

    # ---- NCHW -> (S, C): in-kernel transposes (XLU slot otherwise idle) -----
    img = jnp.transpose(img_ref[0])                # (S, C)
    dense = jnp.transpose(dense_ref[0])            # (S, C)
    pos = jnp.transpose(pos_ref[0])                # (S, C)
    tokens = tokens_ref[0]                         # (T, C)

    # ---- fused BatchNorm (training statistics) over this image block --------
    bn = w("bn")                                   # rows: [gamma, beta]
    mu_b = jnp.mean(img, axis=0, keepdims=True)
    d_b = img - mu_b
    var_b = jnp.mean(d_b * d_b, axis=0, keepdims=True)
    img = d_b * jax.lax.rsqrt(var_b + eps_bn) * bn[0:1, :] + bn[1:2, :]

    src = img + dense

    # ---- two-way attention stand-in (reference transformer undefined) -------
    ab = w("attn_b")
    q = jnp.dot(tokens, w("wq"), preferred_element_type=f32) + ab[0:1, :]
    k = jnp.dot(src + pos, w("wk"), preferred_element_type=f32) + ab[1:2, :]
    v = jnp.dot(src, w("wv"), preferred_element_type=f32) + ab[2:3, :]
    scores = jax.lax.dot_general(q, k, (((1,), (1,)), ((), ())),
                                 preferred_element_type=f32) * (1.0 / dim ** 0.5)
    m = jnp.max(scores, axis=-1, keepdims=True)
    e = jnp.exp(scores - m)
    attn = e * pl.reciprocal(jnp.sum(e, axis=-1, keepdims=True), approx=True)
    ctx = jnp.dot(attn, v, preferred_element_type=f32)              # (T, C)
    hs = tokens + jnp.dot(ctx, w("wo"), preferred_element_type=f32)
    back = jax.lax.dot_general(attn, hs, (((0,), (0,)), ((), ())),
                               preferred_element_type=f32)          # (S, C)
    src_out = src + jnp.dot(back, w("ws"), preferred_element_type=f32)

    # ---- output_upscaling: ConvT(2,2) -> LayerNorm2d -> GELU -> ConvT -> GELU
    # Packed channels-last layout; both ConvTranspose2d(k=2,s=2) are matmuls.
    uvec = w("up1_vec")                            # rows: [bias, ln_g, ln_b]
    y1 = jnp.dot(src_out, w("w1p"), preferred_element_type=f32) + uvec[0:1, :]
    c1 = y1.shape[1]
    # One-pass LayerNorm2d stats: [y1 | y1^2] @ blockdiag(gmean, gmean).
    stats = jnp.dot(jnp.concatenate([y1, y1 * y1], axis=1), w("gmean2"),
                    preferred_element_type=f32)
    mu1 = stats[:, :c1]
    var1 = jnp.maximum(stats[:, c1:] - mu1 * mu1, 0.0)
    y1 = (y1 - mu1) * jax.lax.rsqrt(var1 + eps_ln) * uvec[1:2, :] + uvec[2:3, :]
    y1 = _gelu(y1)
    u = _gelu(jnp.dot(y1, w("w2p"), preferred_element_type=f32) + w("b2p"))

    # ---- all hypernetwork MLPs in 3 block-diagonal matmuls ------------------
    g = hs[1:1 + nt, :]                                             # (nt, C)
    x_bd = jnp.dot(g, w("rep"), preferred_element_type=f32) * w("bd_mask")
    h1 = jnp.maximum(jnp.dot(x_bd, w("hyp_w1"), preferred_element_type=f32)
                     + w("hyp_b1"), 0.0)
    h2 = jnp.maximum(jnp.dot(h1, w("hyp_w2"), preferred_element_type=f32)
                     + w("hyp_b2"), 0.0)
    hmat = jnp.dot(h2, w("hyp_w3"), preferred_element_type=f32) + w("hyp_b3")

    # ---- masks = u @ kron(H^T, I16): one MXU pass + one dense store ---------
    tmp = jax.lax.dot_general(w("kexp"), hmat, (((1,), (1,)), ((), ())),
                              preferred_element_type=f32)           # (16*co2, nt)
    wk = jnp.dot(tmp, w("kexpT"), preferred_element_type=f32) * w("kmask")
    masks_ref[0] = jnp.dot(u, wk, preferred_element_type=f32)       # (S, 16*nt)

    # ---- IoU prediction head -------------------------------------------------
    it = hs[0:1, :]
    it = jnp.maximum(jnp.dot(it, w("iw1"), preferred_element_type=f32)
                     + w("ib1"), 0.0)
    it = jnp.maximum(jnp.dot(it, w("iw2"), preferred_element_type=f32)
                     + w("ib2"), 0.0)
    iou_ref[0] = jnp.dot(it, w("iw3"), preferred_element_type=f32) + w("ib3")


# ----------------------------------------------------------------------------
# One-time weight packing (outside jit): everything into a single (R,128) slab
# ----------------------------------------------------------------------------
def _block_diag(mats):
    rs = sum(m.shape[0] for m in mats)
    cs = sum(m.shape[1] for m in mats)
    out = jnp.zeros((rs, cs), jnp.float32)
    r = c = 0
    for m in mats:
        out = out.at[r:r + m.shape[0], c:c + m.shape[1]].set(m)
        r += m.shape[0]
        c += m.shape[1]
    return out


def _pack_weights(params):
    f32 = jnp.float32
    C = params["iou_token"].shape[-1]
    nt = params["mask_tokens"].shape[0]
    co1, co2 = C // 4, C // 8
    lanes = 128
    assert nt * C <= lanes and 16 * co2 <= lanes and 4 * co1 <= lanes

    rows, layout = [], {}
    cursor = 0

    def add(name, a):
        nonlocal cursor
        a = jnp.asarray(a, f32)
        if a.ndim == 1:
            a = a.reshape(1, -1)
        r, c = a.shape
        assert c <= lanes, (name, a.shape)
        rp = r + ((-r) % 8)                       # keep every block 8-row aligned
        buf = jnp.zeros((rp, lanes), f32).at[:r, :c].set(a)
        layout[name] = (cursor, r, c)
        rows.append(buf)
        cursor += rp

    add("bn", jnp.stack([params["bn_gamma"], params["bn_beta"]], axis=0))

    tr = params["transformer"]
    for n in ("wq", "wk", "wv", "wo", "ws"):
        add(n, tr[n])
    add("attn_b", jnp.stack([tr["bq"], tr["bk"], tr["bv"]], axis=0))

    # ConvT1 (k=2,s=2) as a matmul; y1 columns = [sub1(4) outer, c1(co1) inner].
    add("w1p", jnp.transpose(params["up1_w"], (0, 2, 3, 1)).reshape(C, 4 * co1))
    add("up1_vec", jnp.stack([jnp.tile(params["up1_b"], 4),
                              jnp.tile(params["ln_g"], 4),
                              jnp.tile(params["ln_b"], 4)], axis=0))
    gid = jnp.arange(4 * co1) // co1
    gmean = (gid[:, None] == gid[None, :]).astype(f32) / co1
    add("gmean2", _block_diag([gmean, gmean]))
    # ConvT2 as block-diagonal matmul; u columns = [c2(co2), sub1(4), sub2(4)].
    a2 = params["up2_w"].reshape(co1, co2, 4)
    add("w2p", jnp.einsum("ab,cds->acdbs", jnp.eye(4, dtype=f32), a2
                          ).reshape(4 * co1, 16 * co2))
    add("b2p", jnp.repeat(params["up2_b"], 16).reshape(1, 16 * co2))

    # Hypernetwork MLPs packed block-diagonally (3 matmuls for all mask tokens).
    hyper = params["hyper"]
    add("rep", (jnp.arange(nt * C)[None, :] % C
                == jnp.arange(C)[:, None]).astype(f32))            # (C, nt*C)
    add("bd_mask", (jnp.arange(nt * C)[None, :] // C
                    == jnp.arange(nt)[:, None]).astype(f32))       # (nt, nt*C)
    add("hyp_w1", _block_diag([h["ws"][0] for h in hyper]))
    add("hyp_w2", _block_diag([h["ws"][1] for h in hyper]))
    add("hyp_w3", jnp.concatenate([h["ws"][2] for h in hyper], axis=0))
    b1 = jnp.zeros((nt, nt * C), f32)
    b2 = jnp.zeros((nt, nt * C), f32)
    for t in range(nt):
        b1 = b1.at[t, t * C:(t + 1) * C].set(hyper[t]["bs"][0])
        b2 = b2.at[t, t * C:(t + 1) * C].set(hyper[t]["bs"][1])
    add("hyp_b1", b1)
    add("hyp_b2", b2)
    add("hyp_b3", jnp.stack([h["bs"][2] for h in hyper], axis=0))

    # Constants for masks = u @ kron(H^T, I16), built from two tiny matmuls.
    add("kexp", (jnp.arange(16 * co2)[:, None] // 16
                 == jnp.arange(co2)[None, :]).astype(f32))
    add("kexpT", (jnp.arange(nt)[:, None]
                  == jnp.arange(16 * nt)[None, :] // 16).astype(f32))
    add("kmask", (jnp.arange(16 * co2)[:, None] % 16
                  == jnp.arange(16 * nt)[None, :] % 16).astype(f32))

    iw, ib = params["iou"]["ws"], params["iou"]["bs"]
    for i in range(3):
        assert iw[i].shape[1] <= lanes
        add(f"iw{i + 1}", iw[i])
        add(f"ib{i + 1}", ib[i])

    slab = jnp.concatenate(rows, axis=0)
    out_tok = jnp.concatenate([params["iou_token"], params["mask_tokens"]],
                              axis=0).astype(f32)
    return slab, out_tok, layout, dict(dim=C, nt=nt)


# ----------------------------------------------------------------------------
# Forward builder (packing hoisted out of the jitted forward)
# ----------------------------------------------------------------------------
def build_mask_decoder(params):
    slab_, out_tok_, layout, meta = _pack_weights(params)
    C, nt = meta["dim"], meta["nt"]

    @functools.partial(jax.jit, static_argnames=("multimask_output",))
    def forward(slab, out_tok, image_embeddings, image_pe,
                sparse_prompt_embeddings, dense_prompt_embeddings,
                multimask_output):
        f32 = jnp.float32
        Ni, _, H, W = image_embeddings.shape
        B = sparse_prompt_embeddings.shape[0]
        S = H * W
        T = out_tok.shape[0] + sparse_prompt_embeddings.shape[1]

        img_cs = image_embeddings.reshape(Ni, C, S).astype(f32)
        pos_cs = image_pe.reshape(image_pe.shape[0], C, S).astype(f32)
        dense_cs = dense_prompt_embeddings.reshape(B, C, S).astype(f32)
        tokens = jnp.concatenate(
            [jnp.broadcast_to(out_tok[None], (B,) + out_tok.shape),
             sparse_prompt_embeddings.astype(f32)], axis=1)

        img_map = (lambda b: (b, 0, 0)) if Ni == B else (lambda b: (0, 0, 0))

        kernel = functools.partial(_decoder_kernel, layout=layout, dim=C,
                                   nt=nt, eps_bn=1e-5, eps_ln=1e-6)
        masks_p, iou_p = pl.pallas_call(
            kernel,
            grid=(B,),
            out_shape=(jax.ShapeDtypeStruct((B, S, 16 * nt), f32),
                       jax.ShapeDtypeStruct((B, 1, nt), f32)),
            in_specs=[pl.BlockSpec((1, T, C), lambda b: (b, 0, 0)),
                      pl.BlockSpec((1, C, S), img_map),
                      pl.BlockSpec((1, C, S), lambda b: (b, 0, 0)),
                      pl.BlockSpec((1, C, S), lambda b: (0, 0, 0)),
                      pl.BlockSpec(slab.shape, lambda b: (0, 0))],
            out_specs=(pl.BlockSpec((1, S, 16 * nt), lambda b: (b, 0, 0)),
                       pl.BlockSpec((1, 1, nt), lambda b: (b, 0, 0))),
            compiler_params=pltpu.CompilerParams(
                dimension_semantics=("parallel",)),
        )(tokens, img_cs, dense_cs, pos_cs, slab)

        # Un-interleave packed mask columns [token, di, dj, ei, ej] ->
        # (B, num_mask_tokens, 4H, 4W) row-major image.
        masks = masks_p.reshape(B, H, W, nt, 2, 2, 2, 2)
        masks = jnp.transpose(masks, (0, 3, 1, 4, 6, 2, 5, 7)
                              ).reshape(B, nt, 4 * H, 4 * W)
        iou_pred = iou_p.reshape(B, nt)
        if multimask_output:
            return masks[:, 1:], iou_pred[:, 1:]
        return masks[:, 0:1], iou_pred[:, 0:1]

    return forward, slab_, out_tok_


# ----------------------------------------------------------------------------
# Deterministic parameter construction
# ----------------------------------------------------------------------------
def make_params(key, transformer_dim=32, num_multimask_outputs=3,
                iou_head_hidden_dim=64, iou_head_depth=3):
    C = transformer_dim
    num_mask_tokens = num_multimask_outputs + 1
    keys = iter(jax.random.split(key, 64))

    def nrm(shape, scale=0.05):
        return (jax.random.normal(next(keys), shape) * scale).astype(jnp.float32)

    params = {
        "bn_gamma": jnp.ones((C,), jnp.float32),
        "bn_beta": jnp.zeros((C,), jnp.float32),
        "iou_token": nrm((1, C), 1.0),
        "mask_tokens": nrm((num_mask_tokens, C), 1.0),
        "transformer": {
            "wq": nrm((C, C)), "bq": nrm((C,)),
            "wk": nrm((C, C)), "bk": nrm((C,)),
            "wv": nrm((C, C)), "bv": nrm((C,)),
            "wo": nrm((C, C)), "ws": nrm((C, C)),
        },
        "up1_w": nrm((C, C // 4, 2, 2)), "up1_b": nrm((C // 4,)),
        "ln_g": jnp.ones((C // 4,), jnp.float32),
        "ln_b": jnp.zeros((C // 4,), jnp.float32),
        "up2_w": nrm((C // 4, C // 8, 2, 2)), "up2_b": nrm((C // 8,)),
    }
    hyper = []
    for _ in range(num_mask_tokens):
        hyper.append({
            "ws": [nrm((C, C)), nrm((C, C)), nrm((C, C // 8))],
            "bs": [nrm((C,)), nrm((C,)), nrm((C // 8,))],
        })
    params["hyper"] = hyper
    dims = [C] + [iou_head_hidden_dim] * (iou_head_depth - 1) + [num_mask_tokens]
    params["iou"] = {
        "ws": [nrm((dims[i], dims[i + 1])) for i in range(iou_head_depth)],
        "bs": [nrm((dims[i + 1],)) for i in range(iou_head_depth)],
    }
    return params


# ----------------------------------------------------------------------------
if __name__ == "__main__":
    key = jax.random.PRNGKey(0)
    kp, k1, k2, k3, k4 = jax.random.split(key, 5)

    C, H, W = 32, 16, 16          # transformer_dim, image-embedding spatial size
    B_PROMPT, N_SPARSE = 2, 7     # prompt batch, sparse tokens per prompt

    params = make_params(kp, transformer_dim=C)

    image_embeddings = jax.random.normal(k1, (1, C, H, W), jnp.float32)
    image_pe = jax.random.normal(k2, (1, C, H, W), jnp.float32)
    sparse_prompt_embeddings = jax.random.normal(k3, (B_PROMPT, N_SPARSE, C),
                                                 jnp.float32)
    dense_prompt_embeddings = jax.random.normal(k4, (B_PROMPT, C, H, W),
                                                jnp.float32)

    forward, slab, out_tok = build_mask_decoder(params)
    masks, iou_pred = forward(slab, out_tok, image_embeddings, image_pe,
                              sparse_prompt_embeddings, dense_prompt_embeddings,
                              multimask_output=True)

    jax.block_until_ready((masks, iou_pred))
    assert masks.shape == (B_PROMPT, 3, 4 * H, 4 * W), masks.shape
    assert iou_pred.shape == (B_PROMPT, 3), iou_pred.shape
    assert bool(jnp.all(jnp.isfinite(masks))) and bool(jnp.all(jnp.isfinite(iou_pred)))
    print("KERNEL_OK")
</pallas_src>

<mosaic_0001>
module attributes {stable_mosaic.version = 11 : i64} {
  func.func @_decoder_kernel(%arg0: i32, %arg1: memref<1x12x32xf32, #tpu.memory_space<vmem>>, %arg2: memref<1x32x256xf32, #tpu.memory_space<vmem>>, %arg3: memref<1x32x256xf32, #tpu.memory_space<vmem>>, %arg4: memref<1x32x256xf32, #tpu.memory_space<vmem>>, %arg5: memref<1088x128xf32, #tpu.memory_space<vmem>>, %arg6: memref<1x256x64xf32, #tpu.memory_space<vmem>>, %arg7: memref<1x1x4xf32, #tpu.memory_space<vmem>>) attributes {dimension_semantics = [#tpu.dimension_semantics<parallel>], iteration_bounds = array<i64: 2>, scalar_prefetch = 0 : i64, scratch_operands = 0 : i64, tpu.core_type = #tpu.core_type<tc>, window_params = [{transform_indices = @transform_0, window_bounds = array<i64: 1, 12, 32>}, {pipeline_mode = #tpu.pipeline_mode<synchronous>, transform_indices = @transform_1, window_bounds = array<i64: 1, 32, 256>}, {transform_indices = @transform_2, window_bounds = array<i64: 1, 32, 256>}, {pipeline_mode = #tpu.pipeline_mode<synchronous>, transform_indices = @transform_3, window_bounds = array<i64: 1, 32, 256>}, {pipeline_mode = #tpu.pipeline_mode<synchronous>, transform_indices = @transform_4, window_bounds = array<i64: 1088, 128>}, {transform_indices = @transform_5, window_bounds = array<i64: 1, 256, 64>}, {transform_indices = @transform_6, window_bounds = array<i64: 1, 1, 4>}]} {
    %c0 = arith.constant 0 : index
    %c0_0 = arith.constant 0 : index
    %c0_1 = arith.constant 0 : index
    %0 = vector.load %arg2[%c0, %c0_0, %c0_1] : memref<1x32x256xf32, #tpu.memory_space<vmem>>, vector<1x32x256xf32>
    %1 = vector.shape_cast %0 : vector<1x32x256xf32> to vector<32x256xf32>
    %2 = tpu.transpose %1, [1, 0] : vector<32x256xf32> -> vector<256x32xf32>
    %c0_2 = arith.constant 0 : index
    %c0_3 = arith.constant 0 : index
    %c0_4 = arith.constant 0 : index
    %3 = vector.load %arg3[%c0_2, %c0_3, %c0_4] : memref<1x32x256xf32, #tpu.memory_space<vmem>>, vector<1x32x256xf32>
    %4 = vector.shape_cast %3 : vector<1x32x256xf32> to vector<32x256xf32>
    %5 = tpu.transpose %4, [1, 0] : vector<32x256xf32> -> vector<256x32xf32>
    %c0_5 = arith.constant 0 : index
    %c0_6 = arith.constant 0 : index
    %c0_7 = arith.constant 0 : index
    %6 = vector.load %arg4[%c0_5, %c0_6, %c0_7] : memref<1x32x256xf32, #tpu.memory_space<vmem>>, vector<1x32x256xf32>
    %7 = vector.shape_cast %6 : vector<1x32x256xf32> to vector<32x256xf32>
    %8 = tpu.transpose %7, [1, 0] : vector<32x256xf32> -> vector<256x32xf32>
    %c0_8 = arith.constant 0 : index
    %c0_9 = arith.constant 0 : index
    %c0_10 = arith.constant 0 : index
    %9 = vector.load %arg1[%c0_8, %c0_9, %c0_10] : memref<1x12x32xf32, #tpu.memory_space<vmem>>, vector<1x12x32xf32>
    %10 = vector.shape_cast %9 : vector<1x12x32xf32> to vector<12x32xf32>
    %c0_11 = arith.constant 0 : index
    %c0_12 = arith.constant 0 : index
    %11 = vector.load %arg5[%c0_11, %c0_12] : memref<1088x128xf32, #tpu.memory_space<vmem>>, vector<2x32xf32>
    %cst = arith.constant dense<0.000000e+00> : vector<32xf32>
    %12 = vector.multi_reduction <add>, %2, %cst [0] : vector<256x32xf32> to vector<32xf32>
    %13 = vector.shape_cast %12 : vector<32xf32> to vector<1x32xf32>
    %cst_13 = arith.constant 2.560000e+02 : f32
    %14 = vector.broadcast %cst_13 : f32 to vector<1x32xf32>
    %15 = arith.divf %13, %14 : vector<1x32xf32>
    %16 = vector.broadcast %15 : vector<1x32xf32> to vector<256x32xf32>
    %17 = arith.subf %2, %16 : vector<256x32xf32>
    %18 = arith.mulf %17, %17 : vector<256x32xf32>
    %cst_14 = arith.constant dense<0.000000e+00> : vector<32xf32>
    %19 = vector.multi_reduction <add>, %18, %cst_14 [0] : vector<256x32xf32> to vector<32xf32>
    %20 = vector.shape_cast %19 : vector<32xf32> to vector<1x32xf32>
    %cst_15 = arith.constant 2.560000e+02 : f32
    %21 = vector.broadcast %cst_15 : f32 to vector<1x32xf32>
    %22 = arith.divf %20, %21 : vector<1x32xf32>
    %cst_16 = arith.constant 9.99999974E-6 : f32
    %23 = vector.broadcast %cst_16 : f32 to vector<1x32xf32>
    %24 = arith.addf %22, %23 : vector<1x32xf32>
    %25 = math.rsqrt %24 : vector<1x32xf32>
    %26 = vector.broadcast %25 : vector<1x32xf32> to vector<256x32xf32>
    %27 = arith.mulf %17, %26 : vector<256x32xf32>
    %28 = vector.extract_strided_slice %11 {offsets = [0, 0], sizes = [1, 32], strides = [1, 1]} : vector<2x32xf32> to vector<1x32xf32>
    %29 = vector.broadcast %28 : vector<1x32xf32> to vector<256x32xf32>
    %30 = arith.mulf %27, %29 : vector<256x32xf32>
    %31 = vector.extract_strided_slice %11 {offsets = [1, 0], sizes = [1, 32], strides = [1, 1]} : vector<2x32xf32> to vector<1x32xf32>
    %32 = vector.broadcast %31 : vector<1x32xf32> to vector<256x32xf32>
    %33 = arith.addf %30, %32 : vector<256x32xf32>
    %34 = arith.addf %33, %5 : vector<256x32xf32>
    %c168 = arith.constant 168 : index
    %c0_17 = arith.constant 0 : index
    %35 = vector.load %arg5[%c168, %c0_17] : memref<1088x128xf32, #tpu.memory_space<vmem>>, vector<3x32xf32>
    %c8 = arith.constant 8 : index
    %c0_18 = arith.constant 0 : index
    %36 = vector.load %arg5[%c8, %c0_18] : memref<1088x128xf32, #tpu.memory_space<vmem>>, vector<32x32xf32>
    %cst_19 = arith.constant dense<0.000000e+00> : vector<12x32xf32>
    %37 = tpu.matmul %10, %36, %cst_19 {dimension_numbers = #tpu.dot_dimension_numbers<[1], [0], [0], [1], [0, 0, 1, 1], [], []>} : vector<12x32xf32>, vector<32x32xf32>, vector<12x32xf32> -> vector<12x32xf32>
    %38 = vector.extract_strided_slice %35 {offsets = [0, 0], sizes = [1, 32], strides = [1, 1]} : vector<3x32xf32> to vector<1x32xf32>
    %39 = vector.broadcast %38 : vector<1x32xf32> to vector<12x32xf32>
    %40 = arith.addf %37, %39 : vector<12x32xf32>
    %41 = arith.addf %34, %8 : vector<256x32xf32>
    %c40 = arith.constant 40 : index
    %c0_20 = arith.constant 0 : index
    %42 = vector.load %arg5[%c40, %c0_20] : memref<1088x128xf32, #tpu.memory_space<vmem>>, vector<32x32xf32>
    %cst_21 = arith.constant dense<0.000000e+00> : vector<256x32xf32>
    %43 = tpu.matmul %41, %42, %cst_21 {dimension_numbers = #tpu.dot_dimension_numbers<[1], [0], [0], [1], [0, 0, 1, 1], [], []>} : vector<256x32xf32>, vector<32x32xf32>, vector<256x32xf32> -> vector<256x32xf32>
    %44 = vector.extract_strided_slice %35 {offsets = [1, 0], sizes = [1, 32], strides = [1, 1]} : vector<3x32xf32> to vector<1x32xf32>
    %45 = vector.broadcast %44 : vector<1x32xf32> to vector<256x32xf32>
    %46 = arith.addf %43, %45 : vector<256x32xf32>
    %c72 = arith.constant 72 : index
    %c0_22 = arith.constant 0 : index
    %47 = vector.load %arg5[%c72, %c0_22] : memref<1088x128xf32, #tpu.memory_space<vmem>>, vector<32x32xf32>
    %cst_23 = arith.constant dense<0.000000e+00> : vector<256x32xf32>
    %48 = tpu.matmul %34, %47, %cst_23 {dimension_numbers = #tpu.dot_dimension_numbers<[1], [0], [0], [1], [0, 0, 1, 1], [], []>} : vector<256x32xf32>, vector<32x32xf32>, vector<256x32xf32> -> vector<256x32xf32>
    %49 = vector.extract_strided_slice %35 {offsets = [2, 0], sizes = [1, 32], strides = [1, 1]} : vector<3x32xf32> to vector<1x32xf32>
    %50 = vector.broadcast %49 : vector<1x32xf32> to vector<256x32xf32>
    %51 = arith.addf %48, %50 : vector<256x32xf32>
    %cst_24 = arith.constant dense<0.000000e+00> : vector<12x256xf32>
    %52 = tpu.matmul %40, %46, %cst_24 {dimension_numbers = #tpu.dot_dimension_numbers<[1], [1], [0], [0], [0, 0, 1, 0], [], []>} : vector<12x32xf32>, vector<256x32xf32>, vector<12x256xf32> -> vector<12x256xf32>
    %cst_25 = arith.constant 0.176776692 : f32
    %53 = vector.broadcast %cst_25 : f32 to vector<12x256xf32>
    %54 = arith.mulf %52, %53 : vector<12x256xf32>
    %cst_26 = arith.constant dense<0xFF800000> : vector<12xf32>
    %55 = vector.multi_reduction <maximumf>, %54, %cst_26 [1] : vector<12x256xf32> to vector<12xf32>
    %56 = vector.shape_cast %55 : vector<12xf32> to vector<12x1xf32>
    %57 = vector.broadcast %56 : vector<12x1xf32> to vector<12x256xf32>
    %58 = arith.subf %54, %57 : vector<12x256xf32>
    %59 = math.exp %58 : vector<12x256xf32>
    %cst_27 = arith.constant dense<0.000000e+00> : vector<12xf32>
    %60 = vector.multi_reduction <add>, %59, %cst_27 [1] : vector<12x256xf32> to vector<12xf32>
    %61 = vector.shape_cast %60 : vector<12xf32> to vector<12x1xf32>
    %62 = tpu.reciprocal %61 {approx = true} : vector<12x1xf32> -> vector<12x1xf32>
    %63 = vector.broadcast %62 : vector<12x1xf32> to vector<12x256xf32>
    %64 = arith.mulf %59, %63 : vector<12x256xf32>
    %cst_28 = arith.constant dense<0.000000e+00> : vector<12x32xf32>
    %65 = tpu.matmul %64, %51, %cst_28 {dimension_numbers = #tpu.dot_dimension_numbers<[1], [0], [0], [1], [0, 0, 1, 1], [], []>} : vector<12x256xf32>, vector<256x32xf32>, vector<12x32xf32> -> vector<12x32xf32>
    %c104 = arith.constant 104 : index
    %c0_29 = arith.constant 0 : index
    %66 = vector.load %arg5[%c104, %c0_29] : memref<1088x128xf32, #tpu.memory_space<vmem>>, vector<32x32xf32>
    %cst_30 = arith.constant dense<0.000000e+00> : vector<12x32xf32>
    %67 = tpu.matmul %65, %66, %cst_30 {dimension_numbers = #tpu.dot_dimension_numbers<[1], [0], [0], [1], [0, 0, 1, 1], [], []>} : vector<12x32xf32>, vector<32x32xf32>, vector<12x32xf32> -> vector<12x32xf32>
    %68 = arith.addf %10, %67 : vector<12x32xf32>
    %cst_31 = arith.constant dense<0.000000e+00> : vector<256x32xf32>
    %69 = tpu.matmul %64, %68, %cst_31 {dimension_numbers = #tpu.dot_dimension_numbers<[0], [0], [1], [1], [0, 1, 1, 1], [], []>} : vector<12x256xf32>, vector<12x32xf32>, vector<256x32xf32> -> vector<256x32xf32>
    %c136 = arith.constant 136 : index
    %c0_32 = arith.constant 0 : index
    %70 = vector.load %arg5[%c136, %c0_32] : memref<1088x128xf32, #tpu.memory_space<vmem>>, vector<32x32xf32>
    %cst_33 = arith.constant dense<0.000000e+00> : vector<256x32xf32>
    %71 = tpu.matmul %69, %70, %cst_33 {dimension_numbers = #tpu.dot_dimension_numbers<[1], [0], [0], [1], [0, 0, 1, 1], [], []>} : vector<256x32xf32>, vector<32x32xf32>, vector<256x32xf32> -> vector<256x32xf32>
    %72 = arith.addf %34, %71 : vector<256x32xf32>
    %c208 = arith.constant 208 : index
    %c0_34 = arith.constant 0 : index
    %73 = vector.load %arg5[%c208, %c0_34] : memref<1088x128xf32, #tpu.memory_space<vmem>>, vector<3x32xf32>
    %c176 = arith.constant 176 : index
    %c0_35 = arith.constant 0 : index
    %74 = vector.load %arg5[%c176, %c0_35] : memref<1088x128xf32, #tpu.memory_space<vmem>>, vector<32x32xf32>
    %cst_36 = arith.constant dense<0.000000e+00> : vector<256x32xf32>
    %75 = tpu.matmul %72, %74, %cst_36 {dimension_numbers = #tpu.dot_dimension_numbers<[1], [0], [0], [1], [0, 0, 1, 1], [], []>} : vector<256x32xf32>, vector<32x32xf32>, vector<256x32xf32> -> vector<256x32xf32>
    %76 = vector.extract_strided_slice %73 {offsets = [0, 0], sizes = [1, 32], strides = [1, 1]} : vector<3x32xf32> to vector<1x32xf32>
    %77 = vector.broadcast %76 : vector<1x32xf32> to vector<256x32xf32>
    %78 = arith.addf %75, %77 : vector<256x32xf32>
    %79 = arith.mulf %78, %78 : vector<256x32xf32>
    %80 = tpu.concatenate %78, %79 in 1 : vector<256x32xf32>, vector<256x32xf32> -> vector<256x64xf32>
    %c216 = arith.constant 216 : index
    %c0_37 = arith.constant 0 : index
    %81 = vector.load %arg5[%c216, %c0_37] : memref<1088x128xf32, #tpu.memory_space<vmem>>, vector<64x64xf32>
    %cst_38 = arith.constant dense<0.000000e+00> : vector<256x64xf32>
    %82 = tpu.matmul %80, %81, %cst_38 {dimension_numbers = #tpu.dot_dimension_numbers<[1], [0], [0], [1], [0, 0, 1, 1], [], []>} : vector<256x64xf32>, vector<64x64xf32>, vector<256x64xf32> -> vector<256x64xf32>
    %83 = vector.extract_strided_slice %82 {offsets = [0, 0], sizes = [256, 32], strides = [1, 1]} : vector<256x64xf32> to vector<256x32xf32>
    %84 = vector.extract_strided_slice %82 {offsets = [0, 32], sizes = [256, 32], strides = [1, 1]} : vector<256x64xf32> to vector<256x32xf32>
    %85 = arith.mulf %83, %83 : vector<256x32xf32>
    %86 = arith.subf %84, %85 : vector<256x32xf32>
    %cst_39 = arith.constant 0.000000e+00 : f32
    %87 = vector.broadcast %cst_39 : f32 to vector<256x32xf32>
    %88 = arith.maximumf %86, %87 : vector<256x32xf32>
    %89 = arith.subf %78, %83 : vector<256x32xf32>
    %cst_40 = arith.constant 9.99999997E-7 : f32
    %90 = vector.broadcast %cst_40 : f32 to vector<256x32xf32>
    %91 = arith.addf %88, %90 : vector<256x32xf32>
    %92 = math.rsqrt %91 : vector<256x32xf32>
    %93 = arith.mulf %89, %92 : vector<256x32xf32>
    %94 = vector.extract_strided_slice %73 {offsets = [1, 0], sizes = [1, 32], strides = [1, 1]} : vector<3x32xf32> to vector<1x32xf32>
    %95 = vector.broadcast %94 : vector<1x32xf32> to vector<256x32xf32>
    %96 = arith.mulf %93, %95 : vector<256x32xf32>
    %97 = vector.extract_strided_slice %73 {offsets = [2, 0], sizes = [1, 32], strides = [1, 1]} : vector<3x32xf32> to vector<1x32xf32>
    %98 = vector.broadcast %97 : vector<1x32xf32> to vector<256x32xf32>
    %99 = arith.addf %96, %98 : vector<256x32xf32>
    %cst_41 = arith.constant 0.707106769 : f32
    %100 = vector.broadcast %cst_41 : f32 to vector<256x32xf32>
    %101 = arith.mulf %99, %100 : vector<256x32xf32>
    %102 = math.absf %101 : vector<256x32xf32>
    %cst_42 = arith.constant 0.327591091 : f32
    %103 = vector.broadcast %cst_42 : f32 to vector<256x32xf32>
    %104 = arith.mulf %103, %102 : vector<256x32xf32>
    %cst_43 = arith.constant 1.000000e+00 : f32
    %105 = vector.broadcast %cst_43 : f32 to vector<256x32xf32>
    %106 = arith.addf %105, %104 : vector<256x32xf32>
    %107 = tpu.reciprocal %106 : vector<256x32xf32> -> vector<256x32xf32>
    %cst_44 = arith.constant 1.06140542 : f32
    %108 = vector.broadcast %cst_44 : f32 to vector<256x32xf32>
    %109 = arith.mulf %108, %107 : vector<256x32xf32>
    %cst_45 = arith.constant -1.45315206 : f32
    %110 = vector.broadcast %cst_45 : f32 to vector<256x32xf32>
    %111 = arith.addf %109, %110 : vector<256x32xf32>
    %112 = arith.mulf %111, %107 : vector<256x32xf32>
    %cst_46 = arith.constant 1.42141378 : f32
    %113 = vector.broadcast %cst_46 : f32 to vector<256x32xf32>
    %114 = arith.addf %112, %113 : vector<256x32xf32>
    %115 = arith.mulf %114, %107 : vector<256x32xf32>
    %cst_47 = arith.constant -0.284496725 : f32
    %116 = vector.broadcast %cst_47 : f32 to vector<256x32xf32>
    %117 = arith.addf %115, %116 : vector<256x32xf32>
    %118 = arith.mulf %117, %107 : vector<256x32xf32>
    %cst_48 = arith.constant 0.254829586 : f32
    %119 = vector.broadcast %cst_48 : f32 to vector<256x32xf32>
    %120 = arith.addf %118, %119 : vector<256x32xf32>
    %121 = arith.mulf %120, %107 : vector<256x32xf32>
    %cst_49 = arith.constant 0.000000e+00 : f32
    %122 = vector.broadcast %cst_49 : f32 to vector<256x32xf32>
    %123 = arith.subf %122, %102 : vector<256x32xf32>
    %124 = arith.mulf %123, %102 : vector<256x32xf32>
    %125 = math.exp %124 : vector<256x32xf32>
    %126 = arith.mulf %121, %125 : vector<256x32xf32>
    %cst_50 = arith.constant 1.000000e+00 : f32
    %127 = vector.broadcast %cst_50 : f32 to vector<256x32xf32>
    %128 = arith.subf %127, %126 : vector<256x32xf32>
    %cst_51 = arith.constant 0.000000e+00 : f32
    %129 = vector.broadcast %cst_51 : f32 to vector<256x32xf32>
    %130 = arith.cmpf oge, %101, %129 : vector<256x32xf32>
    %cst_52 = arith.constant 0.000000e+00 : f32
    %131 = vector.broadcast %cst_52 : f32 to vector<256x32xf32>
    %132 = arith.subf %131, %128 : vector<256x32xf32>
    %133 = arith.select %130, %128, %132 : vector<256x32xi1>, vector<256x32xf32>
    %cst_53 = arith.constant 5.000000e-01 : f32
    %134 = vector.broadcast %cst_53 : f32 to vector<256x32xf32>
    %135 = arith.mulf %134, %99 : vector<256x32xf32>
    %cst_54 = arith.constant 1.000000e+00 : f32
    %136 = vector.broadcast %cst_54 : f32 to vector<256x32xf32>
    %137 = arith.addf %136, %133 : vector<256x32xf32>
    %138 = arith.mulf %135, %137 : vector<256x32xf32>
    %c280 = arith.constant 280 : index
    %c0_55 = arith.constant 0 : index
    %139 = vector.load %arg5[%c280, %c0_55] : memref<1088x128xf32, #tpu.memory_space<vmem>>, vector<32x64xf32>
    %cst_56 = arith.constant dense<0.000000e+00> : vector<256x64xf32>
    %140 = tpu.matmul %138, %139, %cst_56 {dimension_numbers = #tpu.dot_dimension_numbers<[1], [0], [0], [1], [0, 0, 1, 1], [], []>} : vector<256x32xf32>, vector<32x64xf32>, vector<256x64xf32> -> vector<256x64xf32>
    %c312 = arith.constant 312 : index
    %c0_57 = arith.constant 0 : index
    %141 = vector.load %arg5[%c312, %c0_57] : memref<1088x128xf32, #tpu.memory_space<vmem>>, vector<1x64xf32>
    %142 = vector.broadcast %141 : vector<1x64xf32> to vector<256x64xf32>
    %143 = arith.addf %140, %142 : vector<256x64xf32>
    %cst_58 = arith.constant 0.707106769 : f32
    %144 = vector.broadcast %cst_58 : f32 to vector<256x64xf32>
    %145 = arith.mulf %143, %144 : vector<256x64xf32>
    %146 = math.absf %145 : vector<256x64xf32>
    %cst_59 = arith.constant 0.327591091 : f32
    %147 = vector.broadcast %cst_59 : f32 to vector<256x64xf32>
    %148 = arith.mulf %147, %146 : vector<256x64xf32>
    %cst_60 = arith.constant 1.000000e+00 : f32
    %149 = vector.broadcast %cst_60 : f32 to vector<256x64xf32>
    %150 = arith.addf %149, %148 : vector<256x64xf32>
    %151 = tpu.reciprocal %150 : vector<256x64xf32> -> vector<256x64xf32>
    %cst_61 = arith.constant 1.06140542 : f32
    %152 = vector.broadcast %cst_61 : f32 to vector<256x64xf32>
    %153 = arith.mulf %152, %151 : vector<256x64xf32>
    %cst_62 = arith.constant -1.45315206 : f32
    %154 = vector.broadcast %cst_62 : f32 to vector<256x64xf32>
    %155 = arith.addf %153, %154 : vector<256x64xf32>
    %156 = arith.mulf %155, %151 : vector<256x64xf32>
    %cst_63 = arith.constant 1.42141378 : f32
    %157 = vector.broadcast %cst_63 : f32 to vector<256x64xf32>
    %158 = arith.addf %156, %157 : vector<256x64xf32>
    %159 = arith.mulf %158, %151 : vector<256x64xf32>
    %cst_64 = arith.constant -0.284496725 : f32
    %160 = vector.broadcast %cst_64 : f32 to vector<256x64xf32>
    %161 = arith.addf %159, %160 : vector<256x64xf32>
    %162 = arith.mulf %161, %151 : vector<256x64xf32>
    %cst_65 = arith.constant 0.254829586 : f32
    %163 = vector.broadcast %cst_65 : f32 to vector<256x64xf32>
    %164 = arith.addf %162, %163 : vector<256x64xf32>
    %165 = arith.mulf %164, %151 : vector<256x64xf32>
    %cst_66 = arith.constant 0.000000e+00 : f32
    %166 = vector.broadcast %cst_66 : f32 to vector<256x64xf32>
    %167 = arith.subf %166, %146 : vector<256x64xf32>
    %168 = arith.mulf %167, %146 : vector<256x64xf32>
    %169 = math.exp %168 : vector<256x64xf32>
    %170 = arith.mulf %165, %169 : vector<256x64xf32>
    %cst_67 = arith.constant 1.000000e+00 : f32
    %171 = vector.broadcast %cst_67 : f32 to vector<256x64xf32>
    %172 = arith.subf %171, %170 : vector<256x64xf32>
    %cst_68 = arith.constant 0.000000e+00 : f32
    %173 = vector.broadcast %cst_68 : f32 to vector<256x64xf32>
    %174 = arith.cmpf oge, %145, %173 : vector<256x64xf32>
    %cst_69 = arith.constant 0.000000e+00 : f32
    %175 = vector.broadcast %cst_69 : f32 to vector<256x64xf32>
    %176 = arith.subf %175, %172 : vector<256x64xf32>
    %177 = arith.select %174, %172, %176 : vector<256x64xi1>, vector<256x64xf32>
    %cst_70 = arith.constant 5.000000e-01 : f32
    %178 = vector.broadcast %cst_70 : f32 to vector<256x64xf32>
    %179 = arith.mulf %178, %143 : vector<256x64xf32>
    %cst_71 = arith.constant 1.000000e+00 : f32
    %180 = vector.broadcast %cst_71 : f32 to vector<256x64xf32>
    %181 = arith.addf %180, %177 : vector<256x64xf32>
    %182 = arith.mulf %179, %181 : vector<256x64xf32>
    %183 = vector.extract_strided_slice %68 {offsets = [1, 0], sizes = [4, 32], strides = [1, 1]} : vector<12x32xf32> to vector<4x32xf32>
    %c320 = arith.constant 320 : index
    %c0_72 = arith.constant 0 : index
    %184 = vector.load %arg5[%c320, %c0_72] : memref<1088x128xf32, #tpu.memory_space<vmem>>, vector<32x128xf32>
    %cst_73 = arith.constant dense<0.000000e+00> : vector<4x128xf32>
    %185 = tpu.matmul %183, %184, %cst_73 {dimension_numbers = #tpu.dot_dimension_numbers<[1], [0], [0], [1], [0, 0, 1, 1], [], []>} : vector<4x32xf32>, vector<32x128xf32>, vector<4x128xf32> -> vector<4x128xf32>
    %c352 = arith.constant 352 : index
    %c0_74 = arith.constant 0 : index
    %186 = vector.load %arg5[%c352, %c0_74] : memref<1088x128xf32, #tpu.memory_space<vmem>>, vector<4x128xf32>
    %187 = arith.mulf %185, %186 : vector<4x128xf32>
    %c360 = arith.constant 360 : index
    %c0_75 = arith.constant 0 : index
    %188 = vector.load %arg5[%c360, %c0_75] : memref<1088x128xf32, #tpu.memory_space<vmem>>, vector<128x128xf32>
    %cst_76 = arith.constant dense<0.000000e+00> : vector<4x128xf32>
    %189 = tpu.matmul %187, %188, %cst_76 {dimension_numbers = #tpu.dot_dimension_numbers<[1], [0], [0], [1], [0, 0, 1, 1], [], []>} : vector<4x128xf32>, vector<128x128xf32>, vector<4x128xf32> -> vector<4x128xf32>
    %c744 = arith.constant 744 : index
    %c0_77 = arith.constant 0 : index
    %190 = vector.load %arg5[%c744, %c0_77] : memref<1088x128xf32, #tpu.memory_space<vmem>>, vector<4x128xf32>
    %191 = arith.addf %189, %190 : vector<4x128xf32>
    %cst_78 = arith.constant 0.000000e+00 : f32
    %192 = vector.broadcast %cst_78 : f32 to vector<4x128xf32>
    %193 = arith.maximumf %191, %192 : vector<4x128xf32>
    %c488 = arith.constant 488 : index
    %c0_79 = arith.constant 0 : index
    %194 = vector.load %arg5[%c488, %c0_79] : memref<1088x128xf32, #tpu.memory_space<vmem>>, vector<128x128xf32>
    %cst_80 = arith.constant dense<0.000000e+00> : vector<4x128xf32>
    %195 = tpu.matmul %193, %194, %cst_80 {dimension_numbers = #tpu.dot_dimension_numbers<[1], [0], [0], [1], [0, 0, 1, 1], [], []>} : vector<4x128xf32>, vector<128x128xf32>, vector<4x128xf32> -> vector<4x128xf32>
    %c752 = arith.constant 752 : index
    %c0_81 = arith.constant 0 : index
    %196 = vector.load %arg5[%c752, %c0_81] : memref<1088x128xf32, #tpu.memory_space<vmem>>, vector<4x128xf32>
    %197 = arith.addf %195, %196 : vector<4x128xf32>
    %cst_82 = arith.constant 0.000000e+00 : f32
    %198 = vector.broadcast %cst_82 : f32 to vector<4x128xf32>
    %199 = arith.maximumf %197, %198 : vector<4x128xf32>
    %c616 = arith.constant 616 : index
    %c0_83 = arith.constant 0 : index
    %200 = vector.load %arg5[%c616, %c0_83] : memref<1088x128xf32, #tpu.memory_space<vmem>>, vector<128x4xf32>
    %cst_84 = arith.constant dense<0.000000e+00> : vector<4x4xf32>
    %201 = tpu.matmul %199, %200, %cst_84 {dimension_numbers = #tpu.dot_dimension_numbers<[1], [0], [0], [1], [0, 0, 1, 1], [], []>} : vector<4x128xf32>, vector<128x4xf32>, vector<4x4xf32> -> vector<4x4xf32>
    %c760 = arith.constant 760 : index
    %c0_85 = arith.constant 0 : index
    %202 = vector.load %arg5[%c760, %c0_85] : memref<1088x128xf32, #tpu.memory_space<vmem>>, vector<4x4xf32>
    %203 = arith.addf %201, %202 : vector<4x4xf32>
    %c768 = arith.constant 768 : index
    %c0_86 = arith.constant 0 : index
    %204 = vector.load %arg5[%c768, %c0_86] : memref<1088x128xf32, #tpu.memory_space<vmem>>, vector<64x4xf32>
    %cst_87 = arith.constant dense<0.000000e+00> : vector<64x4xf32>
    %205 = tpu.matmul %204, %203, %cst_87 {dimension_numbers = #tpu.dot_dimension_numbers<[1], [1], [0], [0], [0, 0, 1, 0], [], []>} : vector<64x4xf32>, vector<4x4xf32>, vector<64x4xf32> -> vector<64x4xf32>
    %c832 = arith.constant 832 : index
    %c0_88 = arith.constant 0 : index
    %206 = vector.load %arg5[%c832, %c0_88] : memref<1088x128xf32, #tpu.memory_space<vmem>>, vector<4x64xf32>
    %cst_89 = arith.constant dense<0.000000e+00> : vector<64x64xf32>
    %207 = tpu.matmul %205, %206, %cst_89 {dimension_numbers = #tpu.dot_dimension_numbers<[1], [0], [0], [1], [0, 0, 1, 1], [], []>} : vector<64x4xf32>, vector<4x64xf32>, vector<64x64xf32> -> vector<64x64xf32>
    %c840 = arith.constant 840 : index
    %c0_90 = arith.constant 0 : index
    %208 = vector.load %arg5[%c840, %c0_90] : memref<1088x128xf32, #tpu.memory_space<vmem>>, vector<64x64xf32>
    %209 = arith.mulf %207, %208 : vector<64x64xf32>
    %cst_91 = arith.constant dense<0.000000e+00> : vector<256x64xf32>
    %210 = tpu.matmul %182, %209, %cst_91 {dimension_numbers = #tpu.dot_dimension_numbers<[1], [0], [0], [1], [0, 0, 1, 1], [], []>} : vector<256x64xf32>, vector<64x64xf32>, vector<256x64xf32> -> vector<256x64xf32>
    %c0_92 = arith.constant 0 : index
    %c0_93 = arith.constant 0 : index
    %c0_94 = arith.constant 0 : index
    %211 = vector.load %arg6[%c0_92, %c0_93, %c0_94] : memref<1x256x64xf32, #tpu.memory_space<vmem>>, vector<1x256x64xf32>
    %212 = vector.shape_cast %211 : vector<1x256x64xf32> to vector<256x64xf32>
    %213 = vector.shape_cast %210 : vector<256x64xf32> to vector<1x256x64xf32>
    tpu.vector_store %arg6[%c0_92, %c0_93, %c0_94], %213 {strides = array<i32>} : memref<1x256x64xf32, #tpu.memory_space<vmem>>, vector<1x256x64xf32>,
    %214 = vector.extract_strided_slice %68 {offsets = [0, 0], sizes = [1, 32], strides = [1, 1]} : vector<12x32xf32> to vector<1x32xf32>
    %c904 = arith.constant 904 : index
    %c0_95 = arith.constant 0 : index
    %215 = vector.load %arg5[%c904, %c0_95] : memref<1088x128xf32, #tpu.memory_space<vmem>>, vector<32x64xf32>
    %cst_96 = arith.constant dense<0.000000e+00> : vector<1x64xf32>
    %216 = tpu.matmul %214, %215, %cst_96 {dimension_numbers = #tpu.dot_dimension_numbers<[1], [0], [0], [1], [0, 0, 1, 1], [], []>} : vector<1x32xf32>, vector<32x64xf32>, vector<1x64xf32> -> vector<1x64xf32>
    %c936 = arith.constant 936 : index
    %c0_97 = arith.constant 0 : index
    %217 = vector.load %arg5[%c936, %c0_97] : memref<1088x128xf32, #tpu.memory_space<vmem>>, vector<1x64xf32>
    %218 = arith.addf %216, %217 : vector<1x64xf32>
    %cst_98 = arith.constant 0.000000e+00 : f32
    %219 = vector.broadcast %cst_98 : f32 to vector<1x64xf32>
    %220 = arith.maximumf %218, %219 : vector<1x64xf32>
    %c944 = arith.constant 944 : index
    %c0_99 = arith.constant 0 : index
    %221 = vector.load %arg5[%c944, %c0_99] : memref<1088x128xf32, #tpu.memory_space<vmem>>, vector<64x64xf32>
    %cst_100 = arith.constant dense<0.000000e+00> : vector<1x64xf32>
    %222 = tpu.matmul %220, %221, %cst_100 {dimension_numbers = #tpu.dot_dimension_numbers<[1], [0], [0], [1], [0, 0, 1, 1], [], []>} : vector<1x64xf32>, vector<64x64xf32>, vector<1x64xf32> -> vector<1x64xf32>
    %c1008 = arith.constant 1008 : index
    %c0_101 = arith.constant 0 : index
    %223 = vector.load %arg5[%c1008, %c0_101] : memref<1088x128xf32, #tpu.memory_space<vmem>>, vector<1x64xf32>
    %224 = arith.addf %222, %223 : vector<1x64xf32>
    %cst_102 = arith.constant 0.000000e+00 : f32
    %225 = vector.broadcast %cst_102 : f32 to vector<1x64xf32>
    %226 = arith.maximumf %224, %225 : vector<1x64xf32>
    %c1016 = arith.constant 1016 : index
    %c0_103 = arith.constant 0 : index
    %227 = vector.load %arg5[%c1016, %c0_103] : memref<1088x128xf32, #tpu.memory_space<vmem>>, vector<64x4xf32>
    %cst_104 = arith.constant dense<0.000000e+00> : vector<1x4xf32>
    %228 = tpu.matmul %226, %227, %cst_104 {dimension_numbers = #tpu.dot_dimension_numbers<[1], [0], [0], [1], [0, 0, 1, 1], [], []>} : vector<1x64xf32>, vector<64x4xf32>, vector<1x4xf32> -> vector<1x4xf32>
    %c1080 = arith.constant 1080 : index
    %c0_105 = arith.constant 0 : index
    %229 = vector.load %arg5[%c1080, %c0_105] : memref<1088x128xf32, #tpu.memory_space<vmem>>, vector<1x4xf32>
    %230 = arith.addf %228, %229 : vector<1x4xf32>
    %c0_106 = arith.constant 0 : index
    %c0_107 = arith.constant 0 : index
    %c0_108 = arith.constant 0 : index
    %231 = vector.load %arg7[%c0_106, %c0_107, %c0_108] : memref<1x1x4xf32, #tpu.memory_space<vmem>>, vector<1x1x4xf32>
    %232 = vector.shape_cast %231 : vector<1x1x4xf32> to vector<1x4xf32>
    %233 = vector.shape_cast %230 : vector<1x4xf32> to vector<1x1x4xf32>
    tpu.vector_store %arg7[%c0_106, %c0_107, %c0_108], %233 {strides = array<i32>} : memref<1x1x4xf32, #tpu.memory_space<vmem>>, vector<1x1x4xf32>,
    return
  }
  func.func @transform_0(%arg0: i32) -> (i32, i32, i32) {
    %c0_i32 = arith.constant 0 : i32
    %c0_i32_0 = arith.constant 0 : i32
    %c0_i32_1 = arith.constant 0 : i32
    return %arg0, %c0_i32, %c0_i32_0 : i32, i32, i32
  }
  func.func @transform_1(%arg0: i32) -> (i32, i32, i32) {
    %c0_i32 = arith.constant 0 : i32
    %c0_i32_0 = arith.constant 0 : i32
    %c0_i32_1 = arith.constant 0 : i32
    %c0_i32_2 = arith.constant 0 : i32
    return %c0_i32, %c0_i32_0, %c0_i32_1 : i32, i32, i32
  }
  func.func @transform_2(%arg0: i32) -> (i32, i32, i32) {
    %c0_i32 = arith.constant 0 : i32
    %c0_i32_0 = arith.constant 0 : i32
    %c0_i32_1 = arith.constant 0 : i32
    return %arg0, %c0_i32, %c0_i32_0 : i32, i32, i32
  }
  func.func @transform_3(%arg0: i32) -> (i32, i32, i32) {
    %c0_i32 = arith.constant 0 : i32
    %c0_i32_0 = arith.constant 0 : i32
    %c0_i32_1 = arith.constant 0 : i32
    %c0_i32_2 = arith.constant 0 : i32
    return %c0_i32, %c0_i32_0, %c0_i32_1 : i32, i32, i32
  }
  func.func @transform_4(%arg0: i32) -> (i32, i32) {
    %c0_i32 = arith.constant 0 : i32
    %c0_i32_0 = arith.constant 0 : i32
    %c0_i32_1 = arith.constant 0 : i32
    return %c0_i32, %c0_i32_0 : i32, i32
  }
  func.func @transform_5(%arg0: i32) -> (i32, i32, i32) {
    %c0_i32 = arith.constant 0 : i32
    %c0_i32_0 = arith.constant 0 : i32
    %c0_i32_1 = arith.constant 0 : i32
    return %arg0, %c0_i32, %c0_i32_0 : i32, i32, i32
  }
  func.func @transform_6(%arg0: i32) -> (i32, i32, i32) {
    %c0_i32 = arith.constant 0 : i32
    %c0_i32_0 = arith.constant 0 : i32
    %c0_i32_1 = arith.constant 0 : i32
    return %arg0, %c0_i32, %c0_i32_0 : i32, i32, i32
  }
}

</mosaic_0001>

<llo_original>
// kernel: forward.1
$region0: #{forward.1}
  #allocation0 [shape = 'u32[]', space=smem, size = 0x4, offset = 0x4, fixed_abs, tag = 'smem constant byte address 0x4 - core index']
  #allocation1 [shape = 'u32[72,128]{1,0:T(1,128)}', space=vmem, size = 0x9000, scoped, tag = 'internal scratch']
  %s0 = inlined_call_operand.vmem [shape: f32[2,12,32], index: 0, kind: input, shape index: {}]
  %s1 = inlined_call_operand.vmem [shape: f32[1,32,256], index: 1, kind: input, shape index: {}]
  %s2 = inlined_call_operand.vmem [shape: f32[2,32,256], index: 2, kind: input, shape index: {}]
  %s3 = inlined_call_operand.vmem [shape: f32[1,32,256], index: 3, kind: input, shape index: {}]
  %s4 = inlined_call_operand.hbm [shape: f32[1088,128], index: 4, kind: input, shape index: {}]
  %s5 = inlined_call_operand.vmem [shape: f32[2,256,64], index: 5, kind: output, shape index: {0}]
  %s6 = inlined_call_operand.vmem [shape: f32[2,1,4], index: 6, kind: output, shape index: {1}]
  %7 = xla_tuple %s5, %s6
  %s8 = sld [smem:[#allocation0]]
  $region65: #{forward.1} parent=0
    _
  %s10 = ssub.s32 1, %s8
  %s11 = scalar_select 0, %s10, %s8
  $region1: #{forward.1} parent=0
    #allocation2 [shape = 'u8[557056]{0}', space=vmem, size = 0x88000, scoped, tag = 'input window, operand 4, single buffered']
    #allocation3 [shape = 's32[2]{0}', space=sflag, size = 0x8, scoped, tag = 'scoped memory for forward.1']
    %12 = vsyncpa [#allocation3], 0
    loop: start=0, step=1, limit=4
    $region2: #{forward.1} parent=1 // loop_pre_header
      _
    $region3: #{forward.1} parent=1 // loop_header
      %s14 = sphi 0, %s18
      %p15 = scmp.ge.s32.totalorder %s14, 4
      %s24 = sphi 0, %s26
      %s27 = sphi 0, %s24
      %s28 = sphi 0, %s27
      %s44 = sphi 0, %s28
      %s48 = sphi 0, %s48
      %s50 = sphi 0, %s48
      %s51 = sphi 0, %s50
      %s65 = sphi 0, %s51
      %s71 = sphi 0, %s73
      %s74 = sphi 0, %s71
      %s75 = sphi 0, %s74
      %s91 = sphi 0, %s75
      %s95 = sphi 0, %s95
      %s97 = sphi 0, %s95
      %s98 = sphi 0, %s97
      %s112 = sphi 0, %s98
      %s116 = sphi 0, %s116
      %s118 = sphi 0, %s116
      %s119 = sphi 0, %s118
      %s133 = sphi 0, %s119
      %s139 = sphi 0, %s141
      %s142 = sphi 0, %s139
      %s143 = sphi 0, %s142
      %s159 = sphi 0, %s143
      %s165 = sphi 0, %s167
      %s168 = sphi 0, %s165
      %s169 = sphi 0, %s168
      %s185 = sphi 0, %s169
    $region4: #{forward.1} parent=1 // loop_header_branch
      %17 = sbr.rel (%p15) target = $region8
    $region5: #{forward.1} parent=1 // loop_body
      %s19 = ssub.s32 %s14, 1
      %s20 = ssub.s32 %s14, 2
      %s21 = sadd.s32 %s14, 1
      %s22 = ssub.s32 %s14, %s21
      %p23 = scmp.eq.s32.totalorder %s22, 0
      %s25 = sadd.s32 %s24, 1
      %s26 = scalar_select %p23, %s24, %s25
      %p29 = pneg %p23
      %p30 = scmp.eq.s32.totalorder %s14, 1
      %p31 = por %p29, %p30
      %p32 = scmp.ne.s32.totalorder %s24, %s27
      %p33 = scmp.eq.s32.totalorder %s14, 0
      %p34 = por %p32, %p33
      %p35 = scmp.ne.s32.totalorder %s24, %s27
      %p36 = scmp.eq.s32.totalorder %s19, 1
      %p37 = por %p35, %p36
      %p38 = scmp.ne.s32.totalorder %s27, %s28
      %p39 = scmp.eq.s32.totalorder %s19, 0
      %p40 = por %p38, %p39
      %p41 = scmp.ne.s32.totalorder %s27, %s28
      %p42 = scmp.eq.s32.totalorder %s20, 1
      %p43 = por %p41, %p42
      %p45 = scmp.ne.s32.totalorder %s28, %s44
      %p46 = scmp.eq.s32.totalorder %s20, 0
      %p47 = por %p45, %p46
      %s49 = sadd.s32 %s48, 1
      %p52 = scmp.eq.s32.totalorder %s14, 1
      %p53 = scmp.ne.s32.totalorder %s48, %s50
      %p54 = scmp.eq.s32.totalorder %s14, 0
      %p55 = por %p53, %p54
      %p56 = scmp.ne.s32.totalorder %s48, %s50
      %p57 = scmp.eq.s32.totalorder %s19, 1
      %p58 = por %p56, %p57
      %p59 = scmp.ne.s32.totalorder %s50, %s51
      %p60 = scmp.eq.s32.totalorder %s19, 0
      %p61 = por %p59, %p60
      %p62 = scmp.ne.s32.totalorder %s50, %s51
      %p63 = scmp.eq.s32.totalorder %s20, 1
      %p64 = por %p62, %p63
      %p66 = scmp.ne.s32.totalorder %s51, %s65
      %p67 = scmp.eq.s32.totalorder %s20, 0
      %p68 = por %p66, %p67
      %s69 = ssub.s32 %s14, %s21
      %p70 = scmp.eq.s32.totalorder %s69, 0
      %s72 = sadd.s32 %s71, 1
      %s73 = scalar_select %p70, %s71, %s72
      %p76 = pneg %p70
      %p77 = scmp.eq.s32.totalorder %s14, 1
      %p78 = por %p76, %p77
      %p79 = scmp.ne.s32.totalorder %s71, %s74
      %p80 = scmp.eq.s32.totalorder %s14, 0
      %p81 = por %p79, %p80
      %p82 = scmp.ne.s32.totalorder %s71, %s74
      %p83 = scmp.eq.s32.totalorder %s19, 1
      %p84 = por %p82, %p83
      %p85 = scmp.ne.s32.totalorder %s74, %s75
      %p86 = scmp.eq.s32.totalorder %s19, 0
      %p87 = por %p85, %p86
      %p88 = scmp.ne.s32.totalorder %s74, %s75
      %p89 = scmp.eq.s32.totalorder %s20, 1
      %p90 = por %p88, %p89
      %p92 = scmp.ne.s32.totalorder %s75, %s91
      %p93 = scmp.eq.s32.totalorder %s20, 0
      %p94 = por %p92, %p93
      %s96 = sadd.s32 %s95, 1
      %p99 = scmp.eq.s32.totalorder %s14, 1
      %p100 = scmp.ne.s32.totalorder %s95, %s97
      %p101 = scmp.eq.s32.totalorder %s14, 0
      %p102 = por %p100, %p101
      %p103 = scmp.ne.s32.totalorder %s95, %s97
      %p104 = scmp.eq.s32.totalorder %s19, 1
      %p105 = por %p103, %p104
      %p106 = scmp.ne.s32.totalorder %s97, %s98
      %p107 = scmp.eq.s32.totalorder %s19, 0
      %p108 = por %p106, %p107
      %p109 = scmp.ne.s32.totalorder %s97, %s98
      %p110 = scmp.eq.s32.totalorder %s20, 1
      %p111 = por %p109, %p110
      %p113 = scmp.ne.s32.totalorder %s98, %s112
      %p114 = scmp.eq.s32.totalorder %s20, 0
      %p115 = por %p113, %p114
      %s117 = sadd.s32 %s116, 1
      %p120 = scmp.eq.s32.totalorder %s14, 1
      %p121 = scmp.ne.s32.totalorder %s116, %s118
      %p122 = scmp.eq.s32.totalorder %s14, 0
      %p123 = por %p121, %p122
      %p124 = scmp.ne.s32.totalorder %s116, %s118
      %p125 = scmp.eq.s32.totalorder %s19, 1
      %p126 = por %p124, %p125
      %p127 = scmp.ne.s32.totalorder %s118, %s119
      %p128 = scmp.eq.s32.totalorder %s19, 0
      %p129 = por %p127, %p128
      %p130 = scmp.ne.s32.totalorder %s118, %s119
      %p131 = scmp.eq.s32.totalorder %s20, 1
      %p132 = por %p130, %p131
      %p134 = scmp.ne.s32.totalorder %s119, %s133
      %p135 = scmp.eq.s32.totalorder %s20, 0
      %p136 = por %p134, %p135
      %s137 = ssub.s32 %s14, %s21
      %p138 = scmp.eq.s32.totalorder %s137, 0
      %s140 = sadd.s32 %s139, 1
      %s141 = scalar_select %p138, %s139, %s140
      %p144 = pneg %p138
      %p145 = scmp.eq.s32.totalorder %s14, 1
      %p146 = por %p144, %p145
      %p147 = scmp.ne.s32.totalorder %s139, %s142
      %p148 = scmp.eq.s32.totalorder %s14, 0
      %p149 = por %p147, %p148
      %p150 = scmp.ne.s32.totalorder %s139, %s142
      %p151 = scmp.eq.s32.totalorder %s19, 1
      %p152 = por %p150, %p151
      %p153 = scmp.ne.s32.totalorder %s142, %s143
      %p154 = scmp.eq.s32.totalorder %s19, 0
      %p155 = por %p153, %p154
      %p156 = scmp.ne.s32.totalorder %s142, %s143
      %p157 = scmp.eq.s32.totalorder %s20, 1
      %p158 = por %p156, %p157
      %p160 = scmp.ne.s32.totalorder %s143, %s159
      %p161 = scmp.eq.s32.totalorder %s20, 0
      %p162 = por %p160, %p161
      %s163 = ssub.s32 %s14, %s21
      %p164 = scmp.eq.s32.totalorder %s163, 0
      %s166 = sadd.s32 %s165, 1
      %s167 = scalar_select %p164, %s165, %s166
      %p170 = pneg %p164
      %p171 = scmp.eq.s32.totalorder %s14, 1
      %p172 = por %p170, %p171
      %p173 = scmp.ne.s32.totalorder %s165, %s168
      %p174 = scmp.eq.s32.totalorder %s14, 0
      %p175 = por %p173, %p174
      %p176 = scmp.ne.s32.totalorder %s165, %s168
      %p177 = scmp.eq.s32.totalorder %s19, 1
      %p178 = por %p176, %p177
      %p179 = scmp.ne.s32.totalorder %s168, %s169
      %p180 = scmp.eq.s32.totalorder %s19, 0
      %p181 = por %p179, %p180
      %p182 = scmp.ne.s32.totalorder %s168, %s169
      %p183 = scmp.eq.s32.totalorder %s20, 1
      %p184 = por %p182, %p183
      %p186 = scmp.ne.s32.totalorder %s169, %s185
      %p187 = scmp.eq.s32.totalorder %s20, 0
      %p188 = por %p186, %p187
      %p189 = scmp.le.s32.totalorder 1, %s14
      %p190 = scmp.lt.s32.totalorder %s14, 3
      %p191 = pnand %p189, %p190
      %p192 = pneg %p191
      // Predicated region
      $region9: #{forward.1} parent=5 // pred_check
        _
      $region10: #{forward.1} parent=5 // pred_check_branch
        %194 = sbr.rel (%p191) target = $region12
      $region11: #{forward.1} parent=5 // pred_region
        %s195 = ssub.s32 %s14, 1
        // Predicated region
        $region13: #{forward.1} parent=11 // pred_check
          %p196 = pneg %p61
        $region14: #{forward.1} parent=11 // pred_check_branch
          %198 = sbr.rel (%p196) target = $region16
        $region15: #{forward.1} parent=11 // pred_region
          _
        $region16: #{forward.1} parent=11 // pred_fallthru
          _
        // Predicated region
        $region17: #{forward.1} parent=11 // pred_check
          %p199 = pneg %p108
        $region18: #{forward.1} parent=11 // pred_check_branch
          %201 = sbr.rel (%p199) target = $region20
        $region19: #{forward.1} parent=11 // pred_region
          _
        $region20: #{forward.1} parent=11 // pred_fallthru
          _
        // Predicated region
        $region21: #{forward.1} parent=11 // pred_check
          %p202 = pneg %p129
        $region22: #{forward.1} parent=11 // pred_check_branch
          %204 = sbr.rel (%p202) target = $region24
        $region23: #{forward.1} parent=11 // pred_region
          %206 = vsyncadd [#allocation3], 0
          %s207 = sshll.u32 %s4, 4
          %s208 = int_to_ptr.hbm [resolvable:$true] %s207
          %s209 = sshll.u32 [#allocation2], 4
          %s210 = int_to_ptr.vmem [resolvable:$true] %s209
          %215 = dma.hbm_to_vmem [thread:$0]  %s208, 17408, %s210, [#allocation3], 128, 128, 8
        $region24: #{forward.1} parent=11 // pred_fallthru
          _
      $region12: #{forward.1} parent=5 // pred_fallthru
        _
      %p216 = scmp.lt.s32.totalorder %s14, 2
      // Predicated region
      $region25: #{forward.1} parent=5 // pred_check
        %p217 = pneg %p216
      $region26: #{forward.1} parent=5 // pred_check_branch
        %219 = sbr.rel (%p217) target = $region28
      $region27: #{forward.1} parent=5 // pred_region
        // Predicated region
        $region29: #{forward.1} parent=27 // pred_check
          %p220 = pneg %p34
        $region30: #{forward.1} parent=27 // pred_check_branch
          %222 = sbr.rel (%p220) target = $region32
        $region31: #{forward.1} parent=27 // pred_region
          %p223 = scmp.lt.s32.totalorder %s14, 1
          %s224 = scalar_select %p223, %s14, 1
          %s225 = smul.addr %s224, 2
          %s226 = smul.addr %s225, 8
          %s227 = scalar_lea.vmem %s0, %s226
        $region32: #{forward.1} parent=27 // pred_fallthru
          _
        // Predicated region
        $region33: #{forward.1} parent=27 // pred_check
          %p228 = pneg %p81
        $region34: #{forward.1} parent=27 // pred_check_branch
          %230 = sbr.rel (%p228) target = $region36
        $region35: #{forward.1} parent=27 // pred_region
          %p231 = scmp.lt.s32.totalorder %s14, 1
          %s232 = scalar_select %p231, %s14, 1
          %s233 = smul.addr %s232, 8
          %s234 = smul.addr %s233, 8
          %s235 = scalar_lea.vmem %s2, %s234
        $region36: #{forward.1} parent=27 // pred_fallthru
          _
      $region28: #{forward.1} parent=5 // pred_fallthru
        _
      %p236 = scmp.le.s32.totalorder 1, %s14
      %p237 = scmp.lt.s32.totalorder %s14, 3
      %p238 = pnand %p236, %p237
      %p239 = pneg %p238
      // Predicated region
      $region37: #{forward.1} parent=5 // pred_check
        _
      $region38: #{forward.1} parent=5 // pred_check_branch
        %241 = sbr.rel (%p238) target = $region40
      $region39: #{forward.1} parent=5 // pred_region
        %s242 = ssub.s32 %s14, 1
        // Predicated region
        $region41: #{forward.1} parent=39 // pred_check
          %p243 = pneg %p129
        $region42: #{forward.1} parent=39 // pred_check_branch
          %245 = sbr.rel (%p243) target = $region44
        $region43: #{forward.1} parent=39 // pred_region
          %247 = dma.done [#allocation3], 17408
        $region44: #{forward.1} parent=39 // pred_fallthru
          _
        %p248 = scmp.lt.s32.totalorder %s19, 1
        %s249 = scalar_select %p248, %s19, 1
        %s250 = smul.addr %s249, 2
        %s251 = smul.addr %s250, 8
        %s252 = scalar_lea.vmem %s0, %s251
        %p253 = pneg %p40
        %p254 = pneg %p37
        %p255 = pneg %p61
        %p256 = pneg %p58
        %p257 = scmp.lt.s32.totalorder %s19, 1
        %s258 = scalar_select %p257, %s19, 1
        %s259 = smul.addr %s258, 8
        %s260 = smul.addr %s259, 8
        %s261 = scalar_lea.vmem %s2, %s260
        %p262 = pneg %p87
        %p263 = pneg %p84
        %p264 = pneg %p108
        %p265 = pneg %p105
        %p266 = pneg %p129
        %p267 = pneg %p126
        %p268 = pneg %p155
        %p269 = pneg %p152
        %p270 = scmp.lt.s32.totalorder %s19, 1
        %s271 = scalar_select %p270, %s19, 1
        %s272 = smul.addr %s271, 32
        %s273 = smul.addr %s272, 8
        %s274 = scalar_lea.vmem %s5, %s273
        %p275 = pneg %p181
        %p276 = pneg %p178
        %p277 = scmp.lt.s32.totalorder %s19, 1
        %s278 = scalar_select %p277, %s19, 1
        %s279 = scalar_lea.vmem %s6, %s278
        %p280 = scmp.lt.s32.totalorder %s19, 1
        %s281 = scalar_select %p280, %s19, 1
        %s282 = smul.addr %s281, 2
        %s283 = smul.addr %s282, 8
        %s284 = scalar_lea.vmem %s0, %s283
        %p285 = scmp.lt.s32.totalorder %s19, 1
        %s286 = scalar_select %p285, %s19, 1
        %s287 = smul.addr %s286, 8
        %s288 = smul.addr %s287, 8
        %s289 = scalar_lea.vmem %s2, %s288
        %p290 = scmp.lt.s32.totalorder %s19, 1
        %s291 = scalar_select %p290, %s19, 1
        %s292 = smul.addr %s291, 32
        %s293 = smul.addr %s292, 8
        %s294 = scalar_lea.vmem %s5, %s293
        %p295 = scmp.lt.s32.totalorder %s19, 1
        %s296 = scalar_select %p295, %s19, 1
        %s297 = scalar_lea.vmem %s6, %s296
        %v298 = vld [vmem:[%s1] sm:$0xff]
        %v299 = vld [vmem:[%s1 + $0x8] sm:$0xff]
        %v300 = vld [vmem:[%s1 + $0x10] sm:$0xff]
        %v301 = vld [vmem:[%s1 + $0x18] sm:$0xff]
        %v302 = vld [vmem:[%s1 + $0x20] sm:$0xff]
        %v303 = vld [vmem:[%s1 + $0x28] sm:$0xff]
        %v304 = vld [vmem:[%s1 + $0x30] sm:$0xff]
        %v305 = vld [vmem:[%s1 + $0x38] sm:$0xff]
        %306 = vxpose.xlu0.b32.start [1/16] %v298, 128
        %307 = vxpose.xlu0.b32.cont [2/16] %v300, 128
        %308 = vxpose.xlu0.b32.cont [3/16] %v302, 128
        %309 = vxpose.xlu0.b32.cont [4/16] %v304, 128
        %310 = vxpose.xlu0.b32.cont [5/16] 0.0, 128
        %311 = vxpose.xlu0.b32.cont [6/16] 0.0, 128
        %312 = vxpose.xlu0.b32.cont [7/16] 0.0, 128
        %313 = vxpose.xlu0.b32.cont [8/16] 0.0, 128
        %314 = vxpose.xlu0.b32.cont [9/16] 0.0, 128
        %315 = vxpose.xlu0.b32.cont [10/16] 0.0, 128
        %316 = vxpose.xlu0.b32.cont [11/16] 0.0, 128
        %317 = vxpose.xlu0.b32.cont [12/16] 0.0, 128
        %318 = vxpose.xlu0.b32.cont [13/16] 0.0, 128
        %319 = vxpose.xlu0.b32.cont [14/16] 0.0, 128
        %320 = vxpose.xlu0.b32.cont [15/16] 0.0, 128
        %321 = vxpose.xlu0.b32.end [16/16] 0.0, 128
        %v322 = vpop.trf.xlu0
        %v323 = vpop.trf.xlu0
        %v324 = vpop.trf.xlu0
        %v325 = vpop.trf.xlu0
        %v326 = vpop.trf.xlu0
        %v327 = vpop.trf.xlu0
        %v328 = vpop.trf.xlu0
        %v329 = vpop.trf.xlu0
        %v330 = vpop.trf.xlu0
        %v331 = vpop.trf.xlu0
        %v332 = vpop.trf.xlu0
        %v333 = vpop.trf.xlu0
        %v334 = vpop.trf.xlu0
        %v335 = vpop.trf.xlu0
        %v336 = vpop.trf.xlu0
        %v337 = vpop.trf.xlu0
        %338 = vxpose.xlu0.b32.start [1/16] %v299, 128
        %339 = vxpose.xlu0.b32.cont [2/16] %v301, 128
        %340 = vxpose.xlu0.b32.cont [3/16] %v303, 128
        %341 = vxpose.xlu0.b32.cont [4/16] %v305, 128
        %342 = vxpose.xlu0.b32.cont [5/16] 0.0, 128
        %343 = vxpose.xlu0.b32.cont [6/16] 0.0, 128
        %344 = vxpose.xlu0.b32.cont [7/16] 0.0, 128
        %345 = vxpose.xlu0.b32.cont [8/16] 0.0, 128
        %346 = vxpose.xlu0.b32.cont [9/16] 0.0, 128
        %347 = vxpose.xlu0.b32.cont [10/16] 0.0, 128
        %348 = vxpose.xlu0.b32.cont [11/16] 0.0, 128
        %349 = vxpose.xlu0.b32.cont [12/16] 0.0, 128
        %350 = vxpose.xlu0.b32.cont [13/16] 0.0, 128
        %351 = vxpose.xlu0.b32.cont [14/16] 0.0, 128
        %352 = vxpose.xlu0.b32.cont [15/16] 0.0, 128
        %353 = vxpose.xlu0.b32.end [16/16] 0.0, 128
        %v354 = vpop.trf.xlu0
        %v355 = vpop.trf.xlu0
        %v356 = vpop.trf.xlu0
        %v357 = vpop.trf.xlu0
        %v358 = vpop.trf.xlu0
        %v359 = vpop.trf.xlu0
        %v360 = vpop.trf.xlu0
        %v361 = vpop.trf.xlu0
        %v362 = vpop.trf.xlu0
        %v363 = vpop.trf.xlu0
        %v364 = vpop.trf.xlu0
        %v365 = vpop.trf.xlu0
        %v366 = vpop.trf.xlu0
        %v367 = vpop.trf.xlu0
        %v368 = vpop.trf.xlu0
        %v369 = vpop.trf.xlu0
        %v370 = vld [vmem:[%s289] sm:$0xff]
        %v371 = vld [vmem:[%s289 + $0x8] sm:$0xff]
        %v372 = vld [vmem:[%s289 + $0x10] sm:$0xff]
        %v373 = vld [vmem:[%s289 + $0x18] sm:$0xff]
        %v374 = vld [vmem:[%s289 + $0x20] sm:$0xff]
        %v375 = vld [vmem:[%s289 + $0x28] sm:$0xff]
        %v376 = vld [vmem:[%s289 + $0x30] sm:$0xff]
        %v377 = vld [vmem:[%s289 + $0x38] sm:$0xff]
        %378 = vxpose.xlu0.b32.start [1/16] %v370, 128
        %379 = vxpose.xlu0.b32.cont [2/16] %v372, 128
        %380 = vxpose.xlu0.b32.cont [3/16] %v374, 128
        %381 = vxpose.xlu0.b32.cont [4/16] %v376, 128
        %382 = vxpose.xlu0.b32.cont [5/16] 0.0, 128
        %383 = vxpose.xlu0.b32.cont [6/16] 0.0, 128
        %384 = vxpose.xlu0.b32.cont [7/16] 0.0, 128
        %385 = vxpose.xlu0.b32.cont [8/16] 0.0, 128
        %386 = vxpose.xlu0.b32.cont [9/16] 0.0, 128
        %387 = vxpose.xlu0.b32.cont [10/16] 0.0, 128
        %388 = vxpose.xlu0.b32.cont [11/16] 0.0, 128
        %389 = vxpose.xlu0.b32.cont [12/16] 0.0, 128
        %390 = vxpose.xlu0.b32.cont [13/16] 0.0, 128
        %391 = vxpose.xlu0.b32.cont [14/16] 0.0, 128
        %392 = vxpose.xlu0.b32.cont [15/16] 0.0, 128
        %393 = vxpose.xlu0.b32.end [16/16] 0.0, 128
        %v394 = vpop.trf.xlu0
        %v395 = vpop.trf.xlu0
        %v396 = vpop.trf.xlu0
        %v397 = vpop.trf.xlu0
        %v398 = vpop.trf.xlu0
        %v399 = vpop.trf.xlu0
        %v400 = vpop.trf.xlu0
        %v401 = vpop.trf.xlu0
        %v402 = vpop.trf.xlu0
        %v403 = vpop.trf.xlu0
        %v404 = vpop.trf.xlu0
        %v405 = vpop.trf.xlu0
        %v406 = vpop.trf.xlu0
        %v407 = vpop.trf.xlu0
        %v408 = vpop.trf.xlu0
        %v409 = vpop.trf.xlu0
        %410 = vxpose.xlu0.b32.start [1/16] %v371, 128
        %411 = vxpose.xlu0.b32.cont [2/16] %v373, 128
        %412 = vxpose.xlu0.b32.cont [3/16] %v375, 128
        %413 = vxpose.xlu0.b32.cont [4/16] %v377, 128
        %414 = vxpose.xlu0.b32.cont [5/16] 0.0, 128
        %415 = vxpose.xlu0.b32.cont [6/16] 0.0, 128
        %416 = vxpose.xlu0.b32.cont [7/16] 0.0, 128
        %417 = vxpose.xlu0.b32.cont [8/16] 0.0, 128
        %418 = vxpose.xlu0.b32.cont [9/16] 0.0, 128
        %419 = vxpose.xlu0.b32.cont [10/16] 0.0, 128
        %420 = vxpose.xlu0.b32.cont [11/16] 0.0, 128
        %421 = vxpose.xlu0.b32.cont [12/16] 0.0, 128
        %422 = vxpose.xlu0.b32.cont [13/16] 0.0, 128
        %423 = vxpose.xlu0.b32.cont [14/16] 0.0, 128
        %424 = vxpose.xlu0.b32.cont [15/16] 0.0, 128
        %425 = vxpose.xlu0.b32.end [16/16] 0.0, 128
        %v426 = vpop.trf.xlu0
        %v427 = vpop.trf.xlu0
        %v428 = vpop.trf.xlu0
        %v429 = vpop.trf.xlu0
        %v430 = vpop.trf.xlu0
        %v431 = vpop.trf.xlu0
        %v432 = vpop.trf.xlu0
        %v433 = vpop.trf.xlu0
        %v434 = vpop.trf.xlu0
        %v435 = vpop.trf.xlu0
        %v436 = vpop.trf.xlu0
        %v437 = vpop.trf.xlu0
        %v438 = vpop.trf.xlu0
        %v439 = vpop.trf.xlu0
        %v440 = vpop.trf.xlu0
        %v441 = vpop.trf.xlu0
        %v442 = vld [vmem:[%s3] sm:$0xff]
        %v443 = vld [vmem:[%s3 + $0x8] sm:$0xff]
        %v444 = vld [vmem:[%s3 + $0x10] sm:$0xff]
        %v445 = vld [vmem:[%s3 + $0x18] sm:$0xff]
        %v446 = vld [vmem:[%s3 + $0x20] sm:$0xff]
        %v447 = vld [vmem:[%s3 + $0x28] sm:$0xff]
        %v448 = vld [vmem:[%s3 + $0x30] sm:$0xff]
        %v449 = vld [vmem:[%s3 + $0x38] sm:$0xff]
        %450 = vxpose.xlu0.b32.start [1/16] %v442, 128
        %451 = vxpose.xlu0.b32.cont [2/16] %v444, 128
        %452 = vxpose.xlu0.b32.cont [3/16] %v446, 128
        %453 = vxpose.xlu0.b32.cont [4/16] %v448, 128
        %454 = vxpose.xlu0.b32.cont [5/16] 0.0, 128
        %455 = vxpose.xlu0.b32.cont [6/16] 0.0, 128
        %456 = vxpose.xlu0.b32.cont [7/16] 0.0, 128
        %457 = vxpose.xlu0.b32.cont [8/16] 0.0, 128
        %458 = vxpose.xlu0.b32.cont [9/16] 0.0, 128
        %459 = vxpose.xlu0.b32.cont [10/16] 0.0, 128
        %460 = vxpose.xlu0.b32.cont [11/16] 0.0, 128
        %461 = vxpose.xlu0.b32.cont [12/16] 0.0, 128
        %462 = vxpose.xlu0.b32.cont [13/16] 0.0, 128
        %463 = vxpose.xlu0.b32.cont [14/16] 0.0, 128
        %464 = vxpose.xlu0.b32.cont [15/16] 0.0, 128
        %465 = vxpose.xlu0.b32.end [16/16] 0.0, 128
        %v466 = vpop.trf.xlu0
        %v467 = vpop.trf.xlu0
        %v468 = vpop.trf.xlu0
        %v469 = vpop.trf.xlu0
        %v470 = vpop.trf.xlu0
        %v471 = vpop.trf.xlu0
        %v472 = vpop.trf.xlu0
        %v473 = vpop.trf.xlu0
        %v474 = vpop.trf.xlu0
        %v475 = vpop.trf.xlu0
        %v476 = vpop.trf.xlu0
        %v477 = vpop.trf.xlu0
        %v478 = vpop.trf.xlu0
        %v479 = vpop.trf.xlu0
        %v480 = vpop.trf.xlu0
        %v481 = vpop.trf.xlu0
        %482 = vxpose.xlu0.b32.start [1/16] %v443, 128
        %483 = vxpose.xlu0.b32.cont [2/16] %v445, 128
        %484 = vxpose.xlu0.b32.cont [3/16] %v447, 128
        %485 = vxpose.xlu0.b32.cont [4/16] %v449, 128
        %486 = vxpose.xlu0.b32.cont [5/16] 0.0, 128
        %487 = vxpose.xlu0.b32.cont [6/16] 0.0, 128
        %488 = vxpose.xlu0.b32.cont [7/16] 0.0, 128
        %489 = vxpose.xlu0.b32.cont [8/16] 0.0, 128
        %490 = vxpose.xlu0.b32.cont [9/16] 0.0, 128
        %491 = vxpose.xlu0.b32.cont [10/16] 0.0, 128
        %492 = vxpose.xlu0.b32.cont [11/16] 0.0, 128
        %493 = vxpose.xlu0.b32.cont [12/16] 0.0, 128
        %494 = vxpose.xlu0.b32.cont [13/16] 0.0, 128
        %495 = vxpose.xlu0.b32.cont [14/16] 0.0, 128
        %496 = vxpose.xlu0.b32.cont [15/16] 0.0, 128
        %497 = vxpose.xlu0.b32.end [16/16] 0.0, 128
        %v498 = vpop.trf.xlu0
        %v499 = vpop.trf.xlu0
        %v500 = vpop.trf.xlu0
        %v501 = vpop.trf.xlu0
        %v502 = vpop.trf.xlu0
        %v503 = vpop.trf.xlu0
        %v504 = vpop.trf.xlu0
        %v505 = vpop.trf.xlu0
        %v506 = vpop.trf.xlu0
        %v507 = vpop.trf.xlu0
        %v508 = vpop.trf.xlu0
        %v509 = vpop.trf.xlu0
        %v510 = vpop.trf.xlu0
        %v511 = vpop.trf.xlu0
        %v512 = vpop.trf.xlu0
        %v513 = vpop.trf.xlu0
        %v514 = vld [vmem:[%s284] sm:$0xff]
        %v515 = vld [vmem:[%s284 + $0x8] sm:$0xf]
        %v516 = vld [vmem:[#allocation2] sm:$0x3]
        %vm517 = vcmask 261120
        %v518 = vsel %vm517, %v322, 0.0
        %v519 = vsel %vm517, %v323, 0.0
        %v520 = vadd.f32 %v518, %v519
        %v521 = vsel %vm517, %v324, 0.0
        %v522 = vadd.f32 %v520, %v521
        %v523 = vsel %vm517, %v325, 0.0
        %v524 = vadd.f32 %v522, %v523
        %v525 = vsel %vm517, %v326, 0.0
        %v526 = vadd.f32 %v524, %v525
        %v527 = vsel %vm517, %v327, 0.0
        %v528 = vadd.f32 %v526, %v527
        %v529 = vsel %vm517, %v328, 0.0
        %v530 = vadd.f32 %v528, %v529
        %v531 = vsel %vm517, %v329, 0.0
        %v532 = vadd.f32 %v530, %v531
        %v533 = vsel %vm517, %v330, 0.0
        %v534 = vadd.f32 %v532, %v533
        %v535 = vsel %vm517, %v331, 0.0
        %v536 = vadd.f32 %v534, %v535
        %v537 = vsel %vm517, %v332, 0.0
        %v538 = vadd.f32 %v536, %v537
        %v539 = vsel %vm517, %v333, 0.0
        %v540 = vadd.f32 %v538, %v539
        %v541 = vsel %vm517, %v334, 0.0
        %v542 = vadd.f32 %v540, %v541
        %v543 = vsel %vm517, %v335, 0.0
        %v544 = vadd.f32 %v542, %v543
        %v545 = vsel %vm517, %v336, 0.0
        %v546 = vadd.f32 %v544, %v545
        %v547 = vsel %vm517, %v337, 0.0
        %v548 = vadd.f32 %v546, %v547
        %v549 = vsel %vm517, %v354, 0.0
        %v550 = vadd.f32 %v548, %v549
        %v551 = vsel %vm517, %v355, 0.0
        %v552 = vadd.f32 %v550, %v551
        %v553 = vsel %vm517, %v356, 0.0
        %v554 = vadd.f32 %v552, %v553
        %v555 = vsel %vm517, %v357, 0.0
        %v556 = vadd.f32 %v554, %v555
        %v557 = vsel %vm517, %v358, 0.0
        %v558 = vadd.f32 %v556, %v557
        %v559 = vsel %vm517, %v359, 0.0
        %v560 = vadd.f32 %v558, %v559
        %v561 = vsel %vm517, %v360, 0.0
        %v562 = vadd.f32 %v560, %v561
        %v563 = vsel %vm517, %v361, 0.0
        %v564 = vadd.f32 %v562, %v563
        %v565 = vsel %vm517, %v362, 0.0
        %v566 = vadd.f32 %v564, %v565
        %v567 = vsel %vm517, %v363, 0.0
        %v568 = vadd.f32 %v566, %v567
        %v569 = vsel %vm517, %v364, 0.0
        %v570 = vadd.f32 %v568, %v569
        %v571 = vsel %vm517, %v365, 0.0
        %v572 = vadd.f32 %v570, %v571
        %v573 = vsel %vm517, %v366, 0.0
        %v574 = vadd.f32 %v572, %v573
        %v575 = vsel %vm517, %v367, 0.0
        %v576 = vadd.f32 %v574, %v575
        %v577 = vsel %vm517, %v368, 0.0
        %v578 = vadd.f32 %v576, %v577
        %v579 = vsel %vm517, %v369, 0.0
        %v580 = vadd.f32 %v578, %v579
        %v581 = vrot.slane %v580, 4
        %v582 = vadd.f32 %v580, %v581
        %v583 = vrot.slane %v582, 2
        %v584 = vadd.f32 %v582, %v583
        %v585 = vrot.slane %v584, 1
        %v586 = vadd.f32 %v584, %v585
        %v587 = vrcp.pop 256.0
        %v588 = vmul.f32 256.0, %v587
        %v589 = vsub.f32 1.0, %v588
        %v590 = vmul.f32 %v587, %v589
        %v591 = vadd.f32 %v587, %v590
        %vm592 = vweird.f32 %v587
        %v593 = vsel %vm592, %v587, %v591
        %v594 = vmul.f32 %v586, %v593
        %v595 = vsub.f32 %v322, %v594
        %v596 = vsub.f32 %v323, %v594
        %v597 = vsub.f32 %v324, %v594
        %v598 = vsub.f32 %v325, %v594
        %v599 = vsub.f32 %v326, %v594
        %v600 = vsub.f32 %v327, %v594
        %v601 = vsub.f32 %v328, %v594
        %v602 = vsub.f32 %v329, %v594
        %v603 = vsub.f32 %v330, %v594
        %v604 = vsub.f32 %v331, %v594
        %v605 = vsub.f32 %v332, %v594
        %v606 = vsub.f32 %v333, %v594
        %v607 = vsub.f32 %v334, %v594
        %v608 = vsub.f32 %v335, %v594
        %v609 = vsub.f32 %v336, %v594
        %v610 = vsub.f32 %v337, %v594
        %v611 = vsub.f32 %v354, %v594
        %v612 = vsub.f32 %v355, %v594
        %v613 = vsub.f32 %v356, %v594
        %v614 = vsub.f32 %v357, %v594
        %v615 = vsub.f32 %v358, %v594
        %v616 = vsub.f32 %v359, %v594
        %v617 = vsub.f32 %v360, %v594
        %v618 = vsub.f32 %v361, %v594
        %v619 = vsub.f32 %v362, %v594
        %v620 = vsub.f32 %v363, %v594
        %v621 = vsub.f32 %v364, %v594
        %v622 = vsub.f32 %v365, %v594
        %v623 = vsub.f32 %v366, %v594
        %v624 = vsub.f32 %v367, %v594
        %v625 = vsub.f32 %v368, %v594
        %v626 = vsub.f32 %v369, %v594
        %v627 = vmul.f32 %v595, %v595
        %v628 = vmul.f32 %v596, %v596
        %v629 = vmul.f32 %v597, %v597
        %v630 = vmul.f32 %v598, %v598
        %v631 = vmul.f32 %v599, %v599
        %v632 = vmul.f32 %v600, %v600
        %v633 = vmul.f32 %v601, %v601
        %v634 = vmul.f32 %v602, %v602
        %v635 = vmul.f32 %v603, %v603
        %v636 = vmul.f32 %v604, %v604
        %v637 = vmul.f32 %v605, %v605
        %v638 = vmul.f32 %v606, %v606
        %v639 = vmul.f32 %v607, %v607
        %v640 = vmul.f32 %v608, %v608
        %v641 = vmul.f32 %v609, %v609
        %v642 = vmul.f32 %v610, %v610
        %v643 = vmul.f32 %v611, %v611
        %v644 = vmul.f32 %v612, %v612
        %v645 = vmul.f32 %v613, %v613
        %v646 = vmul.f32 %v614, %v614
        %v647 = vmul.f32 %v615, %v615
        %v648 = vmul.f32 %v616, %v616
        %v649 = vmul.f32 %v617, %v617
        %v650 = vmul.f32 %v618, %v618
        %v651 = vmul.f32 %v619, %v619
        %v652 = vmul.f32 %v620, %v620
        %v653 = vmul.f32 %v621, %v621
        %v654 = vmul.f32 %v622, %v622
        %v655 = vmul.f32 %v623, %v623
        %v656 = vmul.f32 %v624, %v624
        %v657 = vmul.f32 %v625, %v625
        %v658 = vmul.f32 %v626, %v626
        %v659 = vsel %vm517, %v627, 0.0
        %v660 = vsel %vm517, %v628, 0.0
        %v661 = vadd.f32 %v659, %v660
        %v662 = vsel %vm517, %v629, 0.0
        %v663 = vadd.f32 %v661, %v662
        %v664 = vsel %vm517, %v630, 0.0
        %v665 = vadd.f32 %v663, %v664
        %v666 = vsel %vm517, %v631, 0.0
        %v667 = vadd.f32 %v665, %v666
        %v668 = vsel %vm517, %v632, 0.0
        %v669 = vadd.f32 %v667, %v668
        %v670 = vsel %vm517, %v633, 0.0
        %v671 = vadd.f32 %v669, %v670
        %v672 = vsel %vm517, %v634, 0.0
        %v673 = vadd.f32 %v671, %v672
        %v674 = vsel %vm517, %v635, 0.0
        %v675 = vadd.f32 %v673, %v674
        %v676 = vsel %vm517, %v636, 0.0
        %v677 = vadd.f32 %v675, %v676
        %v678 = vsel %vm517, %v637, 0.0
        %v679 = vadd.f32 %v677, %v678
        %v680 = vsel %vm517, %v638, 0.0
        %v681 = vadd.f32 %v679, %v680
        %v682 = vsel %vm517, %v639, 0.0
        %v683 = vadd.f32 %v681, %v682
        %v684 = vsel %vm517, %v640, 0.0
        %v685 = vadd.f32 %v683, %v684
        %v686 = vsel %vm517, %v641, 0.0
        %v687 = vadd.f32 %v685, %v686
        %v688 = vsel %vm517, %v642, 0.0
        %v689 = vadd.f32 %v687, %v688
        %v690 = vsel %vm517, %v643, 0.0
        %v691 = vadd.f32 %v689, %v690
        %v692 = vsel %vm517, %v644, 0.0
        %v693 = vadd.f32 %v691, %v692
        %v694 = vsel %vm517, %v645, 0.0
        %v695 = vadd.f32 %v693, %v694
        %v696 = vsel %vm517, %v646, 0.0
        %v697 = vadd.f32 %v695, %v696
        %v698 = vsel %vm517, %v647, 0.0
        %v699 = vadd.f32 %v697, %v698
        %v700 = vsel %vm517, %v648, 0.0
        %v701 = vadd.f32 %v699, %v700
        %v702 = vsel %vm517, %v649, 0.0
        %v703 = vadd.f32 %v701, %v702
        %v704 = vsel %vm517, %v650, 0.0
        %v705 = vadd.f32 %v703, %v704
        %v706 = vsel %vm517, %v651, 0.0
        %v707 = vadd.f32 %v705, %v706
        %v708 = vsel %vm517, %v652, 0.0
        %v709 = vadd.f32 %v707, %v708
        %v710 = vsel %vm517, %v653, 0.0
        %v711 = vadd.f32 %v709, %v710
        %v712 = vsel %vm517, %v654, 0.0
        %v713 = vadd.f32 %v711, %v712
        %v714 = vsel %vm517, %v655, 0.0
        %v715 = vadd.f32 %v713, %v714
        %v716 = vsel %vm517, %v656, 0.0
        %v717 = vadd.f32 %v715, %v716
        %v718 = vsel %vm517, %v657, 0.0
        %v719 = vadd.f32 %v717, %v718
        %v720 = vsel %vm517, %v658, 0.0
        %v721 = vadd.f32 %v719, %v720
        %v722 = vrot.slane %v721, 4
        %v723 = vadd.f32 %v721, %v722
        %v724 = vrot.slane %v723, 2
        %v725 = vadd.f32 %v723, %v724
        %v726 = vrot.slane %v725, 1
        %v727 = vadd.f32 %v725, %v726
        %v728 = vmul.f32 %v727, %v593
        %v729 = vadd.f32 %v728, 1e-05
        %v730 = vrsqrt.pop %v729
        %v731 = vmul.f32 %v730, %v729
        %v732 = vmul.f32 %v731, %v730
        %v733 = vmul.f32 0.5, %v732
        %v734 = vsub.f32 1.5, %v733
        %v735 = vmul.f32 %v730, %v734
        %vm736 = vweird.f32 %v729
        %vm737 = vweird.f32 %v730
        %vm738 = vmor %vm736, %vm737
        %v739 = vsel %vm738, %v730, %v735
        %v740 = vmul.f32 %v595, %v739
        %v741 = vmul.f32 %v596, %v739
        %v742 = vmul.f32 %v597, %v739
        %v743 = vmul.f32 %v598, %v739
        %v744 = vmul.f32 %v599, %v739
        %v745 = vmul.f32 %v600, %v739
        %v746 = vmul.f32 %v601, %v739
        %v747 = vmul.f32 %v602, %v739
        %v748 = vmul.f32 %v603, %v739
        %v749 = vmul.f32 %v604, %v739
        %v750 = vmul.f32 %v605, %v739
        %v751 = vmul.f32 %v606, %v739
        %v752 = vmul.f32 %v607, %v739
        %v753 = vmul.f32 %v608, %v739
        %v754 = vmul.f32 %v609, %v739
        %v755 = vmul.f32 %v610, %v739
        %v756 = vmul.f32 %v611, %v739
        %v757 = vmul.f32 %v612, %v739
        %v758 = vmul.f32 %v613, %v739
        %v759 = vmul.f32 %v614, %v739
        %v760 = vmul.f32 %v615, %v739
        %v761 = vmul.f32 %v616, %v739
        %v762 = vmul.f32 %v617, %v739
        %v763 = vmul.f32 %v618, %v739
        %v764 = vmul.f32 %v619, %v739
        %v765 = vmul.f32 %v620, %v739
        %v766 = vmul.f32 %v621, %v739
        %v767 = vmul.f32 %v622, %v739
        %v768 = vmul.f32 %v623, %v739
        %v769 = vmul.f32 %v624, %v739
        %v770 = vmul.f32 %v625, %v739
        %v771 = vmul.f32 %v626, %v739
        %v772 = vperm.slane %v516, 0
        %v773 = vmul.f32 %v740, %v772
        %v774 = vmul.f32 %v741, %v772
        %v775 = vmul.f32 %v742, %v772
        %v776 = vmul.f32 %v743, %v772
        %v777 = vmul.f32 %v744, %v772
        %v778 = vmul.f32 %v745, %v772
        %v779 = vmul.f32 %v746, %v772
        %v780 = vmul.f32 %v747, %v772
        %v781 = vmul.f32 %v748, %v772
        %v782 = vmul.f32 %v749, %v772
        %v783 = vmul.f32 %v750, %v772
        %v784 = vmul.f32 %v751, %v772
        %v785 = vmul.f32 %v752, %v772
        %v786 = vmul.f32 %v753, %v772
        %v787 = vmul.f32 %v754, %v772
        %v788 = vmul.f32 %v755, %v772
        %v789 = vmul.f32 %v756, %v772
        %v790 = vmul.f32 %v757, %v772
        %v791 = vmul.f32 %v758, %v772
        %v792 = vmul.f32 %v759, %v772
        %v793 = vmul.f32 %v760, %v772
        %v794 = vmul.f32 %v761, %v772
        %v795 = vmul.f32 %v762, %v772
        %v796 = vmul.f32 %v763, %v772
        %v797 = vmul.f32 %v764, %v772
        %v798 = vmul.f32 %v765, %v772
        %v799 = vmul.f32 %v766, %v772
        %v800 = vmul.f32 %v767, %v772
        %v801 = vmul.f32 %v768, %v772
        %v802 = vmul.f32 %v769, %v772
        %v803 = vmul.f32 %v770, %v772
        %v804 = vmul.f32 %v771, %v772
        %v805 = vperm.slane %v516, 1
        %v806 = vadd.f32 %v773, %v805
        %v807 = vadd.f32 %v774, %v805
        %v808 = vadd.f32 %v775, %v805
        %v809 = vadd.f32 %v776, %v805
        %v810 = vadd.f32 %v777, %v805
        %v811 = vadd.f32 %v778, %v805
        %v812 = vadd.f32 %v779, %v805
        %v813 = vadd.f32 %v780, %v805
        %v814 = vadd.f32 %v781, %v805
        %v815 = vadd.f32 %v782, %v805
        %v816 = vadd.f32 %v783, %v805
        %v817 = vadd.f32 %v784, %v805
        %v818 = vadd.f32 %v785, %v805
        %v819 = vadd.f32 %v786, %v805
        %v820 = vadd.f32 %v787, %v805
        %v821 = vadd.f32 %v788, %v805
        %v822 = vadd.f32 %v789, %v805
        %v823 = vadd.f32 %v790, %v805
        %v824 = vadd.f32 %v791, %v805
        %v825 = vadd.f32 %v792, %v805
        %v826 = vadd.f32 %v793, %v805
        %v827 = vadd.f32 %v794, %v805
        %v828 = vadd.f32 %v795, %v805
        %v829 = vadd.f32 %v796, %v805
        %v830 = vadd.f32 %v797, %v805
        %v831 = vadd.f32 %v798, %v805
        %v832 = vadd.f32 %v799, %v805
        %v833 = vadd.f32 %v800, %v805
        %v834 = vadd.f32 %v801, %v805
        %v835 = vadd.f32 %v802, %v805
        %v836 = vadd.f32 %v803, %v805
        %v837 = vadd.f32 %v804, %v805
        %v838 = vadd.f32 %v806, %v394
        %v839 = vadd.f32 %v807, %v395
        %v840 = vadd.f32 %v808, %v396
        %v841 = vadd.f32 %v809, %v397
        %v842 = vadd.f32 %v810, %v398
        %v843 = vadd.f32 %v811, %v399
        %v844 = vadd.f32 %v812, %v400
        %v845 = vadd.f32 %v813, %v401
        %v846 = vadd.f32 %v814, %v402
        %v847 = vadd.f32 %v815, %v403
        %v848 = vadd.f32 %v816, %v404
        %v849 = vadd.f32 %v817, %v405
        %v850 = vadd.f32 %v818, %v406
        %v851 = vadd.f32 %v819, %v407
        %v852 = vadd.f32 %v820, %v408
        %v853 = vadd.f32 %v821, %v409
        %v854 = vadd.f32 %v822, %v426
        %v855 = vadd.f32 %v823, %v427
        %v856 = vadd.f32 %v824, %v428
        %v857 = vadd.f32 %v825, %v429
        %v858 = vadd.f32 %v826, %v430
        %v859 = vadd.f32 %v827, %v431
        %v860 = vadd.f32 %v828, %v432
        %v861 = vadd.f32 %v829, %v433
        %v862 = vadd.f32 %v830, %v434
        %v863 = vadd.f32 %v831, %v435
        %v864 = vadd.f32 %v832, %v436
        %v865 = vadd.f32 %v833, %v437
        %v866 = vadd.f32 %v834, %v438
        %v867 = vadd.f32 %v835, %v439
        %v868 = vadd.f32 %v836, %v440
        %v869 = vadd.f32 %v837, %v441
        %v870 = vld [vmem:[#allocation2 + $0xa8] sm:$0x7]
        %v871 = vld [vmem:[#allocation2 + $0x8] sm:$0xff]
        %v872 = vld [vmem:[#allocation2 + $0x10] sm:$0xff]
        %v873 = vld [vmem:[#allocation2 + $0x18] sm:$0xff]
        %v874 = vld [vmem:[#allocation2 + $0x20] sm:$0xff]
        %v875 = vperm.slane %v870, 0
        %v877 = vsel %vm517, %v514, 0
        %v880 = vsel %vm517, %v515, 0
        %882 = vmatpush.msra.mxu0 0.0
        %883 = vmatpush.msra.mxu0 0.0
        %884 = vmatpush.msra.mxu0 0.0
        %885 = vmatpush.msra.mxu0 0.0
        %886 = vmatpush.msra.mxu0 0.0
        %887 = vmatpush.msra.mxu0 0.0
        %888 = vmatpush.msra.mxu0 0.0
        %889 = vmatpush.msra.mxu0 0.0
        %890 = vmatpush.msra.mxu0 0.0
        %891 = vmatpush.msra.mxu0 0.0
        %892 = vmatpush.msra.mxu0 0.0
        %893 = vmatpush.msra.mxu0 0.0
        %894 = vmatpush.msra.mxu0 %v874
        %895 = vmatpush.msra.mxu0 %v873
        %896 = vmatpush.msra.mxu0 %v872
        %897 = vmatpush.msra.mxu0 %v871
        %898 = vmatmul.f32.gmra.mxu0 %v877
        %v899 = vpop.f32.mrf.mxu0
        %v900 = vadd.f32 %v875, %v899
        %901 = vmatmul.f32.gmra.mxu0 %v880
        %v902 = vpop.f32.mrf.mxu0
        %v903 = vadd.f32 %v875, %v902
        %904 = vdwg.mxu0
        %v905 = vadd.f32 %v838, %v466
        %v906 = vadd.f32 %v839, %v467
        %v907 = vadd.f32 %v840, %v468
        %v908 = vadd.f32 %v841, %v469
        %v909 = vadd.f32 %v842, %v470
        %v910 = vadd.f32 %v843, %v471
        %v911 = vadd.f32 %v844, %v472
        %v912 = vadd.f32 %v845, %v473
        %v913 = vadd.f32 %v846, %v474
        %v914 = vadd.f32 %v847, %v475
        %v915 = vadd.f32 %v848, %v476
        %v916 = vadd.f32 %v849, %v477
        %v917 = vadd.f32 %v850, %v478
        %v918 = vadd.f32 %v851, %v479
        %v919 = vadd.f32 %v852, %v480
        %v920 = vadd.f32 %v853, %v481
        %v921 = vadd.f32 %v854, %v498
        %v922 = vadd.f32 %v855, %v499
        %v923 = vadd.f32 %v856, %v500
        %v924 = vadd.f32 %v857, %v501
        %v925 = vadd.f32 %v858, %v502
        %v926 = vadd.f32 %v859, %v503
        %v927 = vadd.f32 %v860, %v504
        %v928 = vadd.f32 %v861, %v505
        %v929 = vadd.f32 %v862, %v506
        %v930 = vadd.f32 %v863, %v507
        %v931 = vadd.f32 %v864, %v508
        %v932 = vadd.f32 %v865, %v509
        %v933 = vadd.f32 %v866, %v510
        %v934 = vadd.f32 %v867, %v511
        %v935 = vadd.f32 %v868, %v512
        %v936 = vadd.f32 %v869, %v513
        %v937 = vld [vmem:[#allocation2 + $0x28] sm:$0xff]
        %v938 = vld [vmem:[#allocation2 + $0x30] sm:$0xff]
        %v939 = vld [vmem:[#allocation2 + $0x38] sm:$0xff]
        %v940 = vld [vmem:[#allocation2 + $0x40] sm:$0xff]
        %v941 = vperm.slane %v870, 1
        %v943 = vsel %vm517, %v905, 0
        %v946 = vsel %vm517, %v906, 0
        %v949 = vsel %vm517, %v907, 0
        %v952 = vsel %vm517, %v908, 0
        %v955 = vsel %vm517, %v909, 0
        %v958 = vsel %vm517, %v910, 0
        %v961 = vsel %vm517, %v911, 0
        %v964 = vsel %vm517, %v912, 0
        %v967 = vsel %vm517, %v913, 0
        %v970 = vsel %vm517, %v914, 0
        %v973 = vsel %vm517, %v915, 0
        %v976 = vsel %vm517, %v916, 0
        %v979 = vsel %vm517, %v917, 0
        %v982 = vsel %vm517, %v918, 0
        %v985 = vsel %vm517, %v919, 0
        %v988 = vsel %vm517, %v920, 0
        %v991 = vsel %vm517, %v921, 0
        %v994 = vsel %vm517, %v922, 0
        %v997 = vsel %vm517, %v923, 0
        %v1000 = vsel %vm517, %v924, 0
        %v1003 = vsel %vm517, %v925, 0
        %v1006 = vsel %vm517, %v926, 0
        %v1009 = vsel %vm517, %v927, 0
        %v1012 = vsel %vm517, %v928, 0
        %v1015 = vsel %vm517, %v929, 0
        %v1018 = vsel %vm517, %v930, 0
        %v1021 = vsel %vm517, %v931, 0
        %v1024 = vsel %vm517, %v932, 0
        %v1027 = vsel %vm517, %v933, 0
        %v1030 = vsel %vm517, %v934, 0
        %v1033 = vsel %vm517, %v935, 0
        %v1036 = vsel %vm517, %v936, 0
        %1038 = vmatpush.msra.mxu0 0.0
        %1039 = vmatpush.msra.mxu0 0.0
        %1040 = vmatpush.msra.mxu0 0.0
        %1041 = vmatpush.msra.mxu0 0.0
        %1042 = vmatpush.msra.mxu0 0.0
        %1043 = vmatpush.msra.mxu0 0.0
        %1044 = vmatpush.msra.mxu0 0.0
        %1045 = vmatpush.msra.mxu0 0.0
        %1046 = vmatpush.msra.mxu0 0.0
        %1047 = vmatpush.msra.mxu0 0.0
        %1048 = vmatpush.msra.mxu0 0.0
        %1049 = vmatpush.msra.mxu0 0.0
        %1050 = vmatpush.msra.mxu0 %v940
        %1051 = vmatpush.msra.mxu0 %v939
        %1052 = vmatpush.msra.mxu0 %v938
        %1053 = vmatpush.msra.mxu0 %v937
        %1054 = vmatmul.f32.gmra.mxu0 %v943
        %v1055 = vpop.f32.mrf.mxu0
        %v1056 = vadd.f32 %v941, %v1055
        %1057 = vmatmul.f32.gmra.mxu0 %v946
        %v1058 = vpop.f32.mrf.mxu0
        %v1059 = vadd.f32 %v941, %v1058
        %1060 = vmatmul.f32.gmra.mxu0 %v949
        %v1061 = vpop.f32.mrf.mxu0
        %v1062 = vadd.f32 %v941, %v1061
        %1063 = vmatmul.f32.gmra.mxu0 %v952
        %v1064 = vpop.f32.mrf.mxu0
        %v1065 = vadd.f32 %v941, %v1064
        %1066 = vmatmul.f32.gmra.mxu0 %v955
        %v1067 = vpop.f32.mrf.mxu0
        %v1068 = vadd.f32 %v941, %v1067
        %1069 = vmatmul.f32.gmra.mxu0 %v958
        %v1070 = vpop.f32.mrf.mxu0
        %v1071 = vadd.f32 %v941, %v1070
        %1072 = vmatmul.f32.gmra.mxu0 %v961
        %v1073 = vpop.f32.mrf.mxu0
        %v1074 = vadd.f32 %v941, %v1073
        %1075 = vmatmul.f32.gmra.mxu0 %v964
        %v1076 = vpop.f32.mrf.mxu0
        %v1077 = vadd.f32 %v941, %v1076
        %1078 = vmatmul.f32.gmra.mxu0 %v967
        %v1079 = vpop.f32.mrf.mxu0
        %v1080 = vadd.f32 %v941, %v1079
        %1081 = vmatmul.f32.gmra.mxu0 %v970
        %v1082 = vpop.f32.mrf.mxu0
        %v1083 = vadd.f32 %v941, %v1082
        %1084 = vmatmul.f32.gmra.mxu0 %v973
        %v1085 = vpop.f32.mrf.mxu0
        %v1086 = vadd.f32 %v941, %v1085
        %1087 = vmatmul.f32.gmra.mxu0 %v976
        %v1088 = vpop.f32.mrf.mxu0
        %v1089 = vadd.f32 %v941, %v1088
        %1090 = vmatmul.f32.gmra.mxu0 %v979
        %v1091 = vpop.f32.mrf.mxu0
        %v1092 = vadd.f32 %v941, %v1091
        %1093 = vmatmul.f32.gmra.mxu0 %v982
        %v1094 = vpop.f32.mrf.mxu0
        %v1095 = vadd.f32 %v941, %v1094
        %1096 = vmatmul.f32.gmra.mxu0 %v985
        %v1097 = vpop.f32.mrf.mxu0
        %v1098 = vadd.f32 %v941, %v1097
        %1099 = vmatmul.f32.gmra.mxu0 %v988
        %v1100 = vpop.f32.mrf.mxu0
        %v1101 = vadd.f32 %v941, %v1100
        %1102 = vmatmul.f32.gmra.mxu0 %v991
        %v1103 = vpop.f32.mrf.mxu0
        %v1104 = vadd.f32 %v941, %v1103
        %1105 = vmatmul.f32.gmra.mxu0 %v994
        %v1106 = vpop.f32.mrf.mxu0
        %v1107 = vadd.f32 %v941, %v1106
        %1108 = vmatmul.f32.gmra.mxu0 %v997
        %v1109 = vpop.f32.mrf.mxu0
        %v1110 = vadd.f32 %v941, %v1109
        %1111 = vmatmul.f32.gmra.mxu0 %v1000
        %v1112 = vpop.f32.mrf.mxu0
        %v1113 = vadd.f32 %v941, %v1112
        %1114 = vmatmul.f32.gmra.mxu0 %v1003
        %v1115 = vpop.f32.mrf.mxu0
        %v1116 = vadd.f32 %v941, %v1115
        %1117 = vmatmul.f32.gmra.mxu0 %v1006
        %v1118 = vpop.f32.mrf.mxu0
        %v1119 = vadd.f32 %v941, %v1118
        %1120 = vmatmul.f32.gmra.mxu0 %v1009
        %v1121 = vpop.f32.mrf.mxu0
        %v1122 = vadd.f32 %v941, %v1121
        %1123 = vmatmul.f32.gmra.mxu0 %v1012
        %v1124 = vpop.f32.mrf.mxu0
        %v1125 = vadd.f32 %v941, %v1124
        %1126 = vmatmul.f32.gmra.mxu0 %v1015
        %v1127 = vpop.f32.mrf.mxu0
        %v1128 = vadd.f32 %v941, %v1127
        %1129 = vmatmul.f32.gmra.mxu0 %v1018
        %v1130 = vpop.f32.mrf.mxu0
        %v1131 = vadd.f32 %v941, %v1130
        %1132 = vmatmul.f32.gmra.mxu0 %v1021
        %v1133 = vpop.f32.mrf.mxu0
        %v1134 = vadd.f32 %v941, %v1133
        %1135 = vmatmul.f32.gmra.mxu0 %v1024
        %v1136 = vpop.f32.mrf.mxu0
        %v1137 = vadd.f32 %v941, %v1136
        %1138 = vmatmul.f32.gmra.mxu0 %v1027
        %v1139 = vpop.f32.mrf.mxu0
        %v1140 = vadd.f32 %v941, %v1139
        %1141 = vmatmul.f32.gmra.mxu0 %v1030
        %v1142 = vpop.f32.mrf.mxu0
        %v1143 = vadd.f32 %v941, %v1142
        %1144 = vmatmul.f32.gmra.mxu0 %v1033
        %v1145 = vpop.f32.mrf.mxu0
        %v1146 = vadd.f32 %v941, %v1145
        %1147 = vmatmul.f32.gmra.mxu0 %v1036
        %v1148 = vpop.f32.mrf.mxu0
        %v1149 = vadd.f32 %v941, %v1148
        %1150 = vdwg.mxu0
        %v1151 = vld [vmem:[#allocation2 + $0x48] sm:$0xff]
        %v1152 = vld [vmem:[#allocation2 + $0x50] sm:$0xff]
        %v1153 = vld [vmem:[#allocation2 + $0x58] sm:$0xff]
        %v1154 = vld [vmem:[#allocation2 + $0x60] sm:$0xff]
        %v1155 = vperm.slane %v870, 2
        %v1157 = vsel %vm517, %v838, 0
        %v1160 = vsel %vm517, %v839, 0
        %v1163 = vsel %vm517, %v840, 0
        %v1166 = vsel %vm517, %v841, 0
        %v1169 = vsel %vm517, %v842, 0
        %v1172 = vsel %vm517, %v843, 0
        %v1175 = vsel %vm517, %v844, 0
        %v1178 = vsel %vm517, %v845, 0
        %v1181 = vsel %vm517, %v846, 0
        %v1184 = vsel %vm517, %v847, 0
        %v1187 = vsel %vm517, %v848, 0
        %v1190 = vsel %vm517, %v849, 0
        %v1193 = vsel %vm517, %v850, 0
        %v1196 = vsel %vm517, %v851, 0
        %v1199 = vsel %vm517, %v852, 0
        %v1202 = vsel %vm517, %v853, 0
        %v1205 = vsel %vm517, %v854, 0
        %v1208 = vsel %vm517, %v855, 0
        %v1211 = vsel %vm517, %v856, 0
        %v1214 = vsel %vm517, %v857, 0
        %v1217 = vsel %vm517, %v858, 0
        %v1220 = vsel %vm517, %v859, 0
        %v1223 = vsel %vm517, %v860, 0
        %v1226 = vsel %vm517, %v861, 0
        %v1229 = vsel %vm517, %v862, 0
        %v1232 = vsel %vm517, %v863, 0
        %v1235 = vsel %vm517, %v864, 0
        %v1238 = vsel %vm517, %v865, 0
        %v1241 = vsel %vm517, %v866, 0
        %v1244 = vsel %vm517, %v867, 0
        %v1247 = vsel %vm517, %v868, 0
        %v1250 = vsel %vm517, %v869, 0
        %1252 = vmatpush.msra.mxu0 0.0
        %1253 = vmatpush.msra.mxu0 0.0
        %1254 = vmatpush.msra.mxu0 0.0
        %1255 = vmatpush.msra.mxu0 0.0
        %1256 = vmatpush.msra.mxu0 0.0
        %1257 = vmatpush.msra.mxu0 0.0
        %1258 = vmatpush.msra.mxu0 0.0
        %1259 = vmatpush.msra.mxu0 0.0
        %1260 = vmatpush.msra.mxu0 0.0
        %1261 = vmatpush.msra.mxu0 0.0
        %1262 = vmatpush.msra.mxu0 0.0
        %1263 = vmatpush.msra.mxu0 0.0
        %1264 = vmatpush.msra.mxu0 %v1154
        %1265 = vmatpush.msra.mxu0 %v1153
        %1266 = vmatpush.msra.mxu0 %v1152
        %1267 = vmatpush.msra.mxu0 %v1151
        %1268 = vmatmul.f32.gmra.mxu0 %v1157
        %v1269 = vpop.f32.mrf.mxu0
        %v1270 = vadd.f32 %v1155, %v1269
        %1271 = vmatmul.f32.gmra.mxu0 %v1160
        %v1272 = vpop.f32.mrf.mxu0
        %v1273 = vadd.f32 %v1155, %v1272
        %1274 = vmatmul.f32.gmra.mxu0 %v1163
        %v1275 = vpop.f32.mrf.mxu0
        %v1276 = vadd.f32 %v1155, %v1275
        %1277 = vmatmul.f32.gmra.mxu0 %v1166
        %v1278 = vpop.f32.mrf.mxu0
        %v1279 = vadd.f32 %v1155, %v1278
        %1280 = vmatmul.f32.gmra.mxu0 %v1169
        %v1281 = vpop.f32.mrf.mxu0
        %v1282 = vadd.f32 %v1155, %v1281
        %1283 = vmatmul.f32.gmra.mxu0 %v1172
        %v1284 = vpop.f32.mrf.mxu0
        %v1285 = vadd.f32 %v1155, %v1284
        %1286 = vmatmul.f32.gmra.mxu0 %v1175
        %v1287 = vpop.f32.mrf.mxu0
        %v1288 = vadd.f32 %v1155, %v1287
        %1289 = vmatmul.f32.gmra.mxu0 %v1178
        %v1290 = vpop.f32.mrf.mxu0
        %v1291 = vadd.f32 %v1155, %v1290
        %1292 = vmatmul.f32.gmra.mxu0 %v1181
        %v1293 = vpop.f32.mrf.mxu0
        %v1294 = vadd.f32 %v1155, %v1293
        %1295 = vmatmul.f32.gmra.mxu0 %v1184
        %v1296 = vpop.f32.mrf.mxu0
        %v1297 = vadd.f32 %v1155, %v1296
        %1298 = vmatmul.f32.gmra.mxu0 %v1187
        %v1299 = vpop.f32.mrf.mxu0
        %v1300 = vadd.f32 %v1155, %v1299
        %1301 = vmatmul.f32.gmra.mxu0 %v1190
        %v1302 = vpop.f32.mrf.mxu0
        %v1303 = vadd.f32 %v1155, %v1302
        %1304 = vmatmul.f32.gmra.mxu0 %v1193
        %v1305 = vpop.f32.mrf.mxu0
        %v1306 = vadd.f32 %v1155, %v1305
        %1307 = vmatmul.f32.gmra.mxu0 %v1196
        %v1308 = vpop.f32.mrf.mxu0
        %v1309 = vadd.f32 %v1155, %v1308
        %1310 = vmatmul.f32.gmra.mxu0 %v1199
        %v1311 = vpop.f32.mrf.mxu0
        %v1312 = vadd.f32 %v1155, %v1311
        %1313 = vmatmul.f32.gmra.mxu0 %v1202
        %v1314 = vpop.f32.mrf.mxu0
        %v1315 = vadd.f32 %v1155, %v1314
        %1316 = vmatmul.f32.gmra.mxu0 %v1205
        %v1317 = vpop.f32.mrf.mxu0
        %v1318 = vadd.f32 %v1155, %v1317
        %1319 = vmatmul.f32.gmra.mxu0 %v1208
        %v1320 = vpop.f32.mrf.mxu0
        %v1321 = vadd.f32 %v1155, %v1320
        %1322 = vmatmul.f32.gmra.mxu0 %v1211
        %v1323 = vpop.f32.mrf.mxu0
        %v1324 = vadd.f32 %v1155, %v1323
        %1325 = vmatmul.f32.gmra.mxu0 %v1214
        %v1326 = vpop.f32.mrf.mxu0
        %v1327 = vadd.f32 %v1155, %v1326
        %1328 = vmatmul.f32.gmra.mxu0 %v1217
        %v1329 = vpop.f32.mrf.mxu0
        %v1330 = vadd.f32 %v1155, %v1329
        %1331 = vmatmul.f32.gmra.mxu0 %v1220
        %v1332 = vpop.f32.mrf.mxu0
        %v1333 = vadd.f32 %v1155, %v1332
        %1334 = vmatmul.f32.gmra.mxu0 %v1223
        %v1335 = vpop.f32.mrf.mxu0
        %v1336 = vadd.f32 %v1155, %v1335
        %1337 = vmatmul.f32.gmra.mxu0 %v1226
        %v1338 = vpop.f32.mrf.mxu0
        %v1339 = vadd.f32 %v1155, %v1338
        %1340 = vmatmul.f32.gmra.mxu0 %v1229
        %v1341 = vpop.f32.mrf.mxu0
        %v1342 = vadd.f32 %v1155, %v1341
        %1343 = vmatmul.f32.gmra.mxu0 %v1232
        %v1344 = vpop.f32.mrf.mxu0
        %v1345 = vadd.f32 %v1155, %v1344
        %1346 = vmatmul.f32.gmra.mxu0 %v1235
        %v1347 = vpop.f32.mrf.mxu0
        %v1348 = vadd.f32 %v1155, %v1347
        %1349 = vmatmul.f32.gmra.mxu0 %v1238
        %v1350 = vpop.f32.mrf.mxu0
        %v1351 = vadd.f32 %v1155, %v1350
        %1352 = vmatmul.f32.gmra.mxu0 %v1241
        %v1353 = vpop.f32.mrf.mxu0
        %v1354 = vadd.f32 %v1155, %v1353
        %1355 = vmatmul.f32.gmra.mxu0 %v1244
        %v1356 = vpop.f32.mrf.mxu0
        %v1357 = vadd.f32 %v1155, %v1356
        %1358 = vmatmul.f32.gmra.mxu0 %v1247
        %v1359 = vpop.f32.mrf.mxu0
        %v1360 = vadd.f32 %v1155, %v1359
        %1361 = vmatmul.f32.gmra.mxu0 %v1250
        %v1362 = vpop.f32.mrf.mxu0
        %v1363 = vadd.f32 %v1155, %v1362
        %1364 = vdwg.mxu0
        %v1366 = vsel %vm517, %v900, 0
        %v1369 = vsel %vm517, %v903, 0
        %v1372 = vsel %vm517, %v1056, 0
        %v1375 = vsel %vm517, %v1059, 0
        %v1378 = vsel %vm517, %v1062, 0
        %v1381 = vsel %vm517, %v1065, 0
        %v1384 = vsel %vm517, %v1068, 0
        %v1387 = vsel %vm517, %v1071, 0
        %v1390 = vsel %vm517, %v1074, 0
        %v1393 = vsel %vm517, %v1077, 0
        %v1396 = vsel %vm517, %v1080, 0
        %v1399 = vsel %vm517, %v1083, 0
        %v1402 = vsel %vm517, %v1086, 0
        %v1405 = vsel %vm517, %v1089, 0
        %v1408 = vsel %vm517, %v1092, 0
        %v1411 = vsel %vm517, %v1095, 0
        %v1414 = vsel %vm517, %v1098, 0
        %v1417 = vsel %vm517, %v1101, 0
        %v1420 = vsel %vm517, %v1104, 0
        %v1423 = vsel %vm517, %v1107, 0
        %v1426 = vsel %vm517, %v1110, 0
        %v1429 = vsel %vm517, %v1113, 0
        %v1432 = vsel %vm517, %v1116, 0
        %v1435 = vsel %vm517, %v1119, 0
        %v1438 = vsel %vm517, %v1122, 0
        %v1441 = vsel %vm517, %v1125, 0
        %v1444 = vsel %vm517, %v1128, 0
        %v1447 = vsel %vm517, %v1131, 0
        %v1450 = vsel %vm517, %v1134, 0
        %v1453 = vsel %vm517, %v1137, 0
        %v1456 = vsel %vm517, %v1140, 0
        %v1459 = vsel %vm517, %v1143, 0
        %v1462 = vsel %vm517, %v1146, 0
        %v1465 = vsel %vm517, %v1149, 0
        %1467 = vmatpush.xpose.msra.mxu0 %v1417
        %1468 = vmatpush.xpose.msra.mxu0 %v1414
        %1469 = vmatpush.xpose.msra.mxu0 %v1411
        %1470 = vmatpush.xpose.msra.mxu0 %v1408
        %1471 = vmatpush.xpose.msra.mxu0 %v1405
        %1472 = vmatpush.xpose.msra.mxu0 %v1402
        %1473 = vmatpush.xpose.msra.mxu0 %v1399
        %1474 = vmatpush.xpose.msra.mxu0 %v1396
        %1475 = vmatpush.xpose.msra.mxu0 %v1393
        %1476 = vmatpush.xpose.msra.mxu0 %v1390
        %1477 = vmatpush.xpose.msra.mxu0 %v1387
        %1478 = vmatpush.xpose.msra.mxu0 %v1384
        %1479 = vmatpush.xpose.msra.mxu0 %v1381
        %1480 = vmatpush.xpose.msra.mxu0 %v1378
        %1481 = vmatpush.xpose.msra.mxu0 %v1375
        %1482 = vmatpush.xpose.msra.mxu0 %v1372
        %1483 = vmatmul.f32.gmra.mxu0 %v1366
        %v1484 = vpop.f32.mrf.mxu0
        %v1485 = vadd.f32 0.0, %v1484
        %1486 = vmatmul.f32.gmra.mxu0 %v1369
        %v1487 = vpop.f32.mrf.mxu0
        %v1488 = vadd.f32 0.0, %v1487
        %1489 = vdwg.mxu0
        %1490 = vmatpush.xpose.msra.mxu0 %v1465
        %1491 = vmatpush.xpose.msra.mxu0 %v1462
        %1492 = vmatpush.xpose.msra.mxu0 %v1459
        %1493 = vmatpush.xpose.msra.mxu0 %v1456
        %1494 = vmatpush.xpose.msra.mxu0 %v1453
        %1495 = vmatpush.xpose.msra.mxu0 %v1450
        %1496 = vmatpush.xpose.msra.mxu0 %v1447
        %1497 = vmatpush.xpose.msra.mxu0 %v1444
        %1498 = vmatpush.xpose.msra.mxu0 %v1441
        %1499 = vmatpush.xpose.msra.mxu0 %v1438
        %1500 = vmatpush.xpose.msra.mxu0 %v1435
        %1501 = vmatpush.xpose.msra.mxu0 %v1432
        %1502 = vmatpush.xpose.msra.mxu0 %v1429
        %1503 = vmatpush.xpose.msra.mxu0 %v1426
        %1504 = vmatpush.xpose.msra.mxu0 %v1423
        %1505 = vmatpush.xpose.msra.mxu0 %v1420
        %1506 = vmatmul.f32.gmra.mxu0 %v1366
        %v1507 = vpop.f32.mrf.mxu0
        %v1508 = vadd.f32 0.0, %v1507
        %1509 = vmatmul.f32.gmra.mxu0 %v1369
        %v1510 = vpop.f32.mrf.mxu0
        %v1511 = vadd.f32 0.0, %v1510
        %1512 = vdwg.mxu0
        %v1513 = vmul.f32 %v1485, 0.17677669
        %v1514 = vmul.f32 %v1508, 0.17677669
        %v1515 = vmul.f32 %v1488, 0.17677669
        %v1516 = vmul.f32 %v1511, 0.17677669
        %v1517 = vmax.f32 %v1513, %v1514
        %1518 = vmax.xlane.f32.xlu0 %v1517
        %v1519 = vpop.xlane.xlu0 %1518
        %vm1520 = vcmask 1043456
        %v1521 = vsel %vm1520, %v1515, -inf
        %v1522 = vsel %vm1520, %v1516, -inf
        %v1523 = vmax.f32 %v1521, %v1522
        %1524 = vmax.xlane.f32.xlu0 %v1523
        %v1525 = vpop.xlane.xlu0 %1524
        %v1526 = vsub.f32 %v1513, %v1519
        %v1527 = vsub.f32 %v1514, %v1519
        %v1528 = vsub.f32 %v1515, %v1525
        %v1529 = vsub.f32 %v1516, %v1525
        %v1530 = vmul.f32 %v1526, 1.442695
        %v1531 = vpow.pop %v1530
        %v1532 = vmul.f32 %v1527, 1.442695
        %v1533 = vpow.pop %v1532
        %v1534 = vmul.f32 %v1528, 1.442695
        %v1535 = vpow.pop %v1534
        %v1536 = vmul.f32 %v1529, 1.442695
        %v1537 = vpow.pop %v1536
        %v1538 = vadd.f32 %v1531, %v1533
        %1539 = vadd.xlane.f32.xlu0 %v1538
        %v1540 = vpop.xlane.xlu0 %1539
        %v1541 = vsel %vm1520, %v1535, 0.0
        %v1542 = vsel %vm1520, %v1537, 0.0
        %v1543 = vadd.f32 %v1541, %v1542
        %1544 = vadd.xlane.f32.xlu0 %v1543
        %v1545 = vpop.xlane.xlu0 %1544
        %v1546 = vrcp.pop %v1540
        %v1547 = vrcp.pop %v1545
        %v1548 = vmul.f32 %v1531, %v1546
        %v1549 = vmul.f32 %v1533, %v1546
        %v1550 = vmul.f32 %v1535, %v1547
        %v1551 = vmul.f32 %v1537, %v1547
        %1552 = vmatpush.msra.mxu0 %v1315
        %1553 = vmatpush.msra.mxu0 %v1312
        %1554 = vmatpush.msra.mxu0 %v1309
        %1555 = vmatpush.msra.mxu0 %v1306
        %1556 = vmatpush.msra.mxu0 %v1303
        %1557 = vmatpush.msra.mxu0 %v1300
        %1558 = vmatpush.msra.mxu0 %v1297
        %1559 = vmatpush.msra.mxu0 %v1294
        %1560 = vmatpush.msra.mxu0 %v1291
        %1561 = vmatpush.msra.mxu0 %v1288
        %1562 = vmatpush.msra.mxu0 %v1285
        %1563 = vmatpush.msra.mxu0 %v1282
        %1564 = vmatpush.msra.mxu0 %v1279
        %1565 = vmatpush.msra.mxu0 %v1276
        %1566 = vmatpush.msra.mxu0 %v1273
        %1567 = vmatpush.msra.mxu0 %v1270
        %1568 = vmatmul.f32.gmra.mxu0 %v1548
        %v1569 = vpop.f32.mrf.mxu0
        %v1570 = vadd.f32 0.0, %v1569
        %1571 = vmatmul.f32.gmra.mxu0 %v1550
        %v1572 = vpop.f32.mrf.mxu0
        %v1573 = vadd.f32 0.0, %v1572
        %1574 = vdwg.mxu0
        %1575 = vmatpush.msra.mxu0 %v1363
        %1576 = vmatpush.msra.mxu0 %v1360
        %1577 = vmatpush.msra.mxu0 %v1357
        %1578 = vmatpush.msra.mxu0 %v1354
        %1579 = vmatpush.msra.mxu0 %v1351
        %1580 = vmatpush.msra.mxu0 %v1348
        %1581 = vmatpush.msra.mxu0 %v1345
        %1582 = vmatpush.msra.mxu0 %v1342
        %1583 = vmatpush.msra.mxu0 %v1339
        %1584 = vmatpush.msra.mxu0 %v1336
        %1585 = vmatpush.msra.mxu0 %v1333
        %1586 = vmatpush.msra.mxu0 %v1330
        %1587 = vmatpush.msra.mxu0 %v1327
        %1588 = vmatpush.msra.mxu0 %v1324
        %1589 = vmatpush.msra.mxu0 %v1321
        %1590 = vmatpush.msra.mxu0 %v1318
        %1591 = vmatmul.f32.gmra.mxu0 %v1549
        %v1592 = vpop.f32.mrf.mxu0
        %v1593 = vadd.f32 %v1570, %v1592
        %1594 = vmatmul.f32.gmra.mxu0 %v1551
        %v1595 = vpop.f32.mrf.mxu0
        %v1596 = vadd.f32 %v1573, %v1595
        %1597 = vdwg.mxu0
        %v1598 = vld [vmem:[#allocation2 + $0x68] sm:$0xff]
        %v1599 = vld [vmem:[#allocation2 + $0x70] sm:$0xff]
        %v1600 = vld [vmem:[#allocation2 + $0x78] sm:$0xff]
        %v1601 = vld [vmem:[#allocation2 + $0x80] sm:$0xff]
        %v1603 = vsel %vm517, %v1593, 0
        %v1606 = vsel %vm517, %v1596, 0
        %1608 = vmatpush.msra.mxu0 0.0
        %1609 = vmatpush.msra.mxu0 0.0
        %1610 = vmatpush.msra.mxu0 0.0
        %1611 = vmatpush.msra.mxu0 0.0
        %1612 = vmatpush.msra.mxu0 0.0
        %1613 = vmatpush.msra.mxu0 0.0
        %1614 = vmatpush.msra.mxu0 0.0
        %1615 = vmatpush.msra.mxu0 0.0
        %1616 = vmatpush.msra.mxu0 0.0
        %1617 = vmatpush.msra.mxu0 0.0
        %1618 = vmatpush.msra.mxu0 0.0
        %1619 = vmatpush.msra.mxu0 0.0
        %1620 = vmatpush.msra.mxu0 %v1601
        %1621 = vmatpush.msra.mxu0 %v1600
        %1622 = vmatpush.msra.mxu0 %v1599
        %1623 = vmatpush.msra.mxu0 %v1598
        %1624 = vmatmul.f32.gmra.mxu0 %v1603
        %v1625 = vpop.f32.mrf.mxu0
        %v1626 = vadd.f32 0.0, %v1625
        %1627 = vmatmul.f32.gmra.mxu0 %v1606
        %v1628 = vpop.f32.mrf.mxu0
        %v1629 = vadd.f32 0.0, %v1628
        %1630 = vdwg.mxu0
        %v1631 = vadd.f32 %v514, %v1626
        %v1632 = vadd.f32 %v515, %v1629
        %1633 = vxpose.xlu0.b32.start [1/16] %v1548, 128
        %1634 = vxpose.xlu0.b32.cont [2/16] %v1550, 128
        %1635 = vxpose.xlu0.b32.cont [3/16] 0.0, 128
        %1636 = vxpose.xlu0.b32.cont [4/16] 0.0, 128
        %1637 = vxpose.xlu0.b32.cont [5/16] 0.0, 128
        %1638 = vxpose.xlu0.b32.cont [6/16] 0.0, 128
        %1639 = vxpose.xlu0.b32.cont [7/16] 0.0, 128
        %1640 = vxpose.xlu0.b32.cont [8/16] 0.0, 128
        %1641 = vxpose.xlu0.b32.cont [9/16] 0.0, 128
        %1642 = vxpose.xlu0.b32.cont [10/16] 0.0, 128
        %1643 = vxpose.xlu0.b32.cont [11/16] 0.0, 128
        %1644 = vxpose.xlu0.b32.cont [12/16] 0.0, 128
        %1645 = vxpose.xlu0.b32.cont [13/16] 0.0, 128
        %1646 = vxpose.xlu0.b32.cont [14/16] 0.0, 128
        %1647 = vxpose.xlu0.b32.cont [15/16] 0.0, 128
        %1648 = vxpose.xlu0.b32.end [16/16] 0.0, 128
        %v1649 = vpop.trf.xlu0
        %v1650 = vpop.trf.xlu0
        %v1651 = vpop.trf.xlu0
        %v1652 = vpop.trf.xlu0
        %v1653 = vpop.trf.xlu0
        %v1654 = vpop.trf.xlu0
        %v1655 = vpop.trf.xlu0
        %v1656 = vpop.trf.xlu0
        %v1657 = vpop.trf.xlu0
        %v1658 = vpop.trf.xlu0
        %v1659 = vpop.trf.xlu0
        %v1660 = vpop.trf.xlu0
        %v1661 = vpop.trf.xlu0
        %v1662 = vpop.trf.xlu0
        %v1663 = vpop.trf.xlu0
        %v1664 = vpop.trf.xlu0
        %1665 = vxpose.xlu0.b32.start [1/16] %v1549, 128
        %1666 = vxpose.xlu0.b32.cont [2/16] %v1551, 128
        %1667 = vxpose.xlu0.b32.cont [3/16] 0.0, 128
        %1668 = vxpose.xlu0.b32.cont [4/16] 0.0, 128
        %1669 = vxpose.xlu0.b32.cont [5/16] 0.0, 128
        %1670 = vxpose.xlu0.b32.cont [6/16] 0.0, 128
        %1671 = vxpose.xlu0.b32.cont [7/16] 0.0, 128
        %1672 = vxpose.xlu0.b32.cont [8/16] 0.0, 128
        %1673 = vxpose.xlu0.b32.cont [9/16] 0.0, 128
        %1674 = vxpose.xlu0.b32.cont [10/16] 0.0, 128
        %1675 = vxpose.xlu0.b32.cont [11/16] 0.0, 128
        %1676 = vxpose.xlu0.b32.cont [12/16] 0.0, 128
        %1677 = vxpose.xlu0.b32.cont [13/16] 0.0, 128
        %1678 = vxpose.xlu0.b32.cont [14/16] 0.0, 128
        %1679 = vxpose.xlu0.b32.cont [15/16] 0.0, 128
        %1680 = vxpose.xlu0.b32.end [16/16] 0.0, 128
        %v1681 = vpop.trf.xlu0
        %v1682 = vpop.trf.xlu0
        %v1683 = vpop.trf.xlu0
        %v1684 = vpop.trf.xlu0
        %v1685 = vpop.trf.xlu0
        %v1686 = vpop.trf.xlu0
        %v1687 = vpop.trf.xlu0
        %v1688 = vpop.trf.xlu0
        %v1689 = vpop.trf.xlu0
        %v1690 = vpop.trf.xlu0
        %v1691 = vpop.trf.xlu0
        %v1692 = vpop.trf.xlu0
        %v1693 = vpop.trf.xlu0
        %v1694 = vpop.trf.xlu0
        %v1695 = vpop.trf.xlu0
        %v1696 = vpop.trf.xlu0
        %vm1697 = vcmask 97280
        %v1699 = vsel %vm1697, %v1649, 0
        %v1702 = vsel %vm1697, %v1650, 0
        %v1705 = vsel %vm1697, %v1651, 0
        %v1708 = vsel %vm1697, %v1652, 0
        %v1711 = vsel %vm1697, %v1653, 0
        %v1714 = vsel %vm1697, %v1654, 0
        %v1717 = vsel %vm1697, %v1655, 0
        %v1720 = vsel %vm1697, %v1656, 0
        %v1723 = vsel %vm1697, %v1657, 0
        %v1726 = vsel %vm1697, %v1658, 0
        %v1729 = vsel %vm1697, %v1659, 0
        %v1732 = vsel %vm1697, %v1660, 0
        %v1735 = vsel %vm1697, %v1661, 0
        %v1738 = vsel %vm1697, %v1662, 0
        %v1741 = vsel %vm1697, %v1663, 0
        %v1744 = vsel %vm1697, %v1664, 0
        %v1747 = vsel %vm1697, %v1681, 0
        %v1750 = vsel %vm1697, %v1682, 0
        %v1753 = vsel %vm1697, %v1683, 0
        %v1756 = vsel %vm1697, %v1684, 0
        %v1759 = vsel %vm1697, %v1685, 0
        %v1762 = vsel %vm1697, %v1686, 0
        %v1765 = vsel %vm1697, %v1687, 0
        %v1768 = vsel %vm1697, %v1688, 0
        %v1771 = vsel %vm1697, %v1689, 0
        %v1774 = vsel %vm1697, %v1690, 0
        %v1777 = vsel %vm1697, %v1691, 0
        %v1780 = vsel %vm1697, %v1692, 0
        %v1783 = vsel %vm1697, %v1693, 0
        %v1786 = vsel %vm1697, %v1694, 0
        %v1789 = vsel %vm1697, %v1695, 0
        %v1792 = vsel %vm1697, %v1696, 0
        %v1795 = vsel %vm1520, %v1632, 0
        %1797 = vmatpush.msra.mxu0 0.0
        %1798 = vmatpush.msra.mxu0 0.0
        %1799 = vmatpush.msra.mxu0 0.0
        %1800 = vmatpush.msra.mxu0 0.0
        %1801 = vmatpush.msra.mxu0 0.0
        %1802 = vmatpush.msra.mxu0 0.0
        %1803 = vmatpush.msra.mxu0 0.0
        %1804 = vmatpush.msra.mxu0 0.0
        %1805 = vmatpush.msra.mxu0 0.0
        %1806 = vmatpush.msra.mxu0 0.0
        %1807 = vmatpush.msra.mxu0 0.0
        %1808 = vmatpush.msra.mxu0 0.0
        %1809 = vmatpush.msra.mxu0 0.0
        %1810 = vmatpush.msra.mxu0 0.0
        %1811 = vmatpush.msra.mxu0 %v1795
        %1812 = vmatpush.msra.mxu0 %v1631
        %1813 = vmatmul.f32.gmra.mxu0 %v1699
        %v1814 = vpop.f32.mrf.mxu0
        %v1815 = vadd.f32 0.0, %v1814
        %1816 = vmatmul.f32.gmra.mxu0 %v1702
        %v1817 = vpop.f32.mrf.mxu0
        %v1818 = vadd.f32 0.0, %v1817
        %1819 = vmatmul.f32.gmra.mxu0 %v1705
        %v1820 = vpop.f32.mrf.mxu0
        %v1821 = vadd.f32 0.0, %v1820
        %1822 = vmatmul.f32.gmra.mxu0 %v1708
        %v1823 = vpop.f32.mrf.mxu0
        %v1824 = vadd.f32 0.0, %v1823
        %1825 = vmatmul.f32.gmra.mxu0 %v1711
        %v1826 = vpop.f32.mrf.mxu0
        %v1827 = vadd.f32 0.0, %v1826
        %1828 = vmatmul.f32.gmra.mxu0 %v1714
        %v1829 = vpop.f32.mrf.mxu0
        %v1830 = vadd.f32 0.0, %v1829
        %1831 = vmatmul.f32.gmra.mxu0 %v1717
        %v1832 = vpop.f32.mrf.mxu0
        %v1833 = vadd.f32 0.0, %v1832
        %1834 = vmatmul.f32.gmra.mxu0 %v1720
        %v1835 = vpop.f32.mrf.mxu0
        %v1836 = vadd.f32 0.0, %v1835
        %1837 = vmatmul.f32.gmra.mxu0 %v1723
        %v1838 = vpop.f32.mrf.mxu0
        %v1839 = vadd.f32 0.0, %v1838
        %1840 = vmatmul.f32.gmra.mxu0 %v1726
        %v1841 = vpop.f32.mrf.mxu0
        %v1842 = vadd.f32 0.0, %v1841
        %1843 = vmatmul.f32.gmra.mxu0 %v1729
        %v1844 = vpop.f32.mrf.mxu0
        %v1845 = vadd.f32 0.0, %v1844
        %1846 = vmatmul.f32.gmra.mxu0 %v1732
        %v1847 = vpop.f32.mrf.mxu0
        %v1848 = vadd.f32 0.0, %v1847
        %1849 = vmatmul.f32.gmra.mxu0 %v1735
        %v1850 = vpop.f32.mrf.mxu0
        %v1851 = vadd.f32 0.0, %v1850
        %1852 = vmatmul.f32.gmra.mxu0 %v1738
        %v1853 = vpop.f32.mrf.mxu0
        %v1854 = vadd.f32 0.0, %v1853
        %1855 = vmatmul.f32.gmra.mxu0 %v1741
        %v1856 = vpop.f32.mrf.mxu0
        %v1857 = vadd.f32 0.0, %v1856
        %1858 = vmatmul.f32.gmra.mxu0 %v1744
        %v1859 = vpop.f32.mrf.mxu0
        %v1860 = vadd.f32 0.0, %v1859
        %1861 = vmatmul.f32.gmra.mxu0 %v1747
        %v1862 = vpop.f32.mrf.mxu0
        %v1863 = vadd.f32 0.0, %v1862
        %1864 = vmatmul.f32.gmra.mxu0 %v1750
        %v1865 = vpop.f32.mrf.mxu0
        %v1866 = vadd.f32 0.0, %v1865
        %1867 = vmatmul.f32.gmra.mxu0 %v1753
        %v1868 = vpop.f32.mrf.mxu0
        %v1869 = vadd.f32 0.0, %v1868
        %1870 = vmatmul.f32.gmra.mxu0 %v1756
        %v1871 = vpop.f32.mrf.mxu0
        %v1872 = vadd.f32 0.0, %v1871
        %1873 = vmatmul.f32.gmra.mxu0 %v1759
        %v1874 = vpop.f32.mrf.mxu0
        %v1875 = vadd.f32 0.0, %v1874
        %1876 = vmatmul.f32.gmra.mxu0 %v1762
        %v1877 = vpop.f32.mrf.mxu0
        %v1878 = vadd.f32 0.0, %v1877
        %1879 = vmatmul.f32.gmra.mxu0 %v1765
        %v1880 = vpop.f32.mrf.mxu0
        %v1881 = vadd.f32 0.0, %v1880
        %1882 = vmatmul.f32.gmra.mxu0 %v1768
        %v1883 = vpop.f32.mrf.mxu0
        %v1884 = vadd.f32 0.0, %v1883
        %1885 = vmatmul.f32.gmra.mxu0 %v1771
        %v1886 = vpop.f32.mrf.mxu0
        %v1887 = vadd.f32 0.0, %v1886
        %1888 = vmatmul.f32.gmra.mxu0 %v1774
        %v1889 = vpop.f32.mrf.mxu0
        %v1890 = vadd.f32 0.0, %v1889
        %1891 = vmatmul.f32.gmra.mxu0 %v1777
        %v1892 = vpop.f32.mrf.mxu0
        %v1893 = vadd.f32 0.0, %v1892
        %1894 = vmatmul.f32.gmra.mxu0 %v1780
        %v1895 = vpop.f32.mrf.mxu0
        %v1896 = vadd.f32 0.0, %v1895
        %1897 = vmatmul.f32.gmra.mxu0 %v1783
        %v1898 = vpop.f32.mrf.mxu0
        %v1899 = vadd.f32 0.0, %v1898
        %1900 = vmatmul.f32.gmra.mxu0 %v1786
        %v1901 = vpop.f32.mrf.mxu0
        %v1902 = vadd.f32 0.0, %v1901
        %1903 = vmatmul.f32.gmra.mxu0 %v1789
        %v1904 = vpop.f32.mrf.mxu0
        %v1905 = vadd.f32 0.0, %v1904
        %1906 = vmatmul.f32.gmra.mxu0 %v1792
        %v1907 = vpop.f32.mrf.mxu0
        %v1908 = vadd.f32 0.0, %v1907
        %1909 = vdwg.mxu0
        %v1910 = vld [vmem:[#allocation2 + $0x88] sm:$0xff]
        %v1911 = vld [vmem:[#allocation2 + $0x90] sm:$0xff]
        %v1912 = vld [vmem:[#allocation2 + $0x98] sm:$0xff]
        %v1913 = vld [vmem:[#allocation2 + $0xa0] sm:$0xff]
        %v1915 = vsel %vm517, %v1815, 0
        %v1918 = vsel %vm517, %v1818, 0
        %v1921 = vsel %vm517, %v1821, 0
        %v1924 = vsel %vm517, %v1824, 0
        %v1927 = vsel %vm517, %v1827, 0
        %v1930 = vsel %vm517, %v1830, 0
        %v1933 = vsel %vm517, %v1833, 0
        %v1936 = vsel %vm517, %v1836, 0
        %v1939 = vsel %vm517, %v1839, 0
        %v1942 = vsel %vm517, %v1842, 0
        %v1945 = vsel %vm517, %v1845, 0
        %v1948 = vsel %vm517, %v1848, 0
        %v1951 = vsel %vm517, %v1851, 0
        %v1954 = vsel %vm517, %v1854, 0
        %v1957 = vsel %vm517, %v1857, 0
        %v1960 = vsel %vm517, %v1860, 0
        %v1963 = vsel %vm517, %v1863, 0
        %v1966 = vsel %vm517, %v1866, 0
        %v1969 = vsel %vm517, %v1869, 0
        %v1972 = vsel %vm517, %v1872, 0
        %v1975 = vsel %vm517, %v1875, 0
        %v1978 = vsel %vm517, %v1878, 0
        %v1981 = vsel %vm517, %v1881, 0
        %v1984 = vsel %vm517, %v1884, 0
        %v1987 = vsel %vm517, %v1887, 0
        %v1990 = vsel %vm517, %v1890, 0
        %v1993 = vsel %vm517, %v1893, 0
        %v1996 = vsel %vm517, %v1896, 0
        %v1999 = vsel %vm517, %v1899, 0
        %v2002 = vsel %vm517, %v1902, 0
        %v2005 = vsel %vm517, %v1905, 0
        %v2008 = vsel %vm517, %v1908, 0
        %2010 = vmatpush.msra.mxu0 0.0
        %2011 = vmatpush.msra.mxu0 0.0
        %2012 = vmatpush.msra.mxu0 0.0
        %2013 = vmatpush.msra.mxu0 0.0
        %2014 = vmatpush.msra.mxu0 0.0
        %2015 = vmatpush.msra.mxu0 0.0
        %2016 = vmatpush.msra.mxu0 0.0
        %2017 = vmatpush.msra.mxu0 0.0
        %2018 = vmatpush.msra.mxu0 0.0
        %2019 = vmatpush.msra.mxu0 0.0
        %2020 = vmatpush.msra.mxu0 0.0
        %2021 = vmatpush.msra.mxu0 0.0
        %2022 = vmatpush.msra.mxu0 %v1913
        %2023 = vmatpush.msra.mxu0 %v1912
        %2024 = vmatpush.msra.mxu0 %v1911
        %2025 = vmatpush.msra.mxu0 %v1910
        %2026 = vmatmul.f32.gmra.mxu0 %v1915
        %v2027 = vpop.f32.mrf.mxu0
        %v2028 = vadd.f32 0.0, %v2027
        %2029 = vmatmul.f32.gmra.mxu0 %v1918
        %v2030 = vpop.f32.mrf.mxu0
        %v2031 = vadd.f32 0.0, %v2030
        %2032 = vmatmul.f32.gmra.mxu0 %v1921
        %v2033 = vpop.f32.mrf.mxu0
        %v2034 = vadd.f32 0.0, %v2033
        %2035 = vmatmul.f32.gmra.mxu0 %v1924
        %v2036 = vpop.f32.mrf.mxu0
        %v2037 = vadd.f32 0.0, %v2036
        %2038 = vmatmul.f32.gmra.mxu0 %v1927
        %v2039 = vpop.f32.mrf.mxu0
        %v2040 = vadd.f32 0.0, %v2039
        %2041 = vmatmul.f32.gmra.mxu0 %v1930
        %v2042 = vpop.f32.mrf.mxu0
        %v2043 = vadd.f32 0.0, %v2042
        %2044 = vmatmul.f32.gmra.mxu0 %v1933
        %v2045 = vpop.f32.mrf.mxu0
        %v2046 = vadd.f32 0.0, %v2045
        %2047 = vmatmul.f32.gmra.mxu0 %v1936
        %v2048 = vpop.f32.mrf.mxu0
        %v2049 = vadd.f32 0.0, %v2048
        %2050 = vmatmul.f32.gmra.mxu0 %v1939
        %v2051 = vpop.f32.mrf.mxu0
        %v2052 = vadd.f32 0.0, %v2051
        %2053 = vmatmul.f32.gmra.mxu0 %v1942
        %v2054 = vpop.f32.mrf.mxu0
        %v2055 = vadd.f32 0.0, %v2054
        %2056 = vmatmul.f32.gmra.mxu0 %v1945
        %v2057 = vpop.f32.mrf.mxu0
        %v2058 = vadd.f32 0.0, %v2057
        %2059 = vmatmul.f32.gmra.mxu0 %v1948
        %v2060 = vpop.f32.mrf.mxu0
        %v2061 = vadd.f32 0.0, %v2060
        %2062 = vmatmul.f32.gmra.mxu0 %v1951
        %v2063 = vpop.f32.mrf.mxu0
        %v2064 = vadd.f32 0.0, %v2063
        %2065 = vmatmul.f32.gmra.mxu0 %v1954
        %v2066 = vpop.f32.mrf.mxu0
        %v2067 = vadd.f32 0.0, %v2066
        %2068 = vmatmul.f32.gmra.mxu0 %v1957
        %v2069 = vpop.f32.mrf.mxu0
        %v2070 = vadd.f32 0.0, %v2069
        %2071 = vmatmul.f32.gmra.mxu0 %v1960
        %v2072 = vpop.f32.mrf.mxu0
        %v2073 = vadd.f32 0.0, %v2072
        %2074 = vmatmul.f32.gmra.mxu0 %v1963
        %v2075 = vpop.f32.mrf.mxu0
        %v2076 = vadd.f32 0.0, %v2075
        %2077 = vmatmul.f32.gmra.mxu0 %v1966
        %v2078 = vpop.f32.mrf.mxu0
        %v2079 = vadd.f32 0.0, %v2078
        %2080 = vmatmul.f32.gmra.mxu0 %v1969
        %v2081 = vpop.f32.mrf.mxu0
        %v2082 = vadd.f32 0.0, %v2081
        %2083 = vmatmul.f32.gmra.mxu0 %v1972
        %v2084 = vpop.f32.mrf.mxu0
        %v2085 = vadd.f32 0.0, %v2084
        %2086 = vmatmul.f32.gmra.mxu0 %v1975
        %v2087 = vpop.f32.mrf.mxu0
        %v2088 = vadd.f32 0.0, %v2087
        %2089 = vmatmul.f32.gmra.mxu0 %v1978
        %v2090 = vpop.f32.mrf.mxu0
        %v2091 = vadd.f32 0.0, %v2090
        %2092 = vmatmul.f32.gmra.mxu0 %v1981
        %v2093 = vpop.f32.mrf.mxu0
        %v2094 = vadd.f32 0.0, %v2093
        %2095 = vmatmul.f32.gmra.mxu0 %v1984
        %v2096 = vpop.f32.mrf.mxu0
        %v2097 = vadd.f32 0.0, %v2096
        %2098 = vmatmul.f32.gmra.mxu0 %v1987
        %v2099 = vpop.f32.mrf.mxu0
        %v2100 = vadd.f32 0.0, %v2099
        %2101 = vmatmul.f32.gmra.mxu0 %v1990
        %v2102 = vpop.f32.mrf.mxu0
        %v2103 = vadd.f32 0.0, %v2102
        %2104 = vmatmul.f32.gmra.mxu0 %v1993
        %v2105 = vpop.f32.mrf.mxu0
        %v2106 = vadd.f32 0.0, %v2105
        %2107 = vmatmul.f32.gmra.mxu0 %v1996
        %v2108 = vpop.f32.mrf.mxu0
        %v2109 = vadd.f32 0.0, %v2108
        %2110 = vmatmul.f32.gmra.mxu0 %v1999
        %v2111 = vpop.f32.mrf.mxu0
        %v2112 = vadd.f32 0.0, %v2111
        %2113 = vmatmul.f32.gmra.mxu0 %v2002
        %v2114 = vpop.f32.mrf.mxu0
        %v2115 = vadd.f32 0.0, %v2114
        %2116 = vmatmul.f32.gmra.mxu0 %v2005
        %v2117 = vpop.f32.mrf.mxu0
        %v2118 = vadd.f32 0.0, %v2117
        %2119 = vmatmul.f32.gmra.mxu0 %v2008
        %v2120 = vpop.f32.mrf.mxu0
        %v2121 = vadd.f32 0.0, %v2120
        %2122 = vdwg.mxu0
        %v2123 = vadd.f32 %v838, %v2028
        %v2124 = vadd.f32 %v839, %v2031
        %v2125 = vadd.f32 %v840, %v2034
        %v2126 = vadd.f32 %v841, %v2037
        %v2127 = vadd.f32 %v842, %v2040
        %v2128 = vadd.f32 %v843, %v2043
        %v2129 = vadd.f32 %v844, %v2046
        %v2130 = vadd.f32 %v845, %v2049
        %v2131 = vadd.f32 %v846, %v2052
        %v2132 = vadd.f32 %v847, %v2055
        %v2133 = vadd.f32 %v848, %v2058
        %v2134 = vadd.f32 %v849, %v2061
        %v2135 = vadd.f32 %v850, %v2064
        %v2136 = vadd.f32 %v851, %v2067
        %v2137 = vadd.f32 %v852, %v2070
        %v2138 = vadd.f32 %v853, %v2073
        %v2139 = vadd.f32 %v854, %v2076
        %v2140 = vadd.f32 %v855, %v2079
        %v2141 = vadd.f32 %v856, %v2082
        %v2142 = vadd.f32 %v857, %v2085
        %v2143 = vadd.f32 %v858, %v2088
        %v2144 = vadd.f32 %v859, %v2091
        %v2145 = vadd.f32 %v860, %v2094
        %v2146 = vadd.f32 %v861, %v2097
        %v2147 = vadd.f32 %v862, %v2100
        %v2148 = vadd.f32 %v863, %v2103
        %v2149 = vadd.f32 %v864, %v2106
        %v2150 = vadd.f32 %v865, %v2109
        %v2151 = vadd.f32 %v866, %v2112
        %v2152 = vadd.f32 %v867, %v2115
        %v2153 = vadd.f32 %v868, %v2118
        %v2154 = vadd.f32 %v869, %v2121
        %v2155 = vld [vmem:[#allocation2 + $0xd0] sm:$0x7]
        %v2156 = vld [vmem:[#allocation2 + $0xb0] sm:$0xff]
        %v2157 = vld [vmem:[#allocation2 + $0xb8] sm:$0xff]
        %v2158 = vld [vmem:[#allocation2 + $0xc0] sm:$0xff]
        %v2159 = vld [vmem:[#allocation2 + $0xc8] sm:$0xff]
        %v2160 = vperm.slane %v2155, 0
        %v2162 = vsel %vm517, %v2123, 0
        %v2165 = vsel %vm517, %v2124, 0
        %v2168 = vsel %vm517, %v2125, 0
        %v2171 = vsel %vm517, %v2126, 0
        %v2174 = vsel %vm517, %v2127, 0
        %v2177 = vsel %vm517, %v2128, 0
        %v2180 = vsel %vm517, %v2129, 0
        %v2183 = vsel %vm517, %v2130, 0
        %v2186 = vsel %vm517, %v2131, 0
        %v2189 = vsel %vm517, %v2132, 0
        %v2192 = vsel %vm517, %v2133, 0
        %v2195 = vsel %vm517, %v2134, 0
        %v2198 = vsel %vm517, %v2135, 0
        %v2201 = vsel %vm517, %v2136, 0
        %v2204 = vsel %vm517, %v2137, 0
        %v2207 = vsel %vm517, %v2138, 0
        %v2210 = vsel %vm517, %v2139, 0
        %v2213 = vsel %vm517, %v2140, 0
        %v2216 = vsel %vm517, %v2141, 0
        %v2219 = vsel %vm517, %v2142, 0
        %v2222 = vsel %vm517, %v2143, 0
        %v2225 = vsel %vm517, %v2144, 0
        %v2228 = vsel %vm517, %v2145, 0
        %v2231 = vsel %vm517, %v2146, 0
        %v2234 = vsel %vm517, %v2147, 0
        %v2237 = vsel %vm517, %v2148, 0
        %v2240 = vsel %vm517, %v2149, 0
        %v2243 = vsel %vm517, %v2150, 0
        %v2246 = vsel %vm517, %v2151, 0
        %v2249 = vsel %vm517, %v2152, 0
        %v2252 = vsel %vm517, %v2153, 0
        %v2255 = vsel %vm517, %v2154, 0
        %2257 = vmatpush.msra.mxu0 0.0
        %2258 = vmatpush.msra.mxu0 0.0
        %2259 = vmatpush.msra.mxu0 0.0
        %2260 = vmatpush.msra.mxu0 0.0
        %2261 = vmatpush.msra.mxu0 0.0
        %2262 = vmatpush.msra.mxu0 0.0
        %2263 = vmatpush.msra.mxu0 0.0
        %2264 = vmatpush.msra.mxu0 0.0
        %2265 = vmatpush.msra.mxu0 0.0
        %2266 = vmatpush.msra.mxu0 0.0
        %2267 = vmatpush.msra.mxu0 0.0
        %2268 = vmatpush.msra.mxu0 0.0
        %2269 = vmatpush.msra.mxu0 %v2159
        %2270 = vmatpush.msra.mxu0 %v2158
        %2271 = vmatpush.msra.mxu0 %v2157
        %2272 = vmatpush.msra.mxu0 %v2156
        %2273 = vmatmul.f32.gmra.mxu0 %v2162
        %v2274 = vpop.f32.mrf.mxu0
        %v2275 = vadd.f32 %v2160, %v2274
        %2276 = vmatmul.f32.gmra.mxu0 %v2165
        %v2277 = vpop.f32.mrf.mxu0
        %v2278 = vadd.f32 %v2160, %v2277
        %2279 = vmatmul.f32.gmra.mxu0 %v2168
        %v2280 = vpop.f32.mrf.mxu0
        %v2281 = vadd.f32 %v2160, %v2280
        %2282 = vmatmul.f32.gmra.mxu0 %v2171
        %v2283 = vpop.f32.mrf.mxu0
        %v2284 = vadd.f32 %v2160, %v2283
        %2285 = vmatmul.f32.gmra.mxu0 %v2174
        %v2286 = vpop.f32.mrf.mxu0
        %v2287 = vadd.f32 %v2160, %v2286
        %2288 = vmatmul.f32.gmra.mxu0 %v2177
        %v2289 = vpop.f32.mrf.mxu0
        %v2290 = vadd.f32 %v2160, %v2289
        %2291 = vmatmul.f32.gmra.mxu0 %v2180
        %v2292 = vpop.f32.mrf.mxu0
        %v2293 = vadd.f32 %v2160, %v2292
        %2294 = vmatmul.f32.gmra.mxu0 %v2183
        %v2295 = vpop.f32.mrf.mxu0
        %v2296 = vadd.f32 %v2160, %v2295
        %2297 = vmatmul.f32.gmra.mxu0 %v2186
        %v2298 = vpop.f32.mrf.mxu0
        %v2299 = vadd.f32 %v2160, %v2298
        %2300 = vmatmul.f32.gmra.mxu0 %v2189
        %v2301 = vpop.f32.mrf.mxu0
        %v2302 = vadd.f32 %v2160, %v2301
        %2303 = vmatmul.f32.gmra.mxu0 %v2192
        %v2304 = vpop.f32.mrf.mxu0
        %v2305 = vadd.f32 %v2160, %v2304
        %2306 = vmatmul.f32.gmra.mxu0 %v2195
        %v2307 = vpop.f32.mrf.mxu0
        %v2308 = vadd.f32 %v2160, %v2307
        %2309 = vmatmul.f32.gmra.mxu0 %v2198
        %v2310 = vpop.f32.mrf.mxu0
        %v2311 = vadd.f32 %v2160, %v2310
        %2312 = vmatmul.f32.gmra.mxu0 %v2201
        %v2313 = vpop.f32.mrf.mxu0
        %v2314 = vadd.f32 %v2160, %v2313
        %2315 = vmatmul.f32.gmra.mxu0 %v2204
        %v2316 = vpop.f32.mrf.mxu0
        %v2317 = vadd.f32 %v2160, %v2316
        %2318 = vmatmul.f32.gmra.mxu0 %v2207
        %v2319 = vpop.f32.mrf.mxu0
        %v2320 = vadd.f32 %v2160, %v2319
        %2321 = vmatmul.f32.gmra.mxu0 %v2210
        %v2322 = vpop.f32.mrf.mxu0
        %v2323 = vadd.f32 %v2160, %v2322
        %2324 = vmatmul.f32.gmra.mxu0 %v2213
        %v2325 = vpop.f32.mrf.mxu0
        %v2326 = vadd.f32 %v2160, %v2325
        %2327 = vmatmul.f32.gmra.mxu0 %v2216
        %v2328 = vpop.f32.mrf.mxu0
        %v2329 = vadd.f32 %v2160, %v2328
        %2330 = vmatmul.f32.gmra.mxu0 %v2219
        %v2331 = vpop.f32.mrf.mxu0
        %v2332 = vadd.f32 %v2160, %v2331
        %2333 = vmatmul.f32.gmra.mxu0 %v2222
        %v2334 = vpop.f32.mrf.mxu0
        %v2335 = vadd.f32 %v2160, %v2334
        %2336 = vmatmul.f32.gmra.mxu0 %v2225
        %v2337 = vpop.f32.mrf.mxu0
        %v2338 = vadd.f32 %v2160, %v2337
        %2339 = vmatmul.f32.gmra.mxu0 %v2228
        %v2340 = vpop.f32.mrf.mxu0
        %v2341 = vadd.f32 %v2160, %v2340
        %2342 = vmatmul.f32.gmra.mxu0 %v2231
        %v2343 = vpop.f32.mrf.mxu0
        %v2344 = vadd.f32 %v2160, %v2343
        %2345 = vmatmul.f32.gmra.mxu0 %v2234
        %v2346 = vpop.f32.mrf.mxu0
        %v2347 = vadd.f32 %v2160, %v2346
        %2348 = vmatmul.f32.gmra.mxu0 %v2237
        %v2349 = vpop.f32.mrf.mxu0
        %v2350 = vadd.f32 %v2160, %v2349
        %2351 = vmatmul.f32.gmra.mxu0 %v2240
        %v2352 = vpop.f32.mrf.mxu0
        %v2353 = vadd.f32 %v2160, %v2352
        %2354 = vmatmul.f32.gmra.mxu0 %v2243
        %v2355 = vpop.f32.mrf.mxu0
        %v2356 = vadd.f32 %v2160, %v2355
        %2357 = vmatmul.f32.gmra.mxu0 %v2246
        %v2358 = vpop.f32.mrf.mxu0
        %v2359 = vadd.f32 %v2160, %v2358
        %2360 = vmatmul.f32.gmra.mxu0 %v2249
        %v2361 = vpop.f32.mrf.mxu0
        %v2362 = vadd.f32 %v2160, %v2361
        %2363 = vmatmul.f32.gmra.mxu0 %v2252
        %v2364 = vpop.f32.mrf.mxu0
        %v2365 = vadd.f32 %v2160, %v2364
        %2366 = vmatmul.f32.gmra.mxu0 %v2255
        %v2367 = vpop.f32.mrf.mxu0
        %v2368 = vadd.f32 %v2160, %v2367
        %2369 = vdwg.mxu0
        %v2370 = vmul.f32 %v2275, %v2275
        %v2371 = vmul.f32 %v2278, %v2278
        %v2372 = vmul.f32 %v2281, %v2281
        %v2373 = vmul.f32 %v2284, %v2284
        %v2374 = vmul.f32 %v2287, %v2287
        %v2375 = vmul.f32 %v2290, %v2290
        %v2376 = vmul.f32 %v2293, %v2293
        %v2377 = vmul.f32 %v2296, %v2296
        %v2378 = vmul.f32 %v2299, %v2299
        %v2379 = vmul.f32 %v2302, %v2302
        %v2380 = vmul.f32 %v2305, %v2305
        %v2381 = vmul.f32 %v2308, %v2308
        %v2382 = vmul.f32 %v2311, %v2311
        %v2383 = vmul.f32 %v2314, %v2314
        %v2384 = vmul.f32 %v2317, %v2317
        %v2385 = vmul.f32 %v2320, %v2320
        %v2386 = vmul.f32 %v2323, %v2323
        %v2387 = vmul.f32 %v2326, %v2326
        %v2388 = vmul.f32 %v2329, %v2329
        %v2389 = vmul.f32 %v2332, %v2332
        %v2390 = vmul.f32 %v2335, %v2335
        %v2391 = vmul.f32 %v2338, %v2338
        %v2392 = vmul.f32 %v2341, %v2341
        %v2393 = vmul.f32 %v2344, %v2344
        %v2394 = vmul.f32 %v2347, %v2347
        %v2395 = vmul.f32 %v2350, %v2350
        %v2396 = vmul.f32 %v2353, %v2353
        %v2397 = vmul.f32 %v2356, %v2356
        %v2398 = vmul.f32 %v2359, %v2359
        %v2399 = vmul.f32 %v2362, %v2362
        %v2400 = vmul.f32 %v2365, %v2365
        %v2401 = vmul.f32 %v2368, %v2368
        %2434 = vrot.lane.b32.xlu0 %v2370, 32
        %v2435 = vpop.permute.xlu0 %2434
        %2436 = vrot.lane.b32.xlu0 %v2371, 32
        %v2437 = vpop.permute.xlu0 %2436
        %2438 = vrot.lane.b32.xlu0 %v2372, 32
        %v2439 = vpop.permute.xlu0 %2438
        %2440 = vrot.lane.b32.xlu0 %v2373, 32
        %v2441 = vpop.permute.xlu0 %2440
        %2442 = vrot.lane.b32.xlu0 %v2374, 32
        %v2443 = vpop.permute.xlu0 %2442
        %2444 = vrot.lane.b32.xlu0 %v2375, 32
        %v2445 = vpop.permute.xlu0 %2444
        %2446 = vrot.lane.b32.xlu0 %v2376, 32
        %v2447 = vpop.permute.xlu0 %2446
        %2448 = vrot.lane.b32.xlu0 %v2377, 32
        %v2449 = vpop.permute.xlu0 %2448
        %2450 = vrot.lane.b32.xlu0 %v2378, 32
        %v2451 = vpop.permute.xlu0 %2450
        %2452 = vrot.lane.b32.xlu0 %v2379, 32
        %v2453 = vpop.permute.xlu0 %2452
        %2454 = vrot.lane.b32.xlu0 %v2380, 32
        %v2455 = vpop.permute.xlu0 %2454
        %2456 = vrot.lane.b32.xlu0 %v2381, 32
        %v2457 = vpop.permute.xlu0 %2456
        %2458 = vrot.lane.b32.xlu0 %v2382, 32
        %v2459 = vpop.permute.xlu0 %2458
        %2460 = vrot.lane.b32.xlu0 %v2383, 32
        %v2461 = vpop.permute.xlu0 %2460
        %2462 = vrot.lane.b32.xlu0 %v2384, 32
        %v2463 = vpop.permute.xlu0 %2462
        %2464 = vrot.lane.b32.xlu0 %v2385, 32
        %v2465 = vpop.permute.xlu0 %2464
        %2466 = vrot.lane.b32.xlu0 %v2386, 32
        %v2467 = vpop.permute.xlu0 %2466
        %2468 = vrot.lane.b32.xlu0 %v2387, 32
        %v2469 = vpop.permute.xlu0 %2468
        %2470 = vrot.lane.b32.xlu0 %v2388, 32
        %v2471 = vpop.permute.xlu0 %2470
        %2472 = vrot.lane.b32.xlu0 %v2389, 32
        %v2473 = vpop.permute.xlu0 %2472
        %2474 = vrot.lane.b32.xlu0 %v2390, 32
        %v2475 = vpop.permute.xlu0 %2474
        %2476 = vrot.lane.b32.xlu0 %v2391, 32
        %v2477 = vpop.permute.xlu0 %2476
        %2478 = vrot.lane.b32.xlu0 %v2392, 32
        %v2479 = vpop.permute.xlu0 %2478
        %2480 = vrot.lane.b32.xlu0 %v2393, 32
        %v2481 = vpop.permute.xlu0 %2480
        %2482 = vrot.lane.b32.xlu0 %v2394, 32
        %v2483 = vpop.permute.xlu0 %2482
        %2484 = vrot.lane.b32.xlu0 %v2395, 32
        %v2485 = vpop.permute.xlu0 %2484
        %2486 = vrot.lane.b32.xlu0 %v2396, 32
        %v2487 = vpop.permute.xlu0 %2486
        %2488 = vrot.lane.b32.xlu0 %v2397, 32
        %v2489 = vpop.permute.xlu0 %2488
        %2490 = vrot.lane.b32.xlu0 %v2398, 32
        %v2491 = vpop.permute.xlu0 %2490
        %2492 = vrot.lane.b32.xlu0 %v2399, 32
        %v2493 = vpop.permute.xlu0 %2492
        %2494 = vrot.lane.b32.xlu0 %v2400, 32
        %v2495 = vpop.permute.xlu0 %2494
        %2496 = vrot.lane.b32.xlu0 %v2401, 32
        %v2497 = vpop.permute.xlu0 %2496
        %v2530 = vsel %vm517, %v2275, %v2435
        %v2531 = vsel %vm517, %v2278, %v2437
        %v2532 = vsel %vm517, %v2281, %v2439
        %v2533 = vsel %vm517, %v2284, %v2441
        %v2534 = vsel %vm517, %v2287, %v2443
        %v2535 = vsel %vm517, %v2290, %v2445
        %v2536 = vsel %vm517, %v2293, %v2447
        %v2537 = vsel %vm517, %v2296, %v2449
        %v2538 = vsel %vm517, %v2299, %v2451
        %v2539 = vsel %vm517, %v2302, %v2453
        %v2540 = vsel %vm517, %v2305, %v2455
        %v2541 = vsel %vm517, %v2308, %v2457
        %v2542 = vsel %vm517, %v2311, %v2459
        %v2543 = vsel %vm517, %v2314, %v2461
        %v2544 = vsel %vm517, %v2317, %v2463
        %v2545 = vsel %vm517, %v2320, %v2465
        %v2546 = vsel %vm517, %v2323, %v2467
        %v2547 = vsel %vm517, %v2326, %v2469
        %v2548 = vsel %vm517, %v2329, %v2471
        %v2549 = vsel %vm517, %v2332, %v2473
        %v2550 = vsel %vm517, %v2335, %v2475
        %v2551 = vsel %vm517, %v2338, %v2477
        %v2552 = vsel %vm517, %v2341, %v2479
        %v2553 = vsel %vm517, %v2344, %v2481
        %v2554 = vsel %vm517, %v2347, %v2483
        %v2555 = vsel %vm517, %v2350, %v2485
        %v2556 = vsel %vm517, %v2353, %v2487
        %v2557 = vsel %vm517, %v2356, %v2489
        %v2558 = vsel %vm517, %v2359, %v2491
        %v2559 = vsel %vm517, %v2362, %v2493
        %v2560 = vsel %vm517, %v2365, %v2495
        %v2561 = vsel %vm517, %v2368, %v2497
        %v2562 = vld [vmem:[#allocation2 + $0xd8] sm:$0xff]
        %v2563 = vld [vmem:[#allocation2 + $0xe0] sm:$0xff]
        %v2564 = vld [vmem:[#allocation2 + $0xe8] sm:$0xff]
        %v2565 = vld [vmem:[#allocation2 + $0xf0] sm:$0xff]
        %v2566 = vld [vmem:[#allocation2 + $0xf8] sm:$0xff]
        %v2567 = vld [vmem:[#allocation2 + $0x100] sm:$0xff]
        %v2568 = vld [vmem:[#allocation2 + $0x108] sm:$0xff]
        %v2569 = vld [vmem:[#allocation2 + $0x110] sm:$0xff]
        %vm2570 = vcmask 523264
        %v2572 = vsel %vm2570, %v2530, 0
        %v2575 = vsel %vm2570, %v2531, 0
        %v2578 = vsel %vm2570, %v2532, 0
        %v2581 = vsel %vm2570, %v2533, 0
        %v2584 = vsel %vm2570, %v2534, 0
        %v2587 = vsel %vm2570, %v2535, 0
        %v2590 = vsel %vm2570, %v2536, 0
        %v2593 = vsel %vm2570, %v2537, 0
        %v2596 = vsel %vm2570, %v2538, 0
        %v2599 = vsel %vm2570, %v2539, 0
        %v2602 = vsel %vm2570, %v2540, 0
        %v2605 = vsel %vm2570, %v2541, 0
        %v2608 = vsel %vm2570, %v2542, 0
        %v2611 = vsel %vm2570, %v2543, 0
        %v2614 = vsel %vm2570, %v2544, 0
        %v2617 = vsel %vm2570, %v2545, 0
        %v2620 = vsel %vm2570, %v2546, 0
        %v2623 = vsel %vm2570, %v2547, 0
        %v2626 = vsel %vm2570, %v2548, 0
        %v2629 = vsel %vm2570, %v2549, 0
        %v2632 = vsel %vm2570, %v2550, 0
        %v2635 = vsel %vm2570, %v2551, 0
        %v2638 = vsel %vm2570, %v2552, 0
        %v2641 = vsel %vm2570, %v2553, 0
        %v2644 = vsel %vm2570, %v2554, 0
        %v2647 = vsel %vm2570, %v2555, 0
        %v2650 = vsel %vm2570, %v2556, 0
        %v2653 = vsel %vm2570, %v2557, 0
        %v2656 = vsel %vm2570, %v2558, 0
        %v2659 = vsel %vm2570, %v2559, 0
        %v2662 = vsel %vm2570, %v2560, 0
        %v2665 = vsel %vm2570, %v2561, 0
        %2667 = vmatpush.msra.mxu0 0.0
        %2668 = vmatpush.msra.mxu0 0.0
        %2669 = vmatpush.msra.mxu0 0.0
        %2670 = vmatpush.msra.mxu0 0.0
        %2671 = vmatpush.msra.mxu0 0.0
        %2672 = vmatpush.msra.mxu0 0.0
        %2673 = vmatpush.msra.mxu0 0.0
        %2674 = vmatpush.msra.mxu0 0.0
        %2675 = vmatpush.msra.mxu0 %v2569
        %2676 = vmatpush.msra.mxu0 %v2568
        %2677 = vmatpush.msra.mxu0 %v2567
        %2678 = vmatpush.msra.mxu0 %v2566
        %2679 = vmatpush.msra.mxu0 %v2565
        %2680 = vmatpush.msra.mxu0 %v2564
        %2681 = vmatpush.msra.mxu0 %v2563
        %2682 = vmatpush.msra.mxu0 %v2562
        %2683 = vmatmul.f32.gmra.mxu0 %v2572
        %v2684 = vpop.f32.mrf.mxu0
        %v2685 = vadd.f32 0.0, %v2684
        %2686 = vmatmul.f32.gmra.mxu0 %v2575
        %v2687 = vpop.f32.mrf.mxu0
        %v2688 = vadd.f32 0.0, %v2687
        %2689 = vmatmul.f32.gmra.mxu0 %v2578
        %v2690 = vpop.f32.mrf.mxu0
        %v2691 = vadd.f32 0.0, %v2690
        %2692 = vmatmul.f32.gmra.mxu0 %v2581
        %v2693 = vpop.f32.mrf.mxu0
        %v2694 = vadd.f32 0.0, %v2693
        %2695 = vmatmul.f32.gmra.mxu0 %v2584
        %v2696 = vpop.f32.mrf.mxu0
        %v2697 = vadd.f32 0.0, %v2696
        %2698 = vmatmul.f32.gmra.mxu0 %v2587
        %v2699 = vpop.f32.mrf.mxu0
        %v2700 = vadd.f32 0.0, %v2699
        %2701 = vmatmul.f32.gmra.mxu0 %v2590
        %v2702 = vpop.f32.mrf.mxu0
        %v2703 = vadd.f32 0.0, %v2702
        %2704 = vmatmul.f32.gmra.mxu0 %v2593
        %v2705 = vpop.f32.mrf.mxu0
        %v2706 = vadd.f32 0.0, %v2705
        %2707 = vmatmul.f32.gmra.mxu0 %v2596
        %v2708 = vpop.f32.mrf.mxu0
        %v2709 = vadd.f32 0.0, %v2708
        %2710 = vmatmul.f32.gmra.mxu0 %v2599
        %v2711 = vpop.f32.mrf.mxu0
        %v2712 = vadd.f32 0.0, %v2711
        %2713 = vmatmul.f32.gmra.mxu0 %v2602
        %v2714 = vpop.f32.mrf.mxu0
        %v2715 = vadd.f32 0.0, %v2714
        %2716 = vmatmul.f32.gmra.mxu0 %v2605
        %v2717 = vpop.f32.mrf.mxu0
        %v2718 = vadd.f32 0.0, %v2717
        %2719 = vmatmul.f32.gmra.mxu0 %v2608
        %v2720 = vpop.f32.mrf.mxu0
        %v2721 = vadd.f32 0.0, %v2720
        %2722 = vmatmul.f32.gmra.mxu0 %v2611
        %v2723 = vpop.f32.mrf.mxu0
        %v2724 = vadd.f32 0.0, %v2723
        %2725 = vmatmul.f32.gmra.mxu0 %v2614
        %v2726 = vpop.f32.mrf.mxu0
        %v2727 = vadd.f32 0.0, %v2726
        %2728 = vmatmul.f32.gmra.mxu0 %v2617
        %v2729 = vpop.f32.mrf.mxu0
        %v2730 = vadd.f32 0.0, %v2729
        %2731 = vmatmul.f32.gmra.mxu0 %v2620
        %v2732 = vpop.f32.mrf.mxu0
        %v2733 = vadd.f32 0.0, %v2732
        %2734 = vmatmul.f32.gmra.mxu0 %v2623
        %v2735 = vpop.f32.mrf.mxu0
        %v2736 = vadd.f32 0.0, %v2735
        %2737 = vmatmul.f32.gmra.mxu0 %v2626
        %v2738 = vpop.f32.mrf.mxu0
        %v2739 = vadd.f32 0.0, %v2738
        %2740 = vmatmul.f32.gmra.mxu0 %v2629
        %v2741 = vpop.f32.mrf.mxu0
        %v2742 = vadd.f32 0.0, %v2741
        %2743 = vmatmul.f32.gmra.mxu0 %v2632
        %v2744 = vpop.f32.mrf.mxu0
        %v2745 = vadd.f32 0.0, %v2744
        %2746 = vmatmul.f32.gmra.mxu0 %v2635
        %v2747 = vpop.f32.mrf.mxu0
        %v2748 = vadd.f32 0.0, %v2747
        %2749 = vmatmul.f32.gmra.mxu0 %v2638
        %v2750 = vpop.f32.mrf.mxu0
        %v2751 = vadd.f32 0.0, %v2750
        %2752 = vmatmul.f32.gmra.mxu0 %v2641
        %v2753 = vpop.f32.mrf.mxu0
        %v2754 = vadd.f32 0.0, %v2753
        %2755 = vmatmul.f32.gmra.mxu0 %v2644
        %v2756 = vpop.f32.mrf.mxu0
        %v2757 = vadd.f32 0.0, %v2756
        %2758 = vmatmul.f32.gmra.mxu0 %v2647
        %v2759 = vpop.f32.mrf.mxu0
        %v2760 = vadd.f32 0.0, %v2759
        %2761 = vmatmul.f32.gmra.mxu0 %v2650
        %v2762 = vpop.f32.mrf.mxu0
        %v2763 = vadd.f32 0.0, %v2762
        %2764 = vmatmul.f32.gmra.mxu0 %v2653
        %v2765 = vpop.f32.mrf.mxu0
        %v2766 = vadd.f32 0.0, %v2765
        %2767 = vmatmul.f32.gmra.mxu0 %v2656
        %v2768 = vpop.f32.mrf.mxu0
        %v2769 = vadd.f32 0.0, %v2768
        %2770 = vmatmul.f32.gmra.mxu0 %v2659
        %v2771 = vpop.f32.mrf.mxu0
        %v2772 = vadd.f32 0.0, %v2771
        %2773 = vmatmul.f32.gmra.mxu0 %v2662
        %v2774 = vpop.f32.mrf.mxu0
        %v2775 = vadd.f32 0.0, %v2774
        %2776 = vmatmul.f32.gmra.mxu0 %v2665
        %v2777 = vpop.f32.mrf.mxu0
        %v2778 = vadd.f32 0.0, %v2777
        %2779 = vdwg.mxu0
        %v2780 = vmul.f32 %v2685, %v2685
        %v2781 = vmul.f32 %v2688, %v2688
        %v2782 = vmul.f32 %v2691, %v2691
        %v2783 = vmul.f32 %v2694, %v2694
        %v2784 = vmul.f32 %v2697, %v2697
        %v2785 = vmul.f32 %v2700, %v2700
        %v2786 = vmul.f32 %v2703, %v2703
        %v2787 = vmul.f32 %v2706, %v2706
        %v2788 = vmul.f32 %v2709, %v2709
        %v2789 = vmul.f32 %v2712, %v2712
        %v2790 = vmul.f32 %v2715, %v2715
        %v2791 = vmul.f32 %v2718, %v2718
        %v2792 = vmul.f32 %v2721, %v2721
        %v2793 = vmul.f32 %v2724, %v2724
        %v2794 = vmul.f32 %v2727, %v2727
        %v2795 = vmul.f32 %v2730, %v2730
        %v2796 = vmul.f32 %v2733, %v2733
        %v2797 = vmul.f32 %v2736, %v2736
        %v2798 = vmul.f32 %v2739, %v2739
        %v2799 = vmul.f32 %v2742, %v2742
        %v2800 = vmul.f32 %v2745, %v2745
        %v2801 = vmul.f32 %v2748, %v2748
        %v2802 = vmul.f32 %v2751, %v2751
        %v2803 = vmul.f32 %v2754, %v2754
        %v2804 = vmul.f32 %v2757, %v2757
        %v2805 = vmul.f32 %v2760, %v2760
        %v2806 = vmul.f32 %v2763, %v2763
        %v2807 = vmul.f32 %v2766, %v2766
        %v2808 = vmul.f32 %v2769, %v2769
        %v2809 = vmul.f32 %v2772, %v2772
        %v2810 = vmul.f32 %v2775, %v2775
        %v2811 = vmul.f32 %v2778, %v2778
        %2844 = vrot.lane.b32.xlu0 %v2780, 32
        %v2845 = vpop.permute.xlu0 %2844
        %2846 = vrot.lane.b32.xlu0 %v2781, 32
        %v2847 = vpop.permute.xlu0 %2846
        %2848 = vrot.lane.b32.xlu0 %v2782, 32
        %v2849 = vpop.permute.xlu0 %2848
        %2850 = vrot.lane.b32.xlu0 %v2783, 32
        %v2851 = vpop.permute.xlu0 %2850
        %2852 = vrot.lane.b32.xlu0 %v2784, 32
        %v2853 = vpop.permute.xlu0 %2852
        %2854 = vrot.lane.b32.xlu0 %v2785, 32
        %v2855 = vpop.permute.xlu0 %2854
        %2856 = vrot.lane.b32.xlu0 %v2786, 32
        %v2857 = vpop.permute.xlu0 %2856
        %2858 = vrot.lane.b32.xlu0 %v2787, 32
        %v2859 = vpop.permute.xlu0 %2858
        %2860 = vrot.lane.b32.xlu0 %v2788, 32
        %v2861 = vpop.permute.xlu0 %2860
        %2862 = vrot.lane.b32.xlu0 %v2789, 32
        %v2863 = vpop.permute.xlu0 %2862
        %2864 = vrot.lane.b32.xlu0 %v2790, 32
        %v2865 = vpop.permute.xlu0 %2864
        %2866 = vrot.lane.b32.xlu0 %v2791, 32
        %v2867 = vpop.permute.xlu0 %2866
        %2868 = vrot.lane.b32.xlu0 %v2792, 32
        %v2869 = vpop.permute.xlu0 %2868
        %2870 = vrot.lane.b32.xlu0 %v2793, 32
        %v2871 = vpop.permute.xlu0 %2870
        %2872 = vrot.lane.b32.xlu0 %v2794, 32
        %v2873 = vpop.permute.xlu0 %2872
        %2874 = vrot.lane.b32.xlu0 %v2795, 32
        %v2875 = vpop.permute.xlu0 %2874
        %2876 = vrot.lane.b32.xlu0 %v2796, 32
        %v2877 = vpop.permute.xlu0 %2876
        %2878 = vrot.lane.b32.xlu0 %v2797, 32
        %v2879 = vpop.permute.xlu0 %2878
        %2880 = vrot.lane.b32.xlu0 %v2798, 32
        %v2881 = vpop.permute.xlu0 %2880
        %2882 = vrot.lane.b32.xlu0 %v2799, 32
        %v2883 = vpop.permute.xlu0 %2882
        %2884 = vrot.lane.b32.xlu0 %v2800, 32
        %v2885 = vpop.permute.xlu0 %2884
        %2886 = vrot.lane.b32.xlu0 %v2801, 32
        %v2887 = vpop.permute.xlu0 %2886
        %2888 = vrot.lane.b32.xlu0 %v2802, 32
        %v2889 = vpop.permute.xlu0 %2888
        %2890 = vrot.lane.b32.xlu0 %v2803, 32
        %v2891 = vpop.permute.xlu0 %2890
        %2892 = vrot.lane.b32.xlu0 %v2804, 32
        %v2893 = vpop.permute.xlu0 %2892
        %2894 = vrot.lane.b32.xlu0 %v2805, 32
        %v2895 = vpop.permute.xlu0 %2894
        %2896 = vrot.lane.b32.xlu0 %v2806, 32
        %v2897 = vpop.permute.xlu0 %2896
        %2898 = vrot.lane.b32.xlu0 %v2807, 32
        %v2899 = vpop.permute.xlu0 %2898
        %2900 = vrot.lane.b32.xlu0 %v2808, 32
        %v2901 = vpop.permute.xlu0 %2900
        %2902 = vrot.lane.b32.xlu0 %v2809, 32
        %v2903 = vpop.permute.xlu0 %2902
        %2904 = vrot.lane.b32.xlu0 %v2810, 32
        %v2905 = vpop.permute.xlu0 %2904
        %2906 = vrot.lane.b32.xlu0 %v2811, 32
        %v2907 = vpop.permute.xlu0 %2906
        %v2940 = vsub.f32 %v2685, %v2845
        %v2941 = vsub.f32 %v2688, %v2847
        %v2942 = vsub.f32 %v2691, %v2849
        %v2943 = vsub.f32 %v2694, %v2851
        %v2944 = vsub.f32 %v2697, %v2853
        %v2945 = vsub.f32 %v2700, %v2855
        %v2946 = vsub.f32 %v2703, %v2857
        %v2947 = vsub.f32 %v2706, %v2859
        %v2948 = vsub.f32 %v2709, %v2861
        %v2949 = vsub.f32 %v2712, %v2863
        %v2950 = vsub.f32 %v2715, %v2865
        %v2951 = vsub.f32 %v2718, %v2867
        %v2952 = vsub.f32 %v2721, %v2869
        %v2953 = vsub.f32 %v2724, %v2871
        %v2954 = vsub.f32 %v2727, %v2873
        %v2955 = vsub.f32 %v2730, %v2875
        %v2956 = vsub.f32 %v2733, %v2877
        %v2957 = vsub.f32 %v2736, %v2879
        %v2958 = vsub.f32 %v2739, %v2881
        %v2959 = vsub.f32 %v2742, %v2883
        %v2960 = vsub.f32 %v2745, %v2885
        %v2961 = vsub.f32 %v2748, %v2887
        %v2962 = vsub.f32 %v2751, %v2889
        %v2963 = vsub.f32 %v2754, %v2891
        %v2964 = vsub.f32 %v2757, %v2893
        %v2965 = vsub.f32 %v2760, %v2895
        %v2966 = vsub.f32 %v2763, %v2897
        %v2967 = vsub.f32 %v2766, %v2899
        %v2968 = vsub.f32 %v2769, %v2901
        %v2969 = vsub.f32 %v2772, %v2903
        %v2970 = vsub.f32 %v2775, %v2905
        %v2971 = vsub.f32 %v2778, %v2907
        %v2972 = vmax.f32 %v2940, 0.0
        %v2973 = vmax.f32 %v2941, 0.0
        %v2974 = vmax.f32 %v2942, 0.0
        %v2975 = vmax.f32 %v2943, 0.0
        %v2976 = vmax.f32 %v2944, 0.0
        %v2977 = vmax.f32 %v2945, 0.0
        %v2978 = vmax.f32 %v2946, 0.0
        %v2979 = vmax.f32 %v2947, 0.0
        %v2980 = vmax.f32 %v2948, 0.0
        %v2981 = vmax.f32 %v2949, 0.0
        %v2982 = vmax.f32 %v2950, 0.0
        %v2983 = vmax.f32 %v2951, 0.0
        %v2984 = vmax.f32 %v2952, 0.0
        %v2985 = vmax.f32 %v2953, 0.0
        %v2986 = vmax.f32 %v2954, 0.0
        %v2987 = vmax.f32 %v2955, 0.0
        %v2988 = vmax.f32 %v2956, 0.0
        %v2989 = vmax.f32 %v2957, 0.0
        %v2990 = vmax.f32 %v2958, 0.0
        %v2991 = vmax.f32 %v2959, 0.0
        %v2992 = vmax.f32 %v2960, 0.0
        %v2993 = vmax.f32 %v2961, 0.0
        %v2994 = vmax.f32 %v2962, 0.0
        %v2995 = vmax.f32 %v2963, 0.0
        %v2996 = vmax.f32 %v2964, 0.0
        %v2997 = vmax.f32 %v2965, 0.0
        %v2998 = vmax.f32 %v2966, 0.0
        %v2999 = vmax.f32 %v2967, 0.0
        %v3000 = vmax.f32 %v2968, 0.0
        %v3001 = vmax.f32 %v2969, 0.0
        %v3002 = vmax.f32 %v2970, 0.0
        %v3003 = vmax.f32 %v2971, 0.0
        %v3004 = vsub.f32 %v2275, %v2685
        %v3005 = vsub.f32 %v2278, %v2688
        %v3006 = vsub.f32 %v2281, %v2691
        %v3007 = vsub.f32 %v2284, %v2694
        %v3008 = vsub.f32 %v2287, %v2697
        %v3009 = vsub.f32 %v2290, %v2700
        %v3010 = vsub.f32 %v2293, %v2703
        %v3011 = vsub.f32 %v2296, %v2706
        %v3012 = vsub.f32 %v2299, %v2709
        %v3013 = vsub.f32 %v2302, %v2712
        %v3014 = vsub.f32 %v2305, %v2715
        %v3015 = vsub.f32 %v2308, %v2718
        %v3016 = vsub.f32 %v2311, %v2721
        %v3017 = vsub.f32 %v2314, %v2724
        %v3018 = vsub.f32 %v2317, %v2727
        %v3019 = vsub.f32 %v2320, %v2730
        %v3020 = vsub.f32 %v2323, %v2733
        %v3021 = vsub.f32 %v2326, %v2736
        %v3022 = vsub.f32 %v2329, %v2739
        %v3023 = vsub.f32 %v2332, %v2742
        %v3024 = vsub.f32 %v2335, %v2745
        %v3025 = vsub.f32 %v2338, %v2748
        %v3026 = vsub.f32 %v2341, %v2751
        %v3027 = vsub.f32 %v2344, %v2754
        %v3028 = vsub.f32 %v2347, %v2757
        %v3029 = vsub.f32 %v2350, %v2760
        %v3030 = vsub.f32 %v2353, %v2763
        %v3031 = vsub.f32 %v2356, %v2766
        %v3032 = vsub.f32 %v2359, %v2769
        %v3033 = vsub.f32 %v2362, %v2772
        %v3034 = vsub.f32 %v2365, %v2775
        %v3035 = vsub.f32 %v2368, %v2778
        %v3036 = vadd.f32 %v2972, 1e-06
        %v3037 = vadd.f32 %v2973, 1e-06
        %v3038 = vadd.f32 %v2974, 1e-06
        %v3039 = vadd.f32 %v2975, 1e-06
        %v3040 = vadd.f32 %v2976, 1e-06
        %v3041 = vadd.f32 %v2977, 1e-06
        %v3042 = vadd.f32 %v2978, 1e-06
        %v3043 = vadd.f32 %v2979, 1e-06
        %v3044 = vadd.f32 %v2980, 1e-06
        %v3045 = vadd.f32 %v2981, 1e-06
        %v3046 = vadd.f32 %v2982, 1e-06
        %v3047 = vadd.f32 %v2983, 1e-06
        %v3048 = vadd.f32 %v2984, 1e-06
        %v3049 = vadd.f32 %v2985, 1e-06
        %v3050 = vadd.f32 %v2986, 1e-06
        %v3051 = vadd.f32 %v2987, 1e-06
        %v3052 = vadd.f32 %v2988, 1e-06
        %v3053 = vadd.f32 %v2989, 1e-06
        %v3054 = vadd.f32 %v2990, 1e-06
        %v3055 = vadd.f32 %v2991, 1e-06
        %v3056 = vadd.f32 %v2992, 1e-06
        %v3057 = vadd.f32 %v2993, 1e-06
        %v3058 = vadd.f32 %v2994, 1e-06
        %v3059 = vadd.f32 %v2995, 1e-06
        %v3060 = vadd.f32 %v2996, 1e-06
        %v3061 = vadd.f32 %v2997, 1e-06
        %v3062 = vadd.f32 %v2998, 1e-06
        %v3063 = vadd.f32 %v2999, 1e-06
        %v3064 = vadd.f32 %v3000, 1e-06
        %v3065 = vadd.f32 %v3001, 1e-06
        %v3066 = vadd.f32 %v3002, 1e-06
        %v3067 = vadd.f32 %v3003, 1e-06
        %v3068 = vrsqrt.pop %v3036
        %v3069 = vmul.f32 %v3068, %v3036
        %v3070 = vmul.f32 %v3069, %v3068
        %v3071 = vmul.f32 0.5, %v3070
        %v3072 = vsub.f32 1.5, %v3071
        %v3073 = vmul.f32 %v3068, %v3072
        %vm3074 = vweird.f32 %v3036
        %vm3075 = vweird.f32 %v3068
        %vm3076 = vmor %vm3074, %vm3075
        %v3077 = vsel %vm3076, %v3068, %v3073
        %v3078 = vrsqrt.pop %v3037
        %v3079 = vmul.f32 %v3078, %v3037
        %v3080 = vmul.f32 %v3079, %v3078
        %v3081 = vmul.f32 0.5, %v3080
        %v3082 = vsub.f32 1.5, %v3081
        %v3083 = vmul.f32 %v3078, %v3082
        %vm3084 = vweird.f32 %v3037
        %vm3085 = vweird.f32 %v3078
        %vm3086 = vmor %vm3084, %vm3085
        %v3087 = vsel %vm3086, %v3078, %v3083
        %v3088 = vrsqrt.pop %v3038
        %v3089 = vmul.f32 %v3088, %v3038
        %v3090 = vmul.f32 %v3089, %v3088
        %v3091 = vmul.f32 0.5, %v3090
        %v3092 = vsub.f32 1.5, %v3091
        %v3093 = vmul.f32 %v3088, %v3092
        %vm3094 = vweird.f32 %v3038
        %vm3095 = vweird.f32 %v3088
        %vm3096 = vmor %vm3094, %vm3095
        %v3097 = vsel %vm3096, %v3088, %v3093
        %v3098 = vrsqrt.pop %v3039
        %v3099 = vmul.f32 %v3098, %v3039
        %v3100 = vmul.f32 %v3099, %v3098
        %v3101 = vmul.f32 0.5, %v3100
        %v3102 = vsub.f32 1.5, %v3101
        %v3103 = vmul.f32 %v3098, %v3102
        %vm3104 = vweird.f32 %v3039
        %vm3105 = vweird.f32 %v3098
        %vm3106 = vmor %vm3104, %vm3105
        %v3107 = vsel %vm3106, %v3098, %v3103
        %v3108 = vrsqrt.pop %v3040
        %v3109 = vmul.f32 %v3108, %v3040
        %v3110 = vmul.f32 %v3109, %v3108
        %v3111 = vmul.f32 0.5, %v3110
        %v3112 = vsub.f32 1.5, %v3111
        %v3113 = vmul.f32 %v3108, %v3112
        %vm3114 = vweird.f32 %v3040
        %vm3115 = vweird.f32 %v3108
        %vm3116 = vmor %vm3114, %vm3115
        %v3117 = vsel %vm3116, %v3108, %v3113
        %v3118 = vrsqrt.pop %v3041
        %v3119 = vmul.f32 %v3118, %v3041
        %v3120 = vmul.f32 %v3119, %v3118
        %v3121 = vmul.f32 0.5, %v3120
        %v3122 = vsub.f32 1.5, %v3121
        %v3123 = vmul.f32 %v3118, %v3122
        %vm3124 = vweird.f32 %v3041
        %vm3125 = vweird.f32 %v3118
        %vm3126 = vmor %vm3124, %vm3125
        %v3127 = vsel %vm3126, %v3118, %v3123
        %v3128 = vrsqrt.pop %v3042
        %v3129 = vmul.f32 %v3128, %v3042
        %v3130 = vmul.f32 %v3129, %v3128
        %v3131 = vmul.f32 0.5, %v3130
        %v3132 = vsub.f32 1.5, %v3131
        %v3133 = vmul.f32 %v3128, %v3132
        %vm3134 = vweird.f32 %v3042
        %vm3135 = vweird.f32 %v3128
        %vm3136 = vmor %vm3134, %vm3135
        %v3137 = vsel %vm3136, %v3128, %v3133
        %v3138 = vrsqrt.pop %v3043
        %v3139 = vmul.f32 %v3138, %v3043
        %v3140 = vmul.f32 %v3139, %v3138
        %v3141 = vmul.f32 0.5, %v3140
        %v3142 = vsub.f32 1.5, %v3141
        %v3143 = vmul.f32 %v3138, %v3142
        %vm3144 = vweird.f32 %v3043
        %vm3145 = vweird.f32 %v3138
        %vm3146 = vmor %vm3144, %vm3145
        %v3147 = vsel %vm3146, %v3138, %v3143
        %v3148 = vrsqrt.pop %v3044
        %v3149 = vmul.f32 %v3148, %v3044
        %v3150 = vmul.f32 %v3149, %v3148
        %v3151 = vmul.f32 0.5, %v3150
        %v3152 = vsub.f32 1.5, %v3151
        %v3153 = vmul.f32 %v3148, %v3152
        %vm3154 = vweird.f32 %v3044
        %vm3155 = vweird.f32 %v3148
        %vm3156 = vmor %vm3154, %vm3155
        %v3157 = vsel %vm3156, %v3148, %v3153
        %v3158 = vrsqrt.pop %v3045
        %v3159 = vmul.f32 %v3158, %v3045
        %v3160 = vmul.f32 %v3159, %v3158
        %v3161 = vmul.f32 0.5, %v3160
        %v3162 = vsub.f32 1.5, %v3161
        %v3163 = vmul.f32 %v3158, %v3162
        %vm3164 = vweird.f32 %v3045
        %vm3165 = vweird.f32 %v3158
        %vm3166 = vmor %vm3164, %vm3165
        %v3167 = vsel %vm3166, %v3158, %v3163
        %v3168 = vrsqrt.pop %v3046
        %v3169 = vmul.f32 %v3168, %v3046
        %v3170 = vmul.f32 %v3169, %v3168
        %v3171 = vmul.f32 0.5, %v3170
        %v3172 = vsub.f32 1.5, %v3171
        %v3173 = vmul.f32 %v3168, %v3172
        %vm3174 = vweird.f32 %v3046
        %vm3175 = vweird.f32 %v3168
        %vm3176 = vmor %vm3174, %vm3175
        %v3177 = vsel %vm3176, %v3168, %v3173
        %v3178 = vrsqrt.pop %v3047
        %v3179 = vmul.f32 %v3178, %v3047
        %v3180 = vmul.f32 %v3179, %v3178
        %v3181 = vmul.f32 0.5, %v3180
        %v3182 = vsub.f32 1.5, %v3181
        %v3183 = vmul.f32 %v3178, %v3182
        %vm3184 = vweird.f32 %v3047
        %vm3185 = vweird.f32 %v3178
        %vm3186 = vmor %vm3184, %vm3185
        %v3187 = vsel %vm3186, %v3178, %v3183
        %v3188 = vrsqrt.pop %v3048
        %v3189 = vmul.f32 %v3188, %v3048
        %v3190 = vmul.f32 %v3189, %v3188
        %v3191 = vmul.f32 0.5, %v3190
        %v3192 = vsub.f32 1.5, %v3191
        %v3193 = vmul.f32 %v3188, %v3192
        %vm3194 = vweird.f32 %v3048
        %vm3195 = vweird.f32 %v3188
        %vm3196 = vmor %vm3194, %vm3195
        %v3197 = vsel %vm3196, %v3188, %v3193
        %v3198 = vrsqrt.pop %v3049
        %v3199 = vmul.f32 %v3198, %v3049
        %v3200 = vmul.f32 %v3199, %v3198
        %v3201 = vmul.f32 0.5, %v3200
        %v3202 = vsub.f32 1.5, %v3201
        %v3203 = vmul.f32 %v3198, %v3202
        %vm3204 = vweird.f32 %v3049
        %vm3205 = vweird.f32 %v3198
        %vm3206 = vmor %vm3204, %vm3205
        %v3207 = vsel %vm3206, %v3198, %v3203
        %v3208 = vrsqrt.pop %v3050
        %v3209 = vmul.f32 %v3208, %v3050
        %v3210 = vmul.f32 %v3209, %v3208
        %v3211 = vmul.f32 0.5, %v3210
        %v3212 = vsub.f32 1.5, %v3211
        %v3213 = vmul.f32 %v3208, %v3212
        %vm3214 = vweird.f32 %v3050
        %vm3215 = vweird.f32 %v3208
        %vm3216 = vmor %vm3214, %vm3215
        %v3217 = vsel %vm3216, %v3208, %v3213
        %v3218 = vrsqrt.pop %v3051
        %v3219 = vmul.f32 %v3218, %v3051
        %v3220 = vmul.f32 %v3219, %v3218
        %v3221 = vmul.f32 0.5, %v3220
        %v3222 = vsub.f32 1.5, %v3221
        %v3223 = vmul.f32 %v3218, %v3222
        %vm3224 = vweird.f32 %v3051
        %vm3225 = vweird.f32 %v3218
        %vm3226 = vmor %vm3224, %vm3225
        %v3227 = vsel %vm3226, %v3218, %v3223
        %v3228 = vrsqrt.pop %v3052
        %v3229 = vmul.f32 %v3228, %v3052
        %v3230 = vmul.f32 %v3229, %v3228
        %v3231 = vmul.f32 0.5, %v3230
        %v3232 = vsub.f32 1.5, %v3231
        %v3233 = vmul.f32 %v3228, %v3232
        %vm3234 = vweird.f32 %v3052
        %vm3235 = vweird.f32 %v3228
        %vm3236 = vmor %vm3234, %vm3235
        %v3237 = vsel %vm3236, %v3228, %v3233
        %v3238 = vrsqrt.pop %v3053
        %v3239 = vmul.f32 %v3238, %v3053
        %v3240 = vmul.f32 %v3239, %v3238
        %v3241 = vmul.f32 0.5, %v3240
        %v3242 = vsub.f32 1.5, %v3241
        %v3243 = vmul.f32 %v3238, %v3242
        %vm3244 = vweird.f32 %v3053
        %vm3245 = vweird.f32 %v3238
        %vm3246 = vmor %vm3244, %vm3245
        %v3247 = vsel %vm3246, %v3238, %v3243
        %v3248 = vrsqrt.pop %v3054
        %v3249 = vmul.f32 %v3248, %v3054
        %v3250 = vmul.f32 %v3249, %v3248
        %v3251 = vmul.f32 0.5, %v3250
        %v3252 = vsub.f32 1.5, %v3251
        %v3253 = vmul.f32 %v3248, %v3252
        %vm3254 = vweird.f32 %v3054
        %vm3255 = vweird.f32 %v3248
        %vm3256 = vmor %vm3254, %vm3255
        %v3257 = vsel %vm3256, %v3248, %v3253
        %v3258 = vrsqrt.pop %v3055
        %v3259 = vmul.f32 %v3258, %v3055
        %v3260 = vmul.f32 %v3259, %v3258
        %v3261 = vmul.f32 0.5, %v3260
        %v3262 = vsub.f32 1.5, %v3261
        %v3263 = vmul.f32 %v3258, %v3262
        %vm3264 = vweird.f32 %v3055
        %vm3265 = vweird.f32 %v3258
        %vm3266 = vmor %vm3264, %vm3265
        %v3267 = vsel %vm3266, %v3258, %v3263
        %v3268 = vrsqrt.pop %v3056
        %v3269 = vmul.f32 %v3268, %v3056
        %v3270 = vmul.f32 %v3269, %v3268
        %v3271 = vmul.f32 0.5, %v3270
        %v3272 = vsub.f32 1.5, %v3271
        %v3273 = vmul.f32 %v3268, %v3272
        %vm3274 = vweird.f32 %v3056
        %vm3275 = vweird.f32 %v3268
        %vm3276 = vmor %vm3274, %vm3275
        %v3277 = vsel %vm3276, %v3268, %v3273
        %v3278 = vrsqrt.pop %v3057
        %v3279 = vmul.f32 %v3278, %v3057
        %v3280 = vmul.f32 %v3279, %v3278
        %v3281 = vmul.f32 0.5, %v3280
        %v3282 = vsub.f32 1.5, %v3281
        %v3283 = vmul.f32 %v3278, %v3282
        %vm3284 = vweird.f32 %v3057
        %vm3285 = vweird.f32 %v3278
        %vm3286 = vmor %vm3284, %vm3285
        %v3287 = vsel %vm3286, %v3278, %v3283
        %v3288 = vrsqrt.pop %v3058
        %v3289 = vmul.f32 %v3288, %v3058
        %v3290 = vmul.f32 %v3289, %v3288
        %v3291 = vmul.f32 0.5, %v3290
        %v3292 = vsub.f32 1.5, %v3291
        %v3293 = vmul.f32 %v3288, %v3292
        %vm3294 = vweird.f32 %v3058
        %vm3295 = vweird.f32 %v3288
        %vm3296 = vmor %vm3294, %vm3295
        %v3297 = vsel %vm3296, %v3288, %v3293
        %v3298 = vrsqrt.pop %v3059
        %v3299 = vmul.f32 %v3298, %v3059
        %v3300 = vmul.f32 %v3299, %v3298
        %v3301 = vmul.f32 0.5, %v3300
        %v3302 = vsub.f32 1.5, %v3301
        %v3303 = vmul.f32 %v3298, %v3302
        %vm3304 = vweird.f32 %v3059
        %vm3305 = vweird.f32 %v3298
        %vm3306 = vmor %vm3304, %vm3305
        %v3307 = vsel %vm3306, %v3298, %v3303
        %v3308 = vrsqrt.pop %v3060
        %v3309 = vmul.f32 %v3308, %v3060
        %v3310 = vmul.f32 %v3309, %v3308
        %v3311 = vmul.f32 0.5, %v3310
        %v3312 = vsub.f32 1.5, %v3311
        %v3313 = vmul.f32 %v3308, %v3312
        %vm3314 = vweird.f32 %v3060
        %vm3315 = vweird.f32 %v3308
        %vm3316 = vmor %vm3314, %vm3315
        %v3317 = vsel %vm3316, %v3308, %v3313
        %v3318 = vrsqrt.pop %v3061
        %v3319 = vmul.f32 %v3318, %v3061
        %v3320 = vmul.f32 %v3319, %v3318
        %v3321 = vmul.f32 0.5, %v3320
        %v3322 = vsub.f32 1.5, %v3321
        %v3323 = vmul.f32 %v3318, %v3322
        %vm3324 = vweird.f32 %v3061
        %vm3325 = vweird.f32 %v3318
        %vm3326 = vmor %vm3324, %vm3325
        %v3327 = vsel %vm3326, %v3318, %v3323
        %v3328 = vrsqrt.pop %v3062
        %v3329 = vmul.f32 %v3328, %v3062
        %v3330 = vmul.f32 %v3329, %v3328
        %v3331 = vmul.f32 0.5, %v3330
        %v3332 = vsub.f32 1.5, %v3331
        %v3333 = vmul.f32 %v3328, %v3332
        %vm3334 = vweird.f32 %v3062
        %vm3335 = vweird.f32 %v3328
        %vm3336 = vmor %vm3334, %vm3335
        %v3337 = vsel %vm3336, %v3328, %v3333
        %v3338 = vrsqrt.pop %v3063
        %v3339 = vmul.f32 %v3338, %v3063
        %v3340 = vmul.f32 %v3339, %v3338
        %v3341 = vmul.f32 0.5, %v3340
        %v3342 = vsub.f32 1.5, %v3341
        %v3343 = vmul.f32 %v3338, %v3342
        %vm3344 = vweird.f32 %v3063
        %vm3345 = vweird.f32 %v3338
        %vm3346 = vmor %vm3344, %vm3345
        %v3347 = vsel %vm3346, %v3338, %v3343
        %v3348 = vrsqrt.pop %v3064
        %v3349 = vmul.f32 %v3348, %v3064
        %v3350 = vmul.f32 %v3349, %v3348
        %v3351 = vmul.f32 0.5, %v3350
        %v3352 = vsub.f32 1.5, %v3351
        %v3353 = vmul.f32 %v3348, %v3352
        %vm3354 = vweird.f32 %v3064
        %vm3355 = vweird.f32 %v3348
        %vm3356 = vmor %vm3354, %vm3355
        %v3357 = vsel %vm3356, %v3348, %v3353
        %v3358 = vrsqrt.pop %v3065
        %v3359 = vmul.f32 %v3358, %v3065
        %v3360 = vmul.f32 %v3359, %v3358
        %v3361 = vmul.f32 0.5, %v3360
        %v3362 = vsub.f32 1.5, %v3361
        %v3363 = vmul.f32 %v3358, %v3362
        %vm3364 = vweird.f32 %v3065
        %vm3365 = vweird.f32 %v3358
        %vm3366 = vmor %vm3364, %vm3365
        %v3367 = vsel %vm3366, %v3358, %v3363
        %v3368 = vrsqrt.pop %v3066
        %v3369 = vmul.f32 %v3368, %v3066
        %v3370 = vmul.f32 %v3369, %v3368
        %v3371 = vmul.f32 0.5, %v3370
        %v3372 = vsub.f32 1.5, %v3371
        %v3373 = vmul.f32 %v3368, %v3372
        %vm3374 = vweird.f32 %v3066
        %vm3375 = vweird.f32 %v3368
        %vm3376 = vmor %vm3374, %vm3375
        %v3377 = vsel %vm3376, %v3368, %v3373
        %v3378 = vrsqrt.pop %v3067
        %v3379 = vmul.f32 %v3378, %v3067
        %v3380 = vmul.f32 %v3379, %v3378
        %v3381 = vmul.f32 0.5, %v3380
        %v3382 = vsub.f32 1.5, %v3381
        %v3383 = vmul.f32 %v3378, %v3382
        %vm3384 = vweird.f32 %v3067
        %vm3385 = vweird.f32 %v3378
        %vm3386 = vmor %vm3384, %vm3385
        %v3387 = vsel %vm3386, %v3378, %v3383
        %3420 = vrot.lane.b32.xlu0 %v3077, 96
        %v3421 = vpop.permute.xlu0 %3420
        %3422 = vrot.lane.b32.xlu0 %v3087, 96
        %v3423 = vpop.permute.xlu0 %3422
        %3424 = vrot.lane.b32.xlu0 %v3097, 96
        %v3425 = vpop.permute.xlu0 %3424
        %3426 = vrot.lane.b32.xlu0 %v3107, 96
        %v3427 = vpop.permute.xlu0 %3426
        %3428 = vrot.lane.b32.xlu0 %v3117, 96
        %v3429 = vpop.permute.xlu0 %3428
        %3430 = vrot.lane.b32.xlu0 %v3127, 96
        %v3431 = vpop.permute.xlu0 %3430
        %3432 = vrot.lane.b32.xlu0 %v3137, 96
        %v3433 = vpop.permute.xlu0 %3432
        %3434 = vrot.lane.b32.xlu0 %v3147, 96
        %v3435 = vpop.permute.xlu0 %3434
        %3436 = vrot.lane.b32.xlu0 %v3157, 96
        %v3437 = vpop.permute.xlu0 %3436
        %3438 = vrot.lane.b32.xlu0 %v3167, 96
        %v3439 = vpop.permute.xlu0 %3438
        %3440 = vrot.lane.b32.xlu0 %v3177, 96
        %v3441 = vpop.permute.xlu0 %3440
        %3442 = vrot.lane.b32.xlu0 %v3187, 96
        %v3443 = vpop.permute.xlu0 %3442
        %3444 = vrot.lane.b32.xlu0 %v3197, 96
        %v3445 = vpop.permute.xlu0 %3444
        %3446 = vrot.lane.b32.xlu0 %v3207, 96
        %v3447 = vpop.permute.xlu0 %3446
        %3448 = vrot.lane.b32.xlu0 %v3217, 96
        %v3449 = vpop.permute.xlu0 %3448
        %3450 = vrot.lane.b32.xlu0 %v3227, 96
        %v3451 = vpop.permute.xlu0 %3450
        %3452 = vrot.lane.b32.xlu0 %v3237, 96
        %v3453 = vpop.permute.xlu0 %3452
        %3454 = vrot.lane.b32.xlu0 %v3247, 96
        %v3455 = vpop.permute.xlu0 %3454
        %3456 = vrot.lane.b32.xlu0 %v3257, 96
        %v3457 = vpop.permute.xlu0 %3456
        %3458 = vrot.lane.b32.xlu0 %v3267, 96
        %v3459 = vpop.permute.xlu0 %3458
        %3460 = vrot.lane.b32.xlu0 %v3277, 96
        %v3461 = vpop.permute.xlu0 %3460
        %3462 = vrot.lane.b32.xlu0 %v3287, 96
        %v3463 = vpop.permute.xlu0 %3462
        %3464 = vrot.lane.b32.xlu0 %v3297, 96
        %v3465 = vpop.permute.xlu0 %3464
        %3466 = vrot.lane.b32.xlu0 %v3307, 96
        %v3467 = vpop.permute.xlu0 %3466
        %3468 = vrot.lane.b32.xlu0 %v3317, 96
        %v3469 = vpop.permute.xlu0 %3468
        %3470 = vrot.lane.b32.xlu0 %v3327, 96
        %v3471 = vpop.permute.xlu0 %3470
        %3472 = vrot.lane.b32.xlu0 %v3337, 96
        %v3473 = vpop.permute.xlu0 %3472
        %3474 = vrot.lane.b32.xlu0 %v3347, 96
        %v3475 = vpop.permute.xlu0 %3474
        %3476 = vrot.lane.b32.xlu0 %v3357, 96
        %v3477 = vpop.permute.xlu0 %3476
        %3478 = vrot.lane.b32.xlu0 %v3367, 96
        %v3479 = vpop.permute.xlu0 %3478
        %3480 = vrot.lane.b32.xlu0 %v3377, 96
        %v3481 = vpop.permute.xlu0 %3480
        %3482 = vrot.lane.b32.xlu0 %v3387, 96
        %v3483 = vpop.permute.xlu0 %3482
        %v3516 = vmul.f32 %v3004, %v3421
        %v3517 = vmul.f32 %v3005, %v3423
        %v3518 = vmul.f32 %v3006, %v3425
        %v3519 = vmul.f32 %v3007, %v3427
        %v3520 = vmul.f32 %v3008, %v3429
        %v3521 = vmul.f32 %v3009, %v3431
        %v3522 = vmul.f32 %v3010, %v3433
        %v3523 = vmul.f32 %v3011, %v3435
        %v3524 = vmul.f32 %v3012, %v3437
        %v3525 = vmul.f32 %v3013, %v3439
        %v3526 = vmul.f32 %v3014, %v3441
        %v3527 = vmul.f32 %v3015, %v3443
        %v3528 = vmul.f32 %v3016, %v3445
        %v3529 = vmul.f32 %v3017, %v3447
        %v3530 = vmul.f32 %v3018, %v3449
        %v3531 = vmul.f32 %v3019, %v3451
        %v3532 = vmul.f32 %v3020, %v3453
        %v3533 = vmul.f32 %v3021, %v3455
        %v3534 = vmul.f32 %v3022, %v3457
        %v3535 = vmul.f32 %v3023, %v3459
        %v3536 = vmul.f32 %v3024, %v3461
        %v3537 = vmul.f32 %v3025, %v3463
        %v3538 = vmul.f32 %v3026, %v3465
        %v3539 = vmul.f32 %v3027, %v3467
        %v3540 = vmul.f32 %v3028, %v3469
        %v3541 = vmul.f32 %v3029, %v3471
        %v3542 = vmul.f32 %v3030, %v3473
        %v3543 = vmul.f32 %v3031, %v3475
        %v3544 = vmul.f32 %v3032, %v3477
        %v3545 = vmul.f32 %v3033, %v3479
        %v3546 = vmul.f32 %v3034, %v3481
        %v3547 = vmul.f32 %v3035, %v3483
        %v3548 = vperm.slane %v2155, 1
        %v3549 = vmul.f32 %v3516, %v3548
        %v3550 = vmul.f32 %v3517, %v3548
        %v3551 = vmul.f32 %v3518, %v3548
        %v3552 = vmul.f32 %v3519, %v3548
        %v3553 = vmul.f32 %v3520, %v3548
        %v3554 = vmul.f32 %v3521, %v3548
        %v3555 = vmul.f32 %v3522, %v3548
        %v3556 = vmul.f32 %v3523, %v3548
        %v3557 = vmul.f32 %v3524, %v3548
        %v3558 = vmul.f32 %v3525, %v3548
        %v3559 = vmul.f32 %v3526, %v3548
        %v3560 = vmul.f32 %v3527, %v3548
        %v3561 = vmul.f32 %v3528, %v3548
        %v3562 = vmul.f32 %v3529, %v3548
        %v3563 = vmul.f32 %v3530, %v3548
        %v3564 = vmul.f32 %v3531, %v3548
        %v3565 = vmul.f32 %v3532, %v3548
        %v3566 = vmul.f32 %v3533, %v3548
        %v3567 = vmul.f32 %v3534, %v3548
        %v3568 = vmul.f32 %v3535, %v3548
        %v3569 = vmul.f32 %v3536, %v3548
        %v3570 = vmul.f32 %v3537, %v3548
        %v3571 = vmul.f32 %v3538, %v3548
        %v3572 = vmul.f32 %v3539, %v3548
        %v3573 = vmul.f32 %v3540, %v3548
        %v3574 = vmul.f32 %v3541, %v3548
        %v3575 = vmul.f32 %v3542, %v3548
        %v3576 = vmul.f32 %v3543, %v3548
        %v3577 = vmul.f32 %v3544, %v3548
        %v3578 = vmul.f32 %v3545, %v3548
        %v3579 = vmul.f32 %v3546, %v3548
        %v3580 = vmul.f32 %v3547, %v3548
        %v3581 = vperm.slane %v2155, 2
        %v3582 = vadd.f32 %v3549, %v3581
        %v3583 = vadd.f32 %v3550, %v3581
        %v3584 = vadd.f32 %v3551, %v3581
        %v3585 = vadd.f32 %v3552, %v3581
        %v3586 = vadd.f32 %v3553, %v3581
        %v3587 = vadd.f32 %v3554, %v3581
        %v3588 = vadd.f32 %v3555, %v3581
        %v3589 = vadd.f32 %v3556, %v3581
        %v3590 = vadd.f32 %v3557, %v3581
        %v3591 = vadd.f32 %v3558, %v3581
        %v3592 = vadd.f32 %v3559, %v3581
        %v3593 = vadd.f32 %v3560, %v3581
        %v3594 = vadd.f32 %v3561, %v3581
        %v3595 = vadd.f32 %v3562, %v3581
        %v3596 = vadd.f32 %v3563, %v3581
        %v3597 = vadd.f32 %v3564, %v3581
        %v3598 = vadd.f32 %v3565, %v3581
        %v3599 = vadd.f32 %v3566, %v3581
        %v3600 = vadd.f32 %v3567, %v3581
        %v3601 = vadd.f32 %v3568, %v3581
        %v3602 = vadd.f32 %v3569, %v3581
        %v3603 = vadd.f32 %v3570, %v3581
        %v3604 = vadd.f32 %v3571, %v3581
        %v3605 = vadd.f32 %v3572, %v3581
        %v3606 = vadd.f32 %v3573, %v3581
        %v3607 = vadd.f32 %v3574, %v3581
        %v3608 = vadd.f32 %v3575, %v3581
        %v3609 = vadd.f32 %v3576, %v3581
        %v3610 = vadd.f32 %v3577, %v3581
        %v3611 = vadd.f32 %v3578, %v3581
        %v3612 = vadd.f32 %v3579, %v3581
        %v3613 = vadd.f32 %v3580, %v3581
        %v3614 = vmul.f32 %v3582, 0.70710677
        %v3615 = vmul.f32 %v3583, 0.70710677
        %v3616 = vmul.f32 %v3584, 0.70710677
        %v3617 = vmul.f32 %v3585, 0.70710677
        %v3618 = vmul.f32 %v3586, 0.70710677
        %v3619 = vmul.f32 %v3587, 0.70710677
        %v3620 = vmul.f32 %v3588, 0.70710677
        %v3621 = vmul.f32 %v3589, 0.70710677
        %v3622 = vmul.f32 %v3590, 0.70710677
        %v3623 = vmul.f32 %v3591, 0.70710677
        %v3624 = vmul.f32 %v3592, 0.70710677
        %v3625 = vmul.f32 %v3593, 0.70710677
        %v3626 = vmul.f32 %v3594, 0.70710677
        %v3627 = vmul.f32 %v3595, 0.70710677
        %v3628 = vmul.f32 %v3596, 0.70710677
        %v3629 = vmul.f32 %v3597, 0.70710677
        %v3630 = vmul.f32 %v3598, 0.70710677
        %v3631 = vmul.f32 %v3599, 0.70710677
        %v3632 = vmul.f32 %v3600, 0.70710677
        %v3633 = vmul.f32 %v3601, 0.70710677
        %v3634 = vmul.f32 %v3602, 0.70710677
        %v3635 = vmul.f32 %v3603, 0.70710677
        %v3636 = vmul.f32 %v3604, 0.70710677
        %v3637 = vmul.f32 %v3605, 0.70710677
        %v3638 = vmul.f32 %v3606, 0.70710677
        %v3639 = vmul.f32 %v3607, 0.70710677
        %v3640 = vmul.f32 %v3608, 0.70710677
        %v3641 = vmul.f32 %v3609, 0.70710677
        %v3642 = vmul.f32 %v3610, 0.70710677
        %v3643 = vmul.f32 %v3611, 0.70710677
        %v3644 = vmul.f32 %v3612, 0.70710677
        %v3645 = vmul.f32 %v3613, 0.70710677
        %v3646 = vand.u32 2147483647, %v3614
        %v3647 = vand.u32 2147483647, %v3615
        %v3648 = vand.u32 2147483647, %v3616
        %v3649 = vand.u32 2147483647, %v3617
        %v3650 = vand.u32 2147483647, %v3618
        %v3651 = vand.u32 2147483647, %v3619
        %v3652 = vand.u32 2147483647, %v3620
        %v3653 = vand.u32 2147483647, %v3621
        %v3654 = vand.u32 2147483647, %v3622
        %v3655 = vand.u32 2147483647, %v3623
        %v3656 = vand.u32 2147483647, %v3624
        %v3657 = vand.u32 2147483647, %v3625
        %v3658 = vand.u32 2147483647, %v3626
        %v3659 = vand.u32 2147483647, %v3627
        %v3660 = vand.u32 2147483647, %v3628
        %v3661 = vand.u32 2147483647, %v3629
        %v3662 = vand.u32 2147483647, %v3630
        %v3663 = vand.u32 2147483647, %v3631
        %v3664 = vand.u32 2147483647, %v3632
        %v3665 = vand.u32 2147483647, %v3633
        %v3666 = vand.u32 2147483647, %v3634
        %v3667 = vand.u32 2147483647, %v3635
        %v3668 = vand.u32 2147483647, %v3636
        %v3669 = vand.u32 2147483647, %v3637
        %v3670 = vand.u32 2147483647, %v3638
        %v3671 = vand.u32 2147483647, %v3639
        %v3672 = vand.u32 2147483647, %v3640
        %v3673 = vand.u32 2147483647, %v3641
        %v3674 = vand.u32 2147483647, %v3642
        %v3675 = vand.u32 2147483647, %v3643
        %v3676 = vand.u32 2147483647, %v3644
        %v3677 = vand.u32 2147483647, %v3645
        %v3678 = vmul.f32 %v3646, 0.3275911
        %v3679 = vmul.f32 %v3647, 0.3275911
        %v3680 = vmul.f32 %v3648, 0.3275911
        %v3681 = vmul.f32 %v3649, 0.3275911
        %v3682 = vmul.f32 %v3650, 0.3275911
        %v3683 = vmul.f32 %v3651, 0.3275911
        %v3684 = vmul.f32 %v3652, 0.3275911
        %v3685 = vmul.f32 %v3653, 0.3275911
        %v3686 = vmul.f32 %v3654, 0.3275911
        %v3687 = vmul.f32 %v3655, 0.3275911
        %v3688 = vmul.f32 %v3656, 0.3275911
        %v3689 = vmul.f32 %v3657, 0.3275911
        %v3690 = vmul.f32 %v3658, 0.3275911
        %v3691 = vmul.f32 %v3659, 0.3275911
        %v3692 = vmul.f32 %v3660, 0.3275911
        %v3693 = vmul.f32 %v3661, 0.3275911
        %v3694 = vmul.f32 %v3662, 0.3275911
        %v3695 = vmul.f32 %v3663, 0.3275911
        %v3696 = vmul.f32 %v3664, 0.3275911
        %v3697 = vmul.f32 %v3665, 0.3275911
        %v3698 = vmul.f32 %v3666, 0.3275911
        %v3699 = vmul.f32 %v3667, 0.3275911
        %v3700 = vmul.f32 %v3668, 0.3275911
        %v3701 = vmul.f32 %v3669, 0.3275911
        %v3702 = vmul.f32 %v3670, 0.3275911
        %v3703 = vmul.f32 %v3671, 0.3275911
        %v3704 = vmul.f32 %v3672, 0.3275911
        %v3705 = vmul.f32 %v3673, 0.3275911
        %v3706 = vmul.f32 %v3674, 0.3275911
        %v3707 = vmul.f32 %v3675, 0.3275911
        %v3708 = vmul.f32 %v3676, 0.3275911
        %v3709 = vmul.f32 %v3677, 0.3275911
        %v3710 = vadd.f32 %v3678, 1.0
        %v3711 = vadd.f32 %v3679, 1.0
        %v3712 = vadd.f32 %v3680, 1.0
        %v3713 = vadd.f32 %v3681, 1.0
        %v3714 = vadd.f32 %v3682, 1.0
        %v3715 = vadd.f32 %v3683, 1.0
        %v3716 = vadd.f32 %v3684, 1.0
        %v3717 = vadd.f32 %v3685, 1.0
        %v3718 = vadd.f32 %v3686, 1.0
        %v3719 = vadd.f32 %v3687, 1.0
        %v3720 = vadd.f32 %v3688, 1.0
        %v3721 = vadd.f32 %v3689, 1.0
        %v3722 = vadd.f32 %v3690, 1.0
        %v3723 = vadd.f32 %v3691, 1.0
        %v3724 = vadd.f32 %v3692, 1.0
        %v3725 = vadd.f32 %v3693, 1.0
        %v3726 = vadd.f32 %v3694, 1.0
        %v3727 = vadd.f32 %v3695, 1.0
        %v3728 = vadd.f32 %v3696, 1.0
        %v3729 = vadd.f32 %v3697, 1.0
        %v3730 = vadd.f32 %v3698, 1.0
        %v3731 = vadd.f32 %v3699, 1.0
        %v3732 = vadd.f32 %v3700, 1.0
        %v3733 = vadd.f32 %v3701, 1.0
        %v3734 = vadd.f32 %v3702, 1.0
        %v3735 = vadd.f32 %v3703, 1.0
        %v3736 = vadd.f32 %v3704, 1.0
        %v3737 = vadd.f32 %v3705, 1.0
        %v3738 = vadd.f32 %v3706, 1.0
        %v3739 = vadd.f32 %v3707, 1.0
        %v3740 = vadd.f32 %v3708, 1.0
        %v3741 = vadd.f32 %v3709, 1.0
        %v3742 = vrcp.pop %v3710
        %v3743 = vmul.f32 %v3710, %v3742
        %v3744 = vsub.f32 1.0, %v3743
        %v3745 = vmul.f32 %v3742, %v3744
        %v3746 = vadd.f32 %v3742, %v3745
        %vm3747 = vweird.f32 %v3710
        %vm3748 = vweird.f32 %v3742
        %vm3749 = vmor %vm3747, %vm3748
        %v3750 = vsel %vm3749, %v3742, %v3746
        %v3751 = vand.u32 2147483647, %v3710
        %vm3752 = vcmp.eq.f32.partialorder %v3751, 8.507059e+37
        %v3753 = vand.u32 %v3710, 2147483648
        %v3754 = vor.u32 1.1754944e-38, %v3753
        %v3755 = vsel %vm3752, %v3754, %v3750
        %v3756 = vrcp.pop %v3711
        %v3757 = vmul.f32 %v3711, %v3756
        %v3758 = vsub.f32 1.0, %v3757
        %v3759 = vmul.f32 %v3756, %v3758
        %v3760 = vadd.f32 %v3756, %v3759
        %vm3761 = vweird.f32 %v3711
        %vm3762 = vweird.f32 %v3756
        %vm3763 = vmor %vm3761, %vm3762
        %v3764 = vsel %vm3763, %v3756, %v3760
        %v3765 = vand.u32 2147483647, %v3711
        %vm3766 = vcmp.eq.f32.partialorder %v3765, 8.507059e+37
        %v3767 = vand.u32 %v3711, 2147483648
        %v3768 = vor.u32 1.1754944e-38, %v3767
        %v3769 = vsel %vm3766, %v3768, %v3764
        %v3770 = vrcp.pop %v3712
        %v3771 = vmul.f32 %v3712, %v3770
        %v3772 = vsub.f32 1.0, %v3771
        %v3773 = vmul.f32 %v3770, %v3772
        %v3774 = vadd.f32 %v3770, %v3773
        %vm3775 = vweird.f32 %v3712
        %vm3776 = vweird.f32 %v3770
        %vm3777 = vmor %vm3775, %vm3776
        %v3778 = vsel %vm3777, %v3770, %v3774
        %v3779 = vand.u32 2147483647, %v3712
        %vm3780 = vcmp.eq.f32.partialorder %v3779, 8.507059e+37
        %v3781 = vand.u32 %v3712, 2147483648
        %v3782 = vor.u32 1.1754944e-38, %v3781
        %v3783 = vsel %vm3780, %v3782, %v3778
        %v3784 = vrcp.pop %v3713
        %v3785 = vmul.f32 %v3713, %v3784
        %v3786 = vsub.f32 1.0, %v3785
        %v3787 = vmul.f32 %v3784, %v3786
        %v3788 = vadd.f32 %v3784, %v3787
        %vm3789 = vweird.f32 %v3713
        %vm3790 = vweird.f32 %v3784
        %vm3791 = vmor %vm3789, %vm3790
        %v3792 = vsel %vm3791, %v3784, %v3788
        %v3793 = vand.u32 2147483647, %v3713
        %vm3794 = vcmp.eq.f32.partialorder %v3793, 8.507059e+37
        %v3795 = vand.u32 %v3713, 2147483648
        %v3796 = vor.u32 1.1754944e-38, %v3795
        %v3797 = vsel %vm3794, %v3796, %v3792
        %v3798 = vrcp.pop %v3714
        %v3799 = vmul.f32 %v3714, %v3798
        %v3800 = vsub.f32 1.0, %v3799
        %v3801 = vmul.f32 %v3798, %v3800
        %v3802 = vadd.f32 %v3798, %v3801
        %vm3803 = vweird.f32 %v3714
        %vm3804 = vweird.f32 %v3798
        %vm3805 = vmor %vm3803, %vm3804
        %v3806 = vsel %vm3805, %v3798, %v3802
        %v3807 = vand.u32 2147483647, %v3714
        %vm3808 = vcmp.eq.f32.partialorder %v3807, 8.507059e+37
        %v3809 = vand.u32 %v3714, 2147483648
        %v3810 = vor.u32 1.1754944e-38, %v3809
        %v3811 = vsel %vm3808, %v3810, %v3806
        %v3812 = vrcp.pop %v3715
        %v3813 = vmul.f32 %v3715, %v3812
        %v3814 = vsub.f32 1.0, %v3813
        %v3815 = vmul.f32 %v3812, %v3814
        %v3816 = vadd.f32 %v3812, %v3815
        %vm3817 = vweird.f32 %v3715
        %vm3818 = vweird.f32 %v3812
        %vm3819 = vmor %vm3817, %vm3818
        %v3820 = vsel %vm3819, %v3812, %v3816
        %v3821 = vand.u32 2147483647, %v3715
        %vm3822 = vcmp.eq.f32.partialorder %v3821, 8.507059e+37
        %v3823 = vand.u32 %v3715, 2147483648
        %v3824 = vor.u32 1.1754944e-38, %v3823
        %v3825 = vsel %vm3822, %v3824, %v3820
        %v3826 = vrcp.pop %v3716
        %v3827 = vmul.f32 %v3716, %v3826
        %v3828 = vsub.f32 1.0, %v3827
        %v3829 = vmul.f32 %v3826, %v3828
        %v3830 = vadd.f32 %v3826, %v3829
        %vm3831 = vweird.f32 %v3716
        %vm3832 = vweird.f32 %v3826
        %vm3833 = vmor %vm3831, %vm3832
        %v3834 = vsel %vm3833, %v3826, %v3830
        %v3835 = vand.u32 2147483647, %v3716
        %vm3836 = vcmp.eq.f32.partialorder %v3835, 8.507059e+37
        %v3837 = vand.u32 %v3716, 2147483648
        %v3838 = vor.u32 1.1754944e-38, %v3837
        %v3839 = vsel %vm3836, %v3838, %v3834
        %v3840 = vrcp.pop %v3717
        %v3841 = vmul.f32 %v3717, %v3840
        %v3842 = vsub.f32 1.0, %v3841
        %v3843 = vmul.f32 %v3840, %v3842
        %v3844 = vadd.f32 %v3840, %v3843
        %vm3845 = vweird.f32 %v3717
        %vm3846 = vweird.f32 %v3840
        %vm3847 = vmor %vm3845, %vm3846
        %v3848 = vsel %vm3847, %v3840, %v3844
        %v3849 = vand.u32 2147483647, %v3717
        %vm3850 = vcmp.eq.f32.partialorder %v3849, 8.507059e+37
        %v3851 = vand.u32 %v3717, 2147483648
        %v3852 = vor.u32 1.1754944e-38, %v3851
        %v3853 = vsel %vm3850, %v3852, %v3848
        %v3854 = vrcp.pop %v3718
        %v3855 = vmul.f32 %v3718, %v3854
        %v3856 = vsub.f32 1.0, %v3855
        %v3857 = vmul.f32 %v3854, %v3856
        %v3858 = vadd.f32 %v3854, %v3857
        %vm3859 = vweird.f32 %v3718
        %vm3860 = vweird.f32 %v3854
        %vm3861 = vmor %vm3859, %vm3860
        %v3862 = vsel %vm3861, %v3854, %v3858
        %v3863 = vand.u32 2147483647, %v3718
        %vm3864 = vcmp.eq.f32.partialorder %v3863, 8.507059e+37
        %v3865 = vand.u32 %v3718, 2147483648
        %v3866 = vor.u32 1.1754944e-38, %v3865
        %v3867 = vsel %vm3864, %v3866, %v3862
        %v3868 = vrcp.pop %v3719
        %v3869 = vmul.f32 %v3719, %v3868
        %v3870 = vsub.f32 1.0, %v3869
        %v3871 = vmul.f32 %v3868, %v3870
        %v3872 = vadd.f32 %v3868, %v3871
        %vm3873 = vweird.f32 %v3719
        %vm3874 = vweird.f32 %v3868
        %vm3875 = vmor %vm3873, %vm3874
        %v3876 = vsel %vm3875, %v3868, %v3872
        %v3877 = vand.u32 2147483647, %v3719
        %vm3878 = vcmp.eq.f32.partialorder %v3877, 8.507059e+37
        %v3879 = vand.u32 %v3719, 2147483648
        %v3880 = vor.u32 1.1754944e-38, %v3879
        %v3881 = vsel %vm3878, %v3880, %v3876
        %v3882 = vrcp.pop %v3720
        %v3883 = vmul.f32 %v3720, %v3882
        %v3884 = vsub.f32 1.0, %v3883
        %v3885 = vmul.f32 %v3882, %v3884
        %v3886 = vadd.f32 %v3882, %v3885
        %vm3887 = vweird.f32 %v3720
        %vm3888 = vweird.f32 %v3882
        %vm3889 = vmor %vm3887, %vm3888
        %v3890 = vsel %vm3889, %v3882, %v3886
        %v3891 = vand.u32 2147483647, %v3720
        %vm3892 = vcmp.eq.f32.partialorder %v3891, 8.507059e+37
        %v3893 = vand.u32 %v3720, 2147483648
        %v3894 = vor.u32 1.1754944e-38, %v3893
        %v3895 = vsel %vm3892, %v3894, %v3890
        %v3896 = vrcp.pop %v3721
        %v3897 = vmul.f32 %v3721, %v3896
        %v3898 = vsub.f32 1.0, %v3897
        %v3899 = vmul.f32 %v3896, %v3898
        %v3900 = vadd.f32 %v3896, %v3899
        %vm3901 = vweird.f32 %v3721
        %vm3902 = vweird.f32 %v3896
        %vm3903 = vmor %vm3901, %vm3902
        %v3904 = vsel %vm3903, %v3896, %v3900
        %v3905 = vand.u32 2147483647, %v3721
        %vm3906 = vcmp.eq.f32.partialorder %v3905, 8.507059e+37
        %v3907 = vand.u32 %v3721, 2147483648
        %v3908 = vor.u32 1.1754944e-38, %v3907
        %v3909 = vsel %vm3906, %v3908, %v3904
        %v3910 = vrcp.pop %v3722
        %v3911 = vmul.f32 %v3722, %v3910
        %v3912 = vsub.f32 1.0, %v3911
        %v3913 = vmul.f32 %v3910, %v3912
        %v3914 = vadd.f32 %v3910, %v3913
        %vm3915 = vweird.f32 %v3722
        %vm3916 = vweird.f32 %v3910
        %vm3917 = vmor %vm3915, %vm3916
        %v3918 = vsel %vm3917, %v3910, %v3914
        %v3919 = vand.u32 2147483647, %v3722
        %vm3920 = vcmp.eq.f32.partialorder %v3919, 8.507059e+37
        %v3921 = vand.u32 %v3722, 2147483648
        %v3922 = vor.u32 1.1754944e-38, %v3921
        %v3923 = vsel %vm3920, %v3922, %v3918
        %v3924 = vrcp.pop %v3723
        %v3925 = vmul.f32 %v3723, %v3924
        %v3926 = vsub.f32 1.0, %v3925
        %v3927 = vmul.f32 %v3924, %v3926
        %v3928 = vadd.f32 %v3924, %v3927
        %vm3929 = vweird.f32 %v3723
        %vm3930 = vweird.f32 %v3924
        %vm3931 = vmor %vm3929, %vm3930
        %v3932 = vsel %vm3931, %v3924, %v3928
        %v3933 = vand.u32 2147483647, %v3723
        %vm3934 = vcmp.eq.f32.partialorder %v3933, 8.507059e+37
        %v3935 = vand.u32 %v3723, 2147483648
        %v3936 = vor.u32 1.1754944e-38, %v3935
        %v3937 = vsel %vm3934, %v3936, %v3932
        %v3938 = vrcp.pop %v3724
        %v3939 = vmul.f32 %v3724, %v3938
        %v3940 = vsub.f32 1.0, %v3939
        %v3941 = vmul.f32 %v3938, %v3940
        %v3942 = vadd.f32 %v3938, %v3941
        %vm3943 = vweird.f32 %v3724
        %vm3944 = vweird.f32 %v3938
        %vm3945 = vmor %vm3943, %vm3944
        %v3946 = vsel %vm3945, %v3938, %v3942
        %v3947 = vand.u32 2147483647, %v3724
        %vm3948 = vcmp.eq.f32.partialorder %v3947, 8.507059e+37
        %v3949 = vand.u32 %v3724, 2147483648
        %v3950 = vor.u32 1.1754944e-38, %v3949
        %v3951 = vsel %vm3948, %v3950, %v3946
        %v3952 = vrcp.pop %v3725
        %v3953 = vmul.f32 %v3725, %v3952
        %v3954 = vsub.f32 1.0, %v3953
        %v3955 = vmul.f32 %v3952, %v3954
        %v3956 = vadd.f32 %v3952, %v3955
        %vm3957 = vweird.f32 %v3725
        %vm3958 = vweird.f32 %v3952
        %vm3959 = vmor %vm3957, %vm3958
        %v3960 = vsel %vm3959, %v3952, %v3956
        %v3961 = vand.u32 2147483647, %v3725
        %vm3962 = vcmp.eq.f32.partialorder %v3961, 8.507059e+37
        %v3963 = vand.u32 %v3725, 2147483648
        %v3964 = vor.u32 1.1754944e-38, %v3963
        %v3965 = vsel %vm3962, %v3964, %v3960
        %v3966 = vrcp.pop %v3726
        %v3967 = vmul.f32 %v3726, %v3966
        %v3968 = vsub.f32 1.0, %v3967
        %v3969 = vmul.f32 %v3966, %v3968
        %v3970 = vadd.f32 %v3966, %v3969
        %vm3971 = vweird.f32 %v3726
        %vm3972 = vweird.f32 %v3966
        %vm3973 = vmor %vm3971, %vm3972
        %v3974 = vsel %vm3973, %v3966, %v3970
        %v3975 = vand.u32 2147483647, %v3726
        %vm3976 = vcmp.eq.f32.partialorder %v3975, 8.507059e+37
        %v3977 = vand.u32 %v3726, 2147483648
        %v3978 = vor.u32 1.1754944e-38, %v3977
        %v3979 = vsel %vm3976, %v3978, %v3974
        %v3980 = vrcp.pop %v3727
        %v3981 = vmul.f32 %v3727, %v3980
        %v3982 = vsub.f32 1.0, %v3981
        %v3983 = vmul.f32 %v3980, %v3982
        %v3984 = vadd.f32 %v3980, %v3983
        %vm3985 = vweird.f32 %v3727
        %vm3986 = vweird.f32 %v3980
        %vm3987 = vmor %vm3985, %vm3986
        %v3988 = vsel %vm3987, %v3980, %v3984
        %v3989 = vand.u32 2147483647, %v3727
        %vm3990 = vcmp.eq.f32.partialorder %v3989, 8.507059e+37
        %v3991 = vand.u32 %v3727, 2147483648
        %v3992 = vor.u32 1.1754944e-38, %v3991
        %v3993 = vsel %vm3990, %v3992, %v3988
        %v3994 = vrcp.pop %v3728
        %v3995 = vmul.f32 %v3728, %v3994
        %v3996 = vsub.f32 1.0, %v3995
        %v3997 = vmul.f32 %v3994, %v3996
        %v3998 = vadd.f32 %v3994, %v3997
        %vm3999 = vweird.f32 %v3728
        %vm4000 = vweird.f32 %v3994
        %vm4001 = vmor %vm3999, %vm4000
        %v4002 = vsel %vm4001, %v3994, %v3998
        %v4003 = vand.u32 2147483647, %v3728
        %vm4004 = vcmp.eq.f32.partialorder %v4003, 8.507059e+37
        %v4005 = vand.u32 %v3728, 2147483648
        %v4006 = vor.u32 1.1754944e-38, %v4005
        %v4007 = vsel %vm4004, %v4006, %v4002
        %v4008 = vrcp.pop %v3729
        %v4009 = vmul.f32 %v3729, %v4008
        %v4010 = vsub.f32 1.0, %v4009
        %v4011 = vmul.f32 %v4008, %v4010
        %v4012 = vadd.f32 %v4008, %v4011
        %vm4013 = vweird.f32 %v3729
        %vm4014 = vweird.f32 %v4008
        %vm4015 = vmor %vm4013, %vm4014
        %v4016 = vsel %vm4015, %v4008, %v4012
        %v4017 = vand.u32 2147483647, %v3729
        %vm4018 = vcmp.eq.f32.partialorder %v4017, 8.507059e+37
        %v4019 = vand.u32 %v3729, 2147483648
        %v4020 = vor.u32 1.1754944e-38, %v4019
        %v4021 = vsel %vm4018, %v4020, %v4016
        %v4022 = vrcp.pop %v3730
        %v4023 = vmul.f32 %v3730, %v4022
        %v4024 = vsub.f32 1.0, %v4023
        %v4025 = vmul.f32 %v4022, %v4024
        %v4026 = vadd.f32 %v4022, %v4025
        %vm4027 = vweird.f32 %v3730
        %vm4028 = vweird.f32 %v4022
        %vm4029 = vmor %vm4027, %vm4028
        %v4030 = vsel %vm4029, %v4022, %v4026
        %v4031 = vand.u32 2147483647, %v3730
        %vm4032 = vcmp.eq.f32.partialorder %v4031, 8.507059e+37
        %v4033 = vand.u32 %v3730, 2147483648
        %v4034 = vor.u32 1.1754944e-38, %v4033
        %v4035 = vsel %vm4032, %v4034, %v4030
        %v4036 = vrcp.pop %v3731
        %v4037 = vmul.f32 %v3731, %v4036
        %v4038 = vsub.f32 1.0, %v4037
        %v4039 = vmul.f32 %v4036, %v4038
        %v4040 = vadd.f32 %v4036, %v4039
        %vm4041 = vweird.f32 %v3731
        %vm4042 = vweird.f32 %v4036
        %vm4043 = vmor %vm4041, %vm4042
        %v4044 = vsel %vm4043, %v4036, %v4040
        %v4045 = vand.u32 2147483647, %v3731
        %vm4046 = vcmp.eq.f32.partialorder %v4045, 8.507059e+37
        %v4047 = vand.u32 %v3731, 2147483648
        %v4048 = vor.u32 1.1754944e-38, %v4047
        %v4049 = vsel %vm4046, %v4048, %v4044
        %v4050 = vrcp.pop %v3732
        %v4051 = vmul.f32 %v3732, %v4050
        %v4052 = vsub.f32 1.0, %v4051
        %v4053 = vmul.f32 %v4050, %v4052
        %v4054 = vadd.f32 %v4050, %v4053
        %vm4055 = vweird.f32 %v3732
        %vm4056 = vweird.f32 %v4050
        %vm4057 = vmor %vm4055, %vm4056
        %v4058 = vsel %vm4057, %v4050, %v4054
        %v4059 = vand.u32 2147483647, %v3732
        %vm4060 = vcmp.eq.f32.partialorder %v4059, 8.507059e+37
        %v4061 = vand.u32 %v3732, 2147483648
        %v4062 = vor.u32 1.1754944e-38, %v4061
        %v4063 = vsel %vm4060, %v4062, %v4058
        %v4064 = vrcp.pop %v3733
        %v4065 = vmul.f32 %v3733, %v4064
        %v4066 = vsub.f32 1.0, %v4065
        %v4067 = vmul.f32 %v4064, %v4066
        %v4068 = vadd.f32 %v4064, %v4067
        %vm4069 = vweird.f32 %v3733
        %vm4070 = vweird.f32 %v4064
        %vm4071 = vmor %vm4069, %vm4070
        %v4072 = vsel %vm4071, %v4064, %v4068
        %v4073 = vand.u32 2147483647, %v3733
        %vm4074 = vcmp.eq.f32.partialorder %v4073, 8.507059e+37
        %v4075 = vand.u32 %v3733, 2147483648
        %v4076 = vor.u32 1.1754944e-38, %v4075
        %v4077 = vsel %vm4074, %v4076, %v4072
        %v4078 = vrcp.pop %v3734
        %v4079 = vmul.f32 %v3734, %v4078
        %v4080 = vsub.f32 1.0, %v4079
        %v4081 = vmul.f32 %v4078, %v4080
        %v4082 = vadd.f32 %v4078, %v4081
        %vm4083 = vweird.f32 %v3734
        %vm4084 = vweird.f32 %v4078
        %vm4085 = vmor %vm4083, %vm4084
        %v4086 = vsel %vm4085, %v4078, %v4082
        %v4087 = vand.u32 2147483647, %v3734
        %vm4088 = vcmp.eq.f32.partialorder %v4087, 8.507059e+37
        %v4089 = vand.u32 %v3734, 2147483648
        %v4090 = vor.u32 1.1754944e-38, %v4089
        %v4091 = vsel %vm4088, %v4090, %v4086
        %v4092 = vrcp.pop %v3735
        %v4093 = vmul.f32 %v3735, %v4092
        %v4094 = vsub.f32 1.0, %v4093
        %v4095 = vmul.f32 %v4092, %v4094
        %v4096 = vadd.f32 %v4092, %v4095
        %vm4097 = vweird.f32 %v3735
        %vm4098 = vweird.f32 %v4092
        %vm4099 = vmor %vm4097, %vm4098
        %v4100 = vsel %vm4099, %v4092, %v4096
        %v4101 = vand.u32 2147483647, %v3735
        %vm4102 = vcmp.eq.f32.partialorder %v4101, 8.507059e+37
        %v4103 = vand.u32 %v3735, 2147483648
        %v4104 = vor.u32 1.1754944e-38, %v4103
        %v4105 = vsel %vm4102, %v4104, %v4100
        %v4106 = vrcp.pop %v3736
        %v4107 = vmul.f32 %v3736, %v4106
        %v4108 = vsub.f32 1.0, %v4107
        %v4109 = vmul.f32 %v4106, %v4108
        %v4110 = vadd.f32 %v4106, %v4109
        %vm4111 = vweird.f32 %v3736
        %vm4112 = vweird.f32 %v4106
        %vm4113 = vmor %vm4111, %vm4112
        %v4114 = vsel %vm4113, %v4106, %v4110
        %v4115 = vand.u32 2147483647, %v3736
        %vm4116 = vcmp.eq.f32.partialorder %v4115, 8.507059e+37
        %v4117 = vand.u32 %v3736, 2147483648
        %v4118 = vor.u32 1.1754944e-38, %v4117
        %v4119 = vsel %vm4116, %v4118, %v4114
        %v4120 = vrcp.pop %v3737
        %v4121 = vmul.f32 %v3737, %v4120
        %v4122 = vsub.f32 1.0, %v4121
        %v4123 = vmul.f32 %v4120, %v4122
        %v4124 = vadd.f32 %v4120, %v4123
        %vm4125 = vweird.f32 %v3737
        %vm4126 = vweird.f32 %v4120
        %vm4127 = vmor %vm4125, %vm4126
        %v4128 = vsel %vm4127, %v4120, %v4124
        %v4129 = vand.u32 2147483647, %v3737
        %vm4130 = vcmp.eq.f32.partialorder %v4129, 8.507059e+37
        %v4131 = vand.u32 %v3737, 2147483648
        %v4132 = vor.u32 1.1754944e-38, %v4131
        %v4133 = vsel %vm4130, %v4132, %v4128
        %v4134 = vrcp.pop %v3738
        %v4135 = vmul.f32 %v3738, %v4134
        %v4136 = vsub.f32 1.0, %v4135
        %v4137 = vmul.f32 %v4134, %v4136
        %v4138 = vadd.f32 %v4134, %v4137
        %vm4139 = vweird.f32 %v3738
        %vm4140 = vweird.f32 %v4134
        %vm4141 = vmor %vm4139, %vm4140
        %v4142 = vsel %vm4141, %v4134, %v4138
        %v4143 = vand.u32 2147483647, %v3738
        %vm4144 = vcmp.eq.f32.partialorder %v4143, 8.507059e+37
        %v4145 = vand.u32 %v3738, 2147483648
        %v4146 = vor.u32 1.1754944e-38, %v4145
        %v4147 = vsel %vm4144, %v4146, %v4142
        %v4148 = vrcp.pop %v3739
        %v4149 = vmul.f32 %v3739, %v4148
        %v4150 = vsub.f32 1.0, %v4149
        %v4151 = vmul.f32 %v4148, %v4150
        %v4152 = vadd.f32 %v4148, %v4151
        %vm4153 = vweird.f32 %v3739
        %vm4154 = vweird.f32 %v4148
        %vm4155 = vmor %vm4153, %vm4154
        %v4156 = vsel %vm4155, %v4148, %v4152
        %v4157 = vand.u32 2147483647, %v3739
        %vm4158 = vcmp.eq.f32.partialorder %v4157, 8.507059e+37
        %v4159 = vand.u32 %v3739, 2147483648
        %v4160 = vor.u32 1.1754944e-38, %v4159
        %v4161 = vsel %vm4158, %v4160, %v4156
        %v4162 = vrcp.pop %v3740
        %v4163 = vmul.f32 %v3740, %v4162
        %v4164 = vsub.f32 1.0, %v4163
        %v4165 = vmul.f32 %v4162, %v4164
        %v4166 = vadd.f32 %v4162, %v4165
        %vm4167 = vweird.f32 %v3740
        %vm4168 = vweird.f32 %v4162
        %vm4169 = vmor %vm4167, %vm4168
        %v4170 = vsel %vm4169, %v4162, %v4166
        %v4171 = vand.u32 2147483647, %v3740
        %vm4172 = vcmp.eq.f32.partialorder %v4171, 8.507059e+37
        %v4173 = vand.u32 %v3740, 2147483648
        %v4174 = vor.u32 1.1754944e-38, %v4173
        %v4175 = vsel %vm4172, %v4174, %v4170
        %v4176 = vrcp.pop %v3741
        %v4177 = vmul.f32 %v3741, %v4176
        %v4178 = vsub.f32 1.0, %v4177
        %v4179 = vmul.f32 %v4176, %v4178
        %v4180 = vadd.f32 %v4176, %v4179
        %vm4181 = vweird.f32 %v3741
        %vm4182 = vweird.f32 %v4176
        %vm4183 = vmor %vm4181, %vm4182
        %v4184 = vsel %vm4183, %v4176, %v4180
        %v4185 = vand.u32 2147483647, %v3741
        %vm4186 = vcmp.eq.f32.partialorder %v4185, 8.507059e+37
        %v4187 = vand.u32 %v3741, 2147483648
        %v4188 = vor.u32 1.1754944e-38, %v4187
        %v4189 = vsel %vm4186, %v4188, %v4184
        %v4190 = vmul.f32 %v3755, 1.0614054
        %v4191 = vmul.f32 %v3769, 1.0614054
        %v4192 = vmul.f32 %v3783, 1.0614054
        %v4193 = vmul.f32 %v3797, 1.0614054
        %v4194 = vmul.f32 %v3811, 1.0614054
        %v4195 = vmul.f32 %v3825, 1.0614054
        %v4196 = vmul.f32 %v3839, 1.0614054
        %v4197 = vmul.f32 %v3853, 1.0614054
        %v4198 = vmul.f32 %v3867, 1.0614054
        %v4199 = vmul.f32 %v3881, 1.0614054
        %v4200 = vmul.f32 %v3895, 1.0614054
        %v4201 = vmul.f32 %v3909, 1.0614054
        %v4202 = vmul.f32 %v3923, 1.0614054
        %v4203 = vmul.f32 %v3937, 1.0614054
        %v4204 = vmul.f32 %v3951, 1.0614054
        %v4205 = vmul.f32 %v3965, 1.0614054
        %v4206 = vmul.f32 %v3979, 1.0614054
        %v4207 = vmul.f32 %v3993, 1.0614054
        %v4208 = vmul.f32 %v4007, 1.0614054
        %v4209 = vmul.f32 %v4021, 1.0614054
        %v4210 = vmul.f32 %v4035, 1.0614054
        %v4211 = vmul.f32 %v4049, 1.0614054
        %v4212 = vmul.f32 %v4063, 1.0614054
        %v4213 = vmul.f32 %v4077, 1.0614054
        %v4214 = vmul.f32 %v4091, 1.0614054
        %v4215 = vmul.f32 %v4105, 1.0614054
        %v4216 = vmul.f32 %v4119, 1.0614054
        %v4217 = vmul.f32 %v4133, 1.0614054
        %v4218 = vmul.f32 %v4147, 1.0614054
        %v4219 = vmul.f32 %v4161, 1.0614054
        %v4220 = vmul.f32 %v4175, 1.0614054
        %v4221 = vmul.f32 %v4189, 1.0614054
        %v4222 = vadd.f32 %v4190, -1.4531521
        %v4223 = vadd.f32 %v4191, -1.4531521
        %v4224 = vadd.f32 %v4192, -1.4531521
        %v4225 = vadd.f32 %v4193, -1.4531521
        %v4226 = vadd.f32 %v4194, -1.4531521
        %v4227 = vadd.f32 %v4195, -1.4531521
        %v4228 = vadd.f32 %v4196, -1.4531521
        %v4229 = vadd.f32 %v4197, -1.4531521
        %v4230 = vadd.f32 %v4198, -1.4531521
        %v4231 = vadd.f32 %v4199, -1.4531521
        %v4232 = vadd.f32 %v4200, -1.4531521
        %v4233 = vadd.f32 %v4201, -1.4531521
        %v4234 = vadd.f32 %v4202, -1.4531521
        %v4235 = vadd.f32 %v4203, -1.4531521
        %v4236 = vadd.f32 %v4204, -1.4531521
        %v4237 = vadd.f32 %v4205, -1.4531521
        %v4238 = vadd.f32 %v4206, -1.4531521
        %v4239 = vadd.f32 %v4207, -1.4531521
        %v4240 = vadd.f32 %v4208, -1.4531521
        %v4241 = vadd.f32 %v4209, -1.4531521
        %v4242 = vadd.f32 %v4210, -1.4531521
        %v4243 = vadd.f32 %v4211, -1.4531521
        %v4244 = vadd.f32 %v4212, -1.4531521
        %v4245 = vadd.f32 %v4213, -1.4531521
        %v4246 = vadd.f32 %v4214, -1.4531521
        %v4247 = vadd.f32 %v4215, -1.4531521
        %v4248 = vadd.f32 %v4216, -1.4531521
        %v4249 = vadd.f32 %v4217, -1.4531521
        %v4250 = vadd.f32 %v4218, -1.4531521
        %v4251 = vadd.f32 %v4219, -1.4531521
        %v4252 = vadd.f32 %v4220, -1.4531521
        %v4253 = vadd.f32 %v4221, -1.4531521
        %v4254 = vmul.f32 %v4222, %v3755
        %v4255 = vmul.f32 %v4223, %v3769
        %v4256 = vmul.f32 %v4224, %v3783
        %v4257 = vmul.f32 %v4225, %v3797
        %v4258 = vmul.f32 %v4226, %v3811
        %v4259 = vmul.f32 %v4227, %v3825
        %v4260 = vmul.f32 %v4228, %v3839
        %v4261 = vmul.f32 %v4229, %v3853
        %v4262 = vmul.f32 %v4230, %v3867
        %v4263 = vmul.f32 %v4231, %v3881
        %v4264 = vmul.f32 %v4232, %v3895
        %v4265 = vmul.f32 %v4233, %v3909
        %v4266 = vmul.f32 %v4234, %v3923
        %v4267 = vmul.f32 %v4235, %v3937
        %v4268 = vmul.f32 %v4236, %v3951
        %v4269 = vmul.f32 %v4237, %v3965
        %v4270 = vmul.f32 %v4238, %v3979
        %v4271 = vmul.f32 %v4239, %v3993
        %v4272 = vmul.f32 %v4240, %v4007
        %v4273 = vmul.f32 %v4241, %v4021
        %v4274 = vmul.f32 %v4242, %v4035
        %v4275 = vmul.f32 %v4243, %v4049
        %v4276 = vmul.f32 %v4244, %v4063
        %v4277 = vmul.f32 %v4245, %v4077
        %v4278 = vmul.f32 %v4246, %v4091
        %v4279 = vmul.f32 %v4247, %v4105
        %v4280 = vmul.f32 %v4248, %v4119
        %v4281 = vmul.f32 %v4249, %v4133
        %v4282 = vmul.f32 %v4250, %v4147
        %v4283 = vmul.f32 %v4251, %v4161
        %v4284 = vmul.f32 %v4252, %v4175
        %v4285 = vmul.f32 %v4253, %v4189
        %v4286 = vadd.f32 %v4254, 1.4214138
        %v4287 = vadd.f32 %v4255, 1.4214138
        %v4288 = vadd.f32 %v4256, 1.4214138
        %v4289 = vadd.f32 %v4257, 1.4214138
        %v4290 = vadd.f32 %v4258, 1.4214138
        %v4291 = vadd.f32 %v4259, 1.4214138
        %v4292 = vadd.f32 %v4260, 1.4214138
        %v4293 = vadd.f32 %v4261, 1.4214138
        %v4294 = vadd.f32 %v4262, 1.4214138
        %v4295 = vadd.f32 %v4263, 1.4214138
        %v4296 = vadd.f32 %v4264, 1.4214138
        %v4297 = vadd.f32 %v4265, 1.4214138
        %v4298 = vadd.f32 %v4266, 1.4214138
        %v4299 = vadd.f32 %v4267, 1.4214138
        %v4300 = vadd.f32 %v4268, 1.4214138
        %v4301 = vadd.f32 %v4269, 1.4214138
        %v4302 = vadd.f32 %v4270, 1.4214138
        %v4303 = vadd.f32 %v4271, 1.4214138
        %v4304 = vadd.f32 %v4272, 1.4214138
        %v4305 = vadd.f32 %v4273, 1.4214138
        %v4306 = vadd.f32 %v4274, 1.4214138
        %v4307 = vadd.f32 %v4275, 1.4214138
        %v4308 = vadd.f32 %v4276, 1.4214138
        %v4309 = vadd.f32 %v4277, 1.4214138
        %v4310 = vadd.f32 %v4278, 1.4214138
        %v4311 = vadd.f32 %v4279, 1.4214138
        %v4312 = vadd.f32 %v4280, 1.4214138
        %v4313 = vadd.f32 %v4281, 1.4214138
        %v4314 = vadd.f32 %v4282, 1.4214138
        %v4315 = vadd.f32 %v4283, 1.4214138
        %v4316 = vadd.f32 %v4284, 1.4214138
        %v4317 = vadd.f32 %v4285, 1.4214138
        %v4318 = vmul.f32 %v4286, %v3755
        %v4319 = vmul.f32 %v4287, %v3769
        %v4320 = vmul.f32 %v4288, %v3783
        %v4321 = vmul.f32 %v4289, %v3797
        %v4322 = vmul.f32 %v4290, %v3811
        %v4323 = vmul.f32 %v4291, %v3825
        %v4324 = vmul.f32 %v4292, %v3839
        %v4325 = vmul.f32 %v4293, %v3853
        %v4326 = vmul.f32 %v4294, %v3867
        %v4327 = vmul.f32 %v4295, %v3881
        %v4328 = vmul.f32 %v4296, %v3895
        %v4329 = vmul.f32 %v4297, %v3909
        %v4330 = vmul.f32 %v4298, %v3923
        %v4331 = vmul.f32 %v4299, %v3937
        %v4332 = vmul.f32 %v4300, %v3951
        %v4333 = vmul.f32 %v4301, %v3965
        %v4334 = vmul.f32 %v4302, %v3979
        %v4335 = vmul.f32 %v4303, %v3993
        %v4336 = vmul.f32 %v4304, %v4007
        %v4337 = vmul.f32 %v4305, %v4021
        %v4338 = vmul.f32 %v4306, %v4035
        %v4339 = vmul.f32 %v4307, %v4049
        %v4340 = vmul.f32 %v4308, %v4063
        %v4341 = vmul.f32 %v4309, %v4077
        %v4342 = vmul.f32 %v4310, %v4091
        %v4343 = vmul.f32 %v4311, %v4105
        %v4344 = vmul.f32 %v4312, %v4119
        %v4345 = vmul.f32 %v4313, %v4133
        %v4346 = vmul.f32 %v4314, %v4147
        %v4347 = vmul.f32 %v4315, %v4161
        %v4348 = vmul.f32 %v4316, %v4175
        %v4349 = vmul.f32 %v4317, %v4189
        %v4350 = vadd.f32 %v4318, -0.28449672
        %v4351 = vadd.f32 %v4319, -0.28449672
        %v4352 = vadd.f32 %v4320, -0.28449672
        %v4353 = vadd.f32 %v4321, -0.28449672
        %v4354 = vadd.f32 %v4322, -0.28449672
        %v4355 = vadd.f32 %v4323, -0.28449672
        %v4356 = vadd.f32 %v4324, -0.28449672
        %v4357 = vadd.f32 %v4325, -0.28449672
        %v4358 = vadd.f32 %v4326, -0.28449672
        %v4359 = vadd.f32 %v4327, -0.28449672
        %v4360 = vadd.f32 %v4328, -0.28449672
        %v4361 = vadd.f32 %v4329, -0.28449672
        %v4362 = vadd.f32 %v4330, -0.28449672
        %v4363 = vadd.f32 %v4331, -0.28449672
        %v4364 = vadd.f32 %v4332, -0.28449672
        %v4365 = vadd.f32 %v4333, -0.28449672
        %v4366 = vadd.f32 %v4334, -0.28449672
        %v4367 = vadd.f32 %v4335, -0.28449672
        %v4368 = vadd.f32 %v4336, -0.28449672
        %v4369 = vadd.f32 %v4337, -0.28449672
        %v4370 = vadd.f32 %v4338, -0.28449672
        %v4371 = vadd.f32 %v4339, -0.28449672
        %v4372 = vadd.f32 %v4340, -0.28449672
        %v4373 = vadd.f32 %v4341, -0.28449672
        %v4374 = vadd.f32 %v4342, -0.28449672
        %v4375 = vadd.f32 %v4343, -0.28449672
        %v4376 = vadd.f32 %v4344, -0.28449672
        %v4377 = vadd.f32 %v4345, -0.28449672
        %v4378 = vadd.f32 %v4346, -0.28449672
        %v4379 = vadd.f32 %v4347, -0.28449672
        %v4380 = vadd.f32 %v4348, -0.28449672
        %v4381 = vadd.f32 %v4349, -0.28449672
        %v4382 = vmul.f32 %v4350, %v3755
        %v4383 = vmul.f32 %v4351, %v3769
        %v4384 = vmul.f32 %v4352, %v3783
        %v4385 = vmul.f32 %v4353, %v3797
        %v4386 = vmul.f32 %v4354, %v3811
        %v4387 = vmul.f32 %v4355, %v3825
        %v4388 = vmul.f32 %v4356, %v3839
        %v4389 = vmul.f32 %v4357, %v3853
        %v4390 = vmul.f32 %v4358, %v3867
        %v4391 = vmul.f32 %v4359, %v3881
        %v4392 = vmul.f32 %v4360, %v3895
        %v4393 = vmul.f32 %v4361, %v3909
        %v4394 = vmul.f32 %v4362, %v3923
        %v4395 = vmul.f32 %v4363, %v3937
        %v4396 = vmul.f32 %v4364, %v3951
        %v4397 = vmul.f32 %v4365, %v3965
        %v4398 = vmul.f32 %v4366, %v3979
        %v4399 = vmul.f32 %v4367, %v3993
        %v4400 = vmul.f32 %v4368, %v4007
        %v4401 = vmul.f32 %v4369, %v4021
        %v4402 = vmul.f32 %v4370, %v4035
        %v4403 = vmul.f32 %v4371, %v4049
        %v4404 = vmul.f32 %v4372, %v4063
        %v4405 = vmul.f32 %v4373, %v4077
        %v4406 = vmul.f32 %v4374, %v4091
        %v4407 = vmul.f32 %v4375, %v4105
        %v4408 = vmul.f32 %v4376, %v4119
        %v4409 = vmul.f32 %v4377, %v4133
        %v4410 = vmul.f32 %v4378, %v4147
        %v4411 = vmul.f32 %v4379, %v4161
        %v4412 = vmul.f32 %v4380, %v4175
        %v4413 = vmul.f32 %v4381, %v4189
        %v4414 = vadd.f32 %v4382, 0.2548296
        %v4415 = vadd.f32 %v4383, 0.2548296
        %v4416 = vadd.f32 %v4384, 0.2548296
        %v4417 = vadd.f32 %v4385, 0.2548296
        %v4418 = vadd.f32 %v4386, 0.2548296
        %v4419 = vadd.f32 %v4387, 0.2548296
        %v4420 = vadd.f32 %v4388, 0.2548296
        %v4421 = vadd.f32 %v4389, 0.2548296
        %v4422 = vadd.f32 %v4390, 0.2548296
        %v4423 = vadd.f32 %v4391, 0.2548296
        %v4424 = vadd.f32 %v4392, 0.2548296
        %v4425 = vadd.f32 %v4393, 0.2548296
        %v4426 = vadd.f32 %v4394, 0.2548296
        %v4427 = vadd.f32 %v4395, 0.2548296
        %v4428 = vadd.f32 %v4396, 0.2548296
        %v4429 = vadd.f32 %v4397, 0.2548296
        %v4430 = vadd.f32 %v4398, 0.2548296
        %v4431 = vadd.f32 %v4399, 0.2548296
        %v4432 = vadd.f32 %v4400, 0.2548296
        %v4433 = vadd.f32 %v4401, 0.2548296
        %v4434 = vadd.f32 %v4402, 0.2548296
        %v4435 = vadd.f32 %v4403, 0.2548296
        %v4436 = vadd.f32 %v4404, 0.2548296
        %v4437 = vadd.f32 %v4405, 0.2548296
        %v4438 = vadd.f32 %v4406, 0.2548296
        %v4439 = vadd.f32 %v4407, 0.2548296
        %v4440 = vadd.f32 %v4408, 0.2548296
        %v4441 = vadd.f32 %v4409, 0.2548296
        %v4442 = vadd.f32 %v4410, 0.2548296
        %v4443 = vadd.f32 %v4411, 0.2548296
        %v4444 = vadd.f32 %v4412, 0.2548296
        %v4445 = vadd.f32 %v4413, 0.2548296
        %v4446 = vmul.f32 %v4414, %v3755
        %v4447 = vmul.f32 %v4415, %v3769
        %v4448 = vmul.f32 %v4416, %v3783
        %v4449 = vmul.f32 %v4417, %v3797
        %v4450 = vmul.f32 %v4418, %v3811
        %v4451 = vmul.f32 %v4419, %v3825
        %v4452 = vmul.f32 %v4420, %v3839
        %v4453 = vmul.f32 %v4421, %v3853
        %v4454 = vmul.f32 %v4422, %v3867
        %v4455 = vmul.f32 %v4423, %v3881
        %v4456 = vmul.f32 %v4424, %v3895
        %v4457 = vmul.f32 %v4425, %v3909
        %v4458 = vmul.f32 %v4426, %v3923
        %v4459 = vmul.f32 %v4427, %v3937
        %v4460 = vmul.f32 %v4428, %v3951
        %v4461 = vmul.f32 %v4429, %v3965
        %v4462 = vmul.f32 %v4430, %v3979
        %v4463 = vmul.f32 %v4431, %v3993
        %v4464 = vmul.f32 %v4432, %v4007
        %v4465 = vmul.f32 %v4433, %v4021
        %v4466 = vmul.f32 %v4434, %v4035
        %v4467 = vmul.f32 %v4435, %v4049
        %v4468 = vmul.f32 %v4436, %v4063
        %v4469 = vmul.f32 %v4437, %v4077
        %v4470 = vmul.f32 %v4438, %v4091
        %v4471 = vmul.f32 %v4439, %v4105
        %v4472 = vmul.f32 %v4440, %v4119
        %v4473 = vmul.f32 %v4441, %v4133
        %v4474 = vmul.f32 %v4442, %v4147
        %v4475 = vmul.f32 %v4443, %v4161
        %v4476 = vmul.f32 %v4444, %v4175
        %v4477 = vmul.f32 %v4445, %v4189
        %v4478 = vsub.f32 0.0, %v3646
        %v4479 = vsub.f32 0.0, %v3647
        %v4480 = vsub.f32 0.0, %v3648
        %v4481 = vsub.f32 0.0, %v3649
        %v4482 = vsub.f32 0.0, %v3650
        %v4483 = vsub.f32 0.0, %v3651
        %v4484 = vsub.f32 0.0, %v3652
        %v4485 = vsub.f32 0.0, %v3653
        %v4486 = vsub.f32 0.0, %v3654
        %v4487 = vsub.f32 0.0, %v3655
        %v4488 = vsub.f32 0.0, %v3656
        %v4489 = vsub.f32 0.0, %v3657
        %v4490 = vsub.f32 0.0, %v3658
        %v4491 = vsub.f32 0.0, %v3659
        %v4492 = vsub.f32 0.0, %v3660
        %v4493 = vsub.f32 0.0, %v3661
        %v4494 = vsub.f32 0.0, %v3662
        %v4495 = vsub.f32 0.0, %v3663
        %v4496 = vsub.f32 0.0, %v3664
        %v4497 = vsub.f32 0.0, %v3665
        %v4498 = vsub.f32 0.0, %v3666
        %v4499 = vsub.f32 0.0, %v3667
        %v4500 = vsub.f32 0.0, %v3668
        %v4501 = vsub.f32 0.0, %v3669
        %v4502 = vsub.f32 0.0, %v3670
        %v4503 = vsub.f32 0.0, %v3671
        %v4504 = vsub.f32 0.0, %v3672
        %v4505 = vsub.f32 0.0, %v3673
        %v4506 = vsub.f32 0.0, %v3674
        %v4507 = vsub.f32 0.0, %v3675
        %v4508 = vsub.f32 0.0, %v3676
        %v4509 = vsub.f32 0.0, %v3677
        %v4510 = vmul.f32 %v4478, %v3646
        %v4511 = vmul.f32 %v4479, %v3647
        %v4512 = vmul.f32 %v4480, %v3648
        %v4513 = vmul.f32 %v4481, %v3649
        %v4514 = vmul.f32 %v4482, %v3650
        %v4515 = vmul.f32 %v4483, %v3651
        %v4516 = vmul.f32 %v4484, %v3652
        %v4517 = vmul.f32 %v4485, %v3653
        %v4518 = vmul.f32 %v4486, %v3654
        %v4519 = vmul.f32 %v4487, %v3655
        %v4520 = vmul.f32 %v4488, %v3656
        %v4521 = vmul.f32 %v4489, %v3657
        %v4522 = vmul.f32 %v4490, %v3658
        %v4523 = vmul.f32 %v4491, %v3659
        %v4524 = vmul.f32 %v4492, %v3660
        %v4525 = vmul.f32 %v4493, %v3661
        %v4526 = vmul.f32 %v4494, %v3662
        %v4527 = vmul.f32 %v4495, %v3663
        %v4528 = vmul.f32 %v4496, %v3664
        %v4529 = vmul.f32 %v4497, %v3665
        %v4530 = vmul.f32 %v4498, %v3666
        %v4531 = vmul.f32 %v4499, %v3667
        %v4532 = vmul.f32 %v4500, %v3668
        %v4533 = vmul.f32 %v4501, %v3669
        %v4534 = vmul.f32 %v4502, %v3670
        %v4535 = vmul.f32 %v4503, %v3671
        %v4536 = vmul.f32 %v4504, %v3672
        %v4537 = vmul.f32 %v4505, %v3673
        %v4538 = vmul.f32 %v4506, %v3674
        %v4539 = vmul.f32 %v4507, %v3675
        %v4540 = vmul.f32 %v4508, %v3676
        %v4541 = vmul.f32 %v4509, %v3677
        %v4542 = vmul.f32 %v4510, 1.442695
        %v4543 = vpow.pop %v4542
        %v4544 = vmul.f32 %v4511, 1.442695
        %v4545 = vpow.pop %v4544
        %v4546 = vmul.f32 %v4512, 1.442695
        %v4547 = vpow.pop %v4546
        %v4548 = vmul.f32 %v4513, 1.442695
        %v4549 = vpow.pop %v4548
        %v4550 = vmul.f32 %v4514, 1.442695
        %v4551 = vpow.pop %v4550
        %v4552 = vmul.f32 %v4515, 1.442695
        %v4553 = vpow.pop %v4552
        %v4554 = vmul.f32 %v4516, 1.442695
        %v4555 = vpow.pop %v4554
        %v4556 = vmul.f32 %v4517, 1.442695
        %v4557 = vpow.pop %v4556
        %v4558 = vmul.f32 %v4518, 1.442695
        %v4559 = vpow.pop %v4558
        %v4560 = vmul.f32 %v4519, 1.442695
        %v4561 = vpow.pop %v4560
        %v4562 = vmul.f32 %v4520, 1.442695
        %v4563 = vpow.pop %v4562
        %v4564 = vmul.f32 %v4521, 1.442695
        %v4565 = vpow.pop %v4564
        %v4566 = vmul.f32 %v4522, 1.442695
        %v4567 = vpow.pop %v4566
        %v4568 = vmul.f32 %v4523, 1.442695
        %v4569 = vpow.pop %v4568
        %v4570 = vmul.f32 %v4524, 1.442695
        %v4571 = vpow.pop %v4570
        %v4572 = vmul.f32 %v4525, 1.442695
        %v4573 = vpow.pop %v4572
        %v4574 = vmul.f32 %v4526, 1.442695
        %v4575 = vpow.pop %v4574
        %v4576 = vmul.f32 %v4527, 1.442695
        %v4577 = vpow.pop %v4576
        %v4578 = vmul.f32 %v4528, 1.442695
        %v4579 = vpow.pop %v4578
        %v4580 = vmul.f32 %v4529, 1.442695
        %v4581 = vpow.pop %v4580
        %v4582 = vmul.f32 %v4530, 1.442695
        %v4583 = vpow.pop %v4582
        %v4584 = vmul.f32 %v4531, 1.442695
        %v4585 = vpow.pop %v4584
        %v4586 = vmul.f32 %v4532, 1.442695
        %v4587 = vpow.pop %v4586
        %v4588 = vmul.f32 %v4533, 1.442695
        %v4589 = vpow.pop %v4588
        %v4590 = vmul.f32 %v4534, 1.442695
        %v4591 = vpow.pop %v4590
        %v4592 = vmul.f32 %v4535, 1.442695
        %v4593 = vpow.pop %v4592
        %v4594 = vmul.f32 %v4536, 1.442695
        %v4595 = vpow.pop %v4594
        %v4596 = vmul.f32 %v4537, 1.442695
        %v4597 = vpow.pop %v4596
        %v4598 = vmul.f32 %v4538, 1.442695
        %v4599 = vpow.pop %v4598
        %v4600 = vmul.f32 %v4539, 1.442695
        %v4601 = vpow.pop %v4600
        %v4602 = vmul.f32 %v4540, 1.442695
        %v4603 = vpow.pop %v4602
        %v4604 = vmul.f32 %v4541, 1.442695
        %v4605 = vpow.pop %v4604
        %v4606 = vmul.f32 %v4446, %v4543
        %v4607 = vmul.f32 %v4447, %v4545
        %v4608 = vmul.f32 %v4448, %v4547
        %v4609 = vmul.f32 %v4449, %v4549
        %v4610 = vmul.f32 %v4450, %v4551
        %v4611 = vmul.f32 %v4451, %v4553
        %v4612 = vmul.f32 %v4452, %v4555
        %v4613 = vmul.f32 %v4453, %v4557
        %v4614 = vmul.f32 %v4454, %v4559
        %v4615 = vmul.f32 %v4455, %v4561
        %v4616 = vmul.f32 %v4456, %v4563
        %v4617 = vmul.f32 %v4457, %v4565
        %v4618 = vmul.f32 %v4458, %v4567
        %v4619 = vmul.f32 %v4459, %v4569
        %v4620 = vmul.f32 %v4460, %v4571
        %v4621 = vmul.f32 %v4461, %v4573
        %v4622 = vmul.f32 %v4462, %v4575
        %v4623 = vmul.f32 %v4463, %v4577
        %v4624 = vmul.f32 %v4464, %v4579
        %v4625 = vmul.f32 %v4465, %v4581
        %v4626 = vmul.f32 %v4466, %v4583
        %v4627 = vmul.f32 %v4467, %v4585
        %v4628 = vmul.f32 %v4468, %v4587
        %v4629 = vmul.f32 %v4469, %v4589
        %v4630 = vmul.f32 %v4470, %v4591
        %v4631 = vmul.f32 %v4471, %v4593
        %v4632 = vmul.f32 %v4472, %v4595
        %v4633 = vmul.f32 %v4473, %v4597
        %v4634 = vmul.f32 %v4474, %v4599
        %v4635 = vmul.f32 %v4475, %v4601
        %v4636 = vmul.f32 %v4476, %v4603
        %v4637 = vmul.f32 %v4477, %v4605
        %v4638 = vsub.f32 1.0, %v4606
        %v4639 = vsub.f32 1.0, %v4607
        %v4640 = vsub.f32 1.0, %v4608
        %v4641 = vsub.f32 1.0, %v4609
        %v4642 = vsub.f32 1.0, %v4610
        %v4643 = vsub.f32 1.0, %v4611
        %v4644 = vsub.f32 1.0, %v4612
        %v4645 = vsub.f32 1.0, %v4613
        %v4646 = vsub.f32 1.0, %v4614
        %v4647 = vsub.f32 1.0, %v4615
        %v4648 = vsub.f32 1.0, %v4616
        %v4649 = vsub.f32 1.0, %v4617
        %v4650 = vsub.f32 1.0, %v4618
        %v4651 = vsub.f32 1.0, %v4619
        %v4652 = vsub.f32 1.0, %v4620
        %v4653 = vsub.f32 1.0, %v4621
        %v4654 = vsub.f32 1.0, %v4622
        %v4655 = vsub.f32 1.0, %v4623
        %v4656 = vsub.f32 1.0, %v4624
        %v4657 = vsub.f32 1.0, %v4625
        %v4658 = vsub.f32 1.0, %v4626
        %v4659 = vsub.f32 1.0, %v4627
        %v4660 = vsub.f32 1.0, %v4628
        %v4661 = vsub.f32 1.0, %v4629
        %v4662 = vsub.f32 1.0, %v4630
        %v4663 = vsub.f32 1.0, %v4631
        %v4664 = vsub.f32 1.0, %v4632
        %v4665 = vsub.f32 1.0, %v4633
        %v4666 = vsub.f32 1.0, %v4634
        %v4667 = vsub.f32 1.0, %v4635
        %v4668 = vsub.f32 1.0, %v4636
        %v4669 = vsub.f32 1.0, %v4637
        %vm4670 = vcmp.ge.f32.partialorder %v3614, 0.0
        %vm4671 = vcmp.ge.f32.partialorder %v3615, 0.0
        %vm4672 = vcmp.ge.f32.partialorder %v3616, 0.0
        %vm4673 = vcmp.ge.f32.partialorder %v3617, 0.0
        %vm4674 = vcmp.ge.f32.partialorder %v3618, 0.0
        %vm4675 = vcmp.ge.f32.partialorder %v3619, 0.0
        %vm4676 = vcmp.ge.f32.partialorder %v3620, 0.0
        %vm4677 = vcmp.ge.f32.partialorder %v3621, 0.0
        %vm4678 = vcmp.ge.f32.partialorder %v3622, 0.0
        %vm4679 = vcmp.ge.f32.partialorder %v3623, 0.0
        %vm4680 = vcmp.ge.f32.partialorder %v3624, 0.0
        %vm4681 = vcmp.ge.f32.partialorder %v3625, 0.0
        %vm4682 = vcmp.ge.f32.partialorder %v3626, 0.0
        %vm4683 = vcmp.ge.f32.partialorder %v3627, 0.0
        %vm4684 = vcmp.ge.f32.partialorder %v3628, 0.0
        %vm4685 = vcmp.ge.f32.partialorder %v3629, 0.0
        %vm4686 = vcmp.ge.f32.partialorder %v3630, 0.0
        %vm4687 = vcmp.ge.f32.partialorder %v3631, 0.0
        %vm4688 = vcmp.ge.f32.partialorder %v3632, 0.0
        %vm4689 = vcmp.ge.f32.partialorder %v3633, 0.0
        %vm4690 = vcmp.ge.f32.partialorder %v3634, 0.0
        %vm4691 = vcmp.ge.f32.partialorder %v3635, 0.0
        %vm4692 = vcmp.ge.f32.partialorder %v3636, 0.0
        %vm4693 = vcmp.ge.f32.partialorder %v3637, 0.0
        %vm4694 = vcmp.ge.f32.partialorder %v3638, 0.0
        %vm4695 = vcmp.ge.f32.partialorder %v3639, 0.0
        %vm4696 = vcmp.ge.f32.partialorder %v3640, 0.0
        %vm4697 = vcmp.ge.f32.partialorder %v3641, 0.0
        %vm4698 = vcmp.ge.f32.partialorder %v3642, 0.0
        %vm4699 = vcmp.ge.f32.partialorder %v3643, 0.0
        %vm4700 = vcmp.ge.f32.partialorder %v3644, 0.0
        %vm4701 = vcmp.ge.f32.partialorder %v3645, 0.0
        %v4702 = vsub.f32 0.0, %v4638
        %v4703 = vsub.f32 0.0, %v4639
        %v4704 = vsub.f32 0.0, %v4640
        %v4705 = vsub.f32 0.0, %v4641
        %v4706 = vsub.f32 0.0, %v4642
        %v4707 = vsub.f32 0.0, %v4643
        %v4708 = vsub.f32 0.0, %v4644
        %v4709 = vsub.f32 0.0, %v4645
        %v4710 = vsub.f32 0.0, %v4646
        %v4711 = vsub.f32 0.0, %v4647
        %v4712 = vsub.f32 0.0, %v4648
        %v4713 = vsub.f32 0.0, %v4649
        %v4714 = vsub.f32 0.0, %v4650
        %v4715 = vsub.f32 0.0, %v4651
        %v4716 = vsub.f32 0.0, %v4652
        %v4717 = vsub.f32 0.0, %v4653
        %v4718 = vsub.f32 0.0, %v4654
        %v4719 = vsub.f32 0.0, %v4655
        %v4720 = vsub.f32 0.0, %v4656
        %v4721 = vsub.f32 0.0, %v4657
        %v4722 = vsub.f32 0.0, %v4658
        %v4723 = vsub.f32 0.0, %v4659
        %v4724 = vsub.f32 0.0, %v4660
        %v4725 = vsub.f32 0.0, %v4661
        %v4726 = vsub.f32 0.0, %v4662
        %v4727 = vsub.f32 0.0, %v4663
        %v4728 = vsub.f32 0.0, %v4664
        %v4729 = vsub.f32 0.0, %v4665
        %v4730 = vsub.f32 0.0, %v4666
        %v4731 = vsub.f32 0.0, %v4667
        %v4732 = vsub.f32 0.0, %v4668
        %v4733 = vsub.f32 0.0, %v4669
        %v4734 = vsel %vm4670, %v4638, %v4702
        %v4735 = vsel %vm4671, %v4639, %v4703
        %v4736 = vsel %vm4672, %v4640, %v4704
        %v4737 = vsel %vm4673, %v4641, %v4705
        %v4738 = vsel %vm4674, %v4642, %v4706
        %v4739 = vsel %vm4675, %v4643, %v4707
        %v4740 = vsel %vm4676, %v4644, %v4708
        %v4741 = vsel %vm4677, %v4645, %v4709
        %v4742 = vsel %vm4678, %v4646, %v4710
        %v4743 = vsel %vm4679, %v4647, %v4711
        %v4744 = vsel %vm4680, %v4648, %v4712
        %v4745 = vsel %vm4681, %v4649, %v4713
        %v4746 = vsel %vm4682, %v4650, %v4714
        %v4747 = vsel %vm4683, %v4651, %v4715
        %v4748 = vsel %vm4684, %v4652, %v4716
        %v4749 = vsel %vm4685, %v4653, %v4717
        %v4750 = vsel %vm4686, %v4654, %v4718
        %v4751 = vsel %vm4687, %v4655, %v4719
        %v4752 = vsel %vm4688, %v4656, %v4720
        %v4753 = vsel %vm4689, %v4657, %v4721
        %v4754 = vsel %vm4690, %v4658, %v4722
        %v4755 = vsel %vm4691, %v4659, %v4723
        %v4756 = vsel %vm4692, %v4660, %v4724
        %v4757 = vsel %vm4693, %v4661, %v4725
        %v4758 = vsel %vm4694, %v4662, %v4726
        %v4759 = vsel %vm4695, %v4663, %v4727
        %v4760 = vsel %vm4696, %v4664, %v4728
        %v4761 = vsel %vm4697, %v4665, %v4729
        %v4762 = vsel %vm4698, %v4666, %v4730
        %v4763 = vsel %vm4699, %v4667, %v4731
        %v4764 = vsel %vm4700, %v4668, %v4732
        %v4765 = vsel %vm4701, %v4669, %v4733
        %v4766 = vmul.f32 %v3582, 0.5
        %v4767 = vmul.f32 %v3583, 0.5
        %v4768 = vmul.f32 %v3584, 0.5
        %v4769 = vmul.f32 %v3585, 0.5
        %v4770 = vmul.f32 %v3586, 0.5
        %v4771 = vmul.f32 %v3587, 0.5
        %v4772 = vmul.f32 %v3588, 0.5
        %v4773 = vmul.f32 %v3589, 0.5
        %v4774 = vmul.f32 %v3590, 0.5
        %v4775 = vmul.f32 %v3591, 0.5
        %v4776 = vmul.f32 %v3592, 0.5
        %v4777 = vmul.f32 %v3593, 0.5
        %v4778 = vmul.f32 %v3594, 0.5
        %v4779 = vmul.f32 %v3595, 0.5
        %v4780 = vmul.f32 %v3596, 0.5
        %v4781 = vmul.f32 %v3597, 0.5
        %v4782 = vmul.f32 %v3598, 0.5
        %v4783 = vmul.f32 %v3599, 0.5
        %v4784 = vmul.f32 %v3600, 0.5
        %v4785 = vmul.f32 %v3601, 0.5
        %v4786 = vmul.f32 %v3602, 0.5
        %v4787 = vmul.f32 %v3603, 0.5
        %v4788 = vmul.f32 %v3604, 0.5
        %v4789 = vmul.f32 %v3605, 0.5
        %v4790 = vmul.f32 %v3606, 0.5
        %v4791 = vmul.f32 %v3607, 0.5
        %v4792 = vmul.f32 %v3608, 0.5
        %v4793 = vmul.f32 %v3609, 0.5
        %v4794 = vmul.f32 %v3610, 0.5
        %v4795 = vmul.f32 %v3611, 0.5
        %v4796 = vmul.f32 %v3612, 0.5
        %v4797 = vmul.f32 %v3613, 0.5
        %v4798 = vadd.f32 %v4734, 1.0
        %v4799 = vadd.f32 %v4735, 1.0
        %v4800 = vadd.f32 %v4736, 1.0
        %v4801 = vadd.f32 %v4737, 1.0
        %v4802 = vadd.f32 %v4738, 1.0
        %v4803 = vadd.f32 %v4739, 1.0
        %v4804 = vadd.f32 %v4740, 1.0
        %v4805 = vadd.f32 %v4741, 1.0
        %v4806 = vadd.f32 %v4742, 1.0
        %v4807 = vadd.f32 %v4743, 1.0
        %v4808 = vadd.f32 %v4744, 1.0
        %v4809 = vadd.f32 %v4745, 1.0
        %v4810 = vadd.f32 %v4746, 1.0
        %v4811 = vadd.f32 %v4747, 1.0
        %v4812 = vadd.f32 %v4748, 1.0
        %v4813 = vadd.f32 %v4749, 1.0
        %v4814 = vadd.f32 %v4750, 1.0
        %v4815 = vadd.f32 %v4751, 1.0
        %v4816 = vadd.f32 %v4752, 1.0
        %v4817 = vadd.f32 %v4753, 1.0
        %v4818 = vadd.f32 %v4754, 1.0
        %v4819 = vadd.f32 %v4755, 1.0
        %v4820 = vadd.f32 %v4756, 1.0
        %v4821 = vadd.f32 %v4757, 1.0
        %v4822 = vadd.f32 %v4758, 1.0
        %v4823 = vadd.f32 %v4759, 1.0
        %v4824 = vadd.f32 %v4760, 1.0
        %v4825 = vadd.f32 %v4761, 1.0
        %v4826 = vadd.f32 %v4762, 1.0
        %v4827 = vadd.f32 %v4763, 1.0
        %v4828 = vadd.f32 %v4764, 1.0
        %v4829 = vadd.f32 %v4765, 1.0
        %v4830 = vmul.f32 %v4766, %v4798
        %v4831 = vmul.f32 %v4767, %v4799
        %v4832 = vmul.f32 %v4768, %v4800
        %v4833 = vmul.f32 %v4769, %v4801
        %v4834 = vmul.f32 %v4770, %v4802
        %v4835 = vmul.f32 %v4771, %v4803
        %v4836 = vmul.f32 %v4772, %v4804
        %v4837 = vmul.f32 %v4773, %v4805
        %v4838 = vmul.f32 %v4774, %v4806
        %v4839 = vmul.f32 %v4775, %v4807
        %v4840 = vmul.f32 %v4776, %v4808
        %v4841 = vmul.f32 %v4777, %v4809
        %v4842 = vmul.f32 %v4778, %v4810
        %v4843 = vmul.f32 %v4779, %v4811
        %v4844 = vmul.f32 %v4780, %v4812
        %v4845 = vmul.f32 %v4781, %v4813
        %v4846 = vmul.f32 %v4782, %v4814
        %v4847 = vmul.f32 %v4783, %v4815
        %v4848 = vmul.f32 %v4784, %v4816
        %v4849 = vmul.f32 %v4785, %v4817
        %v4850 = vmul.f32 %v4786, %v4818
        %v4851 = vmul.f32 %v4787, %v4819
        %v4852 = vmul.f32 %v4788, %v4820
        %v4853 = vmul.f32 %v4789, %v4821
        %v4854 = vmul.f32 %v4790, %v4822
        %v4855 = vmul.f32 %v4791, %v4823
        %v4856 = vmul.f32 %v4792, %v4824
        %v4857 = vmul.f32 %v4793, %v4825
        %v4858 = vmul.f32 %v4794, %v4826
        %v4859 = vmul.f32 %v4795, %v4827
        %v4860 = vmul.f32 %v4796, %v4828
        %v4861 = vmul.f32 %v4797, %v4829
        %v4862 = vld [vmem:[#allocation2 + $0x118] sm:$0xff]
        %v4863 = vld [vmem:[#allocation2 + $0x120] sm:$0xff]
        %v4864 = vld [vmem:[#allocation2 + $0x128] sm:$0xff]
        %v4865 = vld [vmem:[#allocation2 + $0x130] sm:$0xff]
        %v4866 = vld [vmem:[#allocation2 + $0x138] sm:$0x1]
        %v4867 = vperm.slane %v4866, 0
        %v4869 = vsel %vm517, %v4830, 0
        %v4872 = vsel %vm517, %v4831, 0
        %v4875 = vsel %vm517, %v4832, 0
        %v4878 = vsel %vm517, %v4833, 0
        %v4881 = vsel %vm517, %v4834, 0
        %v4884 = vsel %vm517, %v4835, 0
        %v4887 = vsel %vm517, %v4836, 0
        %v4890 = vsel %vm517, %v4837, 0
        %v4893 = vsel %vm517, %v4838, 0
        %v4896 = vsel %vm517, %v4839, 0
        %v4899 = vsel %vm517, %v4840, 0
        %v4902 = vsel %vm517, %v4841, 0
        %v4905 = vsel %vm517, %v4842, 0
        %v4908 = vsel %vm517, %v4843, 0
        %v4911 = vsel %vm517, %v4844, 0
        %v4914 = vsel %vm517, %v4845, 0
        %v4917 = vsel %vm517, %v4846, 0
        %v4920 = vsel %vm517, %v4847, 0
        %v4923 = vsel %vm517, %v4848, 0
        %v4926 = vsel %vm517, %v4849, 0
        %v4929 = vsel %vm517, %v4850, 0
        %v4932 = vsel %vm517, %v4851, 0
        %v4935 = vsel %vm517, %v4852, 0
        %v4938 = vsel %vm517, %v4853, 0
        %v4941 = vsel %vm517, %v4854, 0
        %v4944 = vsel %vm517, %v4855, 0
        %v4947 = vsel %vm517, %v4856, 0
        %v4950 = vsel %vm517, %v4857, 0
        %v4953 = vsel %vm517, %v4858, 0
        %v4956 = vsel %vm517, %v4859, 0
        %v4959 = vsel %vm517, %v4860, 0
        %v4962 = vsel %vm517, %v4861, 0
        %4964 = vmatpush.msra.mxu0 0.0
        %4965 = vmatpush.msra.mxu0 0.0
        %4966 = vmatpush.msra.mxu0 0.0
        %4967 = vmatpush.msra.mxu0 0.0
        %4968 = vmatpush.msra.mxu0 0.0
        %4969 = vmatpush.msra.mxu0 0.0
        %4970 = vmatpush.msra.mxu0 0.0
        %4971 = vmatpush.msra.mxu0 0.0
        %4972 = vmatpush.msra.mxu0 0.0
        %4973 = vmatpush.msra.mxu0 0.0
        %4974 = vmatpush.msra.mxu0 0.0
        %4975 = vmatpush.msra.mxu0 0.0
        %4976 = vmatpush.msra.mxu0 %v4865
        %4977 = vmatpush.msra.mxu0 %v4864
        %4978 = vmatpush.msra.mxu0 %v4863
        %4979 = vmatpush.msra.mxu0 %v4862
        %4980 = vmatmul.f32.gmra.mxu0 %v4869
        %v4981 = vpop.f32.mrf.mxu0
        %v4982 = vadd.f32 %v4867, %v4981
        %4983 = vmatmul.f32.gmra.mxu0 %v4872
        %v4984 = vpop.f32.mrf.mxu0
        %v4985 = vadd.f32 %v4867, %v4984
        %4986 = vmatmul.f32.gmra.mxu0 %v4875
        %v4987 = vpop.f32.mrf.mxu0
        %v4988 = vadd.f32 %v4867, %v4987
        %4989 = vmatmul.f32.gmra.mxu0 %v4878
        %v4990 = vpop.f32.mrf.mxu0
        %v4991 = vadd.f32 %v4867, %v4990
        %4992 = vmatmul.f32.gmra.mxu0 %v4881
        %v4993 = vpop.f32.mrf.mxu0
        %v4994 = vadd.f32 %v4867, %v4993
        %4995 = vmatmul.f32.gmra.mxu0 %v4884
        %v4996 = vpop.f32.mrf.mxu0
        %v4997 = vadd.f32 %v4867, %v4996
        %4998 = vmatmul.f32.gmra.mxu0 %v4887
        %v4999 = vpop.f32.mrf.mxu0
        %v5000 = vadd.f32 %v4867, %v4999
        %5001 = vmatmul.f32.gmra.mxu0 %v4890
        %v5002 = vpop.f32.mrf.mxu0
        %v5003 = vadd.f32 %v4867, %v5002
        %5004 = vmatmul.f32.gmra.mxu0 %v4893
        %v5005 = vpop.f32.mrf.mxu0
        %v5006 = vadd.f32 %v4867, %v5005
        %5007 = vmatmul.f32.gmra.mxu0 %v4896
        %v5008 = vpop.f32.mrf.mxu0
        %v5009 = vadd.f32 %v4867, %v5008
        %5010 = vmatmul.f32.gmra.mxu0 %v4899
        %v5011 = vpop.f32.mrf.mxu0
        %v5012 = vadd.f32 %v4867, %v5011
        %5013 = vmatmul.f32.gmra.mxu0 %v4902
        %v5014 = vpop.f32.mrf.mxu0
        %v5015 = vadd.f32 %v4867, %v5014
        %5016 = vmatmul.f32.gmra.mxu0 %v4905
        %v5017 = vpop.f32.mrf.mxu0
        %v5018 = vadd.f32 %v4867, %v5017
        %5019 = vmatmul.f32.gmra.mxu0 %v4908
        %v5020 = vpop.f32.mrf.mxu0
        %v5021 = vadd.f32 %v4867, %v5020
        %5022 = vmatmul.f32.gmra.mxu0 %v4911
        %v5023 = vpop.f32.mrf.mxu0
        %v5024 = vadd.f32 %v4867, %v5023
        %5025 = vmatmul.f32.gmra.mxu0 %v4914
        %v5026 = vpop.f32.mrf.mxu0
        %v5027 = vadd.f32 %v4867, %v5026
        %5028 = vmatmul.f32.gmra.mxu0 %v4917
        %v5029 = vpop.f32.mrf.mxu0
        %v5030 = vadd.f32 %v4867, %v5029
        %5031 = vmatmul.f32.gmra.mxu0 %v4920
        %v5032 = vpop.f32.mrf.mxu0
        %v5033 = vadd.f32 %v4867, %v5032
        %5034 = vmatmul.f32.gmra.mxu0 %v4923
        %v5035 = vpop.f32.mrf.mxu0
        %v5036 = vadd.f32 %v4867, %v5035
        %5037 = vmatmul.f32.gmra.mxu0 %v4926
        %v5038 = vpop.f32.mrf.mxu0
        %v5039 = vadd.f32 %v4867, %v5038
        %5040 = vmatmul.f32.gmra.mxu0 %v4929
        %v5041 = vpop.f32.mrf.mxu0
        %v5042 = vadd.f32 %v4867, %v5041
        %5043 = vmatmul.f32.gmra.mxu0 %v4932
        %v5044 = vpop.f32.mrf.mxu0
        %v5045 = vadd.f32 %v4867, %v5044
        %5046 = vmatmul.f32.gmra.mxu0 %v4935
        %v5047 = vpop.f32.mrf.mxu0
        %v5048 = vadd.f32 %v4867, %v5047
        %5049 = vmatmul.f32.gmra.mxu0 %v4938
        %v5050 = vpop.f32.mrf.mxu0
        %v5051 = vadd.f32 %v4867, %v5050
        %5052 = vmatmul.f32.gmra.mxu0 %v4941
        %v5053 = vpop.f32.mrf.mxu0
        %v5054 = vadd.f32 %v4867, %v5053
        %5055 = vmatmul.f32.gmra.mxu0 %v4944
        %v5056 = vpop.f32.mrf.mxu0
        %v5057 = vadd.f32 %v4867, %v5056
        %5058 = vmatmul.f32.gmra.mxu0 %v4947
        %v5059 = vpop.f32.mrf.mxu0
        %v5060 = vadd.f32 %v4867, %v5059
        %5061 = vmatmul.f32.gmra.mxu0 %v4950
        %v5062 = vpop.f32.mrf.mxu0
        %v5063 = vadd.f32 %v4867, %v5062
        %5064 = vmatmul.f32.gmra.mxu0 %v4953
        %v5065 = vpop.f32.mrf.mxu0
        %v5066 = vadd.f32 %v4867, %v5065
        %5067 = vmatmul.f32.gmra.mxu0 %v4956
        %v5068 = vpop.f32.mrf.mxu0
        %v5069 = vadd.f32 %v4867, %v5068
        %5070 = vmatmul.f32.gmra.mxu0 %v4959
        %v5071 = vpop.f32.mrf.mxu0
        %v5072 = vadd.f32 %v4867, %v5071
        %5073 = vmatmul.f32.gmra.mxu0 %v4962
        %v5074 = vpop.f32.mrf.mxu0
        %v5075 = vadd.f32 %v4867, %v5074
        %5076 = vdwg.mxu0
        %v5077 = vmul.f32 %v4982, 0.70710677
        %v5078 = vmul.f32 %v4985, 0.70710677
        %v5079 = vmul.f32 %v4988, 0.70710677
        %v5080 = vmul.f32 %v4991, 0.70710677
        %v5081 = vmul.f32 %v4994, 0.70710677
        %v5082 = vmul.f32 %v4997, 0.70710677
        %v5083 = vmul.f32 %v5000, 0.70710677
        %v5084 = vmul.f32 %v5003, 0.70710677
        %v5085 = vmul.f32 %v5006, 0.70710677
        %v5086 = vmul.f32 %v5009, 0.70710677
        %v5087 = vmul.f32 %v5012, 0.70710677
        %v5088 = vmul.f32 %v5015, 0.70710677
        %v5089 = vmul.f32 %v5018, 0.70710677
        %v5090 = vmul.f32 %v5021, 0.70710677
        %v5091 = vmul.f32 %v5024, 0.70710677
        %v5092 = vmul.f32 %v5027, 0.70710677
        %v5093 = vmul.f32 %v5030, 0.70710677
        %v5094 = vmul.f32 %v5033, 0.70710677
        %v5095 = vmul.f32 %v5036, 0.70710677
        %v5096 = vmul.f32 %v5039, 0.70710677
        %v5097 = vmul.f32 %v5042, 0.70710677
        %v5098 = vmul.f32 %v5045, 0.70710677
        %v5099 = vmul.f32 %v5048, 0.70710677
        %v5100 = vmul.f32 %v5051, 0.70710677
        %v5101 = vmul.f32 %v5054, 0.70710677
        %v5102 = vmul.f32 %v5057, 0.70710677
        %v5103 = vmul.f32 %v5060, 0.70710677
        %v5104 = vmul.f32 %v5063, 0.70710677
        %v5105 = vmul.f32 %v5066, 0.70710677
        %v5106 = vmul.f32 %v5069, 0.70710677
        %v5107 = vmul.f32 %v5072, 0.70710677
        %v5108 = vmul.f32 %v5075, 0.70710677
        %v5109 = vand.u32 2147483647, %v5077
        %v5110 = vand.u32 2147483647, %v5078
        %v5111 = vand.u32 2147483647, %v5079
        %v5112 = vand.u32 2147483647, %v5080
        %v5113 = vand.u32 2147483647, %v5081
        %v5114 = vand.u32 2147483647, %v5082
        %v5115 = vand.u32 2147483647, %v5083
        %v5116 = vand.u32 2147483647, %v5084
        %v5117 = vand.u32 2147483647, %v5085
        %v5118 = vand.u32 2147483647, %v5086
        %v5119 = vand.u32 2147483647, %v5087
        %v5120 = vand.u32 2147483647, %v5088
        %v5121 = vand.u32 2147483647, %v5089
        %v5122 = vand.u32 2147483647, %v5090
        %v5123 = vand.u32 2147483647, %v5091
        %v5124 = vand.u32 2147483647, %v5092
        %v5125 = vand.u32 2147483647, %v5093
        %v5126 = vand.u32 2147483647, %v5094
        %v5127 = vand.u32 2147483647, %v5095
        %v5128 = vand.u32 2147483647, %v5096
        %v5129 = vand.u32 2147483647, %v5097
        %v5130 = vand.u32 2147483647, %v5098
        %v5131 = vand.u32 2147483647, %v5099
        %v5132 = vand.u32 2147483647, %v5100
        %v5133 = vand.u32 2147483647, %v5101
        %v5134 = vand.u32 2147483647, %v5102
        %v5135 = vand.u32 2147483647, %v5103
        %v5136 = vand.u32 2147483647, %v5104
        %v5137 = vand.u32 2147483647, %v5105
        %v5138 = vand.u32 2147483647, %v5106
        %v5139 = vand.u32 2147483647, %v5107
        %v5140 = vand.u32 2147483647, %v5108
        %v5141 = vmul.f32 %v5109, 0.3275911
        %v5142 = vmul.f32 %v5110, 0.3275911
        %v5143 = vmul.f32 %v5111, 0.3275911
        %v5144 = vmul.f32 %v5112, 0.3275911
        %v5145 = vmul.f32 %v5113, 0.3275911
        %v5146 = vmul.f32 %v5114, 0.3275911
        %v5147 = vmul.f32 %v5115, 0.3275911
        %v5148 = vmul.f32 %v5116, 0.3275911
        %v5149 = vmul.f32 %v5117, 0.3275911
        %v5150 = vmul.f32 %v5118, 0.3275911
        %v5151 = vmul.f32 %v5119, 0.3275911
        %v5152 = vmul.f32 %v5120, 0.3275911
        %v5153 = vmul.f32 %v5121, 0.3275911
        %v5154 = vmul.f32 %v5122, 0.3275911
        %v5155 = vmul.f32 %v5123, 0.3275911
        %v5156 = vmul.f32 %v5124, 0.3275911
        %v5157 = vmul.f32 %v5125, 0.3275911
        %v5158 = vmul.f32 %v5126, 0.3275911
        %v5159 = vmul.f32 %v5127, 0.3275911
        %v5160 = vmul.f32 %v5128, 0.3275911
        %v5161 = vmul.f32 %v5129, 0.3275911
        %v5162 = vmul.f32 %v5130, 0.3275911
        %v5163 = vmul.f32 %v5131, 0.3275911
        %v5164 = vmul.f32 %v5132, 0.3275911
        %v5165 = vmul.f32 %v5133, 0.3275911
        %v5166 = vmul.f32 %v5134, 0.3275911
        %v5167 = vmul.f32 %v5135, 0.3275911
        %v5168 = vmul.f32 %v5136, 0.3275911
        %v5169 = vmul.f32 %v5137, 0.3275911
        %v5170 = vmul.f32 %v5138, 0.3275911
        %v5171 = vmul.f32 %v5139, 0.3275911
        %v5172 = vmul.f32 %v5140, 0.3275911
        %v5173 = vadd.f32 %v5141, 1.0
        %v5174 = vadd.f32 %v5142, 1.0
        %v5175 = vadd.f32 %v5143, 1.0
        %v5176 = vadd.f32 %v5144, 1.0
        %v5177 = vadd.f32 %v5145, 1.0
        %v5178 = vadd.f32 %v5146, 1.0
        %v5179 = vadd.f32 %v5147, 1.0
        %v5180 = vadd.f32 %v5148, 1.0
        %v5181 = vadd.f32 %v5149, 1.0
        %v5182 = vadd.f32 %v5150, 1.0
        %v5183 = vadd.f32 %v5151, 1.0
        %v5184 = vadd.f32 %v5152, 1.0
        %v5185 = vadd.f32 %v5153, 1.0
        %v5186 = vadd.f32 %v5154, 1.0
        %v5187 = vadd.f32 %v5155, 1.0
        %v5188 = vadd.f32 %v5156, 1.0
        %v5189 = vadd.f32 %v5157, 1.0
        %v5190 = vadd.f32 %v5158, 1.0
        %v5191 = vadd.f32 %v5159, 1.0
        %v5192 = vadd.f32 %v5160, 1.0
        %v5193 = vadd.f32 %v5161, 1.0
        %v5194 = vadd.f32 %v5162, 1.0
        %v5195 = vadd.f32 %v5163, 1.0
        %v5196 = vadd.f32 %v5164, 1.0
        %v5197 = vadd.f32 %v5165, 1.0
        %v5198 = vadd.f32 %v5166, 1.0
        %v5199 = vadd.f32 %v5167, 1.0
        %v5200 = vadd.f32 %v5168, 1.0
        %v5201 = vadd.f32 %v5169, 1.0
        %v5202 = vadd.f32 %v5170, 1.0
        %v5203 = vadd.f32 %v5171, 1.0
        %v5204 = vadd.f32 %v5172, 1.0
        %v5205 = vrcp.pop %v5173
        %v5206 = vmul.f32 %v5173, %v5205
        %v5207 = vsub.f32 1.0, %v5206
        %v5208 = vmul.f32 %v5205, %v5207
        %v5209 = vadd.f32 %v5205, %v5208
        %vm5210 = vweird.f32 %v5173
        %vm5211 = vweird.f32 %v5205
        %vm5212 = vmor %vm5210, %vm5211
        %v5213 = vsel %vm5212, %v5205, %v5209
        %v5214 = vand.u32 2147483647, %v5173
        %vm5215 = vcmp.eq.f32.partialorder %v5214, 8.507059e+37
        %v5216 = vand.u32 %v5173, 2147483648
        %v5217 = vor.u32 1.1754944e-38, %v5216
        %v5218 = vsel %vm5215, %v5217, %v5213
        %v5219 = vrcp.pop %v5174
        %v5220 = vmul.f32 %v5174, %v5219
        %v5221 = vsub.f32 1.0, %v5220
        %v5222 = vmul.f32 %v5219, %v5221
        %v5223 = vadd.f32 %v5219, %v5222
        %vm5224 = vweird.f32 %v5174
        %vm5225 = vweird.f32 %v5219
        %vm5226 = vmor %vm5224, %vm5225
        %v5227 = vsel %vm5226, %v5219, %v5223
        %v5228 = vand.u32 2147483647, %v5174
        %vm5229 = vcmp.eq.f32.partialorder %v5228, 8.507059e+37
        %v5230 = vand.u32 %v5174, 2147483648
        %v5231 = vor.u32 1.1754944e-38, %v5230
        %v5232 = vsel %vm5229, %v5231, %v5227
        %v5233 = vrcp.pop %v5175
        %v5234 = vmul.f32 %v5175, %v5233
        %v5235 = vsub.f32 1.0, %v5234
        %v5236 = vmul.f32 %v5233, %v5235
        %v5237 = vadd.f32 %v5233, %v5236
        %vm5238 = vweird.f32 %v5175
        %vm5239 = vweird.f32 %v5233
        %vm5240 = vmor %vm5238, %vm5239
        %v5241 = vsel %vm5240, %v5233, %v5237
        %v5242 = vand.u32 2147483647, %v5175
        %vm5243 = vcmp.eq.f32.partialorder %v5242, 8.507059e+37
        %v5244 = vand.u32 %v5175, 2147483648
        %v5245 = vor.u32 1.1754944e-38, %v5244
        %v5246 = vsel %vm5243, %v5245, %v5241
        %v5247 = vrcp.pop %v5176
        %v5248 = vmul.f32 %v5176, %v5247
        %v5249 = vsub.f32 1.0, %v5248
        %v5250 = vmul.f32 %v5247, %v5249
        %v5251 = vadd.f32 %v5247, %v5250
        %vm5252 = vweird.f32 %v5176
        %vm5253 = vweird.f32 %v5247
        %vm5254 = vmor %vm5252, %vm5253
        %v5255 = vsel %vm5254, %v5247, %v5251
        %v5256 = vand.u32 2147483647, %v5176
        %vm5257 = vcmp.eq.f32.partialorder %v5256, 8.507059e+37
        %v5258 = vand.u32 %v5176, 2147483648
        %v5259 = vor.u32 1.1754944e-38, %v5258
        %v5260 = vsel %vm5257, %v5259, %v5255
        %v5261 = vrcp.pop %v5177
        %v5262 = vmul.f32 %v5177, %v5261
        %v5263 = vsub.f32 1.0, %v5262
        %v5264 = vmul.f32 %v5261, %v5263
        %v5265 = vadd.f32 %v5261, %v5264
        %vm5266 = vweird.f32 %v5177
        %vm5267 = vweird.f32 %v5261
        %vm5268 = vmor %vm5266, %vm5267
        %v5269 = vsel %vm5268, %v5261, %v5265
        %v5270 = vand.u32 2147483647, %v5177
        %vm5271 = vcmp.eq.f32.partialorder %v5270, 8.507059e+37
        %v5272 = vand.u32 %v5177, 2147483648
        %v5273 = vor.u32 1.1754944e-38, %v5272
        %v5274 = vsel %vm5271, %v5273, %v5269
        %v5275 = vrcp.pop %v5178
        %v5276 = vmul.f32 %v5178, %v5275
        %v5277 = vsub.f32 1.0, %v5276
        %v5278 = vmul.f32 %v5275, %v5277
        %v5279 = vadd.f32 %v5275, %v5278
        %vm5280 = vweird.f32 %v5178
        %vm5281 = vweird.f32 %v5275
        %vm5282 = vmor %vm5280, %vm5281
        %v5283 = vsel %vm5282, %v5275, %v5279
        %v5284 = vand.u32 2147483647, %v5178
        %vm5285 = vcmp.eq.f32.partialorder %v5284, 8.507059e+37
        %v5286 = vand.u32 %v5178, 2147483648
        %v5287 = vor.u32 1.1754944e-38, %v5286
        %v5288 = vsel %vm5285, %v5287, %v5283
        %v5289 = vrcp.pop %v5179
        %v5290 = vmul.f32 %v5179, %v5289
        %v5291 = vsub.f32 1.0, %v5290
        %v5292 = vmul.f32 %v5289, %v5291
        %v5293 = vadd.f32 %v5289, %v5292
        %vm5294 = vweird.f32 %v5179
        %vm5295 = vweird.f32 %v5289
        %vm5296 = vmor %vm5294, %vm5295
        %v5297 = vsel %vm5296, %v5289, %v5293
        %v5298 = vand.u32 2147483647, %v5179
        %vm5299 = vcmp.eq.f32.partialorder %v5298, 8.507059e+37
        %v5300 = vand.u32 %v5179, 2147483648
        %v5301 = vor.u32 1.1754944e-38, %v5300
        %v5302 = vsel %vm5299, %v5301, %v5297
        %v5303 = vrcp.pop %v5180
        %v5304 = vmul.f32 %v5180, %v5303
        %v5305 = vsub.f32 1.0, %v5304
        %v5306 = vmul.f32 %v5303, %v5305
        %v5307 = vadd.f32 %v5303, %v5306
        %vm5308 = vweird.f32 %v5180
        %vm5309 = vweird.f32 %v5303
        %vm5310 = vmor %vm5308, %vm5309
        %v5311 = vsel %vm5310, %v5303, %v5307
        %v5312 = vand.u32 2147483647, %v5180
        %vm5313 = vcmp.eq.f32.partialorder %v5312, 8.507059e+37
        %v5314 = vand.u32 %v5180, 2147483648
        %v5315 = vor.u32 1.1754944e-38, %v5314
        %v5316 = vsel %vm5313, %v5315, %v5311
        %v5317 = vrcp.pop %v5181
        %v5318 = vmul.f32 %v5181, %v5317
        %v5319 = vsub.f32 1.0, %v5318
        %v5320 = vmul.f32 %v5317, %v5319
        %v5321 = vadd.f32 %v5317, %v5320
        %vm5322 = vweird.f32 %v5181
        %vm5323 = vweird.f32 %v5317
        %vm5324 = vmor %vm5322, %vm5323
        %v5325 = vsel %vm5324, %v5317, %v5321
        %v5326 = vand.u32 2147483647, %v5181
        %vm5327 = vcmp.eq.f32.partialorder %v5326, 8.507059e+37
        %v5328 = vand.u32 %v5181, 2147483648
        %v5329 = vor.u32 1.1754944e-38, %v5328
        %v5330 = vsel %vm5327, %v5329, %v5325
        %v5331 = vrcp.pop %v5182
        %v5332 = vmul.f32 %v5182, %v5331
        %v5333 = vsub.f32 1.0, %v5332
        %v5334 = vmul.f32 %v5331, %v5333
        %v5335 = vadd.f32 %v5331, %v5334
        %vm5336 = vweird.f32 %v5182
        %vm5337 = vweird.f32 %v5331
        %vm5338 = vmor %vm5336, %vm5337
        %v5339 = vsel %vm5338, %v5331, %v5335
        %v5340 = vand.u32 2147483647, %v5182
        %vm5341 = vcmp.eq.f32.partialorder %v5340, 8.507059e+37
        %v5342 = vand.u32 %v5182, 2147483648
        %v5343 = vor.u32 1.1754944e-38, %v5342
        %v5344 = vsel %vm5341, %v5343, %v5339
        %v5345 = vrcp.pop %v5183
        %v5346 = vmul.f32 %v5183, %v5345
        %v5347 = vsub.f32 1.0, %v5346
        %v5348 = vmul.f32 %v5345, %v5347
        %v5349 = vadd.f32 %v5345, %v5348
        %vm5350 = vweird.f32 %v5183
        %vm5351 = vweird.f32 %v5345
        %vm5352 = vmor %vm5350, %vm5351
        %v5353 = vsel %vm5352, %v5345, %v5349
        %v5354 = vand.u32 2147483647, %v5183
        %vm5355 = vcmp.eq.f32.partialorder %v5354, 8.507059e+37
        %v5356 = vand.u32 %v5183, 2147483648
        %v5357 = vor.u32 1.1754944e-38, %v5356
        %v5358 = vsel %vm5355, %v5357, %v5353
        %v5359 = vrcp.pop %v5184
        %v5360 = vmul.f32 %v5184, %v5359
        %v5361 = vsub.f32 1.0, %v5360
        %v5362 = vmul.f32 %v5359, %v5361
        %v5363 = vadd.f32 %v5359, %v5362
        %vm5364 = vweird.f32 %v5184
        %vm5365 = vweird.f32 %v5359
        %vm5366 = vmor %vm5364, %vm5365
        %v5367 = vsel %vm5366, %v5359, %v5363
        %v5368 = vand.u32 2147483647, %v5184
        %vm5369 = vcmp.eq.f32.partialorder %v5368, 8.507059e+37
        %v5370 = vand.u32 %v5184, 2147483648
        %v5371 = vor.u32 1.1754944e-38, %v5370
        %v5372 = vsel %vm5369, %v5371, %v5367
        %v5373 = vrcp.pop %v5185
        %v5374 = vmul.f32 %v5185, %v5373
        %v5375 = vsub.f32 1.0, %v5374
        %v5376 = vmul.f32 %v5373, %v5375
        %v5377 = vadd.f32 %v5373, %v5376
        %vm5378 = vweird.f32 %v5185
        %vm5379 = vweird.f32 %v5373
        %vm5380 = vmor %vm5378, %vm5379
        %v5381 = vsel %vm5380, %v5373, %v5377
        %v5382 = vand.u32 2147483647, %v5185
        %vm5383 = vcmp.eq.f32.partialorder %v5382, 8.507059e+37
        %v5384 = vand.u32 %v5185, 2147483648
        %v5385 = vor.u32 1.1754944e-38, %v5384
        %v5386 = vsel %vm5383, %v5385, %v5381
        %v5387 = vrcp.pop %v5186
        %v5388 = vmul.f32 %v5186, %v5387
        %v5389 = vsub.f32 1.0, %v5388
        %v5390 = vmul.f32 %v5387, %v5389
        %v5391 = vadd.f32 %v5387, %v5390
        %vm5392 = vweird.f32 %v5186
        %vm5393 = vweird.f32 %v5387
        %vm5394 = vmor %vm5392, %vm5393
        %v5395 = vsel %vm5394, %v5387, %v5391
        %v5396 = vand.u32 2147483647, %v5186
        %vm5397 = vcmp.eq.f32.partialorder %v5396, 8.507059e+37
        %v5398 = vand.u32 %v5186, 2147483648
        %v5399 = vor.u32 1.1754944e-38, %v5398
        %v5400 = vsel %vm5397, %v5399, %v5395
        %v5401 = vrcp.pop %v5187
        %v5402 = vmul.f32 %v5187, %v5401
        %v5403 = vsub.f32 1.0, %v5402
        %v5404 = vmul.f32 %v5401, %v5403
        %v5405 = vadd.f32 %v5401, %v5404
        %vm5406 = vweird.f32 %v5187
        %vm5407 = vweird.f32 %v5401
        %vm5408 = vmor %vm5406, %vm5407
        %v5409 = vsel %vm5408, %v5401, %v5405
        %v5410 = vand.u32 2147483647, %v5187
        %vm5411 = vcmp.eq.f32.partialorder %v5410, 8.507059e+37
        %v5412 = vand.u32 %v5187, 2147483648
        %v5413 = vor.u32 1.1754944e-38, %v5412
        %v5414 = vsel %vm5411, %v5413, %v5409
        %v5415 = vrcp.pop %v5188
        %v5416 = vmul.f32 %v5188, %v5415
        %v5417 = vsub.f32 1.0, %v5416
        %v5418 = vmul.f32 %v5415, %v5417
        %v5419 = vadd.f32 %v5415, %v5418
        %vm5420 = vweird.f32 %v5188
        %vm5421 = vweird.f32 %v5415
        %vm5422 = vmor %vm5420, %vm5421
        %v5423 = vsel %vm5422, %v5415, %v5419
        %v5424 = vand.u32 2147483647, %v5188
        %vm5425 = vcmp.eq.f32.partialorder %v5424, 8.507059e+37
        %v5426 = vand.u32 %v5188, 2147483648
        %v5427 = vor.u32 1.1754944e-38, %v5426
        %v5428 = vsel %vm5425, %v5427, %v5423
        %v5429 = vrcp.pop %v5189
        %v5430 = vmul.f32 %v5189, %v5429
        %v5431 = vsub.f32 1.0, %v5430
        %v5432 = vmul.f32 %v5429, %v5431
        %v5433 = vadd.f32 %v5429, %v5432
        %vm5434 = vweird.f32 %v5189
        %vm5435 = vweird.f32 %v5429
        %vm5436 = vmor %vm5434, %vm5435
        %v5437 = vsel %vm5436, %v5429, %v5433
        %v5438 = vand.u32 2147483647, %v5189
        %vm5439 = vcmp.eq.f32.partialorder %v5438, 8.507059e+37
        %v5440 = vand.u32 %v5189, 2147483648
        %v5441 = vor.u32 1.1754944e-38, %v5440
        %v5442 = vsel %vm5439, %v5441, %v5437
        %v5443 = vrcp.pop %v5190
        %v5444 = vmul.f32 %v5190, %v5443
        %v5445 = vsub.f32 1.0, %v5444
        %v5446 = vmul.f32 %v5443, %v5445
        %v5447 = vadd.f32 %v5443, %v5446
        %vm5448 = vweird.f32 %v5190
        %vm5449 = vweird.f32 %v5443
        %vm5450 = vmor %vm5448, %vm5449
        %v5451 = vsel %vm5450, %v5443, %v5447
        %v5452 = vand.u32 2147483647, %v5190
        %vm5453 = vcmp.eq.f32.partialorder %v5452, 8.507059e+37
        %v5454 = vand.u32 %v5190, 2147483648
        %v5455 = vor.u32 1.1754944e-38, %v5454
        %v5456 = vsel %vm5453, %v5455, %v5451
        %v5457 = vrcp.pop %v5191
        %v5458 = vmul.f32 %v5191, %v5457
        %v5459 = vsub.f32 1.0, %v5458
        %v5460 = vmul.f32 %v5457, %v5459
        %v5461 = vadd.f32 %v5457, %v5460
        %vm5462 = vweird.f32 %v5191
        %vm5463 = vweird.f32 %v5457
        %vm5464 = vmor %vm5462, %vm5463
        %v5465 = vsel %vm5464, %v5457, %v5461
        %v5466 = vand.u32 2147483647, %v5191
        %vm5467 = vcmp.eq.f32.partialorder %v5466, 8.507059e+37
        %v5468 = vand.u32 %v5191, 2147483648
        %v5469 = vor.u32 1.1754944e-38, %v5468
        %v5470 = vsel %vm5467, %v5469, %v5465
        %v5471 = vrcp.pop %v5192
        %v5472 = vmul.f32 %v5192, %v5471
        %v5473 = vsub.f32 1.0, %v5472
        %v5474 = vmul.f32 %v5471, %v5473
        %v5475 = vadd.f32 %v5471, %v5474
        %vm5476 = vweird.f32 %v5192
        %vm5477 = vweird.f32 %v5471
        %vm5478 = vmor %vm5476, %vm5477
        %v5479 = vsel %vm5478, %v5471, %v5475
        %v5480 = vand.u32 2147483647, %v5192
        %vm5481 = vcmp.eq.f32.partialorder %v5480, 8.507059e+37
        %v5482 = vand.u32 %v5192, 2147483648
        %v5483 = vor.u32 1.1754944e-38, %v5482
        %v5484 = vsel %vm5481, %v5483, %v5479
        %v5485 = vrcp.pop %v5193
        %v5486 = vmul.f32 %v5193, %v5485
        %v5487 = vsub.f32 1.0, %v5486
        %v5488 = vmul.f32 %v5485, %v5487
        %v5489 = vadd.f32 %v5485, %v5488
        %vm5490 = vweird.f32 %v5193
        %vm5491 = vweird.f32 %v5485
        %vm5492 = vmor %vm5490, %vm5491
        %v5493 = vsel %vm5492, %v5485, %v5489
        %v5494 = vand.u32 2147483647, %v5193
        %vm5495 = vcmp.eq.f32.partialorder %v5494, 8.507059e+37
        %v5496 = vand.u32 %v5193, 2147483648
        %v5497 = vor.u32 1.1754944e-38, %v5496
        %v5498 = vsel %vm5495, %v5497, %v5493
        %v5499 = vrcp.pop %v5194
        %v5500 = vmul.f32 %v5194, %v5499
        %v5501 = vsub.f32 1.0, %v5500
        %v5502 = vmul.f32 %v5499, %v5501
        %v5503 = vadd.f32 %v5499, %v5502
        %vm5504 = vweird.f32 %v5194
        %vm5505 = vweird.f32 %v5499
        %vm5506 = vmor %vm5504, %vm5505
        %v5507 = vsel %vm5506, %v5499, %v5503
        %v5508 = vand.u32 2147483647, %v5194
        %vm5509 = vcmp.eq.f32.partialorder %v5508, 8.507059e+37
        %v5510 = vand.u32 %v5194, 2147483648
        %v5511 = vor.u32 1.1754944e-38, %v5510
        %v5512 = vsel %vm5509, %v5511, %v5507
        %v5513 = vrcp.pop %v5195
        %v5514 = vmul.f32 %v5195, %v5513
        %v5515 = vsub.f32 1.0, %v5514
        %v5516 = vmul.f32 %v5513, %v5515
        %v5517 = vadd.f32 %v5513, %v5516
        %vm5518 = vweird.f32 %v5195
        %vm5519 = vweird.f32 %v5513
        %vm5520 = vmor %vm5518, %vm5519
        %v5521 = vsel %vm5520, %v5513, %v5517
        %v5522 = vand.u32 2147483647, %v5195
        %vm5523 = vcmp.eq.f32.partialorder %v5522, 8.507059e+37
        %v5524 = vand.u32 %v5195, 2147483648
        %v5525 = vor.u32 1.1754944e-38, %v5524
        %v5526 = vsel %vm5523, %v5525, %v5521
        %v5527 = vrcp.pop %v5196
        %v5528 = vmul.f32 %v5196, %v5527
        %v5529 = vsub.f32 1.0, %v5528
        %v5530 = vmul.f32 %v5527, %v5529
        %v5531 = vadd.f32 %v5527, %v5530
        %vm5532 = vweird.f32 %v5196
        %vm5533 = vweird.f32 %v5527
        %vm5534 = vmor %vm5532, %vm5533
        %v5535 = vsel %vm5534, %v5527, %v5531
        %v5536 = vand.u32 2147483647, %v5196
        %vm5537 = vcmp.eq.f32.partialorder %v5536, 8.507059e+37
        %v5538 = vand.u32 %v5196, 2147483648
        %v5539 = vor.u32 1.1754944e-38, %v5538
        %v5540 = vsel %vm5537, %v5539, %v5535
        %v5541 = vrcp.pop %v5197
        %v5542 = vmul.f32 %v5197, %v5541
        %v5543 = vsub.f32 1.0, %v5542
        %v5544 = vmul.f32 %v5541, %v5543
        %v5545 = vadd.f32 %v5541, %v5544
        %vm5546 = vweird.f32 %v5197
        %vm5547 = vweird.f32 %v5541
        %vm5548 = vmor %vm5546, %vm5547
        %v5549 = vsel %vm5548, %v5541, %v5545
        %v5550 = vand.u32 2147483647, %v5197
        %vm5551 = vcmp.eq.f32.partialorder %v5550, 8.507059e+37
        %v5552 = vand.u32 %v5197, 2147483648
        %v5553 = vor.u32 1.1754944e-38, %v5552
        %v5554 = vsel %vm5551, %v5553, %v5549
        %v5555 = vrcp.pop %v5198
        %v5556 = vmul.f32 %v5198, %v5555
        %v5557 = vsub.f32 1.0, %v5556
        %v5558 = vmul.f32 %v5555, %v5557
        %v5559 = vadd.f32 %v5555, %v5558
        %vm5560 = vweird.f32 %v5198
        %vm5561 = vweird.f32 %v5555
        %vm5562 = vmor %vm5560, %vm5561
        %v5563 = vsel %vm5562, %v5555, %v5559
        %v5564 = vand.u32 2147483647, %v5198
        %vm5565 = vcmp.eq.f32.partialorder %v5564, 8.507059e+37
        %v5566 = vand.u32 %v5198, 2147483648
        %v5567 = vor.u32 1.1754944e-38, %v5566
        %v5568 = vsel %vm5565, %v5567, %v5563
        %v5569 = vrcp.pop %v5199
        %v5570 = vmul.f32 %v5199, %v5569
        %v5571 = vsub.f32 1.0, %v5570
        %v5572 = vmul.f32 %v5569, %v5571
        %v5573 = vadd.f32 %v5569, %v5572
        %vm5574 = vweird.f32 %v5199
        %vm5575 = vweird.f32 %v5569
        %vm5576 = vmor %vm5574, %vm5575
        %v5577 = vsel %vm5576, %v5569, %v5573
        %v5578 = vand.u32 2147483647, %v5199
        %vm5579 = vcmp.eq.f32.partialorder %v5578, 8.507059e+37
        %v5580 = vand.u32 %v5199, 2147483648
        %v5581 = vor.u32 1.1754944e-38, %v5580
        %v5582 = vsel %vm5579, %v5581, %v5577
        %v5583 = vrcp.pop %v5200
        %v5584 = vmul.f32 %v5200, %v5583
        %v5585 = vsub.f32 1.0, %v5584
        %v5586 = vmul.f32 %v5583, %v5585
        %v5587 = vadd.f32 %v5583, %v5586
        %vm5588 = vweird.f32 %v5200
        %vm5589 = vweird.f32 %v5583
        %vm5590 = vmor %vm5588, %vm5589
        %v5591 = vsel %vm5590, %v5583, %v5587
        %v5592 = vand.u32 2147483647, %v5200
        %vm5593 = vcmp.eq.f32.partialorder %v5592, 8.507059e+37
        %v5594 = vand.u32 %v5200, 2147483648
        %v5595 = vor.u32 1.1754944e-38, %v5594
        %v5596 = vsel %vm5593, %v5595, %v5591
        %v5597 = vrcp.pop %v5201
        %v5598 = vmul.f32 %v5201, %v5597
        %v5599 = vsub.f32 1.0, %v5598
        %v5600 = vmul.f32 %v5597, %v5599
        %v5601 = vadd.f32 %v5597, %v5600
        %vm5602 = vweird.f32 %v5201
        %vm5603 = vweird.f32 %v5597
        %vm5604 = vmor %vm5602, %vm5603
        %v5605 = vsel %vm5604, %v5597, %v5601
        %v5606 = vand.u32 2147483647, %v5201
        %vm5607 = vcmp.eq.f32.partialorder %v5606, 8.507059e+37
        %v5608 = vand.u32 %v5201, 2147483648
        %v5609 = vor.u32 1.1754944e-38, %v5608
        %v5610 = vsel %vm5607, %v5609, %v5605
        %v5611 = vrcp.pop %v5202
        %v5612 = vmul.f32 %v5202, %v5611
        %v5613 = vsub.f32 1.0, %v5612
        %v5614 = vmul.f32 %v5611, %v5613
        %v5615 = vadd.f32 %v5611, %v5614
        %vm5616 = vweird.f32 %v5202
        %vm5617 = vweird.f32 %v5611
        %vm5618 = vmor %vm5616, %vm5617
        %v5619 = vsel %vm5618, %v5611, %v5615
        %v5620 = vand.u32 2147483647, %v5202
        %vm5621 = vcmp.eq.f32.partialorder %v5620, 8.507059e+37
        %v5622 = vand.u32 %v5202, 2147483648
        %v5623 = vor.u32 1.1754944e-38, %v5622
        %v5624 = vsel %vm5621, %v5623, %v5619
        %v5625 = vrcp.pop %v5203
        %v5626 = vmul.f32 %v5203, %v5625
        %v5627 = vsub.f32 1.0, %v5626
        %v5628 = vmul.f32 %v5625, %v5627
        %v5629 = vadd.f32 %v5625, %v5628
        %vm5630 = vweird.f32 %v5203
        %vm5631 = vweird.f32 %v5625
        %vm5632 = vmor %vm5630, %vm5631
        %v5633 = vsel %vm5632, %v5625, %v5629
        %v5634 = vand.u32 2147483647, %v5203
        %vm5635 = vcmp.eq.f32.partialorder %v5634, 8.507059e+37
        %v5636 = vand.u32 %v5203, 2147483648
        %v5637 = vor.u32 1.1754944e-38, %v5636
        %v5638 = vsel %vm5635, %v5637, %v5633
        %v5639 = vrcp.pop %v5204
        %v5640 = vmul.f32 %v5204, %v5639
        %v5641 = vsub.f32 1.0, %v5640
        %v5642 = vmul.f32 %v5639, %v5641
        %v5643 = vadd.f32 %v5639, %v5642
        %vm5644 = vweird.f32 %v5204
        %vm5645 = vweird.f32 %v5639
        %vm5646 = vmor %vm5644, %vm5645
        %v5647 = vsel %vm5646, %v5639, %v5643
        %v5648 = vand.u32 2147483647, %v5204
        %vm5649 = vcmp.eq.f32.partialorder %v5648, 8.507059e+37
        %v5650 = vand.u32 %v5204, 2147483648
        %v5651 = vor.u32 1.1754944e-38, %v5650
        %v5652 = vsel %vm5649, %v5651, %v5647
        %v5653 = vmul.f32 %v5218, 1.0614054
        %v5654 = vmul.f32 %v5232, 1.0614054
        %v5655 = vmul.f32 %v5246, 1.0614054
        %v5656 = vmul.f32 %v5260, 1.0614054
        %v5657 = vmul.f32 %v5274, 1.0614054
        %v5658 = vmul.f32 %v5288, 1.0614054
        %v5659 = vmul.f32 %v5302, 1.0614054
        %v5660 = vmul.f32 %v5316, 1.0614054
        %v5661 = vmul.f32 %v5330, 1.0614054
        %v5662 = vmul.f32 %v5344, 1.0614054
        %v5663 = vmul.f32 %v5358, 1.0614054
        %v5664 = vmul.f32 %v5372, 1.0614054
        %v5665 = vmul.f32 %v5386, 1.0614054
        %v5666 = vmul.f32 %v5400, 1.0614054
        %v5667 = vmul.f32 %v5414, 1.0614054
        %v5668 = vmul.f32 %v5428, 1.0614054
        %v5669 = vmul.f32 %v5442, 1.0614054
        %v5670 = vmul.f32 %v5456, 1.0614054
        %v5671 = vmul.f32 %v5470, 1.0614054
        %v5672 = vmul.f32 %v5484, 1.0614054
        %v5673 = vmul.f32 %v5498, 1.0614054
        %v5674 = vmul.f32 %v5512, 1.0614054
        %v5675 = vmul.f32 %v5526, 1.0614054
        %v5676 = vmul.f32 %v5540, 1.0614054
        %v5677 = vmul.f32 %v5554, 1.0614054
        %v5678 = vmul.f32 %v5568, 1.0614054
        %v5679 = vmul.f32 %v5582, 1.0614054
        %v5680 = vmul.f32 %v5596, 1.0614054
        %v5681 = vmul.f32 %v5610, 1.0614054
        %v5682 = vmul.f32 %v5624, 1.0614054
        %v5683 = vmul.f32 %v5638, 1.0614054
        %v5684 = vmul.f32 %v5652, 1.0614054
        %v5685 = vadd.f32 %v5653, -1.4531521
        %v5686 = vadd.f32 %v5654, -1.4531521
        %v5687 = vadd.f32 %v5655, -1.4531521
        %v5688 = vadd.f32 %v5656, -1.4531521
        %v5689 = vadd.f32 %v5657, -1.4531521
        %v5690 = vadd.f32 %v5658, -1.4531521
        %v5691 = vadd.f32 %v5659, -1.4531521
        %v5692 = vadd.f32 %v5660, -1.4531521
        %v5693 = vadd.f32 %v5661, -1.4531521
        %v5694 = vadd.f32 %v5662, -1.4531521
        %v5695 = vadd.f32 %v5663, -1.4531521
        %v5696 = vadd.f32 %v5664, -1.4531521
        %v5697 = vadd.f32 %v5665, -1.4531521
        %v5698 = vadd.f32 %v5666, -1.4531521
        %v5699 = vadd.f32 %v5667, -1.4531521
        %v5700 = vadd.f32 %v5668, -1.4531521
        %v5701 = vadd.f32 %v5669, -1.4531521
        %v5702 = vadd.f32 %v5670, -1.4531521
        %v5703 = vadd.f32 %v5671, -1.4531521
        %v5704 = vadd.f32 %v5672, -1.4531521
        %v5705 = vadd.f32 %v5673, -1.4531521
        %v5706 = vadd.f32 %v5674, -1.4531521
        %v5707 = vadd.f32 %v5675, -1.4531521
        %v5708 = vadd.f32 %v5676, -1.4531521
        %v5709 = vadd.f32 %v5677, -1.4531521
        %v5710 = vadd.f32 %v5678, -1.4531521
        %v5711 = vadd.f32 %v5679, -1.4531521
        %v5712 = vadd.f32 %v5680, -1.4531521
        %v5713 = vadd.f32 %v5681, -1.4531521
        %v5714 = vadd.f32 %v5682, -1.4531521
        %v5715 = vadd.f32 %v5683, -1.4531521
        %v5716 = vadd.f32 %v5684, -1.4531521
        %v5717 = vmul.f32 %v5685, %v5218
        %v5718 = vmul.f32 %v5686, %v5232
        %v5719 = vmul.f32 %v5687, %v5246
        %v5720 = vmul.f32 %v5688, %v5260
        %v5721 = vmul.f32 %v5689, %v5274
        %v5722 = vmul.f32 %v5690, %v5288
        %v5723 = vmul.f32 %v5691, %v5302
        %v5724 = vmul.f32 %v5692, %v5316
        %v5725 = vmul.f32 %v5693, %v5330
        %v5726 = vmul.f32 %v5694, %v5344
        %v5727 = vmul.f32 %v5695, %v5358
        %v5728 = vmul.f32 %v5696, %v5372
        %v5729 = vmul.f32 %v5697, %v5386
        %v5730 = vmul.f32 %v5698, %v5400
        %v5731 = vmul.f32 %v5699, %v5414
        %v5732 = vmul.f32 %v5700, %v5428
        %v5733 = vmul.f32 %v5701, %v5442
        %v5734 = vmul.f32 %v5702, %v5456
        %v5735 = vmul.f32 %v5703, %v5470
        %v5736 = vmul.f32 %v5704, %v5484
        %v5737 = vmul.f32 %v5705, %v5498
        %v5738 = vmul.f32 %v5706, %v5512
        %v5739 = vmul.f32 %v5707, %v5526
        %v5740 = vmul.f32 %v5708, %v5540
        %v5741 = vmul.f32 %v5709, %v5554
        %v5742 = vmul.f32 %v5710, %v5568
        %v5743 = vmul.f32 %v5711, %v5582
        %v5744 = vmul.f32 %v5712, %v5596
        %v5745 = vmul.f32 %v5713, %v5610
        %v5746 = vmul.f32 %v5714, %v5624
        %v5747 = vmul.f32 %v5715, %v5638
        %v5748 = vmul.f32 %v5716, %v5652
        %v5749 = vadd.f32 %v5717, 1.4214138
        %v5750 = vadd.f32 %v5718, 1.4214138
        %v5751 = vadd.f32 %v5719, 1.4214138
        %v5752 = vadd.f32 %v5720, 1.4214138
        %v5753 = vadd.f32 %v5721, 1.4214138
        %v5754 = vadd.f32 %v5722, 1.4214138
        %v5755 = vadd.f32 %v5723, 1.4214138
        %v5756 = vadd.f32 %v5724, 1.4214138
        %v5757 = vadd.f32 %v5725, 1.4214138
        %v5758 = vadd.f32 %v5726, 1.4214138
        %v5759 = vadd.f32 %v5727, 1.4214138
        %v5760 = vadd.f32 %v5728, 1.4214138
        %v5761 = vadd.f32 %v5729, 1.4214138
        %v5762 = vadd.f32 %v5730, 1.4214138
        %v5763 = vadd.f32 %v5731, 1.4214138
        %v5764 = vadd.f32 %v5732, 1.4214138
        %v5765 = vadd.f32 %v5733, 1.4214138
        %v5766 = vadd.f32 %v5734, 1.4214138
        %v5767 = vadd.f32 %v5735, 1.4214138
        %v5768 = vadd.f32 %v5736, 1.4214138
        %v5769 = vadd.f32 %v5737, 1.4214138
        %v5770 = vadd.f32 %v5738, 1.4214138
        %v5771 = vadd.f32 %v5739, 1.4214138
        %v5772 = vadd.f32 %v5740, 1.4214138
        %v5773 = vadd.f32 %v5741, 1.4214138
        %v5774 = vadd.f32 %v5742, 1.4214138
        %v5775 = vadd.f32 %v5743, 1.4214138
        %v5776 = vadd.f32 %v5744, 1.4214138
        %v5777 = vadd.f32 %v5745, 1.4214138
        %v5778 = vadd.f32 %v5746, 1.4214138
        %v5779 = vadd.f32 %v5747, 1.4214138
        %v5780 = vadd.f32 %v5748, 1.4214138
        %v5781 = vmul.f32 %v5749, %v5218
        %v5782 = vmul.f32 %v5750, %v5232
        %v5783 = vmul.f32 %v5751, %v5246
        %v5784 = vmul.f32 %v5752, %v5260
        %v5785 = vmul.f32 %v5753, %v5274
        %v5786 = vmul.f32 %v5754, %v5288
        %v5787 = vmul.f32 %v5755, %v5302
        %v5788 = vmul.f32 %v5756, %v5316
        %v5789 = vmul.f32 %v5757, %v5330
        %v5790 = vmul.f32 %v5758, %v5344
        %v5791 = vmul.f32 %v5759, %v5358
        %v5792 = vmul.f32 %v5760, %v5372
        %v5793 = vmul.f32 %v5761, %v5386
        %v5794 = vmul.f32 %v5762, %v5400
        %v5795 = vmul.f32 %v5763, %v5414
        %v5796 = vmul.f32 %v5764, %v5428
        %v5797 = vmul.f32 %v5765, %v5442
        %v5798 = vmul.f32 %v5766, %v5456
        %v5799 = vmul.f32 %v5767, %v5470
        %v5800 = vmul.f32 %v5768, %v5484
        %v5801 = vmul.f32 %v5769, %v5498
        %v5802 = vmul.f32 %v5770, %v5512
        %v5803 = vmul.f32 %v5771, %v5526
        %v5804 = vmul.f32 %v5772, %v5540
        %v5805 = vmul.f32 %v5773, %v5554
        %v5806 = vmul.f32 %v5774, %v5568
        %v5807 = vmul.f32 %v5775, %v5582
        %v5808 = vmul.f32 %v5776, %v5596
        %v5809 = vmul.f32 %v5777, %v5610
        %v5810 = vmul.f32 %v5778, %v5624
        %v5811 = vmul.f32 %v5779, %v5638
        %v5812 = vmul.f32 %v5780, %v5652
        %v5813 = vadd.f32 %v5781, -0.28449672
        %v5814 = vadd.f32 %v5782, -0.28449672
        %v5815 = vadd.f32 %v5783, -0.28449672
        %v5816 = vadd.f32 %v5784, -0.28449672
        %v5817 = vadd.f32 %v5785, -0.28449672
        %v5818 = vadd.f32 %v5786, -0.28449672
        %v5819 = vadd.f32 %v5787, -0.28449672
        %v5820 = vadd.f32 %v5788, -0.28449672
        %v5821 = vadd.f32 %v5789, -0.28449672
        %v5822 = vadd.f32 %v5790, -0.28449672
        %v5823 = vadd.f32 %v5791, -0.28449672
        %v5824 = vadd.f32 %v5792, -0.28449672
        %v5825 = vadd.f32 %v5793, -0.28449672
        %v5826 = vadd.f32 %v5794, -0.28449672
        %v5827 = vadd.f32 %v5795, -0.28449672
        %v5828 = vadd.f32 %v5796, -0.28449672
        %v5829 = vadd.f32 %v5797, -0.28449672
        %v5830 = vadd.f32 %v5798, -0.28449672
        %v5831 = vadd.f32 %v5799, -0.28449672
        %v5832 = vadd.f32 %v5800, -0.28449672
        %v5833 = vadd.f32 %v5801, -0.28449672
        %v5834 = vadd.f32 %v5802, -0.28449672
        %v5835 = vadd.f32 %v5803, -0.28449672
        %v5836 = vadd.f32 %v5804, -0.28449672
        %v5837 = vadd.f32 %v5805, -0.28449672
        %v5838 = vadd.f32 %v5806, -0.28449672
        %v5839 = vadd.f32 %v5807, -0.28449672
        %v5840 = vadd.f32 %v5808, -0.28449672
        %v5841 = vadd.f32 %v5809, -0.28449672
        %v5842 = vadd.f32 %v5810, -0.28449672
        %v5843 = vadd.f32 %v5811, -0.28449672
        %v5844 = vadd.f32 %v5812, -0.28449672
        %v5845 = vmul.f32 %v5813, %v5218
        %v5846 = vmul.f32 %v5814, %v5232
        %v5847 = vmul.f32 %v5815, %v5246
        %v5848 = vmul.f32 %v5816, %v5260
        %v5849 = vmul.f32 %v5817, %v5274
        %v5850 = vmul.f32 %v5818, %v5288
        %v5851 = vmul.f32 %v5819, %v5302
        %v5852 = vmul.f32 %v5820, %v5316
        %v5853 = vmul.f32 %v5821, %v5330
        %v5854 = vmul.f32 %v5822, %v5344
        %v5855 = vmul.f32 %v5823, %v5358
        %v5856 = vmul.f32 %v5824, %v5372
        %v5857 = vmul.f32 %v5825, %v5386
        %v5858 = vmul.f32 %v5826, %v5400
        %v5859 = vmul.f32 %v5827, %v5414
        %v5860 = vmul.f32 %v5828, %v5428
        %v5861 = vmul.f32 %v5829, %v5442
        %v5862 = vmul.f32 %v5830, %v5456
        %v5863 = vmul.f32 %v5831, %v5470
        %v5864 = vmul.f32 %v5832, %v5484
        %v5865 = vmul.f32 %v5833, %v5498
        %v5866 = vmul.f32 %v5834, %v5512
        %v5867 = vmul.f32 %v5835, %v5526
        %v5868 = vmul.f32 %v5836, %v5540
        %v5869 = vmul.f32 %v5837, %v5554
        %v5870 = vmul.f32 %v5838, %v5568
        %v5871 = vmul.f32 %v5839, %v5582
        %v5872 = vmul.f32 %v5840, %v5596
        %v5873 = vmul.f32 %v5841, %v5610
        %v5874 = vmul.f32 %v5842, %v5624
        %v5875 = vmul.f32 %v5843, %v5638
        %v5876 = vmul.f32 %v5844, %v5652
        %v5877 = vadd.f32 %v5845, 0.2548296
        %v5878 = vadd.f32 %v5846, 0.2548296
        %v5879 = vadd.f32 %v5847, 0.2548296
        %v5880 = vadd.f32 %v5848, 0.2548296
        %v5881 = vadd.f32 %v5849, 0.2548296
        %v5882 = vadd.f32 %v5850, 0.2548296
        %v5883 = vadd.f32 %v5851, 0.2548296
        %v5884 = vadd.f32 %v5852, 0.2548296
        %v5885 = vadd.f32 %v5853, 0.2548296
        %v5886 = vadd.f32 %v5854, 0.2548296
        %v5887 = vadd.f32 %v5855, 0.2548296
        %v5888 = vadd.f32 %v5856, 0.2548296
        %v5889 = vadd.f32 %v5857, 0.2548296
        %v5890 = vadd.f32 %v5858, 0.2548296
        %v5891 = vadd.f32 %v5859, 0.2548296
        %v5892 = vadd.f32 %v5860, 0.2548296
        %v5893 = vadd.f32 %v5861, 0.2548296
        %v5894 = vadd.f32 %v5862, 0.2548296
        %v5895 = vadd.f32 %v5863, 0.2548296
        %v5896 = vadd.f32 %v5864, 0.2548296
        %v5897 = vadd.f32 %v5865, 0.2548296
        %v5898 = vadd.f32 %v5866, 0.2548296
        %v5899 = vadd.f32 %v5867, 0.2548296
        %v5900 = vadd.f32 %v5868, 0.2548296
        %v5901 = vadd.f32 %v5869, 0.2548296
        %v5902 = vadd.f32 %v5870, 0.2548296
        %v5903 = vadd.f32 %v5871, 0.2548296
        %v5904 = vadd.f32 %v5872, 0.2548296
        %v5905 = vadd.f32 %v5873, 0.2548296
        %v5906 = vadd.f32 %v5874, 0.2548296
        %v5907 = vadd.f32 %v5875, 0.2548296
        %v5908 = vadd.f32 %v5876, 0.2548296
        %v5909 = vmul.f32 %v5877, %v5218
        %v5910 = vmul.f32 %v5878, %v5232
        %v5911 = vmul.f32 %v5879, %v5246
        %v5912 = vmul.f32 %v5880, %v5260
        %v5913 = vmul.f32 %v5881, %v5274
        %v5914 = vmul.f32 %v5882, %v5288
        %v5915 = vmul.f32 %v5883, %v5302
        %v5916 = vmul.f32 %v5884, %v5316
        %v5917 = vmul.f32 %v5885, %v5330
        %v5918 = vmul.f32 %v5886, %v5344
        %v5919 = vmul.f32 %v5887, %v5358
        %v5920 = vmul.f32 %v5888, %v5372
        %v5921 = vmul.f32 %v5889, %v5386
        %v5922 = vmul.f32 %v5890, %v5400
        %v5923 = vmul.f32 %v5891, %v5414
        %v5924 = vmul.f32 %v5892, %v5428
        %v5925 = vmul.f32 %v5893, %v5442
        %v5926 = vmul.f32 %v5894, %v5456
        %v5927 = vmul.f32 %v5895, %v5470
        %v5928 = vmul.f32 %v5896, %v5484
        %v5929 = vmul.f32 %v5897, %v5498
        %v5930 = vmul.f32 %v5898, %v5512
        %v5931 = vmul.f32 %v5899, %v5526
        %v5932 = vmul.f32 %v5900, %v5540
        %v5933 = vmul.f32 %v5901, %v5554
        %v5934 = vmul.f32 %v5902, %v5568
        %v5935 = vmul.f32 %v5903, %v5582
        %v5936 = vmul.f32 %v5904, %v5596
        %v5937 = vmul.f32 %v5905, %v5610
        %v5938 = vmul.f32 %v5906, %v5624
        %v5939 = vmul.f32 %v5907, %v5638
        %v5940 = vmul.f32 %v5908, %v5652
        %v5941 = vsub.f32 0.0, %v5109
        %v5942 = vsub.f32 0.0, %v5110
        %v5943 = vsub.f32 0.0, %v5111
        %v5944 = vsub.f32 0.0, %v5112
        %v5945 = vsub.f32 0.0, %v5113
        %v5946 = vsub.f32 0.0, %v5114
        %v5947 = vsub.f32 0.0, %v5115
        %v5948 = vsub.f32 0.0, %v5116
        %v5949 = vsub.f32 0.0, %v5117
        %v5950 = vsub.f32 0.0, %v5118
        %v5951 = vsub.f32 0.0, %v5119
        %v5952 = vsub.f32 0.0, %v5120
        %v5953 = vsub.f32 0.0, %v5121
        %v5954 = vsub.f32 0.0, %v5122
        %v5955 = vsub.f32 0.0, %v5123
        %v5956 = vsub.f32 0.0, %v5124
        %v5957 = vsub.f32 0.0, %v5125
        %v5958 = vsub.f32 0.0, %v5126
        %v5959 = vsub.f32 0.0, %v5127
        %v5960 = vsub.f32 0.0, %v5128
        %v5961 = vsub.f32 0.0, %v5129
        %v5962 = vsub.f32 0.0, %v5130
        %v5963 = vsub.f32 0.0, %v5131
        %v5964 = vsub.f32 0.0, %v5132
        %v5965 = vsub.f32 0.0, %v5133
        %v5966 = vsub.f32 0.0, %v5134
        %v5967 = vsub.f32 0.0, %v5135
        %v5968 = vsub.f32 0.0, %v5136
        %v5969 = vsub.f32 0.0, %v5137
        %v5970 = vsub.f32 0.0, %v5138
        %v5971 = vsub.f32 0.0, %v5139
        %v5972 = vsub.f32 0.0, %v5140
        %v5973 = vmul.f32 %v5941, %v5109
        %v5974 = vmul.f32 %v5942, %v5110
        %v5975 = vmul.f32 %v5943, %v5111
        %v5976 = vmul.f32 %v5944, %v5112
        %v5977 = vmul.f32 %v5945, %v5113
        %v5978 = vmul.f32 %v5946, %v5114
        %v5979 = vmul.f32 %v5947, %v5115
        %v5980 = vmul.f32 %v5948, %v5116
        %v5981 = vmul.f32 %v5949, %v5117
        %v5982 = vmul.f32 %v5950, %v5118
        %v5983 = vmul.f32 %v5951, %v5119
        %v5984 = vmul.f32 %v5952, %v5120
        %v5985 = vmul.f32 %v5953, %v5121
        %v5986 = vmul.f32 %v5954, %v5122
        %v5987 = vmul.f32 %v5955, %v5123
        %v5988 = vmul.f32 %v5956, %v5124
        %v5989 = vmul.f32 %v5957, %v5125
        %v5990 = vmul.f32 %v5958, %v5126
        %v5991 = vmul.f32 %v5959, %v5127
        %v5992 = vmul.f32 %v5960, %v5128
        %v5993 = vmul.f32 %v5961, %v5129
        %v5994 = vmul.f32 %v5962, %v5130
        %v5995 = vmul.f32 %v5963, %v5131
        %v5996 = vmul.f32 %v5964, %v5132
        %v5997 = vmul.f32 %v5965, %v5133
        %v5998 = vmul.f32 %v5966, %v5134
        %v5999 = vmul.f32 %v5967, %v5135
        %v6000 = vmul.f32 %v5968, %v5136
        %v6001 = vmul.f32 %v5969, %v5137
        %v6002 = vmul.f32 %v5970, %v5138
        %v6003 = vmul.f32 %v5971, %v5139
        %v6004 = vmul.f32 %v5972, %v5140
        %v6005 = vmul.f32 %v5973, 1.442695
        %v6006 = vpow.pop %v6005
        %v6007 = vmul.f32 %v5974, 1.442695
        %v6008 = vpow.pop %v6007
        %v6009 = vmul.f32 %v5975, 1.442695
        %v6010 = vpow.pop %v6009
        %v6011 = vmul.f32 %v5976, 1.442695
        %v6012 = vpow.pop %v6011
        %v6013 = vmul.f32 %v5977, 1.442695
        %v6014 = vpow.pop %v6013
        %v6015 = vmul.f32 %v5978, 1.442695
        %v6016 = vpow.pop %v6015
        %v6017 = vmul.f32 %v5979, 1.442695
        %v6018 = vpow.pop %v6017
        %v6019 = vmul.f32 %v5980, 1.442695
        %v6020 = vpow.pop %v6019
        %v6021 = vmul.f32 %v5981, 1.442695
        %v6022 = vpow.pop %v6021
        %v6023 = vmul.f32 %v5982, 1.442695
        %v6024 = vpow.pop %v6023
        %v6025 = vmul.f32 %v5983, 1.442695
        %v6026 = vpow.pop %v6025
        %v6027 = vmul.f32 %v5984, 1.442695
        %v6028 = vpow.pop %v6027
        %v6029 = vmul.f32 %v5985, 1.442695
        %v6030 = vpow.pop %v6029
        %v6031 = vmul.f32 %v5986, 1.442695
        %v6032 = vpow.pop %v6031
        %v6033 = vmul.f32 %v5987, 1.442695
        %v6034 = vpow.pop %v6033
        %v6035 = vmul.f32 %v5988, 1.442695
        %v6036 = vpow.pop %v6035
        %v6037 = vmul.f32 %v5989, 1.442695
        %v6038 = vpow.pop %v6037
        %v6039 = vmul.f32 %v5990, 1.442695
        %v6040 = vpow.pop %v6039
        %v6041 = vmul.f32 %v5991, 1.442695
        %v6042 = vpow.pop %v6041
        %v6043 = vmul.f32 %v5992, 1.442695
        %v6044 = vpow.pop %v6043
        %v6045 = vmul.f32 %v5993, 1.442695
        %v6046 = vpow.pop %v6045
        %v6047 = vmul.f32 %v5994, 1.442695
        %v6048 = vpow.pop %v6047
        %v6049 = vmul.f32 %v5995, 1.442695
        %v6050 = vpow.pop %v6049
        %v6051 = vmul.f32 %v5996, 1.442695
        %v6052 = vpow.pop %v6051
        %v6053 = vmul.f32 %v5997, 1.442695
        %v6054 = vpow.pop %v6053
        %v6055 = vmul.f32 %v5998, 1.442695
        %v6056 = vpow.pop %v6055
        %v6057 = vmul.f32 %v5999, 1.442695
        %v6058 = vpow.pop %v6057
        %v6059 = vmul.f32 %v6000, 1.442695
        %v6060 = vpow.pop %v6059
        %v6061 = vmul.f32 %v6001, 1.442695
        %v6062 = vpow.pop %v6061
        %v6063 = vmul.f32 %v6002, 1.442695
        %v6064 = vpow.pop %v6063
        %v6065 = vmul.f32 %v6003, 1.442695
        %v6066 = vpow.pop %v6065
        %v6067 = vmul.f32 %v6004, 1.442695
        %v6068 = vpow.pop %v6067
        %v6069 = vmul.f32 %v5909, %v6006
        %v6070 = vmul.f32 %v5910, %v6008
        %v6071 = vmul.f32 %v5911, %v6010
        %v6072 = vmul.f32 %v5912, %v6012
        %v6073 = vmul.f32 %v5913, %v6014
        %v6074 = vmul.f32 %v5914, %v6016
        %v6075 = vmul.f32 %v5915, %v6018
        %v6076 = vmul.f32 %v5916, %v6020
        %v6077 = vmul.f32 %v5917, %v6022
        %v6078 = vmul.f32 %v5918, %v6024
        %v6079 = vmul.f32 %v5919, %v6026
        %v6080 = vmul.f32 %v5920, %v6028
        %v6081 = vmul.f32 %v5921, %v6030
        %v6082 = vmul.f32 %v5922, %v6032
        %v6083 = vmul.f32 %v5923, %v6034
        %v6084 = vmul.f32 %v5924, %v6036
        %v6085 = vmul.f32 %v5925, %v6038
        %v6086 = vmul.f32 %v5926, %v6040
        %v6087 = vmul.f32 %v5927, %v6042
        %v6088 = vmul.f32 %v5928, %v6044
        %v6089 = vmul.f32 %v5929, %v6046
        %v6090 = vmul.f32 %v5930, %v6048
        %v6091 = vmul.f32 %v5931, %v6050
        %v6092 = vmul.f32 %v5932, %v6052
        %v6093 = vmul.f32 %v5933, %v6054
        %v6094 = vmul.f32 %v5934, %v6056
        %v6095 = vmul.f32 %v5935, %v6058
        %v6096 = vmul.f32 %v5936, %v6060
        %v6097 = vmul.f32 %v5937, %v6062
        %v6098 = vmul.f32 %v5938, %v6064
        %v6099 = vmul.f32 %v5939, %v6066
        %v6100 = vmul.f32 %v5940, %v6068
        %v6101 = vsub.f32 1.0, %v6069
        %v6102 = vsub.f32 1.0, %v6070
        %v6103 = vsub.f32 1.0, %v6071
        %v6104 = vsub.f32 1.0, %v6072
        %v6105 = vsub.f32 1.0, %v6073
        %v6106 = vsub.f32 1.0, %v6074
        %v6107 = vsub.f32 1.0, %v6075
        %v6108 = vsub.f32 1.0, %v6076
        %v6109 = vsub.f32 1.0, %v6077
        %v6110 = vsub.f32 1.0, %v6078
        %v6111 = vsub.f32 1.0, %v6079
        %v6112 = vsub.f32 1.0, %v6080
        %v6113 = vsub.f32 1.0, %v6081
        %v6114 = vsub.f32 1.0, %v6082
        %v6115 = vsub.f32 1.0, %v6083
        %v6116 = vsub.f32 1.0, %v6084
        %v6117 = vsub.f32 1.0, %v6085
        %v6118 = vsub.f32 1.0, %v6086
        %v6119 = vsub.f32 1.0, %v6087
        %v6120 = vsub.f32 1.0, %v6088
        %v6121 = vsub.f32 1.0, %v6089
        %v6122 = vsub.f32 1.0, %v6090
        %v6123 = vsub.f32 1.0, %v6091
        %v6124 = vsub.f32 1.0, %v6092
        %v6125 = vsub.f32 1.0, %v6093
        %v6126 = vsub.f32 1.0, %v6094
        %v6127 = vsub.f32 1.0, %v6095
        %v6128 = vsub.f32 1.0, %v6096
        %v6129 = vsub.f32 1.0, %v6097
        %v6130 = vsub.f32 1.0, %v6098
        %v6131 = vsub.f32 1.0, %v6099
        %v6132 = vsub.f32 1.0, %v6100
        %vm6133 = vcmp.ge.f32.partialorder %v5077, 0.0
        %vm6134 = vcmp.ge.f32.partialorder %v5078, 0.0
        %vm6135 = vcmp.ge.f32.partialorder %v5079, 0.0
        %vm6136 = vcmp.ge.f32.partialorder %v5080, 0.0
        %vm6137 = vcmp.ge.f32.partialorder %v5081, 0.0
        %vm6138 = vcmp.ge.f32.partialorder %v5082, 0.0
        %vm6139 = vcmp.ge.f32.partialorder %v5083, 0.0
        %vm6140 = vcmp.ge.f32.partialorder %v5084, 0.0
        %vm6141 = vcmp.ge.f32.partialorder %v5085, 0.0
        %vm6142 = vcmp.ge.f32.partialorder %v5086, 0.0
        %vm6143 = vcmp.ge.f32.partialorder %v5087, 0.0
        %vm6144 = vcmp.ge.f32.partialorder %v5088, 0.0
        %vm6145 = vcmp.ge.f32.partialorder %v5089, 0.0
        %vm6146 = vcmp.ge.f32.partialorder %v5090, 0.0
        %vm6147 = vcmp.ge.f32.partialorder %v5091, 0.0
        %vm6148 = vcmp.ge.f32.partialorder %v5092, 0.0
        %vm6149 = vcmp.ge.f32.partialorder %v5093, 0.0
        %vm6150 = vcmp.ge.f32.partialorder %v5094, 0.0
        %vm6151 = vcmp.ge.f32.partialorder %v5095, 0.0
        %vm6152 = vcmp.ge.f32.partialorder %v5096, 0.0
        %vm6153 = vcmp.ge.f32.partialorder %v5097, 0.0
        %vm6154 = vcmp.ge.f32.partialorder %v5098, 0.0
        %vm6155 = vcmp.ge.f32.partialorder %v5099, 0.0
        %vm6156 = vcmp.ge.f32.partialorder %v5100, 0.0
        %vm6157 = vcmp.ge.f32.partialorder %v5101, 0.0
        %vm6158 = vcmp.ge.f32.partialorder %v5102, 0.0
        %vm6159 = vcmp.ge.f32.partialorder %v5103, 0.0
        %vm6160 = vcmp.ge.f32.partialorder %v5104, 0.0
        %vm6161 = vcmp.ge.f32.partialorder %v5105, 0.0
        %vm6162 = vcmp.ge.f32.partialorder %v5106, 0.0
        %vm6163 = vcmp.ge.f32.partialorder %v5107, 0.0
        %vm6164 = vcmp.ge.f32.partialorder %v5108, 0.0
        %v6165 = vsub.f32 0.0, %v6101
        %v6166 = vsub.f32 0.0, %v6102
        %v6167 = vsub.f32 0.0, %v6103
        %v6168 = vsub.f32 0.0, %v6104
        %v6169 = vsub.f32 0.0, %v6105
        %v6170 = vsub.f32 0.0, %v6106
        %v6171 = vsub.f32 0.0, %v6107
        %v6172 = vsub.f32 0.0, %v6108
        %v6173 = vsub.f32 0.0, %v6109
        %v6174 = vsub.f32 0.0, %v6110
        %v6175 = vsub.f32 0.0, %v6111
        %v6176 = vsub.f32 0.0, %v6112
        %v6177 = vsub.f32 0.0, %v6113
        %v6178 = vsub.f32 0.0, %v6114
        %v6179 = vsub.f32 0.0, %v6115
        %v6180 = vsub.f32 0.0, %v6116
        %v6181 = vsub.f32 0.0, %v6117
        %v6182 = vsub.f32 0.0, %v6118
        %v6183 = vsub.f32 0.0, %v6119
        %v6184 = vsub.f32 0.0, %v6120
        %v6185 = vsub.f32 0.0, %v6121
        %v6186 = vsub.f32 0.0, %v6122
        %v6187 = vsub.f32 0.0, %v6123
        %v6188 = vsub.f32 0.0, %v6124
        %v6189 = vsub.f32 0.0, %v6125
        %v6190 = vsub.f32 0.0, %v6126
        %v6191 = vsub.f32 0.0, %v6127
        %v6192 = vsub.f32 0.0, %v6128
        %v6193 = vsub.f32 0.0, %v6129
        %v6194 = vsub.f32 0.0, %v6130
        %v6195 = vsub.f32 0.0, %v6131
        %v6196 = vsub.f32 0.0, %v6132
        %v6197 = vsel %vm6133, %v6101, %v6165
        %v6198 = vsel %vm6134, %v6102, %v6166
        %v6199 = vsel %vm6135, %v6103, %v6167
        %v6200 = vsel %vm6136, %v6104, %v6168
        %v6201 = vsel %vm6137, %v6105, %v6169
        %v6202 = vsel %vm6138, %v6106, %v6170
        %v6203 = vsel %vm6139, %v6107, %v6171
        %v6204 = vsel %vm6140, %v6108, %v6172
        %v6205 = vsel %vm6141, %v6109, %v6173
        %v6206 = vsel %vm6142, %v6110, %v6174
        %v6207 = vsel %vm6143, %v6111, %v6175
        %v6208 = vsel %vm6144, %v6112, %v6176
        %v6209 = vsel %vm6145, %v6113, %v6177
        %v6210 = vsel %vm6146, %v6114, %v6178
        %v6211 = vsel %vm6147, %v6115, %v6179
        %v6212 = vsel %vm6148, %v6116, %v6180
        %v6213 = vsel %vm6149, %v6117, %v6181
        %v6214 = vsel %vm6150, %v6118, %v6182
        %v6215 = vsel %vm6151, %v6119, %v6183
        %v6216 = vsel %vm6152, %v6120, %v6184
        %v6217 = vsel %vm6153, %v6121, %v6185
        %v6218 = vsel %vm6154, %v6122, %v6186
        %v6219 = vsel %vm6155, %v6123, %v6187
        %v6220 = vsel %vm6156, %v6124, %v6188
        %v6221 = vsel %vm6157, %v6125, %v6189
        %v6222 = vsel %vm6158, %v6126, %v6190
        %v6223 = vsel %vm6159, %v6127, %v6191
        %v6224 = vsel %vm6160, %v6128, %v6192
        %v6225 = vsel %vm6161, %v6129, %v6193
        %v6226 = vsel %vm6162, %v6130, %v6194
        %v6227 = vsel %vm6163, %v6131, %v6195
        %v6228 = vsel %vm6164, %v6132, %v6196
        %v6229 = vmul.f32 %v4982, 0.5
        %v6230 = vmul.f32 %v4985, 0.5
        %v6231 = vmul.f32 %v4988, 0.5
        %v6232 = vmul.f32 %v4991, 0.5
        %v6233 = vmul.f32 %v4994, 0.5
        %v6234 = vmul.f32 %v4997, 0.5
        %v6235 = vmul.f32 %v5000, 0.5
        %v6236 = vmul.f32 %v5003, 0.5
        %v6237 = vmul.f32 %v5006, 0.5
        %v6238 = vmul.f32 %v5009, 0.5
        %v6239 = vmul.f32 %v5012, 0.5
        %v6240 = vmul.f32 %v5015, 0.5
        %v6241 = vmul.f32 %v5018, 0.5
        %v6242 = vmul.f32 %v5021, 0.5
        %v6243 = vmul.f32 %v5024, 0.5
        %v6244 = vmul.f32 %v5027, 0.5
        %v6245 = vmul.f32 %v5030, 0.5
        %v6246 = vmul.f32 %v5033, 0.5
        %v6247 = vmul.f32 %v5036, 0.5
        %v6248 = vmul.f32 %v5039, 0.5
        %v6249 = vmul.f32 %v5042, 0.5
        %v6250 = vmul.f32 %v5045, 0.5
        %v6251 = vmul.f32 %v5048, 0.5
        %v6252 = vmul.f32 %v5051, 0.5
        %v6253 = vmul.f32 %v5054, 0.5
        %v6254 = vmul.f32 %v5057, 0.5
        %v6255 = vmul.f32 %v5060, 0.5
        %v6256 = vmul.f32 %v5063, 0.5
        %v6257 = vmul.f32 %v5066, 0.5
        %v6258 = vmul.f32 %v5069, 0.5
        %v6259 = vmul.f32 %v5072, 0.5
        %v6260 = vmul.f32 %v5075, 0.5
        %v6261 = vadd.f32 %v6197, 1.0
        %v6262 = vadd.f32 %v6198, 1.0
        %v6263 = vadd.f32 %v6199, 1.0
        %v6264 = vadd.f32 %v6200, 1.0
        %v6265 = vadd.f32 %v6201, 1.0
        %v6266 = vadd.f32 %v6202, 1.0
        %v6267 = vadd.f32 %v6203, 1.0
        %v6268 = vadd.f32 %v6204, 1.0
        %v6269 = vadd.f32 %v6205, 1.0
        %v6270 = vadd.f32 %v6206, 1.0
        %v6271 = vadd.f32 %v6207, 1.0
        %v6272 = vadd.f32 %v6208, 1.0
        %v6273 = vadd.f32 %v6209, 1.0
        %v6274 = vadd.f32 %v6210, 1.0
        %v6275 = vadd.f32 %v6211, 1.0
        %v6276 = vadd.f32 %v6212, 1.0
        %v6277 = vadd.f32 %v6213, 1.0
        %v6278 = vadd.f32 %v6214, 1.0
        %v6279 = vadd.f32 %v6215, 1.0
        %v6280 = vadd.f32 %v6216, 1.0
        %v6281 = vadd.f32 %v6217, 1.0
        %v6282 = vadd.f32 %v6218, 1.0
        %v6283 = vadd.f32 %v6219, 1.0
        %v6284 = vadd.f32 %v6220, 1.0
        %v6285 = vadd.f32 %v6221, 1.0
        %v6286 = vadd.f32 %v6222, 1.0
        %v6287 = vadd.f32 %v6223, 1.0
        %v6288 = vadd.f32 %v6224, 1.0
        %v6289 = vadd.f32 %v6225, 1.0
        %v6290 = vadd.f32 %v6226, 1.0
        %v6291 = vadd.f32 %v6227, 1.0
        %v6292 = vadd.f32 %v6228, 1.0
        %v6293 = vmul.f32 %v6229, %v6261
        %v6294 = vmul.f32 %v6230, %v6262
        %v6295 = vmul.f32 %v6231, %v6263
        %v6296 = vmul.f32 %v6232, %v6264
        %v6297 = vmul.f32 %v6233, %v6265
        %v6298 = vmul.f32 %v6234, %v6266
        %v6299 = vmul.f32 %v6235, %v6267
        %v6300 = vmul.f32 %v6236, %v6268
        %v6301 = vmul.f32 %v6237, %v6269
        %v6302 = vmul.f32 %v6238, %v6270
        %v6303 = vmul.f32 %v6239, %v6271
        %v6304 = vmul.f32 %v6240, %v6272
        %v6305 = vmul.f32 %v6241, %v6273
        %v6306 = vmul.f32 %v6242, %v6274
        %v6307 = vmul.f32 %v6243, %v6275
        %v6308 = vmul.f32 %v6244, %v6276
        %v6309 = vmul.f32 %v6245, %v6277
        %v6310 = vmul.f32 %v6246, %v6278
        %v6311 = vmul.f32 %v6247, %v6279
        %v6312 = vmul.f32 %v6248, %v6280
        %v6313 = vmul.f32 %v6249, %v6281
        %v6314 = vmul.f32 %v6250, %v6282
        %v6315 = vmul.f32 %v6251, %v6283
        %v6316 = vmul.f32 %v6252, %v6284
        %v6317 = vmul.f32 %v6253, %v6285
        %v6318 = vmul.f32 %v6254, %v6286
        %v6319 = vmul.f32 %v6255, %v6287
        %v6320 = vmul.f32 %v6256, %v6288
        %v6321 = vmul.f32 %v6257, %v6289
        %v6322 = vmul.f32 %v6258, %v6290
        %v6323 = vmul.f32 %v6259, %v6291
        %v6324 = vmul.f32 %v6260, %v6292
        %v6325 = vld [vmem:[#allocation2 + $0x140] sm:$0xff]
        %v6326 = vld [vmem:[#allocation2 + $0x148] sm:$0xff]
        %v6327 = vld [vmem:[#allocation2 + $0x150] sm:$0xff]
        %v6328 = vld [vmem:[#allocation2 + $0x158] sm:$0xff]
        %v6330 = vrot.slane %v1631, 1
        %v6331 = vsel %vm517, %v6330, 0
        %6333 = vmatpush.msra.mxu0 0.0
        %6334 = vmatpush.msra.mxu0 0.0
        %6335 = vmatpush.msra.mxu0 0.0
        %6336 = vmatpush.msra.mxu0 0.0
        %6337 = vmatpush.msra.mxu0 0.0
        %6338 = vmatpush.msra.mxu0 0.0
        %6339 = vmatpush.msra.mxu0 0.0
        %6340 = vmatpush.msra.mxu0 0.0
        %6341 = vmatpush.msra.mxu0 0.0
        %6342 = vmatpush.msra.mxu0 0.0
        %6343 = vmatpush.msra.mxu0 0.0
        %6344 = vmatpush.msra.mxu0 0.0
        %6345 = vmatpush.msra.mxu0 %v6328
        %6346 = vmatpush.msra.mxu0 %v6327
        %6347 = vmatpush.msra.mxu0 %v6326
        %6348 = vmatpush.msra.mxu0 %v6325
        %6349 = vmatmul.f32.gmra.mxu0 %v6331
        %v6350 = vpop.f32.mrf.mxu0
        %v6351 = vadd.f32 0.0, %v6350
        %6352 = vdwg.mxu0
        %v6353 = vld [vmem:[#allocation2 + $0x160] sm:$0xf]
        %v6354 = vmul.f32 %v6351, %v6353
        %v6355 = vld [vmem:[#allocation2 + $0x168] sm:$0xff]
        %v6356 = vld [vmem:[#allocation2 + $0x170] sm:$0xff]
        %v6357 = vld [vmem:[#allocation2 + $0x178] sm:$0xff]
        %v6358 = vld [vmem:[#allocation2 + $0x180] sm:$0xff]
        %v6359 = vld [vmem:[#allocation2 + $0x188] sm:$0xff]
        %v6360 = vld [vmem:[#allocation2 + $0x190] sm:$0xff]
        %v6361 = vld [vmem:[#allocation2 + $0x198] sm:$0xff]
        %v6362 = vld [vmem:[#allocation2 + $0x1a0] sm:$0xff]
        %v6363 = vld [vmem:[#allocation2 + $0x1a8] sm:$0xff]
        %v6364 = vld [vmem:[#allocation2 + $0x1b0] sm:$0xff]
        %v6365 = vld [vmem:[#allocation2 + $0x1b8] sm:$0xff]
        %v6366 = vld [vmem:[#allocation2 + $0x1c0] sm:$0xff]
        %v6367 = vld [vmem:[#allocation2 + $0x1c8] sm:$0xff]
        %v6368 = vld [vmem:[#allocation2 + $0x1d0] sm:$0xff]
        %v6369 = vld [vmem:[#allocation2 + $0x1d8] sm:$0xff]
        %v6370 = vld [vmem:[#allocation2 + $0x1e0] sm:$0xff]
        %v6371 = vld [vmem:[#allocation2 + $0x2e8] sm:$0xf]
        %6372 = vmatpush.msra.mxu0 %v6370
        %6373 = vmatpush.msra.mxu0 %v6369
        %6374 = vmatpush.msra.mxu0 %v6368
        %6375 = vmatpush.msra.mxu0 %v6367
        %6376 = vmatpush.msra.mxu0 %v6366
        %6377 = vmatpush.msra.mxu0 %v6365
        %6378 = vmatpush.msra.mxu0 %v6364
        %6379 = vmatpush.msra.mxu0 %v6363
        %6380 = vmatpush.msra.mxu0 %v6362
        %6381 = vmatpush.msra.mxu0 %v6361
        %6382 = vmatpush.msra.mxu0 %v6360
        %6383 = vmatpush.msra.mxu0 %v6359
        %6384 = vmatpush.msra.mxu0 %v6358
        %6385 = vmatpush.msra.mxu0 %v6357
        %6386 = vmatpush.msra.mxu0 %v6356
        %6387 = vmatpush.msra.mxu0 %v6355
        %6388 = vmatmul.f32.gmra.mxu0 %v6354
        %v6389 = vpop.f32.mrf.mxu0
        %v6390 = vadd.f32 %v6371, %v6389
        %6391 = vdwg.mxu0
        %v6392 = vmax.f32 %v6390, 0.0
        %v6393 = vld [vmem:[#allocation2 + $0x1e8] sm:$0xff]
        %v6394 = vld [vmem:[#allocation2 + $0x1f0] sm:$0xff]
        %v6395 = vld [vmem:[#allocation2 + $0x1f8] sm:$0xff]
        %v6396 = vld [vmem:[#allocation2 + $0x200] sm:$0xff]
        %v6397 = vld [vmem:[#allocation2 + $0x208] sm:$0xff]
        %v6398 = vld [vmem:[#allocation2 + $0x210] sm:$0xff]
        %v6399 = vld [vmem:[#allocation2 + $0x218] sm:$0xff]
        %v6400 = vld [vmem:[#allocation2 + $0x220] sm:$0xff]
        %v6401 = vld [vmem:[#allocation2 + $0x228] sm:$0xff]
        %v6402 = vld [vmem:[#allocation2 + $0x230] sm:$0xff]
        %v6403 = vld [vmem:[#allocation2 + $0x238] sm:$0xff]
        %v6404 = vld [vmem:[#allocation2 + $0x240] sm:$0xff]
        %v6405 = vld [vmem:[#allocation2 + $0x248] sm:$0xff]
        %v6406 = vld [vmem:[#allocation2 + $0x250] sm:$0xff]
        %v6407 = vld [vmem:[#allocation2 + $0x258] sm:$0xff]
        %v6408 = vld [vmem:[#allocation2 + $0x260] sm:$0xff]
        %v6409 = vld [vmem:[#allocation2 + $0x2f0] sm:$0xf]
        %6410 = vmatpush.msra.mxu0 %v6408
        %6411 = vmatpush.msra.mxu0 %v6407
        %6412 = vmatpush.msra.mxu0 %v6406
        %6413 = vmatpush.msra.mxu0 %v6405
        %6414 = vmatpush.msra.mxu0 %v6404
        %6415 = vmatpush.msra.mxu0 %v6403
        %6416 = vmatpush.msra.mxu0 %v6402
        %6417 = vmatpush.msra.mxu0 %v6401
        %6418 = vmatpush.msra.mxu0 %v6400
        %6419 = vmatpush.msra.mxu0 %v6399
        %6420 = vmatpush.msra.mxu0 %v6398
        %6421 = vmatpush.msra.mxu0 %v6397
        %6422 = vmatpush.msra.mxu0 %v6396
        %6423 = vmatpush.msra.mxu0 %v6395
        %6424 = vmatpush.msra.mxu0 %v6394
        %6425 = vmatpush.msra.mxu0 %v6393
        %6426 = vmatmul.f32.gmra.mxu0 %v6392
        %v6427 = vpop.f32.mrf.mxu0
        %v6428 = vadd.f32 %v6409, %v6427
        %6429 = vdwg.mxu0
        %v6430 = vmax.f32 %v6428, 0.0
        %v6431 = vld [vmem:[#allocation2 + $0x268] sm:$0xff]
        %v6432 = vld [vmem:[#allocation2 + $0x270] sm:$0xff]
        %v6433 = vld [vmem:[#allocation2 + $0x278] sm:$0xff]
        %v6434 = vld [vmem:[#allocation2 + $0x280] sm:$0xff]
        %v6435 = vld [vmem:[#allocation2 + $0x288] sm:$0xff]
        %v6436 = vld [vmem:[#allocation2 + $0x290] sm:$0xff]
        %v6437 = vld [vmem:[#allocation2 + $0x298] sm:$0xff]
        %v6438 = vld [vmem:[#allocation2 + $0x2a0] sm:$0xff]
        %v6439 = vld [vmem:[#allocation2 + $0x2a8] sm:$0xff]
        %v6440 = vld [vmem:[#allocation2 + $0x2b0] sm:$0xff]
        %v6441 = vld [vmem:[#allocation2 + $0x2b8] sm:$0xff]
        %v6442 = vld [vmem:[#allocation2 + $0x2c0] sm:$0xff]
        %v6443 = vld [vmem:[#allocation2 + $0x2c8] sm:$0xff]
        %v6444 = vld [vmem:[#allocation2 + $0x2d0] sm:$0xff]
        %v6445 = vld [vmem:[#allocation2 + $0x2d8] sm:$0xff]
        %v6446 = vld [vmem:[#allocation2 + $0x2e0] sm:$0xff]
        %v6447 = vld [vmem:[#allocation2 + $0x2f8] sm:$0xf]
        %6448 = vmatpush.msra.mxu0 %v6446
        %6449 = vmatpush.msra.mxu0 %v6445
        %6450 = vmatpush.msra.mxu0 %v6444
        %6451 = vmatpush.msra.mxu0 %v6443
        %6452 = vmatpush.msra.mxu0 %v6442
        %6453 = vmatpush.msra.mxu0 %v6441
        %6454 = vmatpush.msra.mxu0 %v6440
        %6455 = vmatpush.msra.mxu0 %v6439
        %6456 = vmatpush.msra.mxu0 %v6438
        %6457 = vmatpush.msra.mxu0 %v6437
        %6458 = vmatpush.msra.mxu0 %v6436
        %6459 = vmatpush.msra.mxu0 %v6435
        %6460 = vmatpush.msra.mxu0 %v6434
        %6461 = vmatpush.msra.mxu0 %v6433
        %6462 = vmatpush.msra.mxu0 %v6432
        %6463 = vmatpush.msra.mxu0 %v6431
        %6464 = vmatmul.f32.gmra.mxu0 %v6430
        %v6465 = vpop.f32.mrf.mxu0
        %v6466 = vadd.f32 %v6447, %v6465
        %6467 = vdwg.mxu0
        %v6468 = vld [vmem:[#allocation2 + $0x300] sm:$0xff]
        %v6469 = vld [vmem:[#allocation2 + $0x308] sm:$0xff]
        %v6470 = vld [vmem:[#allocation2 + $0x310] sm:$0xff]
        %v6471 = vld [vmem:[#allocation2 + $0x318] sm:$0xff]
        %v6472 = vld [vmem:[#allocation2 + $0x320] sm:$0xff]
        %v6473 = vld [vmem:[#allocation2 + $0x328] sm:$0xff]
        %v6474 = vld [vmem:[#allocation2 + $0x330] sm:$0xff]
        %v6475 = vld [vmem:[#allocation2 + $0x338] sm:$0xff]
        %vm6476 = vcmask 31744
        %v6478 = vsel %vm6476, %v6468, 0
        %v6481 = vsel %vm6476, %v6469, 0
        %v6484 = vsel %vm6476, %v6470, 0
        %v6487 = vsel %vm6476, %v6471, 0
        %v6490 = vsel %vm6476, %v6472, 0
        %v6493 = vsel %vm6476, %v6473, 0
        %v6496 = vsel %vm6476, %v6474, 0
        %v6499 = vsel %vm6476, %v6475, 0
        %v6502 = vsel %vm6476, %v6466, 0
        %6504 = vmatpush.xpose.msra.mxu0 0.0
        %6505 = vmatpush.xpose.msra.mxu0 0.0
        %6506 = vmatpush.xpose.msra.mxu0 0.0
        %6507 = vmatpush.xpose.msra.mxu0 0.0
        %6508 = vmatpush.xpose.msra.mxu0 0.0
        %6509 = vmatpush.xpose.msra.mxu0 0.0
        %6510 = vmatpush.xpose.msra.mxu0 0.0
        %6511 = vmatpush.xpose.msra.mxu0 0.0
        %6512 = vmatpush.xpose.msra.mxu0 0.0
        %6513 = vmatpush.xpose.msra.mxu0 0.0
        %6514 = vmatpush.xpose.msra.mxu0 0.0
        %6515 = vmatpush.xpose.msra.mxu0 0.0
        %6516 = vmatpush.xpose.msra.mxu0 0.0
        %6517 = vmatpush.xpose.msra.mxu0 0.0
        %6518 = vmatpush.xpose.msra.mxu0 0.0
        %6519 = vmatpush.xpose.msra.mxu0 %v6502
        %6520 = vmatmul.f32.gmra.mxu0 %v6478
        %v6521 = vpop.f32.mrf.mxu0
        %v6522 = vadd.f32 0.0, %v6521
        %6523 = vmatmul.f32.gmra.mxu0 %v6481
        %v6524 = vpop.f32.mrf.mxu0
        %v6525 = vadd.f32 0.0, %v6524
        %6526 = vmatmul.f32.gmra.mxu0 %v6484
        %v6527 = vpop.f32.mrf.mxu0
        %v6528 = vadd.f32 0.0, %v6527
        %6529 = vmatmul.f32.gmra.mxu0 %v6487
        %v6530 = vpop.f32.mrf.mxu0
        %v6531 = vadd.f32 0.0, %v6530
        %6532 = vmatmul.f32.gmra.mxu0 %v6490
        %v6533 = vpop.f32.mrf.mxu0
        %v6534 = vadd.f32 0.0, %v6533
        %6535 = vmatmul.f32.gmra.mxu0 %v6493
        %v6536 = vpop.f32.mrf.mxu0
        %v6537 = vadd.f32 0.0, %v6536
        %6538 = vmatmul.f32.gmra.mxu0 %v6496
        %v6539 = vpop.f32.mrf.mxu0
        %v6540 = vadd.f32 0.0, %v6539
        %6541 = vmatmul.f32.gmra.mxu0 %v6499
        %v6542 = vpop.f32.mrf.mxu0
        %v6543 = vadd.f32 0.0, %v6542
        %6544 = vdwg.mxu0
        %v6545 = vld [vmem:[#allocation2 + $0x340] sm:$0xf]
        %v6547 = vsel %vm6476, %v6522, 0
        %v6550 = vsel %vm6476, %v6525, 0
        %v6553 = vsel %vm6476, %v6528, 0
        %v6556 = vsel %vm6476, %v6531, 0
        %v6559 = vsel %vm6476, %v6534, 0
        %v6562 = vsel %vm6476, %v6537, 0
        %v6565 = vsel %vm6476, %v6540, 0
        %v6568 = vsel %vm6476, %v6543, 0
        %v6571 = vsel %vm1520, %v6545, 0
        %6573 = vmatpush.msra.mxu0 0.0
        %6574 = vmatpush.msra.mxu0 0.0
        %6575 = vmatpush.msra.mxu0 0.0
        %6576 = vmatpush.msra.mxu0 0.0
        %6577 = vmatpush.msra.mxu0 0.0
        %6578 = vmatpush.msra.mxu0 0.0
        %6579 = vmatpush.msra.mxu0 0.0
        %6580 = vmatpush.msra.mxu0 0.0
        %6581 = vmatpush.msra.mxu0 0.0
        %6582 = vmatpush.msra.mxu0 0.0
        %6583 = vmatpush.msra.mxu0 0.0
        %6584 = vmatpush.msra.mxu0 0.0
        %6585 = vmatpush.msra.mxu0 0.0
        %6586 = vmatpush.msra.mxu0 0.0
        %6587 = vmatpush.msra.mxu0 0.0
        %6588 = vmatpush.msra.mxu0 %v6571
        %6589 = vmatmul.f32.gmra.mxu0 %v6547
        %v6590 = vpop.f32.mrf.mxu0
        %v6591 = vadd.f32 0.0, %v6590
        %6592 = vmatmul.f32.gmra.mxu0 %v6550
        %v6593 = vpop.f32.mrf.mxu0
        %v6594 = vadd.f32 0.0, %v6593
        %6595 = vmatmul.f32.gmra.mxu0 %v6553
        %v6596 = vpop.f32.mrf.mxu0
        %v6597 = vadd.f32 0.0, %v6596
        %6598 = vmatmul.f32.gmra.mxu0 %v6556
        %v6599 = vpop.f32.mrf.mxu0
        %v6600 = vadd.f32 0.0, %v6599
        %6601 = vmatmul.f32.gmra.mxu0 %v6559
        %v6602 = vpop.f32.mrf.mxu0
        %v6603 = vadd.f32 0.0, %v6602
        %6604 = vmatmul.f32.gmra.mxu0 %v6562
        %v6605 = vpop.f32.mrf.mxu0
        %v6606 = vadd.f32 0.0, %v6605
        %6607 = vmatmul.f32.gmra.mxu0 %v6565
        %v6608 = vpop.f32.mrf.mxu0
        %v6609 = vadd.f32 0.0, %v6608
        %6610 = vmatmul.f32.gmra.mxu0 %v6568
        %v6611 = vpop.f32.mrf.mxu0
        %v6612 = vadd.f32 0.0, %v6611
        %6613 = vdwg.mxu0
        %v6614 = vld [vmem:[#allocation2 + $0x348] sm:$0xff]
        %v6615 = vld [vmem:[#allocation2 + $0x350] sm:$0xff]
        %v6616 = vld [vmem:[#allocation2 + $0x358] sm:$0xff]
        %v6617 = vld [vmem:[#allocation2 + $0x360] sm:$0xff]
        %v6618 = vld [vmem:[#allocation2 + $0x368] sm:$0xff]
        %v6619 = vld [vmem:[#allocation2 + $0x370] sm:$0xff]
        %v6620 = vld [vmem:[#allocation2 + $0x378] sm:$0xff]
        %v6621 = vld [vmem:[#allocation2 + $0x380] sm:$0xff]
        %v6622 = vmul.f32 %v6591, %v6614
        %v6623 = vmul.f32 %v6594, %v6615
        %v6624 = vmul.f32 %v6597, %v6616
        %v6625 = vmul.f32 %v6600, %v6617
        %v6626 = vmul.f32 %v6603, %v6618
        %v6627 = vmul.f32 %v6606, %v6619
        %v6628 = vmul.f32 %v6609, %v6620
        %v6629 = vmul.f32 %v6612, %v6621
        %v6631 = vsel %vm2570, %v6293, 0
        %v6634 = vsel %vm2570, %v6294, 0
        %v6637 = vsel %vm2570, %v6295, 0
        %v6640 = vsel %vm2570, %v6296, 0
        %v6643 = vsel %vm2570, %v6297, 0
        %v6646 = vsel %vm2570, %v6298, 0
        %v6649 = vsel %vm2570, %v6299, 0
        %v6652 = vsel %vm2570, %v6300, 0
        %v6655 = vsel %vm2570, %v6301, 0
        %v6658 = vsel %vm2570, %v6302, 0
        %v6661 = vsel %vm2570, %v6303, 0
        %v6664 = vsel %vm2570, %v6304, 0
        %v6667 = vsel %vm2570, %v6305, 0
        %v6670 = vsel %vm2570, %v6306, 0
        %v6673 = vsel %vm2570, %v6307, 0
        %v6676 = vsel %vm2570, %v6308, 0
        %v6679 = vsel %vm2570, %v6309, 0
        %v6682 = vsel %vm2570, %v6310, 0
        %v6685 = vsel %vm2570, %v6311, 0
        %v6688 = vsel %vm2570, %v6312, 0
        %v6691 = vsel %vm2570, %v6313, 0
        %v6694 = vsel %vm2570, %v6314, 0
        %v6697 = vsel %vm2570, %v6315, 0
        %v6700 = vsel %vm2570, %v6316, 0
        %v6703 = vsel %vm2570, %v6317, 0
        %v6706 = vsel %vm2570, %v6318, 0
        %v6709 = vsel %vm2570, %v6319, 0
        %v6712 = vsel %vm2570, %v6320, 0
        %v6715 = vsel %vm2570, %v6321, 0
        %v6718 = vsel %vm2570, %v6322, 0
        %v6721 = vsel %vm2570, %v6323, 0
        %v6724 = vsel %vm2570, %v6324, 0
        %6726 = vmatpush.msra.mxu0 0.0
        %6727 = vmatpush.msra.mxu0 0.0
        %6728 = vmatpush.msra.mxu0 0.0
        %6729 = vmatpush.msra.mxu0 0.0
        %6730 = vmatpush.msra.mxu0 0.0
        %6731 = vmatpush.msra.mxu0 0.0
        %6732 = vmatpush.msra.mxu0 0.0
        %6733 = vmatpush.msra.mxu0 0.0
        %6734 = vmatpush.msra.mxu0 %v6629
        %6735 = vmatpush.msra.mxu0 %v6628
        %6736 = vmatpush.msra.mxu0 %v6627
        %6737 = vmatpush.msra.mxu0 %v6626
        %6738 = vmatpush.msra.mxu0 %v6625
        %6739 = vmatpush.msra.mxu0 %v6624
        %6740 = vmatpush.msra.mxu0 %v6623
        %6741 = vmatpush.msra.mxu0 %v6622
        %6742 = vmatmul.f32.gmra.mxu0 %v6631
        %v6743 = vpop.f32.mrf.mxu0
        %v6744 = vadd.f32 0.0, %v6743
        %6745 = vmatmul.f32.gmra.mxu0 %v6634
        %v6746 = vpop.f32.mrf.mxu0
        %v6747 = vadd.f32 0.0, %v6746
        %6748 = vmatmul.f32.gmra.mxu0 %v6637
        %v6749 = vpop.f32.mrf.mxu0
        %v6750 = vadd.f32 0.0, %v6749
        %6751 = vmatmul.f32.gmra.mxu0 %v6640
        %v6752 = vpop.f32.mrf.mxu0
        %v6753 = vadd.f32 0.0, %v6752
        %6754 = vmatmul.f32.gmra.mxu0 %v6643
        %v6755 = vpop.f32.mrf.mxu0
        %v6756 = vadd.f32 0.0, %v6755
        %6757 = vmatmul.f32.gmra.mxu0 %v6646
        %v6758 = vpop.f32.mrf.mxu0
        %v6759 = vadd.f32 0.0, %v6758
        %6760 = vmatmul.f32.gmra.mxu0 %v6649
        %v6761 = vpop.f32.mrf.mxu0
        %v6762 = vadd.f32 0.0, %v6761
        %6763 = vmatmul.f32.gmra.mxu0 %v6652
        %v6764 = vpop.f32.mrf.mxu0
        %v6765 = vadd.f32 0.0, %v6764
        %6766 = vmatmul.f32.gmra.mxu0 %v6655
        %v6767 = vpop.f32.mrf.mxu0
        %v6768 = vadd.f32 0.0, %v6767
        %6769 = vmatmul.f32.gmra.mxu0 %v6658
        %v6770 = vpop.f32.mrf.mxu0
        %v6771 = vadd.f32 0.0, %v6770
        %6772 = vmatmul.f32.gmra.mxu0 %v6661
        %v6773 = vpop.f32.mrf.mxu0
        %v6774 = vadd.f32 0.0, %v6773
        %6775 = vmatmul.f32.gmra.mxu0 %v6664
        %v6776 = vpop.f32.mrf.mxu0
        %v6777 = vadd.f32 0.0, %v6776
        %6778 = vmatmul.f32.gmra.mxu0 %v6667
        %v6779 = vpop.f32.mrf.mxu0
        %v6780 = vadd.f32 0.0, %v6779
        %6781 = vmatmul.f32.gmra.mxu0 %v6670
        %v6782 = vpop.f32.mrf.mxu0
        %v6783 = vadd.f32 0.0, %v6782
        %6784 = vmatmul.f32.gmra.mxu0 %v6673
        %v6785 = vpop.f32.mrf.mxu0
        %v6786 = vadd.f32 0.0, %v6785
        %6787 = vmatmul.f32.gmra.mxu0 %v6676
        %v6788 = vpop.f32.mrf.mxu0
        %v6789 = vadd.f32 0.0, %v6788
        %6790 = vmatmul.f32.gmra.mxu0 %v6679
        %v6791 = vpop.f32.mrf.mxu0
        %v6792 = vadd.f32 0.0, %v6791
        %6793 = vmatmul.f32.gmra.mxu0 %v6682
        %v6794 = vpop.f32.mrf.mxu0
        %v6795 = vadd.f32 0.0, %v6794
        %6796 = vmatmul.f32.gmra.mxu0 %v6685
        %v6797 = vpop.f32.mrf.mxu0
        %v6798 = vadd.f32 0.0, %v6797
        %6799 = vmatmul.f32.gmra.mxu0 %v6688
        %v6800 = vpop.f32.mrf.mxu0
        %v6801 = vadd.f32 0.0, %v6800
        %6802 = vmatmul.f32.gmra.mxu0 %v6691
        %v6803 = vpop.f32.mrf.mxu0
        %v6804 = vadd.f32 0.0, %v6803
        %6805 = vmatmul.f32.gmra.mxu0 %v6694
        %v6806 = vpop.f32.mrf.mxu0
        %v6807 = vadd.f32 0.0, %v6806
        %6808 = vmatmul.f32.gmra.mxu0 %v6697
        %v6809 = vpop.f32.mrf.mxu0
        %v6810 = vadd.f32 0.0, %v6809
        %6811 = vmatmul.f32.gmra.mxu0 %v6700
        %v6812 = vpop.f32.mrf.mxu0
        %v6813 = vadd.f32 0.0, %v6812
        %6814 = vmatmul.f32.gmra.mxu0 %v6703
        %v6815 = vpop.f32.mrf.mxu0
        %v6816 = vadd.f32 0.0, %v6815
        %6817 = vmatmul.f32.gmra.mxu0 %v6706
        %v6818 = vpop.f32.mrf.mxu0
        %v6819 = vadd.f32 0.0, %v6818
        %6820 = vmatmul.f32.gmra.mxu0 %v6709
        %v6821 = vpop.f32.mrf.mxu0
        %v6822 = vadd.f32 0.0, %v6821
        %6823 = vmatmul.f32.gmra.mxu0 %v6712
        %v6824 = vpop.f32.mrf.mxu0
        %v6825 = vadd.f32 0.0, %v6824
        %6826 = vmatmul.f32.gmra.mxu0 %v6715
        %v6827 = vpop.f32.mrf.mxu0
        %v6828 = vadd.f32 0.0, %v6827
        %6829 = vmatmul.f32.gmra.mxu0 %v6718
        %v6830 = vpop.f32.mrf.mxu0
        %v6831 = vadd.f32 0.0, %v6830
        %6832 = vmatmul.f32.gmra.mxu0 %v6721
        %v6833 = vpop.f32.mrf.mxu0
        %v6834 = vadd.f32 0.0, %v6833
        %6835 = vmatmul.f32.gmra.mxu0 %v6724
        %v6836 = vpop.f32.mrf.mxu0
        %v6837 = vadd.f32 0.0, %v6836
        %6838 = vdwg.mxu0
        %6839 = vst.msk [vmem:[%s294] sm:$0xff] %vm2570, %v6744
        %6840 = vst.msk [vmem:[%s294 + $0x8] sm:$0xff] %vm2570, %v6747
        %6841 = vst.msk [vmem:[%s294 + $0x10] sm:$0xff] %vm2570, %v6750
        %6842 = vst.msk [vmem:[%s294 + $0x18] sm:$0xff] %vm2570, %v6753
        %6843 = vst.msk [vmem:[%s294 + $0x20] sm:$0xff] %vm2570, %v6756
        %6844 = vst.msk [vmem:[%s294 + $0x28] sm:$0xff] %vm2570, %v6759
        %6845 = vst.msk [vmem:[%s294 + $0x30] sm:$0xff] %vm2570, %v6762
        %6846 = vst.msk [vmem:[%s294 + $0x38] sm:$0xff] %vm2570, %v6765
        %6847 = vst.msk [vmem:[%s294 + $0x40] sm:$0xff] %vm2570, %v6768
        %6848 = vst.msk [vmem:[%s294 + $0x48] sm:$0xff] %vm2570, %v6771
        %6849 = vst.msk [vmem:[%s294 + $0x50] sm:$0xff] %vm2570, %v6774
        %6850 = vst.msk [vmem:[%s294 + $0x58] sm:$0xff] %vm2570, %v6777
        %6851 = vst.msk [vmem:[%s294 + $0x60] sm:$0xff] %vm2570, %v6780
        %6852 = vst.msk [vmem:[%s294 + $0x68] sm:$0xff] %vm2570, %v6783
        %6853 = vst.msk [vmem:[%s294 + $0x70] sm:$0xff] %vm2570, %v6786
        %6854 = vst.msk [vmem:[%s294 + $0x78] sm:$0xff] %vm2570, %v6789
        %6855 = vst.msk [vmem:[%s294 + $0x80] sm:$0xff] %vm2570, %v6792
        %6856 = vst.msk [vmem:[%s294 + $0x88] sm:$0xff] %vm2570, %v6795
        %6857 = vst.msk [vmem:[%s294 + $0x90] sm:$0xff] %vm2570, %v6798
        %6858 = vst.msk [vmem:[%s294 + $0x98] sm:$0xff] %vm2570, %v6801
        %6859 = vst.msk [vmem:[%s294 + $0xa0] sm:$0xff] %vm2570, %v6804
        %6860 = vst.msk [vmem:[%s294 + $0xa8] sm:$0xff] %vm2570, %v6807
        %6861 = vst.msk [vmem:[%s294 + $0xb0] sm:$0xff] %vm2570, %v6810
        %6862 = vst.msk [vmem:[%s294 + $0xb8] sm:$0xff] %vm2570, %v6813
        %6863 = vst.msk [vmem:[%s294 + $0xc0] sm:$0xff] %vm2570, %v6816
        %6864 = vst.msk [vmem:[%s294 + $0xc8] sm:$0xff] %vm2570, %v6819
        %6865 = vst.msk [vmem:[%s294 + $0xd0] sm:$0xff] %vm2570, %v6822
        %6866 = vst.msk [vmem:[%s294 + $0xd8] sm:$0xff] %vm2570, %v6825
        %6867 = vst.msk [vmem:[%s294 + $0xe0] sm:$0xff] %vm2570, %v6828
        %6868 = vst.msk [vmem:[%s294 + $0xe8] sm:$0xff] %vm2570, %v6831
        %6869 = vst.msk [vmem:[%s294 + $0xf0] sm:$0xff] %vm2570, %v6834
        %6870 = vst.msk [vmem:[%s294 + $0xf8] sm:$0xff] %vm2570, %v6837
        %v6871 = vld [vmem:[#allocation2 + $0x388] sm:$0xff]
        %v6872 = vld [vmem:[#allocation2 + $0x390] sm:$0xff]
        %v6873 = vld [vmem:[#allocation2 + $0x398] sm:$0xff]
        %v6874 = vld [vmem:[#allocation2 + $0x3a0] sm:$0xff]
        %v6875 = vld [vmem:[#allocation2 + $0x3a8] sm:$0x1]
        %v6876 = vsel %vm517, %v1631, 0
        %6878 = vmatpush.msra.mxu0 0.0
        %6879 = vmatpush.msra.mxu0 0.0
        %6880 = vmatpush.msra.mxu0 0.0
        %6881 = vmatpush.msra.mxu0 0.0
        %6882 = vmatpush.msra.mxu0 0.0
        %6883 = vmatpush.msra.mxu0 0.0
        %6884 = vmatpush.msra.mxu0 0.0
        %6885 = vmatpush.msra.mxu0 0.0
        %6886 = vmatpush.msra.mxu0 0.0
        %6887 = vmatpush.msra.mxu0 0.0
        %6888 = vmatpush.msra.mxu0 0.0
        %6889 = vmatpush.msra.mxu0 0.0
        %6890 = vmatpush.msra.mxu0 %v6874
        %6891 = vmatpush.msra.mxu0 %v6873
        %6892 = vmatpush.msra.mxu0 %v6872
        %6893 = vmatpush.msra.mxu0 %v6871
        %6894 = vmatmul.f32.gmra.mxu0 %v6876
        %v6895 = vpop.f32.mrf.mxu0
        %v6896 = vadd.f32 %v6875, %v6895
        %6897 = vdwg.mxu0
        %v6898 = vmax.f32 %v6896, 0.0
        %v6899 = vld [vmem:[#allocation2 + $0x3b0] sm:$0xff]
        %v6900 = vld [vmem:[#allocation2 + $0x3b8] sm:$0xff]
        %v6901 = vld [vmem:[#allocation2 + $0x3c0] sm:$0xff]
        %v6902 = vld [vmem:[#allocation2 + $0x3c8] sm:$0xff]
        %v6903 = vld [vmem:[#allocation2 + $0x3d0] sm:$0xff]
        %v6904 = vld [vmem:[#allocation2 + $0x3d8] sm:$0xff]
        %v6905 = vld [vmem:[#allocation2 + $0x3e0] sm:$0xff]
        %v6906 = vld [vmem:[#allocation2 + $0x3e8] sm:$0xff]
        %v6907 = vld [vmem:[#allocation2 + $0x3f0] sm:$0x1]
        %v6909 = vsel %vm2570, %v6898, 0
        %6911 = vmatpush.msra.mxu0 0.0
        %6912 = vmatpush.msra.mxu0 0.0
        %6913 = vmatpush.msra.mxu0 0.0
        %6914 = vmatpush.msra.mxu0 0.0
        %6915 = vmatpush.msra.mxu0 0.0
        %6916 = vmatpush.msra.mxu0 0.0
        %6917 = vmatpush.msra.mxu0 0.0
        %6918 = vmatpush.msra.mxu0 0.0
        %6919 = vmatpush.msra.mxu0 %v6906
        %6920 = vmatpush.msra.mxu0 %v6905
        %6921 = vmatpush.msra.mxu0 %v6904
        %6922 = vmatpush.msra.mxu0 %v6903
        %6923 = vmatpush.msra.mxu0 %v6902
        %6924 = vmatpush.msra.mxu0 %v6901
        %6925 = vmatpush.msra.mxu0 %v6900
        %6926 = vmatpush.msra.mxu0 %v6899
        %6927 = vmatmul.f32.gmra.mxu0 %v6909
        %v6928 = vpop.f32.mrf.mxu0
        %v6929 = vadd.f32 %v6907, %v6928
        %6930 = vdwg.mxu0
        %v6931 = vmax.f32 %v6929, 0.0
        %v6932 = vld [vmem:[#allocation2 + $0x3f8] sm:$0xff]
        %v6933 = vld [vmem:[#allocation2 + $0x400] sm:$0xff]
        %v6934 = vld [vmem:[#allocation2 + $0x408] sm:$0xff]
        %v6935 = vld [vmem:[#allocation2 + $0x410] sm:$0xff]
        %v6936 = vld [vmem:[#allocation2 + $0x418] sm:$0xff]
        %v6937 = vld [vmem:[#allocation2 + $0x420] sm:$0xff]
        %v6938 = vld [vmem:[#allocation2 + $0x428] sm:$0xff]
        %v6939 = vld [vmem:[#allocation2 + $0x430] sm:$0xff]
        %v6940 = vld [vmem:[#allocation2 + $0x438] sm:$0x1]
        %v6942 = vsel %vm2570, %v6931, 0
        %6944 = vmatpush.msra.mxu0 0.0
        %6945 = vmatpush.msra.mxu0 0.0
        %6946 = vmatpush.msra.mxu0 0.0
        %6947 = vmatpush.msra.mxu0 0.0
        %6948 = vmatpush.msra.mxu0 0.0
        %6949 = vmatpush.msra.mxu0 0.0
        %6950 = vmatpush.msra.mxu0 0.0
        %6951 = vmatpush.msra.mxu0 0.0
        %6952 = vmatpush.msra.mxu0 %v6939
        %6953 = vmatpush.msra.mxu0 %v6938
        %6954 = vmatpush.msra.mxu0 %v6937
        %6955 = vmatpush.msra.mxu0 %v6936
        %6956 = vmatpush.msra.mxu0 %v6935
        %6957 = vmatpush.msra.mxu0 %v6934
        %6958 = vmatpush.msra.mxu0 %v6933
        %6959 = vmatpush.msra.mxu0 %v6932
        %6960 = vmatmul.f32.gmra.mxu0 %v6942
        %v6961 = vpop.f32.mrf.mxu0
        %v6962 = vadd.f32 %v6940, %v6961
        %6963 = vdwg.mxu0
        %vm6964 = vcmask 24576
        %6965 = vst.msk [vmem:[%s297] sm:$0x1] %vm6964, %v6962
        %p6966 = scmp.lt.s32.totalorder %s19, 1
        %s6967 = scalar_select %p6966, %s19, 1
        %s6968 = smul.addr %s6967, 32
        %s6969 = smul.addr %s6968, 8
        %s6970 = scalar_lea.vmem %s5, %s6969
        %p6971 = scmp.lt.s32.totalorder %s19, 1
        %s6972 = scalar_select %p6971, %s19, 1
        %s6973 = scalar_lea.vmem %s6, %s6972
        // Predicated region
        $region45: #{forward.1} parent=39 // pred_check
          %p6974 = pneg %p152
        $region46: #{forward.1} parent=39 // pred_check_branch
          %6976 = sbr.rel (%p6974) target = $region48
        $region47: #{forward.1} parent=39 // pred_region
          _
        $region48: #{forward.1} parent=39 // pred_fallthru
          _
        // Predicated region
        $region49: #{forward.1} parent=39 // pred_check
          %p6977 = pneg %p178
        $region50: #{forward.1} parent=39 // pred_check_branch
          %6979 = sbr.rel (%p6977) target = $region52
        $region51: #{forward.1} parent=39 // pred_region
          _
        $region52: #{forward.1} parent=39 // pred_fallthru
          _
      $region40: #{forward.1} parent=5 // pred_fallthru
        _
      %p6980 = scmp.le.s32.totalorder 2, %s14
      // Predicated region
      $region53: #{forward.1} parent=5 // pred_check
        %p6981 = pneg %p6980
      $region54: #{forward.1} parent=5 // pred_check_branch
        %6983 = sbr.rel (%p6981) target = $region56
      $region55: #{forward.1} parent=5 // pred_region
        %s6984 = ssub.s32 %s14, 2
        // Predicated region
        $region57: #{forward.1} parent=55 // pred_check
          %p6985 = pneg %p158
        $region58: #{forward.1} parent=55 // pred_check_branch
          %6987 = sbr.rel (%p6985) target = $region60
        $region59: #{forward.1} parent=55 // pred_region
          %p6988 = scmp.lt.s32.totalorder %s20, 1
          %s6989 = scalar_select %p6988, %s20, 1
          %s6990 = smul.addr %s6989, 32
          %s6991 = smul.addr %s6990, 8
          %s6992 = scalar_lea.vmem %s5, %s6991
        $region60: #{forward.1} parent=55 // pred_fallthru
          _
        // Predicated region
        $region61: #{forward.1} parent=55 // pred_check
          %p6993 = pneg %p184
        $region62: #{forward.1} parent=55 // pred_check_branch
          %6995 = sbr.rel (%p6993) target = $region64
        $region63: #{forward.1} parent=55 // pred_region
          %p6996 = scmp.lt.s32.totalorder %s20, 1
          %s6997 = scalar_select %p6996, %s20, 1
          %s6998 = scalar_lea.vmem %s6, %s6997
        $region64: #{forward.1} parent=55 // pred_fallthru
          _
      $region56: #{forward.1} parent=5 // pred_fallthru
        _
    $region6: #{forward.1} parent=1 // loop_footer
      %s18 = sadd.s32 1, %s14
    $region7: #{forward.1} parent=1 // loop_footer_branch
      %13 = sbr.rel target = $region3
    $region8: #{forward.1} parent=1 // loop_exit
      _
    %6999 = vsyncpa [#allocation3], 1
    %s7000 = scalar_lea.sflag [#allocation3], 1
    %7001 = vsyncpa %s7000, 1

</llo_original>
